<compile_context>
chip_gen: v7x
topology: tpu7x:2x2x1
jax: 0.10.0
libtpu: 0.0.40
codegen_flags: <defaults>
</compile_context>

<pallas_src>
import jax
import jax.numpy as jnp
from jax.experimental import pallas as pl
from jax.experimental.pallas import tpu as pltpu


# ----------------------------- Pallas kernels -----------------------------

def _conv1_pool_drop_kernel(p_ref, w_ref, b_ref, m_ref, o_ref):
    # p_ref: (4, TM, 49) four 2x2-maxpool phases of conv1 im2col patches
    # w_ref: (49, 16), b_ref: (1, 16), m_ref: (TM, 16) scaled dropout keep mask
    w = w_ref[...]
    b = b_ref[...]
    y0 = jnp.maximum(jnp.dot(p_ref[0], w, preferred_element_type=jnp.float32) + b, 0.0)
    y1 = jnp.maximum(jnp.dot(p_ref[1], w, preferred_element_type=jnp.float32) + b, 0.0)
    y2 = jnp.maximum(jnp.dot(p_ref[2], w, preferred_element_type=jnp.float32) + b, 0.0)
    y3 = jnp.maximum(jnp.dot(p_ref[3], w, preferred_element_type=jnp.float32) + b, 0.0)
    pooled = jnp.maximum(jnp.maximum(y0, y1), jnp.maximum(y2, y3))  # MaxPool2d(2)
    o_ref[...] = pooled * m_ref[...]                                # dropout(p=0.1)


def _conv2_relu_l2norm_kernel(p_ref, w_ref, b_ref, o_ref):
    # conv2 as matmul + ReLU + F.normalize(p=2, dim=channels, eps=1e-12)
    y = jnp.dot(p_ref[...], w_ref[...], preferred_element_type=jnp.float32) + b_ref[...]
    y = jnp.maximum(y, 0.0)
    nrm = jnp.sqrt(jnp.sum(y * y, axis=-1, keepdims=True))
    o_ref[...] = y / jnp.maximum(nrm, 1e-12)


def _fc_head_kernel(x_ref, w1_ref, b1_ref, m_ref, w2_ref, b2_ref, o_ref):
    # fc1 + ReLU + dropout(p=0.4) + fc2, fully fused
    h = jnp.dot(x_ref[...], w1_ref[...], preferred_element_type=jnp.float32) + b1_ref[...]
    h = jnp.maximum(h, 0.0) * m_ref[...]
    o_ref[...] = jnp.dot(h, w2_ref[...], preferred_element_type=jnp.float32) + b2_ref[...]


# ----------------------------- kernel wrappers -----------------------------

_VMEM_LIMIT = 64 * 1024 * 1024


def conv1_pool_dropout(phases, w, b, keep, grid_m=2):
    # phases: (4, M, K); keep: (M, C) already scaled by 1/(1-p)
    _, M, K = phases.shape
    C = w.shape[1]
    assert M % grid_m == 0
    tm = M // grid_m
    return pl.pallas_call(
        _conv1_pool_drop_kernel,
        out_shape=jax.ShapeDtypeStruct((M, C), jnp.float32),
        grid=(grid_m,),
        in_specs=[
            pl.BlockSpec((4, tm, K), lambda i: (0, i, 0)),
            pl.BlockSpec((K, C), lambda i: (0, 0)),
            pl.BlockSpec((1, C), lambda i: (0, 0)),
            pl.BlockSpec((tm, C), lambda i: (i, 0)),
        ],
        out_specs=pl.BlockSpec((tm, C), lambda i: (i, 0)),
        compiler_params=pltpu.CompilerParams(
            dimension_semantics=("parallel",),
            vmem_limit_bytes=_VMEM_LIMIT),
    )(phases, w, b, keep)


def conv2_relu_l2norm(p, w, b):
    M, _ = p.shape
    C = w.shape[1]
    return pl.pallas_call(
        _conv2_relu_l2norm_kernel,
        out_shape=jax.ShapeDtypeStruct((M, C), jnp.float32),
        compiler_params=pltpu.CompilerParams(vmem_limit_bytes=_VMEM_LIMIT),
    )(p, w, b)


def fc_head(x, w1, b1, keep, w2, b2):
    N = x.shape[0]
    return pl.pallas_call(
        _fc_head_kernel,
        out_shape=jax.ShapeDtypeStruct((N, w2.shape[1]), jnp.float32),
        compiler_params=pltpu.CompilerParams(vmem_limit_bytes=_VMEM_LIMIT),
    )(x, w1, b1, keep, w2, b2)


# ----------------------------- glue (layout only) -----------------------------

def _conv1_pool_phase_patches(x, k=7, s=2):
    # x: (N, H, W) single-channel input.  Returns (4, N*PH*PW, k*k) im2col
    # patches, one slab per 2x2-maxpool phase (feature order kh, kw).  Only
    # the conv positions that survive the pool are extracted.
    N, H, W = x.shape
    OH = (H - k) // s + 1
    OW = (W - k) // s + 1
    PH, PW = OH // 2, OW // 2
    phases = []
    for a in (0, 1):
        for b in (0, 1):
            cols = []
            for kh in range(k):
                for kw in range(k):
                    r0 = s * a + kh
                    c0 = s * b + kw
                    cols.append(x[:, r0: r0 + 2 * s * (PH - 1) + 1: 2 * s,
                                     c0: c0 + 2 * s * (PW - 1) + 1: 2 * s])
            phases.append(jnp.stack(cols, axis=-1).reshape(N * PH * PW, k * k))
    return jnp.stack(phases, axis=0), PH, PW


def _im2col(y, k, s):
    # y: (N, H, W, C) -> (N*OH*OW, k*k*C), feature order (kh, kw, cin)
    N, H, W, C = y.shape
    OH = (H - k) // s + 1
    OW = (W - k) // s + 1
    cols = []
    for kh in range(k):
        for kw in range(k):
            cols.append(y[:, kh: kh + s * (OH - 1) + 1: s,
                            kw: kw + s * (OW - 1) + 1: s, :])
    return jnp.concatenate(cols, axis=-1).reshape(N * OH * OW, k * k * C), OH, OW


def init_params(key):
    # PyTorch-default-style uniform(-1/sqrt(fan_in), +1/sqrt(fan_in)) init,
    # generated in torch layouts and converted ONCE to kernel-ready layouts.
    ks = jax.random.split(key, 8)

    def u(k, shape, fan_in):
        b = 1.0 / float(fan_in) ** 0.5
        return jax.random.uniform(k, shape, jnp.float32, -b, b)

    w1 = u(ks[0], (16, 1, 7, 7), 1 * 7 * 7)             # conv1.weight
    b1 = u(ks[1], (16,), 1 * 7 * 7)
    w2 = u(ks[2], (32, 16, 5, 5), 16 * 5 * 5)           # conv2.weight
    b2 = u(ks[3], (32,), 16 * 5 * 5)
    wf1 = u(ks[4], (128, 13 * 22 * 32), 13 * 22 * 32)   # fc1.weight
    bf1 = u(ks[5], (128,), 13 * 22 * 32)
    wf2 = u(ks[6], (91, 128), 128)                      # fc2.weight
    bf2 = u(ks[7], (91,), 128)

    # conv weights -> (k*k*cin, cout) matmul layout (feature order kh, kw, cin)
    w1m = jnp.transpose(w1, (2, 3, 1, 0)).reshape(7 * 7 * 1, 16)
    w2m = jnp.transpose(w2, (2, 3, 1, 0)).reshape(5 * 5 * 16, 32)
    # fc1 columns: torch flatten order is (c, h, w); our activations are
    # (h, w, c) -> permute columns once so the forward needs no transpose.
    wf1m = jnp.transpose(wf1.reshape(128, 32, 13, 22), (0, 2, 3, 1)).reshape(128, -1).T
    return dict(
        w1=w1m, b1=b1.reshape(1, 16),
        w2=w2m, b2=b2.reshape(1, 32),
        wf1=wf1m, bf1=bf1.reshape(1, 128),
        wf2=wf2.T, bf2=bf2.reshape(1, 91),
    )


def standard_cnn_forward(params, x_nchw, dropout_key):
    # x_nchw: (N, 1, 128, 200); spatial size implied by fc1 = Linear(13*22*32, 128)
    N = x_nchw.shape[0]
    x = x_nchw[:, 0, :, :].astype(jnp.float32)                 # (N, 128, 200)

    # F.dropout defaults to training=True in the reference module -> active.
    # TODO(synk): dropout masks come from jax.random (TPU hardware PRNG is not
    # available in interpret mode); semantics match, the bitstream does not.
    k1, k2 = jax.random.split(dropout_key)

    # ---- stage 1: conv1 (k=7,s=2) + ReLU + MaxPool2d(2) + dropout(0.1) ----
    phases, PH, PW = _conv1_pool_phase_patches(x, k=7, s=2)    # (4, N*30*48, 49)
    keep1 = (jax.random.bernoulli(k1, 0.9, (N * PH * PW, 16))
             .astype(jnp.float32) * (1.0 / 0.9))
    y1 = conv1_pool_dropout(phases, params["w1"], params["b1"], keep1)
    y1 = y1.reshape(N, PH, PW, 16)                             # (N, 30, 48, 16)

    # ---- stage 2: conv2 (k=5,s=2) + ReLU + F.normalize(dim=channels) ----
    p2, OH2, OW2 = _im2col(y1, 5, 2)                           # (N*13*22, 400)
    y2 = conv2_relu_l2norm(p2, params["w2"], params["b2"])     # (N*13*22, 32)

    # flatten(1): activations are (n, h, w, c); fc1 columns were permuted at
    # init to the same order, so a plain (free) reshape replaces the transpose.
    flat = y2.reshape(N, OH2 * OW2 * 32)                       # (N, 9152)

    # ---- stage 3: fc1 + ReLU + dropout(0.4) + fc2 (single fused kernel) ----
    keep2 = (jax.random.bernoulli(k2, 0.6, (N, 128))
             .astype(jnp.float32) * (1.0 / 0.6))
    return fc_head(flat, params["wf1"], params["bf1"], keep2,
                   params["wf2"], params["bf2"])               # (N, 91)


if __name__ == "__main__":
    key = jax.random.PRNGKey(0)
    pkey, xkey, dkey = jax.random.split(key, 3)
    params = init_params(pkey)

    # Smallest input consistent with fc1 = Linear(13*22*32, 128): (N, 1, 128, 200)
    x = jax.random.normal(xkey, (2, 1, 128, 200), dtype=jnp.float32)

    out = standard_cnn_forward(params, x, dkey)
    out = jax.block_until_ready(out)

    assert out.shape == (2, 91), out.shape
    assert bool(jnp.all(jnp.isfinite(out)))
    print("KERNEL_OK")
</pallas_src>

<mosaic_0001>
module attributes {stable_mosaic.version = 11 : i64} {
  func.func @_conv1_pool_drop_kernel(%arg0: i32, %arg1: memref<4x1440x49xf32, #tpu.memory_space<vmem>>, %arg2: memref<49x16xf32, #tpu.memory_space<vmem>>, %arg3: memref<1x16xf32, #tpu.memory_space<vmem>>, %arg4: memref<1440x16xf32, #tpu.memory_space<vmem>>, %arg5: memref<1440x16xf32, #tpu.memory_space<vmem>>) attributes {dimension_semantics = [#tpu.dimension_semantics<parallel>], iteration_bounds = array<i64: 2>, scalar_prefetch = 0 : i64, scratch_operands = 0 : i64, tpu.core_type = #tpu.core_type<tc>, window_params = [{transform_indices = @transform_0, window_bounds = array<i64: 4, 1440, 49>}, {pipeline_mode = #tpu.pipeline_mode<synchronous>, transform_indices = @transform_1, window_bounds = array<i64: 49, 16>}, {pipeline_mode = #tpu.pipeline_mode<synchronous>, transform_indices = @transform_2, window_bounds = array<i64: 1, 16>}, {transform_indices = @transform_3, window_bounds = array<i64: 1440, 16>}, {transform_indices = @transform_4, window_bounds = array<i64: 1440, 16>}]} {
    %c0 = arith.constant 0 : index
    %c0_0 = arith.constant 0 : index
    %0 = vector.load %arg2[%c0, %c0_0] : memref<49x16xf32, #tpu.memory_space<vmem>>, vector<49x16xf32>
    %c0_1 = arith.constant 0 : index
    %c0_2 = arith.constant 0 : index
    %1 = vector.load %arg3[%c0_1, %c0_2] : memref<1x16xf32, #tpu.memory_space<vmem>>, vector<1x16xf32>
    %c0_3 = arith.constant 0 : index
    %c0_4 = arith.constant 0 : index
    %c0_5 = arith.constant 0 : index
    %2 = vector.load %arg1[%c0_3, %c0_4, %c0_5] : memref<4x1440x49xf32, #tpu.memory_space<vmem>>, vector<1x1440x49xf32>
    %3 = vector.shape_cast %2 : vector<1x1440x49xf32> to vector<1440x49xf32>
    %cst = arith.constant dense<0.000000e+00> : vector<1440x16xf32>
    %4 = tpu.matmul %3, %0, %cst {dimension_numbers = #tpu.dot_dimension_numbers<[1], [0], [0], [1], [0, 0, 1, 1], [], []>} : vector<1440x49xf32>, vector<49x16xf32>, vector<1440x16xf32> -> vector<1440x16xf32>
    %5 = vector.broadcast %1 : vector<1x16xf32> to vector<1440x16xf32>
    %6 = arith.addf %4, %5 : vector<1440x16xf32>
    %cst_6 = arith.constant 0.000000e+00 : f32
    %7 = vector.broadcast %cst_6 : f32 to vector<1440x16xf32>
    %8 = arith.maximumf %6, %7 : vector<1440x16xf32>
    %c1 = arith.constant 1 : index
    %c0_7 = arith.constant 0 : index
    %c0_8 = arith.constant 0 : index
    %9 = vector.load %arg1[%c1, %c0_7, %c0_8] : memref<4x1440x49xf32, #tpu.memory_space<vmem>>, vector<1x1440x49xf32>
    %10 = vector.shape_cast %9 : vector<1x1440x49xf32> to vector<1440x49xf32>
    %cst_9 = arith.constant dense<0.000000e+00> : vector<1440x16xf32>
    %11 = tpu.matmul %10, %0, %cst_9 {dimension_numbers = #tpu.dot_dimension_numbers<[1], [0], [0], [1], [0, 0, 1, 1], [], []>} : vector<1440x49xf32>, vector<49x16xf32>, vector<1440x16xf32> -> vector<1440x16xf32>
    %12 = vector.broadcast %1 : vector<1x16xf32> to vector<1440x16xf32>
    %13 = arith.addf %11, %12 : vector<1440x16xf32>
    %cst_10 = arith.constant 0.000000e+00 : f32
    %14 = vector.broadcast %cst_10 : f32 to vector<1440x16xf32>
    %15 = arith.maximumf %13, %14 : vector<1440x16xf32>
    %c2 = arith.constant 2 : index
    %c0_11 = arith.constant 0 : index
    %c0_12 = arith.constant 0 : index
    %16 = vector.load %arg1[%c2, %c0_11, %c0_12] : memref<4x1440x49xf32, #tpu.memory_space<vmem>>, vector<1x1440x49xf32>
    %17 = vector.shape_cast %16 : vector<1x1440x49xf32> to vector<1440x49xf32>
    %cst_13 = arith.constant dense<0.000000e+00> : vector<1440x16xf32>
    %18 = tpu.matmul %17, %0, %cst_13 {dimension_numbers = #tpu.dot_dimension_numbers<[1], [0], [0], [1], [0, 0, 1, 1], [], []>} : vector<1440x49xf32>, vector<49x16xf32>, vector<1440x16xf32> -> vector<1440x16xf32>
    %19 = vector.broadcast %1 : vector<1x16xf32> to vector<1440x16xf32>
    %20 = arith.addf %18, %19 : vector<1440x16xf32>
    %cst_14 = arith.constant 0.000000e+00 : f32
    %21 = vector.broadcast %cst_14 : f32 to vector<1440x16xf32>
    %22 = arith.maximumf %20, %21 : vector<1440x16xf32>
    %c3 = arith.constant 3 : index
    %c0_15 = arith.constant 0 : index
    %c0_16 = arith.constant 0 : index
    %23 = vector.load %arg1[%c3, %c0_15, %c0_16] : memref<4x1440x49xf32, #tpu.memory_space<vmem>>, vector<1x1440x49xf32>
    %24 = vector.shape_cast %23 : vector<1x1440x49xf32> to vector<1440x49xf32>
    %cst_17 = arith.constant dense<0.000000e+00> : vector<1440x16xf32>
    %25 = tpu.matmul %24, %0, %cst_17 {dimension_numbers = #tpu.dot_dimension_numbers<[1], [0], [0], [1], [0, 0, 1, 1], [], []>} : vector<1440x49xf32>, vector<49x16xf32>, vector<1440x16xf32> -> vector<1440x16xf32>
    %26 = vector.broadcast %1 : vector<1x16xf32> to vector<1440x16xf32>
    %27 = arith.addf %25, %26 : vector<1440x16xf32>
    %cst_18 = arith.constant 0.000000e+00 : f32
    %28 = vector.broadcast %cst_18 : f32 to vector<1440x16xf32>
    %29 = arith.maximumf %27, %28 : vector<1440x16xf32>
    %30 = arith.maximumf %8, %15 : vector<1440x16xf32>
    %31 = arith.maximumf %22, %29 : vector<1440x16xf32>
    %32 = arith.maximumf %30, %31 : vector<1440x16xf32>
    %c0_19 = arith.constant 0 : index
    %c0_20 = arith.constant 0 : index
    %33 = vector.load %arg4[%c0_19, %c0_20] : memref<1440x16xf32, #tpu.memory_space<vmem>>, vector<1440x16xf32>
    %34 = arith.mulf %32, %33 : vector<1440x16xf32>
    %c0_21 = arith.constant 0 : index
    %c0_22 = arith.constant 0 : index
    %35 = vector.load %arg5[%c0_21, %c0_22] : memref<1440x16xf32, #tpu.memory_space<vmem>>, vector<1440x16xf32>
    tpu.vector_store %arg5[%c0_21, %c0_22], %34 {strides = array<i32>} : memref<1440x16xf32, #tpu.memory_space<vmem>>, vector<1440x16xf32>,
    return
  }
  func.func @transform_0(%arg0: i32) -> (i32, i32, i32) {
    %c0_i32 = arith.constant 0 : i32
    %c0_i32_0 = arith.constant 0 : i32
    %c0_i32_1 = arith.constant 0 : i32
    return %c0_i32, %arg0, %c0_i32_0 : i32, i32, i32
  }
  func.func @transform_1(%arg0: i32) -> (i32, i32) {
    %c0_i32 = arith.constant 0 : i32
    %c0_i32_0 = arith.constant 0 : i32
    %c0_i32_1 = arith.constant 0 : i32
    return %c0_i32, %c0_i32_0 : i32, i32
  }
  func.func @transform_2(%arg0: i32) -> (i32, i32) {
    %c0_i32 = arith.constant 0 : i32
    %c0_i32_0 = arith.constant 0 : i32
    %c0_i32_1 = arith.constant 0 : i32
    return %c0_i32, %c0_i32_0 : i32, i32
  }
  func.func @transform_3(%arg0: i32) -> (i32, i32) {
    %c0_i32 = arith.constant 0 : i32
    %c0_i32_0 = arith.constant 0 : i32
    return %arg0, %c0_i32 : i32, i32
  }
  func.func @transform_4(%arg0: i32) -> (i32, i32) {
    %c0_i32 = arith.constant 0 : i32
    %c0_i32_0 = arith.constant 0 : i32
    return %arg0, %c0_i32 : i32, i32
  }
}

</mosaic_0001>

<llo_original>
// kernel: tpu_custom_call.1
$region0: #{tpu_custom_call.1}
  #allocation0 [shape = 'u32[]', space=smem, size = 0x4, offset = 0x4, fixed_abs, tag = 'smem constant byte address 0x4 - core index']
  #allocation1 [shape = 'u32[144,128]{1,0:T(1,128)}', space=vmem, size = 0x12000, scoped, tag = 'internal scratch']
  #allocation11 [shape = 's32[]', space=sflag, size = 0x4, offset = 0, fixed_abs, tag = 'sflag constant byte address 0x0 - dummy sync flag']
  %s0 = inlined_call_operand.hbm [shape: f32[4,2880,49], index: 0, kind: input, shape index: {}]
  %s1 = inlined_call_operand.hbm [shape: f32[49,16], index: 1, kind: input, shape index: {}]
  %s2 = inlined_call_operand.hbm [shape: f32[1,16], index: 2, kind: input, shape index: {}]
  %s3 = inlined_call_operand.hbm [shape: f32[2880,16], index: 3, kind: input, shape index: {}]
  %s4 = inlined_call_operand.hbm [shape: f32[2880,16], index: 4, kind: output, shape index: {}]
  %s5 = sld [smem:[#allocation0]]
  $region65: #{tpu_custom_call.1} parent=0
    _
  %s7 = ssub.s32 1, %s5
  %s8 = scalar_select 0, %s7, %s5
  $region1: #{tpu_custom_call.1} parent=0
    #allocation2 [shape = 'u8[5898240]{0}', space=vmem, size = 0x5a0000, scoped, tag = 'input window, operand 0']
    #allocation3 [shape = 's32[2]{0}', space=sflag, size = 0x8, scoped, tag = 'scoped memory for tpu_custom_call.1']
    #allocation4 [shape = 's32[2]{0}', space=sflag, size = 0x8, scoped, tag = 'scoped memory for tpu_custom_call.1']
    #allocation5 [shape = 'u8[28672]{0}', space=vmem, size = 0x7000, scoped, tag = 'input window, operand 1, single buffered']
    #allocation6 [shape = 's32[1]{0}', space=sflag, size = 0x4, scoped, tag = 'scoped memory for tpu_custom_call.1']
    #allocation7 [shape = 'u8[512]{0}', space=vmem, size = 0x400, scoped, tag = 'input window, operand 2, single buffered']
    #allocation8 [shape = 'u8[1474560]{0}', space=vmem, size = 0x168000, scoped, tag = 'input window, operand 3']
    #allocation9 [shape = 's32[2]{0}', space=sflag, size = 0x8, scoped, tag = 'scoped memory for tpu_custom_call.1']
    #allocation10 [shape = 'u8[1474560]{0}', space=vmem, size = 0x168000, scoped, tag = 'output window, operand 0']
    %9 = vsyncpa [#allocation3], 0
    %s10 = scalar_lea.sflag [#allocation3], 1
    %11 = vsyncpa %s10, 0
    %12 = vsyncpa [#allocation6], 0
    %13 = vsyncpa [#allocation9], 0
    %s14 = scalar_lea.sflag [#allocation9], 1
    %15 = vsyncpa %s14, 0
    %16 = vsyncpa [#allocation4], 0
    %s17 = scalar_lea.sflag [#allocation4], 1
    %18 = vsyncpa %s17, 0
    loop: start=0, step=1, limit=4
    $region2: #{tpu_custom_call.1} parent=1 // loop_pre_header
      _
    $region3: #{tpu_custom_call.1} parent=1 // loop_header
      %s20 = sphi 0, %s24
      %p21 = scmp.ge.s32.totalorder %s20, 4
      %s30 = sphi 0, %s32
      %s33 = sphi 0, %s30
      %s34 = sphi 0, %s33
      %s50 = sphi 0, %s34
      %s54 = sphi 0, %s54
      %s56 = sphi 0, %s54
      %s57 = sphi 0, %s56
      %s71 = sphi 0, %s57
      %s75 = sphi 0, %s75
      %s77 = sphi 0, %s75
      %s78 = sphi 0, %s77
      %s92 = sphi 0, %s78
      %s98 = sphi 0, %s100
      %s101 = sphi 0, %s98
      %s102 = sphi 0, %s101
      %s118 = sphi 0, %s102
      %s124 = sphi 0, %s126
      %s127 = sphi 0, %s124
      %s128 = sphi 0, %s127
      %s144 = sphi 0, %s128
    $region4: #{tpu_custom_call.1} parent=1 // loop_header_branch
      %23 = sbr.rel (%p21) target = $region8
    $region5: #{tpu_custom_call.1} parent=1 // loop_body
      %s25 = ssub.s32 %s20, 1
      %s26 = ssub.s32 %s20, 2
      %s27 = sadd.s32 %s20, 1
      %s28 = ssub.s32 %s20, %s27
      %p29 = scmp.eq.s32.totalorder %s28, 0
      %s31 = sadd.s32 %s30, 1
      %s32 = scalar_select %p29, %s30, %s31
      %p35 = pneg %p29
      %p36 = scmp.eq.s32.totalorder %s20, 1
      %p37 = por %p35, %p36
      %p38 = scmp.ne.s32.totalorder %s30, %s33
      %p39 = scmp.eq.s32.totalorder %s20, 0
      %p40 = por %p38, %p39
      %p41 = scmp.ne.s32.totalorder %s30, %s33
      %p42 = scmp.eq.s32.totalorder %s25, 1
      %p43 = por %p41, %p42
      %p44 = scmp.ne.s32.totalorder %s33, %s34
      %p45 = scmp.eq.s32.totalorder %s25, 0
      %p46 = por %p44, %p45
      %p47 = scmp.ne.s32.totalorder %s33, %s34
      %p48 = scmp.eq.s32.totalorder %s26, 1
      %p49 = por %p47, %p48
      %p51 = scmp.ne.s32.totalorder %s34, %s50
      %p52 = scmp.eq.s32.totalorder %s26, 0
      %p53 = por %p51, %p52
      %s55 = sadd.s32 %s54, 1
      %p58 = scmp.eq.s32.totalorder %s20, 1
      %p59 = scmp.ne.s32.totalorder %s54, %s56
      %p60 = scmp.eq.s32.totalorder %s20, 0
      %p61 = por %p59, %p60
      %p62 = scmp.ne.s32.totalorder %s54, %s56
      %p63 = scmp.eq.s32.totalorder %s25, 1
      %p64 = por %p62, %p63
      %p65 = scmp.ne.s32.totalorder %s56, %s57
      %p66 = scmp.eq.s32.totalorder %s25, 0
      %p67 = por %p65, %p66
      %p68 = scmp.ne.s32.totalorder %s56, %s57
      %p69 = scmp.eq.s32.totalorder %s26, 1
      %p70 = por %p68, %p69
      %p72 = scmp.ne.s32.totalorder %s57, %s71
      %p73 = scmp.eq.s32.totalorder %s26, 0
      %p74 = por %p72, %p73
      %s76 = sadd.s32 %s75, 1
      %p79 = scmp.eq.s32.totalorder %s20, 1
      %p80 = scmp.ne.s32.totalorder %s75, %s77
      %p81 = scmp.eq.s32.totalorder %s20, 0
      %p82 = por %p80, %p81
      %p83 = scmp.ne.s32.totalorder %s75, %s77
      %p84 = scmp.eq.s32.totalorder %s25, 1
      %p85 = por %p83, %p84
      %p86 = scmp.ne.s32.totalorder %s77, %s78
      %p87 = scmp.eq.s32.totalorder %s25, 0
      %p88 = por %p86, %p87
      %p89 = scmp.ne.s32.totalorder %s77, %s78
      %p90 = scmp.eq.s32.totalorder %s26, 1
      %p91 = por %p89, %p90
      %p93 = scmp.ne.s32.totalorder %s78, %s92
      %p94 = scmp.eq.s32.totalorder %s26, 0
      %p95 = por %p93, %p94
      %s96 = ssub.s32 %s20, %s27
      %p97 = scmp.eq.s32.totalorder %s96, 0
      %s99 = sadd.s32 %s98, 1
      %s100 = scalar_select %p97, %s98, %s99
      %p103 = pneg %p97
      %p104 = scmp.eq.s32.totalorder %s20, 1
      %p105 = por %p103, %p104
      %p106 = scmp.ne.s32.totalorder %s98, %s101
      %p107 = scmp.eq.s32.totalorder %s20, 0
      %p108 = por %p106, %p107
      %p109 = scmp.ne.s32.totalorder %s98, %s101
      %p110 = scmp.eq.s32.totalorder %s25, 1
      %p111 = por %p109, %p110
      %p112 = scmp.ne.s32.totalorder %s101, %s102
      %p113 = scmp.eq.s32.totalorder %s25, 0
      %p114 = por %p112, %p113
      %p115 = scmp.ne.s32.totalorder %s101, %s102
      %p116 = scmp.eq.s32.totalorder %s26, 1
      %p117 = por %p115, %p116
      %p119 = scmp.ne.s32.totalorder %s102, %s118
      %p120 = scmp.eq.s32.totalorder %s26, 0
      %p121 = por %p119, %p120
      %s122 = ssub.s32 %s20, %s27
      %p123 = scmp.eq.s32.totalorder %s122, 0
      %s125 = sadd.s32 %s124, 1
      %s126 = scalar_select %p123, %s124, %s125
      %p129 = pneg %p123
      %p130 = scmp.eq.s32.totalorder %s20, 1
      %p131 = por %p129, %p130
      %p132 = scmp.ne.s32.totalorder %s124, %s127
      %p133 = scmp.eq.s32.totalorder %s20, 0
      %p134 = por %p132, %p133
      %p135 = scmp.ne.s32.totalorder %s124, %s127
      %p136 = scmp.eq.s32.totalorder %s25, 1
      %p137 = por %p135, %p136
      %p138 = scmp.ne.s32.totalorder %s127, %s128
      %p139 = scmp.eq.s32.totalorder %s25, 0
      %p140 = por %p138, %p139
      %p141 = scmp.ne.s32.totalorder %s127, %s128
      %p142 = scmp.eq.s32.totalorder %s26, 1
      %p143 = por %p141, %p142
      %p145 = scmp.ne.s32.totalorder %s128, %s144
      %p146 = scmp.eq.s32.totalorder %s26, 0
      %p147 = por %p145, %p146
      %p148 = scmp.le.s32.totalorder 1, %s20
      %p149 = scmp.lt.s32.totalorder %s20, 3
      %p150 = pnand %p148, %p149
      %p151 = pneg %p150
      // Predicated region
      $region9: #{tpu_custom_call.1} parent=5 // pred_check
        _
      $region10: #{tpu_custom_call.1} parent=5 // pred_check_branch
        %153 = sbr.rel (%p150) target = $region12
      $region11: #{tpu_custom_call.1} parent=5 // pred_region
        %s154 = ssub.s32 %s20, 1
        // Predicated region
        $region13: #{tpu_custom_call.1} parent=11 // pred_check
          %p155 = pneg %p67
        $region14: #{tpu_custom_call.1} parent=11 // pred_check_branch
          %157 = sbr.rel (%p155) target = $region16
        $region15: #{tpu_custom_call.1} parent=11 // pred_region
          %s159 = ssub.s32 896, 896
          %160 = vsyncadd [#allocation6], %s159
          %s161 = sshll.u32 [#allocation5], 4
          %s162 = int_to_ptr.vmem [resolvable:$true] %s161
          %167 = dma.hbm_to_vmem [thread:$0]  %s1, 896, %s162, [#allocation6], 128, 128, 8
        $region16: #{tpu_custom_call.1} parent=11 // pred_fallthru
          _
        // Predicated region
        $region17: #{tpu_custom_call.1} parent=11 // pred_check
          %p168 = pneg %p88
        $region18: #{tpu_custom_call.1} parent=11 // pred_check_branch
          %170 = sbr.rel (%p168) target = $region20
        $region19: #{tpu_custom_call.1} parent=11 // pred_region
          %s172 = ssub.s32 16, 16
          %173 = vsyncadd [#allocation6], %s172
          %s175 = sshll.u32 [#allocation7], 4
          %s176 = int_to_ptr.vmem [resolvable:$true] %s175
          %178 = dma.hbm_to_vmem [thread:$0]  %s2, 16, %s176, [#allocation6]
        $region20: #{tpu_custom_call.1} parent=11 // pred_fallthru
          _
      $region12: #{tpu_custom_call.1} parent=5 // pred_fallthru
        _
      %p179 = scmp.lt.s32.totalorder %s20, 2
      // Predicated region
      $region21: #{tpu_custom_call.1} parent=5 // pred_check
        %p180 = pneg %p179
      $region22: #{tpu_custom_call.1} parent=5 // pred_check_branch
        %182 = sbr.rel (%p180) target = $region24
      $region23: #{tpu_custom_call.1} parent=5 // pred_region
        // Predicated region
        $region25: #{tpu_custom_call.1} parent=23 // pred_check
          %p183 = pneg %p40
        $region26: #{tpu_custom_call.1} parent=23 // pred_check_branch
          %185 = sbr.rel (%p183) target = $region28
        $region27: #{tpu_custom_call.1} parent=23 // pred_region
          #allocation12 [shape = 'u32[6]{0}', space=smem, size = 0x18, scoped, tag = 'DMA stride descriptor']
          %s186 = sand.u32 %s30, 1
          %s187 = scalar_lea.sflag [#allocation3], %s186
          %s188 = sand.u32 %s30, 1
          %s189 = smul.addr %s188, 5760
          %s190 = scalar_lea.vmem [#allocation2], %s189
          %s191 = smul.u32 180, %s20
          %s193 = ssub.s32 92160, 92160
          %194 = vsyncadd %s187, %s193
          %s195 = smul.addr %s191, 128
          %s196 = scalar_lea.hbm %s0, %s195
          %s198 = sshll.u32 1, 14
          %s199 = sxor.u32 4294967295, %s198
          %s201 = sld [smem:[#allocation0]]
          %s202 = sadd.s32 2, %s201
          %s204 = sshll.u32 7, 26
          %s205 = sxor.u32 4294967295, %s204
          %s206 = sand.u32 0, %s205
          %s207 = sshll.u32 %s202, 26
          %s208 = sor.u32 %s206, %s207
          %s209 = sshll.u32 %s190, 4
          %s210 = int_to_ptr.vmem [resolvable:$true] %s209
          %216 = sst [smem:[#allocation12]] 46080
          %s217 = scalar_lea.smem [#allocation12], 1
          %218 = sst [smem:[%s217]] 23040
          %s219 = scalar_lea.smem [#allocation12], 2
          %220 = sst [smem:[%s219]] 180
          %s221 = scalar_lea.smem [#allocation12], 3
          %222 = sst [smem:[%s221]] 128
          %s223 = scalar_lea.smem [#allocation12], 4
          %224 = sst [smem:[%s223]] 128
          %s225 = scalar_lea.smem [#allocation12], 5
          %226 = sst [smem:[%s225]] 8
          %228 = dma.general %s196, 92160, %s210, %s187, [#allocation11], [#allocation12], %s208, 0
        $region28: #{tpu_custom_call.1} parent=23 // pred_fallthru
          _
        // Predicated region
        $region29: #{tpu_custom_call.1} parent=23 // pred_check
          %p229 = pneg %p108
        $region30: #{tpu_custom_call.1} parent=23 // pred_check_branch
          %231 = sbr.rel (%p229) target = $region32
        $region31: #{tpu_custom_call.1} parent=23 // pred_region
          %s232 = sand.u32 %s98, 1
          %s233 = scalar_lea.sflag [#allocation9], %s232
          %s234 = sand.u32 %s98, 1
          %s235 = smul.addr %s234, 1440
          %s236 = scalar_lea.vmem [#allocation8], %s235
          %s237 = smul.u32 180, %s20
          %s239 = ssub.s32 23040, 23040
          %240 = vsyncadd %s233, %s239
          %s241 = smul.addr %s237, 128
          %s242 = scalar_lea.hbm %s3, %s241
          %s243 = sshll.u32 %s236, 4
          %s244 = int_to_ptr.vmem [resolvable:$true] %s243
          %249 = dma.hbm_to_vmem [thread:$0]  %s242, 23040, %s244, %s233, 128, 128, 8
        $region32: #{tpu_custom_call.1} parent=23 // pred_fallthru
          _
      $region24: #{tpu_custom_call.1} parent=5 // pred_fallthru
        _
      %p250 = scmp.le.s32.totalorder 1, %s20
      %p251 = scmp.lt.s32.totalorder %s20, 3
      %p252 = pnand %p250, %p251
      %p253 = pneg %p252
      // Predicated region
      $region33: #{tpu_custom_call.1} parent=5 // pred_check
        _
      $region34: #{tpu_custom_call.1} parent=5 // pred_check_branch
        %255 = sbr.rel (%p252) target = $region36
      $region35: #{tpu_custom_call.1} parent=5 // pred_region
        %s256 = ssub.s32 %s20, 1
        %s257 = sand.u32 %s33, 1
        %s258 = scalar_lea.sflag [#allocation3], %s257
        %s259 = sand.u32 %s33, 1
        %s260 = smul.addr %s259, 5760
        %s261 = scalar_lea.vmem [#allocation2], %s260
        // Predicated region
        $region37: #{tpu_custom_call.1} parent=35 // pred_check
          %p262 = pneg %p46
        $region38: #{tpu_custom_call.1} parent=35 // pred_check_branch
          %264 = sbr.rel (%p262) target = $region40
        $region39: #{tpu_custom_call.1} parent=35 // pred_region
          %265 = dma.done %s258, 92160
        $region40: #{tpu_custom_call.1} parent=35 // pred_fallthru
          _
        // Predicated region
        $region41: #{tpu_custom_call.1} parent=35 // pred_check
          %p266 = pneg %p67
        $region42: #{tpu_custom_call.1} parent=35 // pred_check_branch
          %268 = sbr.rel (%p266) target = $region44
        $region43: #{tpu_custom_call.1} parent=35 // pred_region
          %269 = dma.done [#allocation6], 896
        $region44: #{tpu_custom_call.1} parent=35 // pred_fallthru
          _
        // Predicated region
        $region45: #{tpu_custom_call.1} parent=35 // pred_check
          %p270 = pneg %p88
        $region46: #{tpu_custom_call.1} parent=35 // pred_check_branch
          %272 = sbr.rel (%p270) target = $region48
        $region47: #{tpu_custom_call.1} parent=35 // pred_region
          %273 = dma.done [#allocation6], 16
        $region48: #{tpu_custom_call.1} parent=35 // pred_fallthru
          _
        %s274 = sand.u32 %s101, 1
        %s275 = scalar_lea.sflag [#allocation9], %s274
        %s276 = sand.u32 %s101, 1
        %s277 = smul.addr %s276, 1440
        %s278 = scalar_lea.vmem [#allocation8], %s277
        // Predicated region
        $region49: #{tpu_custom_call.1} parent=35 // pred_check
          %p279 = pneg %p114
        $region50: #{tpu_custom_call.1} parent=35 // pred_check_branch
          %281 = sbr.rel (%p279) target = $region52
        $region51: #{tpu_custom_call.1} parent=35 // pred_region
          %282 = dma.done %s275, 23040
        $region52: #{tpu_custom_call.1} parent=35 // pred_fallthru
          _
        %s283 = sand.u32 %s33, 1
        %s284 = scalar_lea.sflag [#allocation3], %s283
        %s285 = sand.u32 %s33, 1
        %s286 = smul.addr %s285, 5760
        %s287 = scalar_lea.vmem [#allocation2], %s286
        %p288 = pneg %p46
        %p289 = pneg %p43
        %p290 = pneg %p67
        %p291 = pneg %p64
        %p292 = pneg %p88
        %p293 = pneg %p85
        %s294 = sand.u32 %s101, 1
        %s295 = scalar_lea.sflag [#allocation9], %s294
        %s296 = sand.u32 %s101, 1
        %s297 = smul.addr %s296, 1440
        %s298 = scalar_lea.vmem [#allocation8], %s297
        %p299 = pneg %p114
        %p300 = pneg %p111
        %p301 = pneg %p140
        %p302 = pneg %p137
        %s303 = sand.u32 %s127, 1
        %s304 = scalar_lea.sflag [#allocation4], %s303
        %s305 = sand.u32 %s127, 1
        %s306 = smul.addr %s305, 1440
        %s307 = scalar_lea.vmem [#allocation10], %s306
        %s308 = smul.u32 180, %s25
        %s309 = smul.u32 180, %s25
        %s310 = smul.u32 180, %s25
        %v311 = vld [vmem:[#allocation5] sm:$0xff]
        %v312 = vld [vmem:[#allocation5 + $0x8] sm:$0xff]
        %v313 = vld [vmem:[#allocation5 + $0x10] sm:$0xff]
        %v314 = vld [vmem:[#allocation5 + $0x18] sm:$0xff]
        %v315 = vld [vmem:[#allocation5 + $0x20] sm:$0xff]
        %v316 = vld [vmem:[#allocation5 + $0x28] sm:$0xff]
        %v317 = vld [vmem:[#allocation5 + $0x30] sm:$0x1]
        %v318 = vld [vmem:[#allocation7] sm:$0x1]
        %v319 = vld [vmem:[%s261] sm:$0xff]
        %v320 = vld [vmem:[%s261 + $0x8] sm:$0xff]
        %v321 = vld [vmem:[%s261 + $0x10] sm:$0xff]
        %v322 = vld [vmem:[%s261 + $0x18] sm:$0xff]
        %v323 = vld [vmem:[%s261 + $0x20] sm:$0xff]
        %v324 = vld [vmem:[%s261 + $0x28] sm:$0xff]
        %v325 = vld [vmem:[%s261 + $0x30] sm:$0xff]
        %v326 = vld [vmem:[%s261 + $0x38] sm:$0xff]
        %v327 = vld [vmem:[%s261 + $0x40] sm:$0xff]
        %v328 = vld [vmem:[%s261 + $0x48] sm:$0xff]
        %v329 = vld [vmem:[%s261 + $0x50] sm:$0xff]
        %v330 = vld [vmem:[%s261 + $0x58] sm:$0xff]
        %v331 = vld [vmem:[%s261 + $0x60] sm:$0xff]
        %v332 = vld [vmem:[%s261 + $0x68] sm:$0xff]
        %v333 = vld [vmem:[%s261 + $0x70] sm:$0xff]
        %v334 = vld [vmem:[%s261 + $0x78] sm:$0xff]
        %v335 = vld [vmem:[%s261 + $0x80] sm:$0xff]
        %v336 = vld [vmem:[%s261 + $0x88] sm:$0xff]
        %v337 = vld [vmem:[%s261 + $0x90] sm:$0xff]
        %v338 = vld [vmem:[%s261 + $0x98] sm:$0xff]
        %v339 = vld [vmem:[%s261 + $0xa0] sm:$0xff]
        %v340 = vld [vmem:[%s261 + $0xa8] sm:$0xff]
        %v341 = vld [vmem:[%s261 + $0xb0] sm:$0xff]
        %v342 = vld [vmem:[%s261 + $0xb8] sm:$0xff]
        %v343 = vld [vmem:[%s261 + $0xc0] sm:$0xff]
        %v344 = vld [vmem:[%s261 + $0xc8] sm:$0xff]
        %v345 = vld [vmem:[%s261 + $0xd0] sm:$0xff]
        %v346 = vld [vmem:[%s261 + $0xd8] sm:$0xff]
        %v347 = vld [vmem:[%s261 + $0xe0] sm:$0xff]
        %v348 = vld [vmem:[%s261 + $0xe8] sm:$0xff]
        %v349 = vld [vmem:[%s261 + $0xf0] sm:$0xff]
        %v350 = vld [vmem:[%s261 + $0xf8] sm:$0xff]
        %v351 = vld [vmem:[%s261 + $0x100] sm:$0xff]
        %v352 = vld [vmem:[%s261 + $0x108] sm:$0xff]
        %v353 = vld [vmem:[%s261 + $0x110] sm:$0xff]
        %v354 = vld [vmem:[%s261 + $0x118] sm:$0xff]
        %v355 = vld [vmem:[%s261 + $0x120] sm:$0xff]
        %v356 = vld [vmem:[%s261 + $0x128] sm:$0xff]
        %v357 = vld [vmem:[%s261 + $0x130] sm:$0xff]
        %v358 = vld [vmem:[%s261 + $0x138] sm:$0xff]
        %v359 = vld [vmem:[%s261 + $0x140] sm:$0xff]
        %v360 = vld [vmem:[%s261 + $0x148] sm:$0xff]
        %v361 = vld [vmem:[%s261 + $0x150] sm:$0xff]
        %v362 = vld [vmem:[%s261 + $0x158] sm:$0xff]
        %v363 = vld [vmem:[%s261 + $0x160] sm:$0xff]
        %v364 = vld [vmem:[%s261 + $0x168] sm:$0xff]
        %v365 = vld [vmem:[%s261 + $0x170] sm:$0xff]
        %v366 = vld [vmem:[%s261 + $0x178] sm:$0xff]
        %v367 = vld [vmem:[%s261 + $0x180] sm:$0xff]
        %v368 = vld [vmem:[%s261 + $0x188] sm:$0xff]
        %v369 = vld [vmem:[%s261 + $0x190] sm:$0xff]
        %v370 = vld [vmem:[%s261 + $0x198] sm:$0xff]
        %v371 = vld [vmem:[%s261 + $0x1a0] sm:$0xff]
        %v372 = vld [vmem:[%s261 + $0x1a8] sm:$0xff]
        %v373 = vld [vmem:[%s261 + $0x1b0] sm:$0xff]
        %v374 = vld [vmem:[%s261 + $0x1b8] sm:$0xff]
        %v375 = vld [vmem:[%s261 + $0x1c0] sm:$0xff]
        %v376 = vld [vmem:[%s261 + $0x1c8] sm:$0xff]
        %v377 = vld [vmem:[%s261 + $0x1d0] sm:$0xff]
        %v378 = vld [vmem:[%s261 + $0x1d8] sm:$0xff]
        %v379 = vld [vmem:[%s261 + $0x1e0] sm:$0xff]
        %v380 = vld [vmem:[%s261 + $0x1e8] sm:$0xff]
        %v381 = vld [vmem:[%s261 + $0x1f0] sm:$0xff]
        %v382 = vld [vmem:[%s261 + $0x1f8] sm:$0xff]
        %v383 = vld [vmem:[%s261 + $0x200] sm:$0xff]
        %v384 = vld [vmem:[%s261 + $0x208] sm:$0xff]
        %v385 = vld [vmem:[%s261 + $0x210] sm:$0xff]
        %v386 = vld [vmem:[%s261 + $0x218] sm:$0xff]
        %v387 = vld [vmem:[%s261 + $0x220] sm:$0xff]
        %v388 = vld [vmem:[%s261 + $0x228] sm:$0xff]
        %v389 = vld [vmem:[%s261 + $0x230] sm:$0xff]
        %v390 = vld [vmem:[%s261 + $0x238] sm:$0xff]
        %v391 = vld [vmem:[%s261 + $0x240] sm:$0xff]
        %v392 = vld [vmem:[%s261 + $0x248] sm:$0xff]
        %v393 = vld [vmem:[%s261 + $0x250] sm:$0xff]
        %v394 = vld [vmem:[%s261 + $0x258] sm:$0xff]
        %v395 = vld [vmem:[%s261 + $0x260] sm:$0xff]
        %v396 = vld [vmem:[%s261 + $0x268] sm:$0xff]
        %v397 = vld [vmem:[%s261 + $0x270] sm:$0xff]
        %v398 = vld [vmem:[%s261 + $0x278] sm:$0xff]
        %v399 = vld [vmem:[%s261 + $0x280] sm:$0xff]
        %v400 = vld [vmem:[%s261 + $0x288] sm:$0xff]
        %v401 = vld [vmem:[%s261 + $0x290] sm:$0xff]
        %v402 = vld [vmem:[%s261 + $0x298] sm:$0xff]
        %v403 = vld [vmem:[%s261 + $0x2a0] sm:$0xff]
        %v404 = vld [vmem:[%s261 + $0x2a8] sm:$0xff]
        %v405 = vld [vmem:[%s261 + $0x2b0] sm:$0xff]
        %v406 = vld [vmem:[%s261 + $0x2b8] sm:$0xff]
        %v407 = vld [vmem:[%s261 + $0x2c0] sm:$0xff]
        %v408 = vld [vmem:[%s261 + $0x2c8] sm:$0xff]
        %v409 = vld [vmem:[%s261 + $0x2d0] sm:$0xff]
        %v410 = vld [vmem:[%s261 + $0x2d8] sm:$0xff]
        %v411 = vld [vmem:[%s261 + $0x2e0] sm:$0xff]
        %v412 = vld [vmem:[%s261 + $0x2e8] sm:$0xff]
        %v413 = vld [vmem:[%s261 + $0x2f0] sm:$0xff]
        %v414 = vld [vmem:[%s261 + $0x2f8] sm:$0xff]
        %v415 = vld [vmem:[%s261 + $0x300] sm:$0xff]
        %v416 = vld [vmem:[%s261 + $0x308] sm:$0xff]
        %v417 = vld [vmem:[%s261 + $0x310] sm:$0xff]
        %v418 = vld [vmem:[%s261 + $0x318] sm:$0xff]
        %v419 = vld [vmem:[%s261 + $0x320] sm:$0xff]
        %v420 = vld [vmem:[%s261 + $0x328] sm:$0xff]
        %v421 = vld [vmem:[%s261 + $0x330] sm:$0xff]
        %v422 = vld [vmem:[%s261 + $0x338] sm:$0xff]
        %v423 = vld [vmem:[%s261 + $0x340] sm:$0xff]
        %v424 = vld [vmem:[%s261 + $0x348] sm:$0xff]
        %v425 = vld [vmem:[%s261 + $0x350] sm:$0xff]
        %v426 = vld [vmem:[%s261 + $0x358] sm:$0xff]
        %v427 = vld [vmem:[%s261 + $0x360] sm:$0xff]
        %v428 = vld [vmem:[%s261 + $0x368] sm:$0xff]
        %v429 = vld [vmem:[%s261 + $0x370] sm:$0xff]
        %v430 = vld [vmem:[%s261 + $0x378] sm:$0xff]
        %v431 = vld [vmem:[%s261 + $0x380] sm:$0xff]
        %v432 = vld [vmem:[%s261 + $0x388] sm:$0xff]
        %v433 = vld [vmem:[%s261 + $0x390] sm:$0xff]
        %v434 = vld [vmem:[%s261 + $0x398] sm:$0xff]
        %v435 = vld [vmem:[%s261 + $0x3a0] sm:$0xff]
        %v436 = vld [vmem:[%s261 + $0x3a8] sm:$0xff]
        %v437 = vld [vmem:[%s261 + $0x3b0] sm:$0xff]
        %v438 = vld [vmem:[%s261 + $0x3b8] sm:$0xff]
        %v439 = vld [vmem:[%s261 + $0x3c0] sm:$0xff]
        %v440 = vld [vmem:[%s261 + $0x3c8] sm:$0xff]
        %v441 = vld [vmem:[%s261 + $0x3d0] sm:$0xff]
        %v442 = vld [vmem:[%s261 + $0x3d8] sm:$0xff]
        %v443 = vld [vmem:[%s261 + $0x3e0] sm:$0xff]
        %v444 = vld [vmem:[%s261 + $0x3e8] sm:$0xff]
        %v445 = vld [vmem:[%s261 + $0x3f0] sm:$0xff]
        %v446 = vld [vmem:[%s261 + $0x3f8] sm:$0xff]
        %v447 = vld [vmem:[%s261 + $0x400] sm:$0xff]
        %v448 = vld [vmem:[%s261 + $0x408] sm:$0xff]
        %v449 = vld [vmem:[%s261 + $0x410] sm:$0xff]
        %v450 = vld [vmem:[%s261 + $0x418] sm:$0xff]
        %v451 = vld [vmem:[%s261 + $0x420] sm:$0xff]
        %v452 = vld [vmem:[%s261 + $0x428] sm:$0xff]
        %v453 = vld [vmem:[%s261 + $0x430] sm:$0xff]
        %v454 = vld [vmem:[%s261 + $0x438] sm:$0xff]
        %v455 = vld [vmem:[%s261 + $0x440] sm:$0xff]
        %v456 = vld [vmem:[%s261 + $0x448] sm:$0xff]
        %v457 = vld [vmem:[%s261 + $0x450] sm:$0xff]
        %v458 = vld [vmem:[%s261 + $0x458] sm:$0xff]
        %v459 = vld [vmem:[%s261 + $0x460] sm:$0xff]
        %v460 = vld [vmem:[%s261 + $0x468] sm:$0xff]
        %v461 = vld [vmem:[%s261 + $0x470] sm:$0xff]
        %v462 = vld [vmem:[%s261 + $0x478] sm:$0xff]
        %v463 = vld [vmem:[%s261 + $0x480] sm:$0xff]
        %v464 = vld [vmem:[%s261 + $0x488] sm:$0xff]
        %v465 = vld [vmem:[%s261 + $0x490] sm:$0xff]
        %v466 = vld [vmem:[%s261 + $0x498] sm:$0xff]
        %v467 = vld [vmem:[%s261 + $0x4a0] sm:$0xff]
        %v468 = vld [vmem:[%s261 + $0x4a8] sm:$0xff]
        %v469 = vld [vmem:[%s261 + $0x4b0] sm:$0xff]
        %v470 = vld [vmem:[%s261 + $0x4b8] sm:$0xff]
        %v471 = vld [vmem:[%s261 + $0x4c0] sm:$0xff]
        %v472 = vld [vmem:[%s261 + $0x4c8] sm:$0xff]
        %v473 = vld [vmem:[%s261 + $0x4d0] sm:$0xff]
        %v474 = vld [vmem:[%s261 + $0x4d8] sm:$0xff]
        %v475 = vld [vmem:[%s261 + $0x4e0] sm:$0xff]
        %v476 = vld [vmem:[%s261 + $0x4e8] sm:$0xff]
        %v477 = vld [vmem:[%s261 + $0x4f0] sm:$0xff]
        %v478 = vld [vmem:[%s261 + $0x4f8] sm:$0xff]
        %v479 = vld [vmem:[%s261 + $0x500] sm:$0xff]
        %v480 = vld [vmem:[%s261 + $0x508] sm:$0xff]
        %v481 = vld [vmem:[%s261 + $0x510] sm:$0xff]
        %v482 = vld [vmem:[%s261 + $0x518] sm:$0xff]
        %v483 = vld [vmem:[%s261 + $0x520] sm:$0xff]
        %v484 = vld [vmem:[%s261 + $0x528] sm:$0xff]
        %v485 = vld [vmem:[%s261 + $0x530] sm:$0xff]
        %v486 = vld [vmem:[%s261 + $0x538] sm:$0xff]
        %v487 = vld [vmem:[%s261 + $0x540] sm:$0xff]
        %v488 = vld [vmem:[%s261 + $0x548] sm:$0xff]
        %v489 = vld [vmem:[%s261 + $0x550] sm:$0xff]
        %v490 = vld [vmem:[%s261 + $0x558] sm:$0xff]
        %v491 = vld [vmem:[%s261 + $0x560] sm:$0xff]
        %v492 = vld [vmem:[%s261 + $0x568] sm:$0xff]
        %v493 = vld [vmem:[%s261 + $0x570] sm:$0xff]
        %v494 = vld [vmem:[%s261 + $0x578] sm:$0xff]
        %v495 = vld [vmem:[%s261 + $0x580] sm:$0xff]
        %v496 = vld [vmem:[%s261 + $0x588] sm:$0xff]
        %v497 = vld [vmem:[%s261 + $0x590] sm:$0xff]
        %v498 = vld [vmem:[%s261 + $0x598] sm:$0xff]
        %v500 = vlaneseq
        %v501 = vshrl.u32 %v500, 7
        %v502 = vsub.s32 0, %v501
        %v503 = vrot.slane %v318, %v502
        %vm505 = vcmask 400384
        %v507 = vsel %vm505, %v319, 0
        %v510 = vsel %vm505, %v320, 0
        %v513 = vsel %vm505, %v321, 0
        %v516 = vsel %vm505, %v322, 0
        %v519 = vsel %vm505, %v323, 0
        %v522 = vsel %vm505, %v324, 0
        %v525 = vsel %vm505, %v325, 0
        %v528 = vsel %vm505, %v326, 0
        %v531 = vsel %vm505, %v327, 0
        %v534 = vsel %vm505, %v328, 0
        %v537 = vsel %vm505, %v329, 0
        %v540 = vsel %vm505, %v330, 0
        %v543 = vsel %vm505, %v331, 0
        %v546 = vsel %vm505, %v332, 0
        %v549 = vsel %vm505, %v333, 0
        %v552 = vsel %vm505, %v334, 0
        %v555 = vsel %vm505, %v335, 0
        %v558 = vsel %vm505, %v336, 0
        %v561 = vsel %vm505, %v337, 0
        %v564 = vsel %vm505, %v338, 0
        %v567 = vsel %vm505, %v339, 0
        %v570 = vsel %vm505, %v340, 0
        %v573 = vsel %vm505, %v341, 0
        %v576 = vsel %vm505, %v342, 0
        %v579 = vsel %vm505, %v343, 0
        %v582 = vsel %vm505, %v344, 0
        %v585 = vsel %vm505, %v345, 0
        %v588 = vsel %vm505, %v346, 0
        %v591 = vsel %vm505, %v347, 0
        %v594 = vsel %vm505, %v348, 0
        %v597 = vsel %vm505, %v349, 0
        %v600 = vsel %vm505, %v350, 0
        %v603 = vsel %vm505, %v351, 0
        %v606 = vsel %vm505, %v352, 0
        %v609 = vsel %vm505, %v353, 0
        %v612 = vsel %vm505, %v354, 0
        %v615 = vsel %vm505, %v355, 0
        %v618 = vsel %vm505, %v356, 0
        %v621 = vsel %vm505, %v357, 0
        %v624 = vsel %vm505, %v358, 0
        %v627 = vsel %vm505, %v359, 0
        %v630 = vsel %vm505, %v360, 0
        %v633 = vsel %vm505, %v361, 0
        %v636 = vsel %vm505, %v362, 0
        %v639 = vsel %vm505, %v363, 0
        %v642 = vsel %vm505, %v364, 0
        %v645 = vsel %vm505, %v365, 0
        %v648 = vsel %vm505, %v366, 0
        %v651 = vsel %vm505, %v367, 0
        %v654 = vsel %vm505, %v368, 0
        %v657 = vsel %vm505, %v369, 0
        %v660 = vsel %vm505, %v370, 0
        %v663 = vsel %vm505, %v371, 0
        %v666 = vsel %vm505, %v372, 0
        %v669 = vsel %vm505, %v373, 0
        %v672 = vsel %vm505, %v374, 0
        %v675 = vsel %vm505, %v375, 0
        %v678 = vsel %vm505, %v376, 0
        %v681 = vsel %vm505, %v377, 0
        %v684 = vsel %vm505, %v378, 0
        %v687 = vsel %vm505, %v379, 0
        %v690 = vsel %vm505, %v380, 0
        %v693 = vsel %vm505, %v381, 0
        %v696 = vsel %vm505, %v382, 0
        %v699 = vsel %vm505, %v383, 0
        %v702 = vsel %vm505, %v384, 0
        %v705 = vsel %vm505, %v385, 0
        %v708 = vsel %vm505, %v386, 0
        %v711 = vsel %vm505, %v387, 0
        %v714 = vsel %vm505, %v388, 0
        %v717 = vsel %vm505, %v389, 0
        %v720 = vsel %vm505, %v390, 0
        %v723 = vsel %vm505, %v391, 0
        %v726 = vsel %vm505, %v392, 0
        %v729 = vsel %vm505, %v393, 0
        %v732 = vsel %vm505, %v394, 0
        %v735 = vsel %vm505, %v395, 0
        %v738 = vsel %vm505, %v396, 0
        %v741 = vsel %vm505, %v397, 0
        %v744 = vsel %vm505, %v398, 0
        %v747 = vsel %vm505, %v399, 0
        %v750 = vsel %vm505, %v400, 0
        %v753 = vsel %vm505, %v401, 0
        %v756 = vsel %vm505, %v402, 0
        %v759 = vsel %vm505, %v403, 0
        %v762 = vsel %vm505, %v404, 0
        %v765 = vsel %vm505, %v405, 0
        %v768 = vsel %vm505, %v406, 0
        %v771 = vsel %vm505, %v407, 0
        %v774 = vsel %vm505, %v408, 0
        %v777 = vsel %vm505, %v409, 0
        %v780 = vsel %vm505, %v410, 0
        %v783 = vsel %vm505, %v411, 0
        %v786 = vsel %vm505, %v412, 0
        %v789 = vsel %vm505, %v413, 0
        %v792 = vsel %vm505, %v414, 0
        %v795 = vsel %vm505, %v415, 0
        %v798 = vsel %vm505, %v416, 0
        %v801 = vsel %vm505, %v417, 0
        %v804 = vsel %vm505, %v418, 0
        %v807 = vsel %vm505, %v419, 0
        %v810 = vsel %vm505, %v420, 0
        %v813 = vsel %vm505, %v421, 0
        %v816 = vsel %vm505, %v422, 0
        %v819 = vsel %vm505, %v423, 0
        %v822 = vsel %vm505, %v424, 0
        %v825 = vsel %vm505, %v425, 0
        %v828 = vsel %vm505, %v426, 0
        %v831 = vsel %vm505, %v427, 0
        %v834 = vsel %vm505, %v428, 0
        %v837 = vsel %vm505, %v429, 0
        %v840 = vsel %vm505, %v430, 0
        %v843 = vsel %vm505, %v431, 0
        %v846 = vsel %vm505, %v432, 0
        %v849 = vsel %vm505, %v433, 0
        %v852 = vsel %vm505, %v434, 0
        %v855 = vsel %vm505, %v435, 0
        %v858 = vsel %vm505, %v436, 0
        %v861 = vsel %vm505, %v437, 0
        %v864 = vsel %vm505, %v438, 0
        %v867 = vsel %vm505, %v439, 0
        %v870 = vsel %vm505, %v440, 0
        %v873 = vsel %vm505, %v441, 0
        %v876 = vsel %vm505, %v442, 0
        %v879 = vsel %vm505, %v443, 0
        %v882 = vsel %vm505, %v444, 0
        %v885 = vsel %vm505, %v445, 0
        %v888 = vsel %vm505, %v446, 0
        %v891 = vsel %vm505, %v447, 0
        %v894 = vsel %vm505, %v448, 0
        %v897 = vsel %vm505, %v449, 0
        %v900 = vsel %vm505, %v450, 0
        %v903 = vsel %vm505, %v451, 0
        %v906 = vsel %vm505, %v452, 0
        %v909 = vsel %vm505, %v453, 0
        %v912 = vsel %vm505, %v454, 0
        %v915 = vsel %vm505, %v455, 0
        %v918 = vsel %vm505, %v456, 0
        %v921 = vsel %vm505, %v457, 0
        %v924 = vsel %vm505, %v458, 0
        %v927 = vsel %vm505, %v459, 0
        %v930 = vsel %vm505, %v460, 0
        %v933 = vsel %vm505, %v461, 0
        %v936 = vsel %vm505, %v462, 0
        %v939 = vsel %vm505, %v463, 0
        %v942 = vsel %vm505, %v464, 0
        %v945 = vsel %vm505, %v465, 0
        %v948 = vsel %vm505, %v466, 0
        %v951 = vsel %vm505, %v467, 0
        %v954 = vsel %vm505, %v468, 0
        %v957 = vsel %vm505, %v469, 0
        %v960 = vsel %vm505, %v470, 0
        %v963 = vsel %vm505, %v471, 0
        %v966 = vsel %vm505, %v472, 0
        %v969 = vsel %vm505, %v473, 0
        %v972 = vsel %vm505, %v474, 0
        %v975 = vsel %vm505, %v475, 0
        %v978 = vsel %vm505, %v476, 0
        %v981 = vsel %vm505, %v477, 0
        %v984 = vsel %vm505, %v478, 0
        %v987 = vsel %vm505, %v479, 0
        %v990 = vsel %vm505, %v480, 0
        %v993 = vsel %vm505, %v481, 0
        %v996 = vsel %vm505, %v482, 0
        %v999 = vsel %vm505, %v483, 0
        %v1002 = vsel %vm505, %v484, 0
        %v1005 = vsel %vm505, %v485, 0
        %v1008 = vsel %vm505, %v486, 0
        %v1011 = vsel %vm505, %v487, 0
        %v1014 = vsel %vm505, %v488, 0
        %v1017 = vsel %vm505, %v489, 0
        %v1020 = vsel %vm505, %v490, 0
        %v1023 = vsel %vm505, %v491, 0
        %v1026 = vsel %vm505, %v492, 0
        %v1029 = vsel %vm505, %v493, 0
        %v1032 = vsel %vm505, %v494, 0
        %v1035 = vsel %vm505, %v495, 0
        %v1038 = vsel %vm505, %v496, 0
        %v1041 = vsel %vm505, %v497, 0
        %v1044 = vsel %vm505, %v498, 0
        %vm1046 = vcmask 1040384
        %v1048 = vsel %vm1046, %v317, 0
        %1050 = vmatprep.subr.mxu0 0.0
        %1051 = vmatpush1.msra.mxu0 %v311
        %1052 = vmatprep.subr.mxu0 0.0
        %1053 = vmatpush1.msra.mxu0 %v312
        %1054 = vmatprep.subr.mxu0 0.0
        %1055 = vmatpush1.msra.mxu0 %v313
        %1056 = vmatprep.subr.mxu0 0.0
        %1057 = vmatpush1.msra.mxu0 %v314
        %1058 = vmatprep.subr.mxu0 0.0
        %1059 = vmatpush1.msra.mxu0 %v315
        %1060 = vmatprep.subr.mxu0 0.0
        %1061 = vmatpush1.msra.mxu0 %v316
        %1062 = vmatprep.subr.mxu0 0.0
        %1063 = vmatpush1.msra.mxu0 %v1048
        %1064 = vmatprep.subr.mxu0 0.0
        %1065 = vmatpush1.msra.mxu0 0.0
        %1066 = vmatprep.subr.mxu0 0.0
        %1067 = vmatpush1.msra.mxu0 0.0
        %1068 = vmatprep.subr.mxu0 0.0
        %1069 = vmatpush1.msra.mxu0 0.0
        %1070 = vmatprep.subr.mxu0 0.0
        %1071 = vmatpush1.msra.mxu0 0.0
        %1072 = vmatprep.subr.mxu0 0.0
        %1073 = vmatpush1.msra.mxu0 0.0
        %1074 = vmatprep.subr.mxu0 0.0
        %1075 = vmatpush1.msra.mxu0 0.0
        %1076 = vmatprep.subr.mxu0 0.0
        %1077 = vmatpush1.msra.mxu0 0.0
        %1078 = vmatprep.subr.mxu0 0.0
        %1079 = vmatpush1.msra.mxu0 0.0
        %1080 = vmatprep.subr.mxu0 0.0
        %1081 = vmatpush1.msra.mxu0 0.0
        %1082 = vmatprep.subr.mxu0 0.0
        %1083 = vmatpush1.msra.mxu0 0.0
        %1084 = vmatprep.subr.mxu0 0.0
        %1085 = vmatpush1.msra.mxu0 0.0
        %1086 = vmatprep.subr.mxu0 0.0
        %1087 = vmatpush1.msra.mxu0 0.0
        %1088 = vmatprep.subr.mxu0 0.0
        %1089 = vmatpush1.msra.mxu0 0.0
        %1090 = vmatprep.subr.mxu0 0.0
        %1091 = vmatpush1.msra.mxu0 0.0
        %1092 = vmatprep.subr.mxu0 0.0
        %1093 = vmatpush1.msra.mxu0 0.0
        %1094 = vmatprep.subr.mxu0 0.0
        %1095 = vmatpush1.msra.mxu0 0.0
        %1096 = vmatprep.subr.mxu0 0.0
        %1097 = vmatpush1.msra.mxu0 0.0
        %1098 = vmatprep.subr.mxu0 0.0
        %1099 = vmatpush1.msra.mxu0 0.0
        %1100 = vmatprep.subr.mxu0 0.0
        %1101 = vmatpush1.msra.mxu0 0.0
        %1102 = vmatprep.subr.mxu0 0.0
        %1103 = vmatpush1.msra.mxu0 0.0
        %1104 = vmatprep.subr.mxu0 0.0
        %1105 = vmatpush1.msra.mxu0 0.0
        %1106 = vmatprep.subr.mxu0 0.0
        %1107 = vmatpush1.msra.mxu0 0.0
        %1108 = vmatprep.subr.mxu0 0.0
        %1109 = vmatpush1.msra.mxu0 0.0
        %1110 = vmatprep.subr.mxu0 0.0
        %1111 = vmatpush1.msra.mxu0 0.0
        %1112 = vmatprep.subr.mxu0 0.0
        %1113 = vmatpush1.msra.mxu0 0.0
        %1114 = vmatprep.mubr.f32.mxu0 0.0
        %1115 = vmatmul.mubr.f32.gmra.mrb[0].mxu0 %v507
        %v1116 = vpop.f32.mrb[0].mxu0
        %v1117 = vadd.f32 %v503, %v1116
        %v1118 = vpop.f32.mrb[0].mxu0
        %1119 = vmatprep.mubr.f32.mxu0 0.0
        %1120 = vmatmul.mubr.f32.gmra.mrb[0].mxu0 %v510
        %v1121 = vpop.f32.mrb[0].mxu0
        %v1122 = vadd.f32 %v503, %v1121
        %v1123 = vpop.f32.mrb[0].mxu0
        %1124 = vmatprep.mubr.f32.mxu0 0.0
        %1125 = vmatmul.mubr.f32.gmra.mrb[0].mxu0 %v513
        %v1126 = vpop.f32.mrb[0].mxu0
        %v1127 = vadd.f32 %v503, %v1126
        %v1128 = vpop.f32.mrb[0].mxu0
        %1129 = vmatprep.mubr.f32.mxu0 0.0
        %1130 = vmatmul.mubr.f32.gmra.mrb[0].mxu0 %v516
        %v1131 = vpop.f32.mrb[0].mxu0
        %v1132 = vadd.f32 %v503, %v1131
        %v1133 = vpop.f32.mrb[0].mxu0
        %1134 = vmatprep.mubr.f32.mxu0 0.0
        %1135 = vmatmul.mubr.f32.gmra.mrb[0].mxu0 %v519
        %v1136 = vpop.f32.mrb[0].mxu0
        %v1137 = vadd.f32 %v503, %v1136
        %v1138 = vpop.f32.mrb[0].mxu0
        %1139 = vmatprep.mubr.f32.mxu0 0.0
        %1140 = vmatmul.mubr.f32.gmra.mrb[0].mxu0 %v522
        %v1141 = vpop.f32.mrb[0].mxu0
        %v1142 = vadd.f32 %v503, %v1141
        %v1143 = vpop.f32.mrb[0].mxu0
        %1144 = vmatprep.mubr.f32.mxu0 0.0
        %1145 = vmatmul.mubr.f32.gmra.mrb[0].mxu0 %v525
        %v1146 = vpop.f32.mrb[0].mxu0
        %v1147 = vadd.f32 %v503, %v1146
        %v1148 = vpop.f32.mrb[0].mxu0
        %1149 = vmatprep.mubr.f32.mxu0 0.0
        %1150 = vmatmul.mubr.f32.gmra.mrb[0].mxu0 %v528
        %v1151 = vpop.f32.mrb[0].mxu0
        %v1152 = vadd.f32 %v503, %v1151
        %v1153 = vpop.f32.mrb[0].mxu0
        %1154 = vmatprep.mubr.f32.mxu0 0.0
        %1155 = vmatmul.mubr.f32.gmra.mrb[0].mxu0 %v531
        %v1156 = vpop.f32.mrb[0].mxu0
        %v1157 = vadd.f32 %v503, %v1156
        %v1158 = vpop.f32.mrb[0].mxu0
        %1159 = vmatprep.mubr.f32.mxu0 0.0
        %1160 = vmatmul.mubr.f32.gmra.mrb[0].mxu0 %v534
        %v1161 = vpop.f32.mrb[0].mxu0
        %v1162 = vadd.f32 %v503, %v1161
        %v1163 = vpop.f32.mrb[0].mxu0
        %1164 = vmatprep.mubr.f32.mxu0 0.0
        %1165 = vmatmul.mubr.f32.gmra.mrb[0].mxu0 %v537
        %v1166 = vpop.f32.mrb[0].mxu0
        %v1167 = vadd.f32 %v503, %v1166
        %v1168 = vpop.f32.mrb[0].mxu0
        %1169 = vmatprep.mubr.f32.mxu0 0.0
        %1170 = vmatmul.mubr.f32.gmra.mrb[0].mxu0 %v540
        %v1171 = vpop.f32.mrb[0].mxu0
        %v1172 = vadd.f32 %v503, %v1171
        %v1173 = vpop.f32.mrb[0].mxu0
        %1174 = vmatprep.mubr.f32.mxu0 0.0
        %1175 = vmatmul.mubr.f32.gmra.mrb[0].mxu0 %v543
        %v1176 = vpop.f32.mrb[0].mxu0
        %v1177 = vadd.f32 %v503, %v1176
        %v1178 = vpop.f32.mrb[0].mxu0
        %1179 = vmatprep.mubr.f32.mxu0 0.0
        %1180 = vmatmul.mubr.f32.gmra.mrb[0].mxu0 %v546
        %v1181 = vpop.f32.mrb[0].mxu0
        %v1182 = vadd.f32 %v503, %v1181
        %v1183 = vpop.f32.mrb[0].mxu0
        %1184 = vmatprep.mubr.f32.mxu0 0.0
        %1185 = vmatmul.mubr.f32.gmra.mrb[0].mxu0 %v549
        %v1186 = vpop.f32.mrb[0].mxu0
        %v1187 = vadd.f32 %v503, %v1186
        %v1188 = vpop.f32.mrb[0].mxu0
        %1189 = vmatprep.mubr.f32.mxu0 0.0
        %1190 = vmatmul.mubr.f32.gmra.mrb[0].mxu0 %v552
        %v1191 = vpop.f32.mrb[0].mxu0
        %v1192 = vadd.f32 %v503, %v1191
        %v1193 = vpop.f32.mrb[0].mxu0
        %1194 = vmatprep.mubr.f32.mxu0 0.0
        %1195 = vmatmul.mubr.f32.gmra.mrb[0].mxu0 %v555
        %v1196 = vpop.f32.mrb[0].mxu0
        %v1197 = vadd.f32 %v503, %v1196
        %v1198 = vpop.f32.mrb[0].mxu0
        %1199 = vmatprep.mubr.f32.mxu0 0.0
        %1200 = vmatmul.mubr.f32.gmra.mrb[0].mxu0 %v558
        %v1201 = vpop.f32.mrb[0].mxu0
        %v1202 = vadd.f32 %v503, %v1201
        %v1203 = vpop.f32.mrb[0].mxu0
        %1204 = vmatprep.mubr.f32.mxu0 0.0
        %1205 = vmatmul.mubr.f32.gmra.mrb[0].mxu0 %v561
        %v1206 = vpop.f32.mrb[0].mxu0
        %v1207 = vadd.f32 %v503, %v1206
        %v1208 = vpop.f32.mrb[0].mxu0
        %1209 = vmatprep.mubr.f32.mxu0 0.0
        %1210 = vmatmul.mubr.f32.gmra.mrb[0].mxu0 %v564
        %v1211 = vpop.f32.mrb[0].mxu0
        %v1212 = vadd.f32 %v503, %v1211
        %v1213 = vpop.f32.mrb[0].mxu0
        %1214 = vmatprep.mubr.f32.mxu0 0.0
        %1215 = vmatmul.mubr.f32.gmra.mrb[0].mxu0 %v567
        %v1216 = vpop.f32.mrb[0].mxu0
        %v1217 = vadd.f32 %v503, %v1216
        %v1218 = vpop.f32.mrb[0].mxu0
        %1219 = vmatprep.mubr.f32.mxu0 0.0
        %1220 = vmatmul.mubr.f32.gmra.mrb[0].mxu0 %v570
        %v1221 = vpop.f32.mrb[0].mxu0
        %v1222 = vadd.f32 %v503, %v1221
        %v1223 = vpop.f32.mrb[0].mxu0
        %1224 = vmatprep.mubr.f32.mxu0 0.0
        %1225 = vmatmul.mubr.f32.gmra.mrb[0].mxu0 %v573
        %v1226 = vpop.f32.mrb[0].mxu0
        %v1227 = vadd.f32 %v503, %v1226
        %v1228 = vpop.f32.mrb[0].mxu0
        %1229 = vmatprep.mubr.f32.mxu0 0.0
        %1230 = vmatmul.mubr.f32.gmra.mrb[0].mxu0 %v576
        %v1231 = vpop.f32.mrb[0].mxu0
        %v1232 = vadd.f32 %v503, %v1231
        %v1233 = vpop.f32.mrb[0].mxu0
        %1234 = vmatprep.mubr.f32.mxu0 0.0
        %1235 = vmatmul.mubr.f32.gmra.mrb[0].mxu0 %v579
        %v1236 = vpop.f32.mrb[0].mxu0
        %v1237 = vadd.f32 %v503, %v1236
        %v1238 = vpop.f32.mrb[0].mxu0
        %1239 = vmatprep.mubr.f32.mxu0 0.0
        %1240 = vmatmul.mubr.f32.gmra.mrb[0].mxu0 %v582
        %v1241 = vpop.f32.mrb[0].mxu0
        %v1242 = vadd.f32 %v503, %v1241
        %v1243 = vpop.f32.mrb[0].mxu0
        %1244 = vmatprep.mubr.f32.mxu0 0.0
        %1245 = vmatmul.mubr.f32.gmra.mrb[0].mxu0 %v585
        %v1246 = vpop.f32.mrb[0].mxu0
        %v1247 = vadd.f32 %v503, %v1246
        %v1248 = vpop.f32.mrb[0].mxu0
        %1249 = vmatprep.mubr.f32.mxu0 0.0
        %1250 = vmatmul.mubr.f32.gmra.mrb[0].mxu0 %v588
        %v1251 = vpop.f32.mrb[0].mxu0
        %v1252 = vadd.f32 %v503, %v1251
        %v1253 = vpop.f32.mrb[0].mxu0
        %1254 = vmatprep.mubr.f32.mxu0 0.0
        %1255 = vmatmul.mubr.f32.gmra.mrb[0].mxu0 %v591
        %v1256 = vpop.f32.mrb[0].mxu0
        %v1257 = vadd.f32 %v503, %v1256
        %v1258 = vpop.f32.mrb[0].mxu0
        %1259 = vmatprep.mubr.f32.mxu0 0.0
        %1260 = vmatmul.mubr.f32.gmra.mrb[0].mxu0 %v594
        %v1261 = vpop.f32.mrb[0].mxu0
        %v1262 = vadd.f32 %v503, %v1261
        %v1263 = vpop.f32.mrb[0].mxu0
        %1264 = vmatprep.mubr.f32.mxu0 0.0
        %1265 = vmatmul.mubr.f32.gmra.mrb[0].mxu0 %v597
        %v1266 = vpop.f32.mrb[0].mxu0
        %v1267 = vadd.f32 %v503, %v1266
        %v1268 = vpop.f32.mrb[0].mxu0
        %1269 = vmatprep.mubr.f32.mxu0 0.0
        %1270 = vmatmul.mubr.f32.gmra.mrb[0].mxu0 %v600
        %v1271 = vpop.f32.mrb[0].mxu0
        %v1272 = vadd.f32 %v503, %v1271
        %v1273 = vpop.f32.mrb[0].mxu0
        %1274 = vmatprep.mubr.f32.mxu0 0.0
        %1275 = vmatmul.mubr.f32.gmra.mrb[0].mxu0 %v603
        %v1276 = vpop.f32.mrb[0].mxu0
        %v1277 = vadd.f32 %v503, %v1276
        %v1278 = vpop.f32.mrb[0].mxu0
        %1279 = vmatprep.mubr.f32.mxu0 0.0
        %1280 = vmatmul.mubr.f32.gmra.mrb[0].mxu0 %v606
        %v1281 = vpop.f32.mrb[0].mxu0
        %v1282 = vadd.f32 %v503, %v1281
        %v1283 = vpop.f32.mrb[0].mxu0
        %1284 = vmatprep.mubr.f32.mxu0 0.0
        %1285 = vmatmul.mubr.f32.gmra.mrb[0].mxu0 %v609
        %v1286 = vpop.f32.mrb[0].mxu0
        %v1287 = vadd.f32 %v503, %v1286
        %v1288 = vpop.f32.mrb[0].mxu0
        %1289 = vmatprep.mubr.f32.mxu0 0.0
        %1290 = vmatmul.mubr.f32.gmra.mrb[0].mxu0 %v612
        %v1291 = vpop.f32.mrb[0].mxu0
        %v1292 = vadd.f32 %v503, %v1291
        %v1293 = vpop.f32.mrb[0].mxu0
        %1294 = vmatprep.mubr.f32.mxu0 0.0
        %1295 = vmatmul.mubr.f32.gmra.mrb[0].mxu0 %v615
        %v1296 = vpop.f32.mrb[0].mxu0
        %v1297 = vadd.f32 %v503, %v1296
        %v1298 = vpop.f32.mrb[0].mxu0
        %1299 = vmatprep.mubr.f32.mxu0 0.0
        %1300 = vmatmul.mubr.f32.gmra.mrb[0].mxu0 %v618
        %v1301 = vpop.f32.mrb[0].mxu0
        %v1302 = vadd.f32 %v503, %v1301
        %v1303 = vpop.f32.mrb[0].mxu0
        %1304 = vmatprep.mubr.f32.mxu0 0.0
        %1305 = vmatmul.mubr.f32.gmra.mrb[0].mxu0 %v621
        %v1306 = vpop.f32.mrb[0].mxu0
        %v1307 = vadd.f32 %v503, %v1306
        %v1308 = vpop.f32.mrb[0].mxu0
        %1309 = vmatprep.mubr.f32.mxu0 0.0
        %1310 = vmatmul.mubr.f32.gmra.mrb[0].mxu0 %v624
        %v1311 = vpop.f32.mrb[0].mxu0
        %v1312 = vadd.f32 %v503, %v1311
        %v1313 = vpop.f32.mrb[0].mxu0
        %1314 = vmatprep.mubr.f32.mxu0 0.0
        %1315 = vmatmul.mubr.f32.gmra.mrb[0].mxu0 %v627
        %v1316 = vpop.f32.mrb[0].mxu0
        %v1317 = vadd.f32 %v503, %v1316
        %v1318 = vpop.f32.mrb[0].mxu0
        %1319 = vmatprep.mubr.f32.mxu0 0.0
        %1320 = vmatmul.mubr.f32.gmra.mrb[0].mxu0 %v630
        %v1321 = vpop.f32.mrb[0].mxu0
        %v1322 = vadd.f32 %v503, %v1321
        %v1323 = vpop.f32.mrb[0].mxu0
        %1324 = vmatprep.mubr.f32.mxu0 0.0
        %1325 = vmatmul.mubr.f32.gmra.mrb[0].mxu0 %v633
        %v1326 = vpop.f32.mrb[0].mxu0
        %v1327 = vadd.f32 %v503, %v1326
        %v1328 = vpop.f32.mrb[0].mxu0
        %1329 = vmatprep.mubr.f32.mxu0 0.0
        %1330 = vmatmul.mubr.f32.gmra.mrb[0].mxu0 %v636
        %v1331 = vpop.f32.mrb[0].mxu0
        %v1332 = vadd.f32 %v503, %v1331
        %v1333 = vpop.f32.mrb[0].mxu0
        %1334 = vmatprep.mubr.f32.mxu0 0.0
        %1335 = vmatmul.mubr.f32.gmra.mrb[0].mxu0 %v639
        %v1336 = vpop.f32.mrb[0].mxu0
        %v1337 = vadd.f32 %v503, %v1336
        %v1338 = vpop.f32.mrb[0].mxu0
        %1339 = vmatprep.mubr.f32.mxu0 0.0
        %1340 = vmatmul.mubr.f32.gmra.mrb[0].mxu0 %v642
        %v1341 = vpop.f32.mrb[0].mxu0
        %v1342 = vadd.f32 %v503, %v1341
        %v1343 = vpop.f32.mrb[0].mxu0
        %1344 = vmatprep.mubr.f32.mxu0 0.0
        %1345 = vmatmul.mubr.f32.gmra.mrb[0].mxu0 %v645
        %v1346 = vpop.f32.mrb[0].mxu0
        %v1347 = vadd.f32 %v503, %v1346
        %v1348 = vpop.f32.mrb[0].mxu0
        %1349 = vmatprep.mubr.f32.mxu0 0.0
        %1350 = vmatmul.mubr.f32.gmra.mrb[0].mxu0 %v648
        %v1351 = vpop.f32.mrb[0].mxu0
        %v1352 = vadd.f32 %v503, %v1351
        %v1353 = vpop.f32.mrb[0].mxu0
        %1354 = vmatprep.mubr.f32.mxu0 0.0
        %1355 = vmatmul.mubr.f32.gmra.mrb[0].mxu0 %v651
        %v1356 = vpop.f32.mrb[0].mxu0
        %v1357 = vadd.f32 %v503, %v1356
        %v1358 = vpop.f32.mrb[0].mxu0
        %1359 = vmatprep.mubr.f32.mxu0 0.0
        %1360 = vmatmul.mubr.f32.gmra.mrb[0].mxu0 %v654
        %v1361 = vpop.f32.mrb[0].mxu0
        %v1362 = vadd.f32 %v503, %v1361
        %v1363 = vpop.f32.mrb[0].mxu0
        %1364 = vmatprep.mubr.f32.mxu0 0.0
        %1365 = vmatmul.mubr.f32.gmra.mrb[0].mxu0 %v657
        %v1366 = vpop.f32.mrb[0].mxu0
        %v1367 = vadd.f32 %v503, %v1366
        %v1368 = vpop.f32.mrb[0].mxu0
        %1369 = vmatprep.mubr.f32.mxu0 0.0
        %1370 = vmatmul.mubr.f32.gmra.mrb[0].mxu0 %v660
        %v1371 = vpop.f32.mrb[0].mxu0
        %v1372 = vadd.f32 %v503, %v1371
        %v1373 = vpop.f32.mrb[0].mxu0
        %1374 = vmatprep.mubr.f32.mxu0 0.0
        %1375 = vmatmul.mubr.f32.gmra.mrb[0].mxu0 %v663
        %v1376 = vpop.f32.mrb[0].mxu0
        %v1377 = vadd.f32 %v503, %v1376
        %v1378 = vpop.f32.mrb[0].mxu0
        %1379 = vmatprep.mubr.f32.mxu0 0.0
        %1380 = vmatmul.mubr.f32.gmra.mrb[0].mxu0 %v666
        %v1381 = vpop.f32.mrb[0].mxu0
        %v1382 = vadd.f32 %v503, %v1381
        %v1383 = vpop.f32.mrb[0].mxu0
        %1384 = vmatprep.mubr.f32.mxu0 0.0
        %1385 = vmatmul.mubr.f32.gmra.mrb[0].mxu0 %v669
        %v1386 = vpop.f32.mrb[0].mxu0
        %v1387 = vadd.f32 %v503, %v1386
        %v1388 = vpop.f32.mrb[0].mxu0
        %1389 = vmatprep.mubr.f32.mxu0 0.0
        %1390 = vmatmul.mubr.f32.gmra.mrb[0].mxu0 %v672
        %v1391 = vpop.f32.mrb[0].mxu0
        %v1392 = vadd.f32 %v503, %v1391
        %v1393 = vpop.f32.mrb[0].mxu0
        %1394 = vmatprep.mubr.f32.mxu0 0.0
        %1395 = vmatmul.mubr.f32.gmra.mrb[0].mxu0 %v675
        %v1396 = vpop.f32.mrb[0].mxu0
        %v1397 = vadd.f32 %v503, %v1396
        %v1398 = vpop.f32.mrb[0].mxu0
        %1399 = vmatprep.mubr.f32.mxu0 0.0
        %1400 = vmatmul.mubr.f32.gmra.mrb[0].mxu0 %v678
        %v1401 = vpop.f32.mrb[0].mxu0
        %v1402 = vadd.f32 %v503, %v1401
        %v1403 = vpop.f32.mrb[0].mxu0
        %1404 = vmatprep.mubr.f32.mxu0 0.0
        %1405 = vmatmul.mubr.f32.gmra.mrb[0].mxu0 %v681
        %v1406 = vpop.f32.mrb[0].mxu0
        %v1407 = vadd.f32 %v503, %v1406
        %v1408 = vpop.f32.mrb[0].mxu0
        %1409 = vmatprep.mubr.f32.mxu0 0.0
        %1410 = vmatmul.mubr.f32.gmra.mrb[0].mxu0 %v684
        %v1411 = vpop.f32.mrb[0].mxu0
        %v1412 = vadd.f32 %v503, %v1411
        %v1413 = vpop.f32.mrb[0].mxu0
        %1414 = vmatprep.mubr.f32.mxu0 0.0
        %1415 = vmatmul.mubr.f32.gmra.mrb[0].mxu0 %v687
        %v1416 = vpop.f32.mrb[0].mxu0
        %v1417 = vadd.f32 %v503, %v1416
        %v1418 = vpop.f32.mrb[0].mxu0
        %1419 = vmatprep.mubr.f32.mxu0 0.0
        %1420 = vmatmul.mubr.f32.gmra.mrb[0].mxu0 %v690
        %v1421 = vpop.f32.mrb[0].mxu0
        %v1422 = vadd.f32 %v503, %v1421
        %v1423 = vpop.f32.mrb[0].mxu0
        %1424 = vmatprep.mubr.f32.mxu0 0.0
        %1425 = vmatmul.mubr.f32.gmra.mrb[0].mxu0 %v693
        %v1426 = vpop.f32.mrb[0].mxu0
        %v1427 = vadd.f32 %v503, %v1426
        %v1428 = vpop.f32.mrb[0].mxu0
        %1429 = vmatprep.mubr.f32.mxu0 0.0
        %1430 = vmatmul.mubr.f32.gmra.mrb[0].mxu0 %v696
        %v1431 = vpop.f32.mrb[0].mxu0
        %v1432 = vadd.f32 %v503, %v1431
        %v1433 = vpop.f32.mrb[0].mxu0
        %1434 = vmatprep.mubr.f32.mxu0 0.0
        %1435 = vmatmul.mubr.f32.gmra.mrb[0].mxu0 %v699
        %v1436 = vpop.f32.mrb[0].mxu0
        %v1437 = vadd.f32 %v503, %v1436
        %v1438 = vpop.f32.mrb[0].mxu0
        %1439 = vmatprep.mubr.f32.mxu0 0.0
        %1440 = vmatmul.mubr.f32.gmra.mrb[0].mxu0 %v702
        %v1441 = vpop.f32.mrb[0].mxu0
        %v1442 = vadd.f32 %v503, %v1441
        %v1443 = vpop.f32.mrb[0].mxu0
        %1444 = vmatprep.mubr.f32.mxu0 0.0
        %1445 = vmatmul.mubr.f32.gmra.mrb[0].mxu0 %v705
        %v1446 = vpop.f32.mrb[0].mxu0
        %v1447 = vadd.f32 %v503, %v1446
        %v1448 = vpop.f32.mrb[0].mxu0
        %1449 = vmatprep.mubr.f32.mxu0 0.0
        %1450 = vmatmul.mubr.f32.gmra.mrb[0].mxu0 %v708
        %v1451 = vpop.f32.mrb[0].mxu0
        %v1452 = vadd.f32 %v503, %v1451
        %v1453 = vpop.f32.mrb[0].mxu0
        %1454 = vmatprep.mubr.f32.mxu0 0.0
        %1455 = vmatmul.mubr.f32.gmra.mrb[0].mxu0 %v711
        %v1456 = vpop.f32.mrb[0].mxu0
        %v1457 = vadd.f32 %v503, %v1456
        %v1458 = vpop.f32.mrb[0].mxu0
        %1459 = vmatprep.mubr.f32.mxu0 0.0
        %1460 = vmatmul.mubr.f32.gmra.mrb[0].mxu0 %v714
        %v1461 = vpop.f32.mrb[0].mxu0
        %v1462 = vadd.f32 %v503, %v1461
        %v1463 = vpop.f32.mrb[0].mxu0
        %1464 = vmatprep.mubr.f32.mxu0 0.0
        %1465 = vmatmul.mubr.f32.gmra.mrb[0].mxu0 %v717
        %v1466 = vpop.f32.mrb[0].mxu0
        %v1467 = vadd.f32 %v503, %v1466
        %v1468 = vpop.f32.mrb[0].mxu0
        %1469 = vmatprep.mubr.f32.mxu0 0.0
        %1470 = vmatmul.mubr.f32.gmra.mrb[0].mxu0 %v720
        %v1471 = vpop.f32.mrb[0].mxu0
        %v1472 = vadd.f32 %v503, %v1471
        %v1473 = vpop.f32.mrb[0].mxu0
        %1474 = vmatprep.mubr.f32.mxu0 0.0
        %1475 = vmatmul.mubr.f32.gmra.mrb[0].mxu0 %v723
        %v1476 = vpop.f32.mrb[0].mxu0
        %v1477 = vadd.f32 %v503, %v1476
        %v1478 = vpop.f32.mrb[0].mxu0
        %1479 = vmatprep.mubr.f32.mxu0 0.0
        %1480 = vmatmul.mubr.f32.gmra.mrb[0].mxu0 %v726
        %v1481 = vpop.f32.mrb[0].mxu0
        %v1482 = vadd.f32 %v503, %v1481
        %v1483 = vpop.f32.mrb[0].mxu0
        %1484 = vmatprep.mubr.f32.mxu0 0.0
        %1485 = vmatmul.mubr.f32.gmra.mrb[0].mxu0 %v729
        %v1486 = vpop.f32.mrb[0].mxu0
        %v1487 = vadd.f32 %v503, %v1486
        %v1488 = vpop.f32.mrb[0].mxu0
        %1489 = vmatprep.mubr.f32.mxu0 0.0
        %1490 = vmatmul.mubr.f32.gmra.mrb[0].mxu0 %v732
        %v1491 = vpop.f32.mrb[0].mxu0
        %v1492 = vadd.f32 %v503, %v1491
        %v1493 = vpop.f32.mrb[0].mxu0
        %1494 = vmatprep.mubr.f32.mxu0 0.0
        %1495 = vmatmul.mubr.f32.gmra.mrb[0].mxu0 %v735
        %v1496 = vpop.f32.mrb[0].mxu0
        %v1497 = vadd.f32 %v503, %v1496
        %v1498 = vpop.f32.mrb[0].mxu0
        %1499 = vmatprep.mubr.f32.mxu0 0.0
        %1500 = vmatmul.mubr.f32.gmra.mrb[0].mxu0 %v738
        %v1501 = vpop.f32.mrb[0].mxu0
        %v1502 = vadd.f32 %v503, %v1501
        %v1503 = vpop.f32.mrb[0].mxu0
        %1504 = vmatprep.mubr.f32.mxu0 0.0
        %1505 = vmatmul.mubr.f32.gmra.mrb[0].mxu0 %v741
        %v1506 = vpop.f32.mrb[0].mxu0
        %v1507 = vadd.f32 %v503, %v1506
        %v1508 = vpop.f32.mrb[0].mxu0
        %1509 = vmatprep.mubr.f32.mxu0 0.0
        %1510 = vmatmul.mubr.f32.gmra.mrb[0].mxu0 %v744
        %v1511 = vpop.f32.mrb[0].mxu0
        %v1512 = vadd.f32 %v503, %v1511
        %v1513 = vpop.f32.mrb[0].mxu0
        %1514 = vmatprep.mubr.f32.mxu0 0.0
        %1515 = vmatmul.mubr.f32.gmra.mrb[0].mxu0 %v747
        %v1516 = vpop.f32.mrb[0].mxu0
        %v1517 = vadd.f32 %v503, %v1516
        %v1518 = vpop.f32.mrb[0].mxu0
        %1519 = vmatprep.mubr.f32.mxu0 0.0
        %1520 = vmatmul.mubr.f32.gmra.mrb[0].mxu0 %v750
        %v1521 = vpop.f32.mrb[0].mxu0
        %v1522 = vadd.f32 %v503, %v1521
        %v1523 = vpop.f32.mrb[0].mxu0
        %1524 = vmatprep.mubr.f32.mxu0 0.0
        %1525 = vmatmul.mubr.f32.gmra.mrb[0].mxu0 %v753
        %v1526 = vpop.f32.mrb[0].mxu0
        %v1527 = vadd.f32 %v503, %v1526
        %v1528 = vpop.f32.mrb[0].mxu0
        %1529 = vmatprep.mubr.f32.mxu0 0.0
        %1530 = vmatmul.mubr.f32.gmra.mrb[0].mxu0 %v756
        %v1531 = vpop.f32.mrb[0].mxu0
        %v1532 = vadd.f32 %v503, %v1531
        %v1533 = vpop.f32.mrb[0].mxu0
        %1534 = vmatprep.mubr.f32.mxu0 0.0
        %1535 = vmatmul.mubr.f32.gmra.mrb[0].mxu0 %v759
        %v1536 = vpop.f32.mrb[0].mxu0
        %v1537 = vadd.f32 %v503, %v1536
        %v1538 = vpop.f32.mrb[0].mxu0
        %1539 = vmatprep.mubr.f32.mxu0 0.0
        %1540 = vmatmul.mubr.f32.gmra.mrb[0].mxu0 %v762
        %v1541 = vpop.f32.mrb[0].mxu0
        %v1542 = vadd.f32 %v503, %v1541
        %v1543 = vpop.f32.mrb[0].mxu0
        %1544 = vmatprep.mubr.f32.mxu0 0.0
        %1545 = vmatmul.mubr.f32.gmra.mrb[0].mxu0 %v765
        %v1546 = vpop.f32.mrb[0].mxu0
        %v1547 = vadd.f32 %v503, %v1546
        %v1548 = vpop.f32.mrb[0].mxu0
        %1549 = vmatprep.mubr.f32.mxu0 0.0
        %1550 = vmatmul.mubr.f32.gmra.mrb[0].mxu0 %v768
        %v1551 = vpop.f32.mrb[0].mxu0
        %v1552 = vadd.f32 %v503, %v1551
        %v1553 = vpop.f32.mrb[0].mxu0
        %1554 = vmatprep.mubr.f32.mxu0 0.0
        %1555 = vmatmul.mubr.f32.gmra.mrb[0].mxu0 %v771
        %v1556 = vpop.f32.mrb[0].mxu0
        %v1557 = vadd.f32 %v503, %v1556
        %v1558 = vpop.f32.mrb[0].mxu0
        %1559 = vmatprep.mubr.f32.mxu0 0.0
        %1560 = vmatmul.mubr.f32.gmra.mrb[0].mxu0 %v774
        %v1561 = vpop.f32.mrb[0].mxu0
        %v1562 = vadd.f32 %v503, %v1561
        %v1563 = vpop.f32.mrb[0].mxu0
        %1564 = vmatprep.mubr.f32.mxu0 0.0
        %1565 = vmatmul.mubr.f32.gmra.mrb[0].mxu0 %v777
        %v1566 = vpop.f32.mrb[0].mxu0
        %v1567 = vadd.f32 %v503, %v1566
        %v1568 = vpop.f32.mrb[0].mxu0
        %1569 = vmatprep.mubr.f32.mxu0 0.0
        %1570 = vmatmul.mubr.f32.gmra.mrb[0].mxu0 %v780
        %v1571 = vpop.f32.mrb[0].mxu0
        %v1572 = vadd.f32 %v503, %v1571
        %v1573 = vpop.f32.mrb[0].mxu0
        %1574 = vmatprep.mubr.f32.mxu0 0.0
        %1575 = vmatmul.mubr.f32.gmra.mrb[0].mxu0 %v783
        %v1576 = vpop.f32.mrb[0].mxu0
        %v1577 = vadd.f32 %v503, %v1576
        %v1578 = vpop.f32.mrb[0].mxu0
        %1579 = vmatprep.mubr.f32.mxu0 0.0
        %1580 = vmatmul.mubr.f32.gmra.mrb[0].mxu0 %v786
        %v1581 = vpop.f32.mrb[0].mxu0
        %v1582 = vadd.f32 %v503, %v1581
        %v1583 = vpop.f32.mrb[0].mxu0
        %1584 = vmatprep.mubr.f32.mxu0 0.0
        %1585 = vmatmul.mubr.f32.gmra.mrb[0].mxu0 %v789
        %v1586 = vpop.f32.mrb[0].mxu0
        %v1587 = vadd.f32 %v503, %v1586
        %v1588 = vpop.f32.mrb[0].mxu0
        %1589 = vmatprep.mubr.f32.mxu0 0.0
        %1590 = vmatmul.mubr.f32.gmra.mrb[0].mxu0 %v792
        %v1591 = vpop.f32.mrb[0].mxu0
        %v1592 = vadd.f32 %v503, %v1591
        %v1593 = vpop.f32.mrb[0].mxu0
        %1594 = vmatprep.mubr.f32.mxu0 0.0
        %1595 = vmatmul.mubr.f32.gmra.mrb[0].mxu0 %v795
        %v1596 = vpop.f32.mrb[0].mxu0
        %v1597 = vadd.f32 %v503, %v1596
        %v1598 = vpop.f32.mrb[0].mxu0
        %1599 = vmatprep.mubr.f32.mxu0 0.0
        %1600 = vmatmul.mubr.f32.gmra.mrb[0].mxu0 %v798
        %v1601 = vpop.f32.mrb[0].mxu0
        %v1602 = vadd.f32 %v503, %v1601
        %v1603 = vpop.f32.mrb[0].mxu0
        %1604 = vmatprep.mubr.f32.mxu0 0.0
        %1605 = vmatmul.mubr.f32.gmra.mrb[0].mxu0 %v801
        %v1606 = vpop.f32.mrb[0].mxu0
        %v1607 = vadd.f32 %v503, %v1606
        %v1608 = vpop.f32.mrb[0].mxu0
        %1609 = vmatprep.mubr.f32.mxu0 0.0
        %1610 = vmatmul.mubr.f32.gmra.mrb[0].mxu0 %v804
        %v1611 = vpop.f32.mrb[0].mxu0
        %v1612 = vadd.f32 %v503, %v1611
        %v1613 = vpop.f32.mrb[0].mxu0
        %1614 = vmatprep.mubr.f32.mxu0 0.0
        %1615 = vmatmul.mubr.f32.gmra.mrb[0].mxu0 %v807
        %v1616 = vpop.f32.mrb[0].mxu0
        %v1617 = vadd.f32 %v503, %v1616
        %v1618 = vpop.f32.mrb[0].mxu0
        %1619 = vmatprep.mubr.f32.mxu0 0.0
        %1620 = vmatmul.mubr.f32.gmra.mrb[0].mxu0 %v810
        %v1621 = vpop.f32.mrb[0].mxu0
        %v1622 = vadd.f32 %v503, %v1621
        %v1623 = vpop.f32.mrb[0].mxu0
        %1624 = vmatprep.mubr.f32.mxu0 0.0
        %1625 = vmatmul.mubr.f32.gmra.mrb[0].mxu0 %v813
        %v1626 = vpop.f32.mrb[0].mxu0
        %v1627 = vadd.f32 %v503, %v1626
        %v1628 = vpop.f32.mrb[0].mxu0
        %1629 = vmatprep.mubr.f32.mxu0 0.0
        %1630 = vmatmul.mubr.f32.gmra.mrb[0].mxu0 %v816
        %v1631 = vpop.f32.mrb[0].mxu0
        %v1632 = vadd.f32 %v503, %v1631
        %v1633 = vpop.f32.mrb[0].mxu0
        %1634 = vmatprep.mubr.f32.mxu0 0.0
        %1635 = vmatmul.mubr.f32.gmra.mrb[0].mxu0 %v819
        %v1636 = vpop.f32.mrb[0].mxu0
        %v1637 = vadd.f32 %v503, %v1636
        %v1638 = vpop.f32.mrb[0].mxu0
        %1639 = vmatprep.mubr.f32.mxu0 0.0
        %1640 = vmatmul.mubr.f32.gmra.mrb[0].mxu0 %v822
        %v1641 = vpop.f32.mrb[0].mxu0
        %v1642 = vadd.f32 %v503, %v1641
        %v1643 = vpop.f32.mrb[0].mxu0
        %1644 = vmatprep.mubr.f32.mxu0 0.0
        %1645 = vmatmul.mubr.f32.gmra.mrb[0].mxu0 %v825
        %v1646 = vpop.f32.mrb[0].mxu0
        %v1647 = vadd.f32 %v503, %v1646
        %v1648 = vpop.f32.mrb[0].mxu0
        %1649 = vmatprep.mubr.f32.mxu0 0.0
        %1650 = vmatmul.mubr.f32.gmra.mrb[0].mxu0 %v828
        %v1651 = vpop.f32.mrb[0].mxu0
        %v1652 = vadd.f32 %v503, %v1651
        %v1653 = vpop.f32.mrb[0].mxu0
        %1654 = vmatprep.mubr.f32.mxu0 0.0
        %1655 = vmatmul.mubr.f32.gmra.mrb[0].mxu0 %v831
        %v1656 = vpop.f32.mrb[0].mxu0
        %v1657 = vadd.f32 %v503, %v1656
        %v1658 = vpop.f32.mrb[0].mxu0
        %1659 = vmatprep.mubr.f32.mxu0 0.0
        %1660 = vmatmul.mubr.f32.gmra.mrb[0].mxu0 %v834
        %v1661 = vpop.f32.mrb[0].mxu0
        %v1662 = vadd.f32 %v503, %v1661
        %v1663 = vpop.f32.mrb[0].mxu0
        %1664 = vmatprep.mubr.f32.mxu0 0.0
        %1665 = vmatmul.mubr.f32.gmra.mrb[0].mxu0 %v837
        %v1666 = vpop.f32.mrb[0].mxu0
        %v1667 = vadd.f32 %v503, %v1666
        %v1668 = vpop.f32.mrb[0].mxu0
        %1669 = vmatprep.mubr.f32.mxu0 0.0
        %1670 = vmatmul.mubr.f32.gmra.mrb[0].mxu0 %v840
        %v1671 = vpop.f32.mrb[0].mxu0
        %v1672 = vadd.f32 %v503, %v1671
        %v1673 = vpop.f32.mrb[0].mxu0
        %1674 = vmatprep.mubr.f32.mxu0 0.0
        %1675 = vmatmul.mubr.f32.gmra.mrb[0].mxu0 %v843
        %v1676 = vpop.f32.mrb[0].mxu0
        %v1677 = vadd.f32 %v503, %v1676
        %v1678 = vpop.f32.mrb[0].mxu0
        %1679 = vmatprep.mubr.f32.mxu0 0.0
        %1680 = vmatmul.mubr.f32.gmra.mrb[0].mxu0 %v846
        %v1681 = vpop.f32.mrb[0].mxu0
        %v1682 = vadd.f32 %v503, %v1681
        %v1683 = vpop.f32.mrb[0].mxu0
        %1684 = vmatprep.mubr.f32.mxu0 0.0
        %1685 = vmatmul.mubr.f32.gmra.mrb[0].mxu0 %v849
        %v1686 = vpop.f32.mrb[0].mxu0
        %v1687 = vadd.f32 %v503, %v1686
        %v1688 = vpop.f32.mrb[0].mxu0
        %1689 = vmatprep.mubr.f32.mxu0 0.0
        %1690 = vmatmul.mubr.f32.gmra.mrb[0].mxu0 %v852
        %v1691 = vpop.f32.mrb[0].mxu0
        %v1692 = vadd.f32 %v503, %v1691
        %v1693 = vpop.f32.mrb[0].mxu0
        %1694 = vmatprep.mubr.f32.mxu0 0.0
        %1695 = vmatmul.mubr.f32.gmra.mrb[0].mxu0 %v855
        %v1696 = vpop.f32.mrb[0].mxu0
        %v1697 = vadd.f32 %v503, %v1696
        %v1698 = vpop.f32.mrb[0].mxu0
        %1699 = vmatprep.mubr.f32.mxu0 0.0
        %1700 = vmatmul.mubr.f32.gmra.mrb[0].mxu0 %v858
        %v1701 = vpop.f32.mrb[0].mxu0
        %v1702 = vadd.f32 %v503, %v1701
        %v1703 = vpop.f32.mrb[0].mxu0
        %1704 = vmatprep.mubr.f32.mxu0 0.0
        %1705 = vmatmul.mubr.f32.gmra.mrb[0].mxu0 %v861
        %v1706 = vpop.f32.mrb[0].mxu0
        %v1707 = vadd.f32 %v503, %v1706
        %v1708 = vpop.f32.mrb[0].mxu0
        %1709 = vmatprep.mubr.f32.mxu0 0.0
        %1710 = vmatmul.mubr.f32.gmra.mrb[0].mxu0 %v864
        %v1711 = vpop.f32.mrb[0].mxu0
        %v1712 = vadd.f32 %v503, %v1711
        %v1713 = vpop.f32.mrb[0].mxu0
        %1714 = vmatprep.mubr.f32.mxu0 0.0
        %1715 = vmatmul.mubr.f32.gmra.mrb[0].mxu0 %v867
        %v1716 = vpop.f32.mrb[0].mxu0
        %v1717 = vadd.f32 %v503, %v1716
        %v1718 = vpop.f32.mrb[0].mxu0
        %1719 = vmatprep.mubr.f32.mxu0 0.0
        %1720 = vmatmul.mubr.f32.gmra.mrb[0].mxu0 %v870
        %v1721 = vpop.f32.mrb[0].mxu0
        %v1722 = vadd.f32 %v503, %v1721
        %v1723 = vpop.f32.mrb[0].mxu0
        %1724 = vmatprep.mubr.f32.mxu0 0.0
        %1725 = vmatmul.mubr.f32.gmra.mrb[0].mxu0 %v873
        %v1726 = vpop.f32.mrb[0].mxu0
        %v1727 = vadd.f32 %v503, %v1726
        %v1728 = vpop.f32.mrb[0].mxu0
        %1729 = vmatprep.mubr.f32.mxu0 0.0
        %1730 = vmatmul.mubr.f32.gmra.mrb[0].mxu0 %v876
        %v1731 = vpop.f32.mrb[0].mxu0
        %v1732 = vadd.f32 %v503, %v1731
        %v1733 = vpop.f32.mrb[0].mxu0
        %1734 = vmatprep.mubr.f32.mxu0 0.0
        %1735 = vmatmul.mubr.f32.gmra.mrb[0].mxu0 %v879
        %v1736 = vpop.f32.mrb[0].mxu0
        %v1737 = vadd.f32 %v503, %v1736
        %v1738 = vpop.f32.mrb[0].mxu0
        %1739 = vmatprep.mubr.f32.mxu0 0.0
        %1740 = vmatmul.mubr.f32.gmra.mrb[0].mxu0 %v882
        %v1741 = vpop.f32.mrb[0].mxu0
        %v1742 = vadd.f32 %v503, %v1741
        %v1743 = vpop.f32.mrb[0].mxu0
        %1744 = vmatprep.mubr.f32.mxu0 0.0
        %1745 = vmatmul.mubr.f32.gmra.mrb[0].mxu0 %v885
        %v1746 = vpop.f32.mrb[0].mxu0
        %v1747 = vadd.f32 %v503, %v1746
        %v1748 = vpop.f32.mrb[0].mxu0
        %1749 = vmatprep.mubr.f32.mxu0 0.0
        %1750 = vmatmul.mubr.f32.gmra.mrb[0].mxu0 %v888
        %v1751 = vpop.f32.mrb[0].mxu0
        %v1752 = vadd.f32 %v503, %v1751
        %v1753 = vpop.f32.mrb[0].mxu0
        %1754 = vmatprep.mubr.f32.mxu0 0.0
        %1755 = vmatmul.mubr.f32.gmra.mrb[0].mxu0 %v891
        %v1756 = vpop.f32.mrb[0].mxu0
        %v1757 = vadd.f32 %v503, %v1756
        %v1758 = vpop.f32.mrb[0].mxu0
        %1759 = vmatprep.mubr.f32.mxu0 0.0
        %1760 = vmatmul.mubr.f32.gmra.mrb[0].mxu0 %v894
        %v1761 = vpop.f32.mrb[0].mxu0
        %v1762 = vadd.f32 %v503, %v1761
        %v1763 = vpop.f32.mrb[0].mxu0
        %1764 = vmatprep.mubr.f32.mxu0 0.0
        %1765 = vmatmul.mubr.f32.gmra.mrb[0].mxu0 %v897
        %v1766 = vpop.f32.mrb[0].mxu0
        %v1767 = vadd.f32 %v503, %v1766
        %v1768 = vpop.f32.mrb[0].mxu0
        %1769 = vmatprep.mubr.f32.mxu0 0.0
        %1770 = vmatmul.mubr.f32.gmra.mrb[0].mxu0 %v900
        %v1771 = vpop.f32.mrb[0].mxu0
        %v1772 = vadd.f32 %v503, %v1771
        %v1773 = vpop.f32.mrb[0].mxu0
        %1774 = vmatprep.mubr.f32.mxu0 0.0
        %1775 = vmatmul.mubr.f32.gmra.mrb[0].mxu0 %v903
        %v1776 = vpop.f32.mrb[0].mxu0
        %v1777 = vadd.f32 %v503, %v1776
        %v1778 = vpop.f32.mrb[0].mxu0
        %1779 = vmatprep.mubr.f32.mxu0 0.0
        %1780 = vmatmul.mubr.f32.gmra.mrb[0].mxu0 %v906
        %v1781 = vpop.f32.mrb[0].mxu0
        %v1782 = vadd.f32 %v503, %v1781
        %v1783 = vpop.f32.mrb[0].mxu0
        %1784 = vmatprep.mubr.f32.mxu0 0.0
        %1785 = vmatmul.mubr.f32.gmra.mrb[0].mxu0 %v909
        %v1786 = vpop.f32.mrb[0].mxu0
        %v1787 = vadd.f32 %v503, %v1786
        %v1788 = vpop.f32.mrb[0].mxu0
        %1789 = vmatprep.mubr.f32.mxu0 0.0
        %1790 = vmatmul.mubr.f32.gmra.mrb[0].mxu0 %v912
        %v1791 = vpop.f32.mrb[0].mxu0
        %v1792 = vadd.f32 %v503, %v1791
        %v1793 = vpop.f32.mrb[0].mxu0
        %1794 = vmatprep.mubr.f32.mxu0 0.0
        %1795 = vmatmul.mubr.f32.gmra.mrb[0].mxu0 %v915
        %v1796 = vpop.f32.mrb[0].mxu0
        %v1797 = vadd.f32 %v503, %v1796
        %v1798 = vpop.f32.mrb[0].mxu0
        %1799 = vmatprep.mubr.f32.mxu0 0.0
        %1800 = vmatmul.mubr.f32.gmra.mrb[0].mxu0 %v918
        %v1801 = vpop.f32.mrb[0].mxu0
        %v1802 = vadd.f32 %v503, %v1801
        %v1803 = vpop.f32.mrb[0].mxu0
        %1804 = vmatprep.mubr.f32.mxu0 0.0
        %1805 = vmatmul.mubr.f32.gmra.mrb[0].mxu0 %v921
        %v1806 = vpop.f32.mrb[0].mxu0
        %v1807 = vadd.f32 %v503, %v1806
        %v1808 = vpop.f32.mrb[0].mxu0
        %1809 = vmatprep.mubr.f32.mxu0 0.0
        %1810 = vmatmul.mubr.f32.gmra.mrb[0].mxu0 %v924
        %v1811 = vpop.f32.mrb[0].mxu0
        %v1812 = vadd.f32 %v503, %v1811
        %v1813 = vpop.f32.mrb[0].mxu0
        %1814 = vmatprep.mubr.f32.mxu0 0.0
        %1815 = vmatmul.mubr.f32.gmra.mrb[0].mxu0 %v927
        %v1816 = vpop.f32.mrb[0].mxu0
        %v1817 = vadd.f32 %v503, %v1816
        %v1818 = vpop.f32.mrb[0].mxu0
        %1819 = vmatprep.mubr.f32.mxu0 0.0
        %1820 = vmatmul.mubr.f32.gmra.mrb[0].mxu0 %v930
        %v1821 = vpop.f32.mrb[0].mxu0
        %v1822 = vadd.f32 %v503, %v1821
        %v1823 = vpop.f32.mrb[0].mxu0
        %1824 = vmatprep.mubr.f32.mxu0 0.0
        %1825 = vmatmul.mubr.f32.gmra.mrb[0].mxu0 %v933
        %v1826 = vpop.f32.mrb[0].mxu0
        %v1827 = vadd.f32 %v503, %v1826
        %v1828 = vpop.f32.mrb[0].mxu0
        %1829 = vmatprep.mubr.f32.mxu0 0.0
        %1830 = vmatmul.mubr.f32.gmra.mrb[0].mxu0 %v936
        %v1831 = vpop.f32.mrb[0].mxu0
        %v1832 = vadd.f32 %v503, %v1831
        %v1833 = vpop.f32.mrb[0].mxu0
        %1834 = vmatprep.mubr.f32.mxu0 0.0
        %1835 = vmatmul.mubr.f32.gmra.mrb[0].mxu0 %v939
        %v1836 = vpop.f32.mrb[0].mxu0
        %v1837 = vadd.f32 %v503, %v1836
        %v1838 = vpop.f32.mrb[0].mxu0
        %1839 = vmatprep.mubr.f32.mxu0 0.0
        %1840 = vmatmul.mubr.f32.gmra.mrb[0].mxu0 %v942
        %v1841 = vpop.f32.mrb[0].mxu0
        %v1842 = vadd.f32 %v503, %v1841
        %v1843 = vpop.f32.mrb[0].mxu0
        %1844 = vmatprep.mubr.f32.mxu0 0.0
        %1845 = vmatmul.mubr.f32.gmra.mrb[0].mxu0 %v945
        %v1846 = vpop.f32.mrb[0].mxu0
        %v1847 = vadd.f32 %v503, %v1846
        %v1848 = vpop.f32.mrb[0].mxu0
        %1849 = vmatprep.mubr.f32.mxu0 0.0
        %1850 = vmatmul.mubr.f32.gmra.mrb[0].mxu0 %v948
        %v1851 = vpop.f32.mrb[0].mxu0
        %v1852 = vadd.f32 %v503, %v1851
        %v1853 = vpop.f32.mrb[0].mxu0
        %1854 = vmatprep.mubr.f32.mxu0 0.0
        %1855 = vmatmul.mubr.f32.gmra.mrb[0].mxu0 %v951
        %v1856 = vpop.f32.mrb[0].mxu0
        %v1857 = vadd.f32 %v503, %v1856
        %v1858 = vpop.f32.mrb[0].mxu0
        %1859 = vmatprep.mubr.f32.mxu0 0.0
        %1860 = vmatmul.mubr.f32.gmra.mrb[0].mxu0 %v954
        %v1861 = vpop.f32.mrb[0].mxu0
        %v1862 = vadd.f32 %v503, %v1861
        %v1863 = vpop.f32.mrb[0].mxu0
        %1864 = vmatprep.mubr.f32.mxu0 0.0
        %1865 = vmatmul.mubr.f32.gmra.mrb[0].mxu0 %v957
        %v1866 = vpop.f32.mrb[0].mxu0
        %v1867 = vadd.f32 %v503, %v1866
        %v1868 = vpop.f32.mrb[0].mxu0
        %1869 = vmatprep.mubr.f32.mxu0 0.0
        %1870 = vmatmul.mubr.f32.gmra.mrb[0].mxu0 %v960
        %v1871 = vpop.f32.mrb[0].mxu0
        %v1872 = vadd.f32 %v503, %v1871
        %v1873 = vpop.f32.mrb[0].mxu0
        %1874 = vmatprep.mubr.f32.mxu0 0.0
        %1875 = vmatmul.mubr.f32.gmra.mrb[0].mxu0 %v963
        %v1876 = vpop.f32.mrb[0].mxu0
        %v1877 = vadd.f32 %v503, %v1876
        %v1878 = vpop.f32.mrb[0].mxu0
        %1879 = vmatprep.mubr.f32.mxu0 0.0
        %1880 = vmatmul.mubr.f32.gmra.mrb[0].mxu0 %v966
        %v1881 = vpop.f32.mrb[0].mxu0
        %v1882 = vadd.f32 %v503, %v1881
        %v1883 = vpop.f32.mrb[0].mxu0
        %1884 = vmatprep.mubr.f32.mxu0 0.0
        %1885 = vmatmul.mubr.f32.gmra.mrb[0].mxu0 %v969
        %v1886 = vpop.f32.mrb[0].mxu0
        %v1887 = vadd.f32 %v503, %v1886
        %v1888 = vpop.f32.mrb[0].mxu0
        %1889 = vmatprep.mubr.f32.mxu0 0.0
        %1890 = vmatmul.mubr.f32.gmra.mrb[0].mxu0 %v972
        %v1891 = vpop.f32.mrb[0].mxu0
        %v1892 = vadd.f32 %v503, %v1891
        %v1893 = vpop.f32.mrb[0].mxu0
        %1894 = vmatprep.mubr.f32.mxu0 0.0
        %1895 = vmatmul.mubr.f32.gmra.mrb[0].mxu0 %v975
        %v1896 = vpop.f32.mrb[0].mxu0
        %v1897 = vadd.f32 %v503, %v1896
        %v1898 = vpop.f32.mrb[0].mxu0
        %1899 = vmatprep.mubr.f32.mxu0 0.0
        %1900 = vmatmul.mubr.f32.gmra.mrb[0].mxu0 %v978
        %v1901 = vpop.f32.mrb[0].mxu0
        %v1902 = vadd.f32 %v503, %v1901
        %v1903 = vpop.f32.mrb[0].mxu0
        %1904 = vmatprep.mubr.f32.mxu0 0.0
        %1905 = vmatmul.mubr.f32.gmra.mrb[0].mxu0 %v981
        %v1906 = vpop.f32.mrb[0].mxu0
        %v1907 = vadd.f32 %v503, %v1906
        %v1908 = vpop.f32.mrb[0].mxu0
        %1909 = vmatprep.mubr.f32.mxu0 0.0
        %1910 = vmatmul.mubr.f32.gmra.mrb[0].mxu0 %v984
        %v1911 = vpop.f32.mrb[0].mxu0
        %v1912 = vadd.f32 %v503, %v1911
        %v1913 = vpop.f32.mrb[0].mxu0
        %1914 = vmatprep.mubr.f32.mxu0 0.0
        %1915 = vmatmul.mubr.f32.gmra.mrb[0].mxu0 %v987
        %v1916 = vpop.f32.mrb[0].mxu0
        %v1917 = vadd.f32 %v503, %v1916
        %v1918 = vpop.f32.mrb[0].mxu0
        %1919 = vmatprep.mubr.f32.mxu0 0.0
        %1920 = vmatmul.mubr.f32.gmra.mrb[0].mxu0 %v990
        %v1921 = vpop.f32.mrb[0].mxu0
        %v1922 = vadd.f32 %v503, %v1921
        %v1923 = vpop.f32.mrb[0].mxu0
        %1924 = vmatprep.mubr.f32.mxu0 0.0
        %1925 = vmatmul.mubr.f32.gmra.mrb[0].mxu0 %v993
        %v1926 = vpop.f32.mrb[0].mxu0
        %v1927 = vadd.f32 %v503, %v1926
        %v1928 = vpop.f32.mrb[0].mxu0
        %1929 = vmatprep.mubr.f32.mxu0 0.0
        %1930 = vmatmul.mubr.f32.gmra.mrb[0].mxu0 %v996
        %v1931 = vpop.f32.mrb[0].mxu0
        %v1932 = vadd.f32 %v503, %v1931
        %v1933 = vpop.f32.mrb[0].mxu0
        %1934 = vmatprep.mubr.f32.mxu0 0.0
        %1935 = vmatmul.mubr.f32.gmra.mrb[0].mxu0 %v999
        %v1936 = vpop.f32.mrb[0].mxu0
        %v1937 = vadd.f32 %v503, %v1936
        %v1938 = vpop.f32.mrb[0].mxu0
        %1939 = vmatprep.mubr.f32.mxu0 0.0
        %1940 = vmatmul.mubr.f32.gmra.mrb[0].mxu0 %v1002
        %v1941 = vpop.f32.mrb[0].mxu0
        %v1942 = vadd.f32 %v503, %v1941
        %v1943 = vpop.f32.mrb[0].mxu0
        %1944 = vmatprep.mubr.f32.mxu0 0.0
        %1945 = vmatmul.mubr.f32.gmra.mrb[0].mxu0 %v1005
        %v1946 = vpop.f32.mrb[0].mxu0
        %v1947 = vadd.f32 %v503, %v1946
        %v1948 = vpop.f32.mrb[0].mxu0
        %1949 = vmatprep.mubr.f32.mxu0 0.0
        %1950 = vmatmul.mubr.f32.gmra.mrb[0].mxu0 %v1008
        %v1951 = vpop.f32.mrb[0].mxu0
        %v1952 = vadd.f32 %v503, %v1951
        %v1953 = vpop.f32.mrb[0].mxu0
        %1954 = vmatprep.mubr.f32.mxu0 0.0
        %1955 = vmatmul.mubr.f32.gmra.mrb[0].mxu0 %v1011
        %v1956 = vpop.f32.mrb[0].mxu0
        %v1957 = vadd.f32 %v503, %v1956
        %v1958 = vpop.f32.mrb[0].mxu0
        %1959 = vmatprep.mubr.f32.mxu0 0.0
        %1960 = vmatmul.mubr.f32.gmra.mrb[0].mxu0 %v1014
        %v1961 = vpop.f32.mrb[0].mxu0
        %v1962 = vadd.f32 %v503, %v1961
        %v1963 = vpop.f32.mrb[0].mxu0
        %1964 = vmatprep.mubr.f32.mxu0 0.0
        %1965 = vmatmul.mubr.f32.gmra.mrb[0].mxu0 %v1017
        %v1966 = vpop.f32.mrb[0].mxu0
        %v1967 = vadd.f32 %v503, %v1966
        %v1968 = vpop.f32.mrb[0].mxu0
        %1969 = vmatprep.mubr.f32.mxu0 0.0
        %1970 = vmatmul.mubr.f32.gmra.mrb[0].mxu0 %v1020
        %v1971 = vpop.f32.mrb[0].mxu0
        %v1972 = vadd.f32 %v503, %v1971
        %v1973 = vpop.f32.mrb[0].mxu0
        %1974 = vmatprep.mubr.f32.mxu0 0.0
        %1975 = vmatmul.mubr.f32.gmra.mrb[0].mxu0 %v1023
        %v1976 = vpop.f32.mrb[0].mxu0
        %v1977 = vadd.f32 %v503, %v1976
        %v1978 = vpop.f32.mrb[0].mxu0
        %1979 = vmatprep.mubr.f32.mxu0 0.0
        %1980 = vmatmul.mubr.f32.gmra.mrb[0].mxu0 %v1026
        %v1981 = vpop.f32.mrb[0].mxu0
        %v1982 = vadd.f32 %v503, %v1981
        %v1983 = vpop.f32.mrb[0].mxu0
        %1984 = vmatprep.mubr.f32.mxu0 0.0
        %1985 = vmatmul.mubr.f32.gmra.mrb[0].mxu0 %v1029
        %v1986 = vpop.f32.mrb[0].mxu0
        %v1987 = vadd.f32 %v503, %v1986
        %v1988 = vpop.f32.mrb[0].mxu0
        %1989 = vmatprep.mubr.f32.mxu0 0.0
        %1990 = vmatmul.mubr.f32.gmra.mrb[0].mxu0 %v1032
        %v1991 = vpop.f32.mrb[0].mxu0
        %v1992 = vadd.f32 %v503, %v1991
        %v1993 = vpop.f32.mrb[0].mxu0
        %1994 = vmatprep.mubr.f32.mxu0 0.0
        %1995 = vmatmul.mubr.f32.gmra.mrb[0].mxu0 %v1035
        %v1996 = vpop.f32.mrb[0].mxu0
        %v1997 = vadd.f32 %v503, %v1996
        %v1998 = vpop.f32.mrb[0].mxu0
        %1999 = vmatprep.mubr.f32.mxu0 0.0
        %2000 = vmatmul.mubr.f32.gmra.mrb[0].mxu0 %v1038
        %v2001 = vpop.f32.mrb[0].mxu0
        %v2002 = vadd.f32 %v503, %v2001
        %v2003 = vpop.f32.mrb[0].mxu0
        %2004 = vmatprep.mubr.f32.mxu0 0.0
        %2005 = vmatmul.mubr.f32.gmra.mrb[0].mxu0 %v1041
        %v2006 = vpop.f32.mrb[0].mxu0
        %v2007 = vadd.f32 %v503, %v2006
        %v2008 = vpop.f32.mrb[0].mxu0
        %2009 = vmatprep.mubr.f32.mxu0 0.0
        %2010 = vmatmul.mubr.f32.gmra.mrb[0].mxu0 %v1044
        %v2011 = vpop.f32.mrb[0].mxu0
        %v2012 = vadd.f32 %v503, %v2011
        %v2013 = vpop.f32.mrb[0].mxu0
        %2014 = vdwg.mxu0
        %v2015 = vmax.f32 %v1117, 0.0
        %v2016 = vmax.f32 %v1122, 0.0
        %v2017 = vmax.f32 %v1127, 0.0
        %v2018 = vmax.f32 %v1132, 0.0
        %v2019 = vmax.f32 %v1137, 0.0
        %v2020 = vmax.f32 %v1142, 0.0
        %v2021 = vmax.f32 %v1147, 0.0
        %v2022 = vmax.f32 %v1152, 0.0
        %v2023 = vmax.f32 %v1157, 0.0
        %v2024 = vmax.f32 %v1162, 0.0
        %v2025 = vmax.f32 %v1167, 0.0
        %v2026 = vmax.f32 %v1172, 0.0
        %v2027 = vmax.f32 %v1177, 0.0
        %v2028 = vmax.f32 %v1182, 0.0
        %v2029 = vmax.f32 %v1187, 0.0
        %v2030 = vmax.f32 %v1192, 0.0
        %v2031 = vmax.f32 %v1197, 0.0
        %v2032 = vmax.f32 %v1202, 0.0
        %v2033 = vmax.f32 %v1207, 0.0
        %v2034 = vmax.f32 %v1212, 0.0
        %v2035 = vmax.f32 %v1217, 0.0
        %v2036 = vmax.f32 %v1222, 0.0
        %v2037 = vmax.f32 %v1227, 0.0
        %v2038 = vmax.f32 %v1232, 0.0
        %v2039 = vmax.f32 %v1237, 0.0
        %v2040 = vmax.f32 %v1242, 0.0
        %v2041 = vmax.f32 %v1247, 0.0
        %v2042 = vmax.f32 %v1252, 0.0
        %v2043 = vmax.f32 %v1257, 0.0
        %v2044 = vmax.f32 %v1262, 0.0
        %v2045 = vmax.f32 %v1267, 0.0
        %v2046 = vmax.f32 %v1272, 0.0
        %v2047 = vmax.f32 %v1277, 0.0
        %v2048 = vmax.f32 %v1282, 0.0
        %v2049 = vmax.f32 %v1287, 0.0
        %v2050 = vmax.f32 %v1292, 0.0
        %v2051 = vmax.f32 %v1297, 0.0
        %v2052 = vmax.f32 %v1302, 0.0
        %v2053 = vmax.f32 %v1307, 0.0
        %v2054 = vmax.f32 %v1312, 0.0
        %v2055 = vmax.f32 %v1317, 0.0
        %v2056 = vmax.f32 %v1322, 0.0
        %v2057 = vmax.f32 %v1327, 0.0
        %v2058 = vmax.f32 %v1332, 0.0
        %v2059 = vmax.f32 %v1337, 0.0
        %v2060 = vmax.f32 %v1342, 0.0
        %v2061 = vmax.f32 %v1347, 0.0
        %v2062 = vmax.f32 %v1352, 0.0
        %v2063 = vmax.f32 %v1357, 0.0
        %v2064 = vmax.f32 %v1362, 0.0
        %v2065 = vmax.f32 %v1367, 0.0
        %v2066 = vmax.f32 %v1372, 0.0
        %v2067 = vmax.f32 %v1377, 0.0
        %v2068 = vmax.f32 %v1382, 0.0
        %v2069 = vmax.f32 %v1387, 0.0
        %v2070 = vmax.f32 %v1392, 0.0
        %v2071 = vmax.f32 %v1397, 0.0
        %v2072 = vmax.f32 %v1402, 0.0
        %v2073 = vmax.f32 %v1407, 0.0
        %v2074 = vmax.f32 %v1412, 0.0
        %v2075 = vmax.f32 %v1417, 0.0
        %v2076 = vmax.f32 %v1422, 0.0
        %v2077 = vmax.f32 %v1427, 0.0
        %v2078 = vmax.f32 %v1432, 0.0
        %v2079 = vmax.f32 %v1437, 0.0
        %v2080 = vmax.f32 %v1442, 0.0
        %v2081 = vmax.f32 %v1447, 0.0
        %v2082 = vmax.f32 %v1452, 0.0
        %v2083 = vmax.f32 %v1457, 0.0
        %v2084 = vmax.f32 %v1462, 0.0
        %v2085 = vmax.f32 %v1467, 0.0
        %v2086 = vmax.f32 %v1472, 0.0
        %v2087 = vmax.f32 %v1477, 0.0
        %v2088 = vmax.f32 %v1482, 0.0
        %v2089 = vmax.f32 %v1487, 0.0
        %v2090 = vmax.f32 %v1492, 0.0
        %v2091 = vmax.f32 %v1497, 0.0
        %v2092 = vmax.f32 %v1502, 0.0
        %v2093 = vmax.f32 %v1507, 0.0
        %v2094 = vmax.f32 %v1512, 0.0
        %v2095 = vmax.f32 %v1517, 0.0
        %v2096 = vmax.f32 %v1522, 0.0
        %v2097 = vmax.f32 %v1527, 0.0
        %v2098 = vmax.f32 %v1532, 0.0
        %v2099 = vmax.f32 %v1537, 0.0
        %v2100 = vmax.f32 %v1542, 0.0
        %v2101 = vmax.f32 %v1547, 0.0
        %v2102 = vmax.f32 %v1552, 0.0
        %v2103 = vmax.f32 %v1557, 0.0
        %v2104 = vmax.f32 %v1562, 0.0
        %v2105 = vmax.f32 %v1567, 0.0
        %v2106 = vmax.f32 %v1572, 0.0
        %v2107 = vmax.f32 %v1577, 0.0
        %v2108 = vmax.f32 %v1582, 0.0
        %v2109 = vmax.f32 %v1587, 0.0
        %v2110 = vmax.f32 %v1592, 0.0
        %v2111 = vmax.f32 %v1597, 0.0
        %v2112 = vmax.f32 %v1602, 0.0
        %v2113 = vmax.f32 %v1607, 0.0
        %v2114 = vmax.f32 %v1612, 0.0
        %v2115 = vmax.f32 %v1617, 0.0
        %v2116 = vmax.f32 %v1622, 0.0
        %v2117 = vmax.f32 %v1627, 0.0
        %v2118 = vmax.f32 %v1632, 0.0
        %v2119 = vmax.f32 %v1637, 0.0
        %v2120 = vmax.f32 %v1642, 0.0
        %v2121 = vmax.f32 %v1647, 0.0
        %v2122 = vmax.f32 %v1652, 0.0
        %v2123 = vmax.f32 %v1657, 0.0
        %v2124 = vmax.f32 %v1662, 0.0
        %v2125 = vmax.f32 %v1667, 0.0
        %v2126 = vmax.f32 %v1672, 0.0
        %v2127 = vmax.f32 %v1677, 0.0
        %v2128 = vmax.f32 %v1682, 0.0
        %v2129 = vmax.f32 %v1687, 0.0
        %v2130 = vmax.f32 %v1692, 0.0
        %v2131 = vmax.f32 %v1697, 0.0
        %v2132 = vmax.f32 %v1702, 0.0
        %v2133 = vmax.f32 %v1707, 0.0
        %v2134 = vmax.f32 %v1712, 0.0
        %v2135 = vmax.f32 %v1717, 0.0
        %v2136 = vmax.f32 %v1722, 0.0
        %v2137 = vmax.f32 %v1727, 0.0
        %v2138 = vmax.f32 %v1732, 0.0
        %v2139 = vmax.f32 %v1737, 0.0
        %v2140 = vmax.f32 %v1742, 0.0
        %v2141 = vmax.f32 %v1747, 0.0
        %v2142 = vmax.f32 %v1752, 0.0
        %v2143 = vmax.f32 %v1757, 0.0
        %v2144 = vmax.f32 %v1762, 0.0
        %v2145 = vmax.f32 %v1767, 0.0
        %v2146 = vmax.f32 %v1772, 0.0
        %v2147 = vmax.f32 %v1777, 0.0
        %v2148 = vmax.f32 %v1782, 0.0
        %v2149 = vmax.f32 %v1787, 0.0
        %v2150 = vmax.f32 %v1792, 0.0
        %v2151 = vmax.f32 %v1797, 0.0
        %v2152 = vmax.f32 %v1802, 0.0
        %v2153 = vmax.f32 %v1807, 0.0
        %v2154 = vmax.f32 %v1812, 0.0
        %v2155 = vmax.f32 %v1817, 0.0
        %v2156 = vmax.f32 %v1822, 0.0
        %v2157 = vmax.f32 %v1827, 0.0
        %v2158 = vmax.f32 %v1832, 0.0
        %v2159 = vmax.f32 %v1837, 0.0
        %v2160 = vmax.f32 %v1842, 0.0
        %v2161 = vmax.f32 %v1847, 0.0
        %v2162 = vmax.f32 %v1852, 0.0
        %v2163 = vmax.f32 %v1857, 0.0
        %v2164 = vmax.f32 %v1862, 0.0
        %v2165 = vmax.f32 %v1867, 0.0
        %v2166 = vmax.f32 %v1872, 0.0
        %v2167 = vmax.f32 %v1877, 0.0
        %v2168 = vmax.f32 %v1882, 0.0
        %v2169 = vmax.f32 %v1887, 0.0
        %v2170 = vmax.f32 %v1892, 0.0
        %v2171 = vmax.f32 %v1897, 0.0
        %v2172 = vmax.f32 %v1902, 0.0
        %v2173 = vmax.f32 %v1907, 0.0
        %v2174 = vmax.f32 %v1912, 0.0
        %v2175 = vmax.f32 %v1917, 0.0
        %v2176 = vmax.f32 %v1922, 0.0
        %v2177 = vmax.f32 %v1927, 0.0
        %v2178 = vmax.f32 %v1932, 0.0
        %v2179 = vmax.f32 %v1937, 0.0
        %v2180 = vmax.f32 %v1942, 0.0
        %v2181 = vmax.f32 %v1947, 0.0
        %v2182 = vmax.f32 %v1952, 0.0
        %v2183 = vmax.f32 %v1957, 0.0
        %v2184 = vmax.f32 %v1962, 0.0
        %v2185 = vmax.f32 %v1967, 0.0
        %v2186 = vmax.f32 %v1972, 0.0
        %v2187 = vmax.f32 %v1977, 0.0
        %v2188 = vmax.f32 %v1982, 0.0
        %v2189 = vmax.f32 %v1987, 0.0
        %v2190 = vmax.f32 %v1992, 0.0
        %v2191 = vmax.f32 %v1997, 0.0
        %v2192 = vmax.f32 %v2002, 0.0
        %v2193 = vmax.f32 %v2007, 0.0
        %v2194 = vmax.f32 %v2012, 0.0
        %s2195 = scalar_lea.vmem %s261, 1440 [#allocation2]
        %v2196 = vld [vmem:[%s2195] sm:$0xff]
        %v2197 = vld [vmem:[%s2195 + $0x8] sm:$0xff]
        %v2198 = vld [vmem:[%s2195 + $0x10] sm:$0xff]
        %v2199 = vld [vmem:[%s2195 + $0x18] sm:$0xff]
        %v2200 = vld [vmem:[%s2195 + $0x20] sm:$0xff]
        %v2201 = vld [vmem:[%s2195 + $0x28] sm:$0xff]
        %v2202 = vld [vmem:[%s2195 + $0x30] sm:$0xff]
        %v2203 = vld [vmem:[%s2195 + $0x38] sm:$0xff]
        %v2204 = vld [vmem:[%s2195 + $0x40] sm:$0xff]
        %v2205 = vld [vmem:[%s2195 + $0x48] sm:$0xff]
        %v2206 = vld [vmem:[%s2195 + $0x50] sm:$0xff]
        %v2207 = vld [vmem:[%s2195 + $0x58] sm:$0xff]
        %v2208 = vld [vmem:[%s2195 + $0x60] sm:$0xff]
        %v2209 = vld [vmem:[%s2195 + $0x68] sm:$0xff]
        %v2210 = vld [vmem:[%s2195 + $0x70] sm:$0xff]
        %v2211 = vld [vmem:[%s2195 + $0x78] sm:$0xff]
        %v2212 = vld [vmem:[%s2195 + $0x80] sm:$0xff]
        %v2213 = vld [vmem:[%s2195 + $0x88] sm:$0xff]
        %v2214 = vld [vmem:[%s2195 + $0x90] sm:$0xff]
        %v2215 = vld [vmem:[%s2195 + $0x98] sm:$0xff]
        %v2216 = vld [vmem:[%s2195 + $0xa0] sm:$0xff]
        %v2217 = vld [vmem:[%s2195 + $0xa8] sm:$0xff]
        %v2218 = vld [vmem:[%s2195 + $0xb0] sm:$0xff]
        %v2219 = vld [vmem:[%s2195 + $0xb8] sm:$0xff]
        %v2220 = vld [vmem:[%s2195 + $0xc0] sm:$0xff]
        %v2221 = vld [vmem:[%s2195 + $0xc8] sm:$0xff]
        %v2222 = vld [vmem:[%s2195 + $0xd0] sm:$0xff]
        %v2223 = vld [vmem:[%s2195 + $0xd8] sm:$0xff]
        %v2224 = vld [vmem:[%s2195 + $0xe0] sm:$0xff]
        %v2225 = vld [vmem:[%s2195 + $0xe8] sm:$0xff]
        %v2226 = vld [vmem:[%s2195 + $0xf0] sm:$0xff]
        %v2227 = vld [vmem:[%s2195 + $0xf8] sm:$0xff]
        %v2228 = vld [vmem:[%s2195 + $0x100] sm:$0xff]
        %v2229 = vld [vmem:[%s2195 + $0x108] sm:$0xff]
        %v2230 = vld [vmem:[%s2195 + $0x110] sm:$0xff]
        %v2231 = vld [vmem:[%s2195 + $0x118] sm:$0xff]
        %v2232 = vld [vmem:[%s2195 + $0x120] sm:$0xff]
        %v2233 = vld [vmem:[%s2195 + $0x128] sm:$0xff]
        %v2234 = vld [vmem:[%s2195 + $0x130] sm:$0xff]
        %v2235 = vld [vmem:[%s2195 + $0x138] sm:$0xff]
        %v2236 = vld [vmem:[%s2195 + $0x140] sm:$0xff]
        %v2237 = vld [vmem:[%s2195 + $0x148] sm:$0xff]
        %v2238 = vld [vmem:[%s2195 + $0x150] sm:$0xff]
        %v2239 = vld [vmem:[%s2195 + $0x158] sm:$0xff]
        %v2240 = vld [vmem:[%s2195 + $0x160] sm:$0xff]
        %v2241 = vld [vmem:[%s2195 + $0x168] sm:$0xff]
        %v2242 = vld [vmem:[%s2195 + $0x170] sm:$0xff]
        %v2243 = vld [vmem:[%s2195 + $0x178] sm:$0xff]
        %v2244 = vld [vmem:[%s2195 + $0x180] sm:$0xff]
        %v2245 = vld [vmem:[%s2195 + $0x188] sm:$0xff]
        %v2246 = vld [vmem:[%s2195 + $0x190] sm:$0xff]
        %v2247 = vld [vmem:[%s2195 + $0x198] sm:$0xff]
        %v2248 = vld [vmem:[%s2195 + $0x1a0] sm:$0xff]
        %v2249 = vld [vmem:[%s2195 + $0x1a8] sm:$0xff]
        %v2250 = vld [vmem:[%s2195 + $0x1b0] sm:$0xff]
        %v2251 = vld [vmem:[%s2195 + $0x1b8] sm:$0xff]
        %v2252 = vld [vmem:[%s2195 + $0x1c0] sm:$0xff]
        %v2253 = vld [vmem:[%s2195 + $0x1c8] sm:$0xff]
        %v2254 = vld [vmem:[%s2195 + $0x1d0] sm:$0xff]
        %v2255 = vld [vmem:[%s2195 + $0x1d8] sm:$0xff]
        %v2256 = vld [vmem:[%s2195 + $0x1e0] sm:$0xff]
        %v2257 = vld [vmem:[%s2195 + $0x1e8] sm:$0xff]
        %v2258 = vld [vmem:[%s2195 + $0x1f0] sm:$0xff]
        %v2259 = vld [vmem:[%s2195 + $0x1f8] sm:$0xff]
        %v2260 = vld [vmem:[%s2195 + $0x200] sm:$0xff]
        %v2261 = vld [vmem:[%s2195 + $0x208] sm:$0xff]
        %v2262 = vld [vmem:[%s2195 + $0x210] sm:$0xff]
        %v2263 = vld [vmem:[%s2195 + $0x218] sm:$0xff]
        %v2264 = vld [vmem:[%s2195 + $0x220] sm:$0xff]
        %v2265 = vld [vmem:[%s2195 + $0x228] sm:$0xff]
        %v2266 = vld [vmem:[%s2195 + $0x230] sm:$0xff]
        %v2267 = vld [vmem:[%s2195 + $0x238] sm:$0xff]
        %v2268 = vld [vmem:[%s2195 + $0x240] sm:$0xff]
        %v2269 = vld [vmem:[%s2195 + $0x248] sm:$0xff]
        %v2270 = vld [vmem:[%s2195 + $0x250] sm:$0xff]
        %v2271 = vld [vmem:[%s2195 + $0x258] sm:$0xff]
        %v2272 = vld [vmem:[%s2195 + $0x260] sm:$0xff]
        %v2273 = vld [vmem:[%s2195 + $0x268] sm:$0xff]
        %v2274 = vld [vmem:[%s2195 + $0x270] sm:$0xff]
        %v2275 = vld [vmem:[%s2195 + $0x278] sm:$0xff]
        %v2276 = vld [vmem:[%s2195 + $0x280] sm:$0xff]
        %v2277 = vld [vmem:[%s2195 + $0x288] sm:$0xff]
        %v2278 = vld [vmem:[%s2195 + $0x290] sm:$0xff]
        %v2279 = vld [vmem:[%s2195 + $0x298] sm:$0xff]
        %v2280 = vld [vmem:[%s2195 + $0x2a0] sm:$0xff]
        %v2281 = vld [vmem:[%s2195 + $0x2a8] sm:$0xff]
        %v2282 = vld [vmem:[%s2195 + $0x2b0] sm:$0xff]
        %v2283 = vld [vmem:[%s2195 + $0x2b8] sm:$0xff]
        %v2284 = vld [vmem:[%s2195 + $0x2c0] sm:$0xff]
        %v2285 = vld [vmem:[%s2195 + $0x2c8] sm:$0xff]
        %v2286 = vld [vmem:[%s2195 + $0x2d0] sm:$0xff]
        %v2287 = vld [vmem:[%s2195 + $0x2d8] sm:$0xff]
        %v2288 = vld [vmem:[%s2195 + $0x2e0] sm:$0xff]
        %v2289 = vld [vmem:[%s2195 + $0x2e8] sm:$0xff]
        %v2290 = vld [vmem:[%s2195 + $0x2f0] sm:$0xff]
        %v2291 = vld [vmem:[%s2195 + $0x2f8] sm:$0xff]
        %v2292 = vld [vmem:[%s2195 + $0x300] sm:$0xff]
        %v2293 = vld [vmem:[%s2195 + $0x308] sm:$0xff]
        %v2294 = vld [vmem:[%s2195 + $0x310] sm:$0xff]
        %v2295 = vld [vmem:[%s2195 + $0x318] sm:$0xff]
        %v2296 = vld [vmem:[%s2195 + $0x320] sm:$0xff]
        %v2297 = vld [vmem:[%s2195 + $0x328] sm:$0xff]
        %v2298 = vld [vmem:[%s2195 + $0x330] sm:$0xff]
        %v2299 = vld [vmem:[%s2195 + $0x338] sm:$0xff]
        %v2300 = vld [vmem:[%s2195 + $0x340] sm:$0xff]
        %v2301 = vld [vmem:[%s2195 + $0x348] sm:$0xff]
        %v2302 = vld [vmem:[%s2195 + $0x350] sm:$0xff]
        %v2303 = vld [vmem:[%s2195 + $0x358] sm:$0xff]
        %v2304 = vld [vmem:[%s2195 + $0x360] sm:$0xff]
        %v2305 = vld [vmem:[%s2195 + $0x368] sm:$0xff]
        %v2306 = vld [vmem:[%s2195 + $0x370] sm:$0xff]
        %v2307 = vld [vmem:[%s2195 + $0x378] sm:$0xff]
        %v2308 = vld [vmem:[%s2195 + $0x380] sm:$0xff]
        %v2309 = vld [vmem:[%s2195 + $0x388] sm:$0xff]
        %v2310 = vld [vmem:[%s2195 + $0x390] sm:$0xff]
        %v2311 = vld [vmem:[%s2195 + $0x398] sm:$0xff]
        %v2312 = vld [vmem:[%s2195 + $0x3a0] sm:$0xff]
        %v2313 = vld [vmem:[%s2195 + $0x3a8] sm:$0xff]
        %v2314 = vld [vmem:[%s2195 + $0x3b0] sm:$0xff]
        %v2315 = vld [vmem:[%s2195 + $0x3b8] sm:$0xff]
        %v2316 = vld [vmem:[%s2195 + $0x3c0] sm:$0xff]
        %v2317 = vld [vmem:[%s2195 + $0x3c8] sm:$0xff]
        %v2318 = vld [vmem:[%s2195 + $0x3d0] sm:$0xff]
        %v2319 = vld [vmem:[%s2195 + $0x3d8] sm:$0xff]
        %v2320 = vld [vmem:[%s2195 + $0x3e0] sm:$0xff]
        %v2321 = vld [vmem:[%s2195 + $0x3e8] sm:$0xff]
        %v2322 = vld [vmem:[%s2195 + $0x3f0] sm:$0xff]
        %v2323 = vld [vmem:[%s2195 + $0x3f8] sm:$0xff]
        %v2324 = vld [vmem:[%s2195 + $0x400] sm:$0xff]
        %v2325 = vld [vmem:[%s2195 + $0x408] sm:$0xff]
        %v2326 = vld [vmem:[%s2195 + $0x410] sm:$0xff]
        %v2327 = vld [vmem:[%s2195 + $0x418] sm:$0xff]
        %v2328 = vld [vmem:[%s2195 + $0x420] sm:$0xff]
        %v2329 = vld [vmem:[%s2195 + $0x428] sm:$0xff]
        %v2330 = vld [vmem:[%s2195 + $0x430] sm:$0xff]
        %v2331 = vld [vmem:[%s2195 + $0x438] sm:$0xff]
        %v2332 = vld [vmem:[%s2195 + $0x440] sm:$0xff]
        %v2333 = vld [vmem:[%s2195 + $0x448] sm:$0xff]
        %v2334 = vld [vmem:[%s2195 + $0x450] sm:$0xff]
        %v2335 = vld [vmem:[%s2195 + $0x458] sm:$0xff]
        %v2336 = vld [vmem:[%s2195 + $0x460] sm:$0xff]
        %v2337 = vld [vmem:[%s2195 + $0x468] sm:$0xff]
        %v2338 = vld [vmem:[%s2195 + $0x470] sm:$0xff]
        %v2339 = vld [vmem:[%s2195 + $0x478] sm:$0xff]
        %v2340 = vld [vmem:[%s2195 + $0x480] sm:$0xff]
        %v2341 = vld [vmem:[%s2195 + $0x488] sm:$0xff]
        %v2342 = vld [vmem:[%s2195 + $0x490] sm:$0xff]
        %v2343 = vld [vmem:[%s2195 + $0x498] sm:$0xff]
        %v2344 = vld [vmem:[%s2195 + $0x4a0] sm:$0xff]
        %v2345 = vld [vmem:[%s2195 + $0x4a8] sm:$0xff]
        %v2346 = vld [vmem:[%s2195 + $0x4b0] sm:$0xff]
        %v2347 = vld [vmem:[%s2195 + $0x4b8] sm:$0xff]
        %v2348 = vld [vmem:[%s2195 + $0x4c0] sm:$0xff]
        %v2349 = vld [vmem:[%s2195 + $0x4c8] sm:$0xff]
        %v2350 = vld [vmem:[%s2195 + $0x4d0] sm:$0xff]
        %v2351 = vld [vmem:[%s2195 + $0x4d8] sm:$0xff]
        %v2352 = vld [vmem:[%s2195 + $0x4e0] sm:$0xff]
        %v2353 = vld [vmem:[%s2195 + $0x4e8] sm:$0xff]
        %v2354 = vld [vmem:[%s2195 + $0x4f0] sm:$0xff]
        %v2355 = vld [vmem:[%s2195 + $0x4f8] sm:$0xff]
        %v2356 = vld [vmem:[%s2195 + $0x500] sm:$0xff]
        %v2357 = vld [vmem:[%s2195 + $0x508] sm:$0xff]
        %v2358 = vld [vmem:[%s2195 + $0x510] sm:$0xff]
        %v2359 = vld [vmem:[%s2195 + $0x518] sm:$0xff]
        %v2360 = vld [vmem:[%s2195 + $0x520] sm:$0xff]
        %v2361 = vld [vmem:[%s2195 + $0x528] sm:$0xff]
        %v2362 = vld [vmem:[%s2195 + $0x530] sm:$0xff]
        %v2363 = vld [vmem:[%s2195 + $0x538] sm:$0xff]
        %v2364 = vld [vmem:[%s2195 + $0x540] sm:$0xff]
        %v2365 = vld [vmem:[%s2195 + $0x548] sm:$0xff]
        %v2366 = vld [vmem:[%s2195 + $0x550] sm:$0xff]
        %v2367 = vld [vmem:[%s2195 + $0x558] sm:$0xff]
        %v2368 = vld [vmem:[%s2195 + $0x560] sm:$0xff]
        %v2369 = vld [vmem:[%s2195 + $0x568] sm:$0xff]
        %v2370 = vld [vmem:[%s2195 + $0x570] sm:$0xff]
        %v2371 = vld [vmem:[%s2195 + $0x578] sm:$0xff]
        %v2372 = vld [vmem:[%s2195 + $0x580] sm:$0xff]
        %v2373 = vld [vmem:[%s2195 + $0x588] sm:$0xff]
        %v2374 = vld [vmem:[%s2195 + $0x590] sm:$0xff]
        %v2375 = vld [vmem:[%s2195 + $0x598] sm:$0xff]
        %v2377 = vsel %vm505, %v2196, 0
        %v2380 = vsel %vm505, %v2197, 0
        %v2383 = vsel %vm505, %v2198, 0
        %v2386 = vsel %vm505, %v2199, 0
        %v2389 = vsel %vm505, %v2200, 0
        %v2392 = vsel %vm505, %v2201, 0
        %v2395 = vsel %vm505, %v2202, 0
        %v2398 = vsel %vm505, %v2203, 0
        %v2401 = vsel %vm505, %v2204, 0
        %v2404 = vsel %vm505, %v2205, 0
        %v2407 = vsel %vm505, %v2206, 0
        %v2410 = vsel %vm505, %v2207, 0
        %v2413 = vsel %vm505, %v2208, 0
        %v2416 = vsel %vm505, %v2209, 0
        %v2419 = vsel %vm505, %v2210, 0
        %v2422 = vsel %vm505, %v2211, 0
        %v2425 = vsel %vm505, %v2212, 0
        %v2428 = vsel %vm505, %v2213, 0
        %v2431 = vsel %vm505, %v2214, 0
        %v2434 = vsel %vm505, %v2215, 0
        %v2437 = vsel %vm505, %v2216, 0
        %v2440 = vsel %vm505, %v2217, 0
        %v2443 = vsel %vm505, %v2218, 0
        %v2446 = vsel %vm505, %v2219, 0
        %v2449 = vsel %vm505, %v2220, 0
        %v2452 = vsel %vm505, %v2221, 0
        %v2455 = vsel %vm505, %v2222, 0
        %v2458 = vsel %vm505, %v2223, 0
        %v2461 = vsel %vm505, %v2224, 0
        %v2464 = vsel %vm505, %v2225, 0
        %v2467 = vsel %vm505, %v2226, 0
        %v2470 = vsel %vm505, %v2227, 0
        %v2473 = vsel %vm505, %v2228, 0
        %v2476 = vsel %vm505, %v2229, 0
        %v2479 = vsel %vm505, %v2230, 0
        %v2482 = vsel %vm505, %v2231, 0
        %v2485 = vsel %vm505, %v2232, 0
        %v2488 = vsel %vm505, %v2233, 0
        %v2491 = vsel %vm505, %v2234, 0
        %v2494 = vsel %vm505, %v2235, 0
        %v2497 = vsel %vm505, %v2236, 0
        %v2500 = vsel %vm505, %v2237, 0
        %v2503 = vsel %vm505, %v2238, 0
        %v2506 = vsel %vm505, %v2239, 0
        %v2509 = vsel %vm505, %v2240, 0
        %v2512 = vsel %vm505, %v2241, 0
        %v2515 = vsel %vm505, %v2242, 0
        %v2518 = vsel %vm505, %v2243, 0
        %v2521 = vsel %vm505, %v2244, 0
        %v2524 = vsel %vm505, %v2245, 0
        %v2527 = vsel %vm505, %v2246, 0
        %v2530 = vsel %vm505, %v2247, 0
        %v2533 = vsel %vm505, %v2248, 0
        %v2536 = vsel %vm505, %v2249, 0
        %v2539 = vsel %vm505, %v2250, 0
        %v2542 = vsel %vm505, %v2251, 0
        %v2545 = vsel %vm505, %v2252, 0
        %v2548 = vsel %vm505, %v2253, 0
        %v2551 = vsel %vm505, %v2254, 0
        %v2554 = vsel %vm505, %v2255, 0
        %v2557 = vsel %vm505, %v2256, 0
        %v2560 = vsel %vm505, %v2257, 0
        %v2563 = vsel %vm505, %v2258, 0
        %v2566 = vsel %vm505, %v2259, 0
        %v2569 = vsel %vm505, %v2260, 0
        %v2572 = vsel %vm505, %v2261, 0
        %v2575 = vsel %vm505, %v2262, 0
        %v2578 = vsel %vm505, %v2263, 0
        %v2581 = vsel %vm505, %v2264, 0
        %v2584 = vsel %vm505, %v2265, 0
        %v2587 = vsel %vm505, %v2266, 0
        %v2590 = vsel %vm505, %v2267, 0
        %v2593 = vsel %vm505, %v2268, 0
        %v2596 = vsel %vm505, %v2269, 0
        %v2599 = vsel %vm505, %v2270, 0
        %v2602 = vsel %vm505, %v2271, 0
        %v2605 = vsel %vm505, %v2272, 0
        %v2608 = vsel %vm505, %v2273, 0
        %v2611 = vsel %vm505, %v2274, 0
        %v2614 = vsel %vm505, %v2275, 0
        %v2617 = vsel %vm505, %v2276, 0
        %v2620 = vsel %vm505, %v2277, 0
        %v2623 = vsel %vm505, %v2278, 0
        %v2626 = vsel %vm505, %v2279, 0
        %v2629 = vsel %vm505, %v2280, 0
        %v2632 = vsel %vm505, %v2281, 0
        %v2635 = vsel %vm505, %v2282, 0
        %v2638 = vsel %vm505, %v2283, 0
        %v2641 = vsel %vm505, %v2284, 0
        %v2644 = vsel %vm505, %v2285, 0
        %v2647 = vsel %vm505, %v2286, 0
        %v2650 = vsel %vm505, %v2287, 0
        %v2653 = vsel %vm505, %v2288, 0
        %v2656 = vsel %vm505, %v2289, 0
        %v2659 = vsel %vm505, %v2290, 0
        %v2662 = vsel %vm505, %v2291, 0
        %v2665 = vsel %vm505, %v2292, 0
        %v2668 = vsel %vm505, %v2293, 0
        %v2671 = vsel %vm505, %v2294, 0
        %v2674 = vsel %vm505, %v2295, 0
        %v2677 = vsel %vm505, %v2296, 0
        %v2680 = vsel %vm505, %v2297, 0
        %v2683 = vsel %vm505, %v2298, 0
        %v2686 = vsel %vm505, %v2299, 0
        %v2689 = vsel %vm505, %v2300, 0
        %v2692 = vsel %vm505, %v2301, 0
        %v2695 = vsel %vm505, %v2302, 0
        %v2698 = vsel %vm505, %v2303, 0
        %v2701 = vsel %vm505, %v2304, 0
        %v2704 = vsel %vm505, %v2305, 0
        %v2707 = vsel %vm505, %v2306, 0
        %v2710 = vsel %vm505, %v2307, 0
        %v2713 = vsel %vm505, %v2308, 0
        %v2716 = vsel %vm505, %v2309, 0
        %v2719 = vsel %vm505, %v2310, 0
        %v2722 = vsel %vm505, %v2311, 0
        %v2725 = vsel %vm505, %v2312, 0
        %v2728 = vsel %vm505, %v2313, 0
        %v2731 = vsel %vm505, %v2314, 0
        %v2734 = vsel %vm505, %v2315, 0
        %v2737 = vsel %vm505, %v2316, 0
        %v2740 = vsel %vm505, %v2317, 0
        %v2743 = vsel %vm505, %v2318, 0
        %v2746 = vsel %vm505, %v2319, 0
        %v2749 = vsel %vm505, %v2320, 0
        %v2752 = vsel %vm505, %v2321, 0
        %v2755 = vsel %vm505, %v2322, 0
        %v2758 = vsel %vm505, %v2323, 0
        %v2761 = vsel %vm505, %v2324, 0
        %v2764 = vsel %vm505, %v2325, 0
        %v2767 = vsel %vm505, %v2326, 0
        %v2770 = vsel %vm505, %v2327, 0
        %v2773 = vsel %vm505, %v2328, 0
        %v2776 = vsel %vm505, %v2329, 0
        %v2779 = vsel %vm505, %v2330, 0
        %v2782 = vsel %vm505, %v2331, 0
        %v2785 = vsel %vm505, %v2332, 0
        %v2788 = vsel %vm505, %v2333, 0
        %v2791 = vsel %vm505, %v2334, 0
        %v2794 = vsel %vm505, %v2335, 0
        %v2797 = vsel %vm505, %v2336, 0
        %v2800 = vsel %vm505, %v2337, 0
        %v2803 = vsel %vm505, %v2338, 0
        %v2806 = vsel %vm505, %v2339, 0
        %v2809 = vsel %vm505, %v2340, 0
        %v2812 = vsel %vm505, %v2341, 0
        %v2815 = vsel %vm505, %v2342, 0
        %v2818 = vsel %vm505, %v2343, 0
        %v2821 = vsel %vm505, %v2344, 0
        %v2824 = vsel %vm505, %v2345, 0
        %v2827 = vsel %vm505, %v2346, 0
        %v2830 = vsel %vm505, %v2347, 0
        %v2833 = vsel %vm505, %v2348, 0
        %v2836 = vsel %vm505, %v2349, 0
        %v2839 = vsel %vm505, %v2350, 0
        %v2842 = vsel %vm505, %v2351, 0
        %v2845 = vsel %vm505, %v2352, 0
        %v2848 = vsel %vm505, %v2353, 0
        %v2851 = vsel %vm505, %v2354, 0
        %v2854 = vsel %vm505, %v2355, 0
        %v2857 = vsel %vm505, %v2356, 0
        %v2860 = vsel %vm505, %v2357, 0
        %v2863 = vsel %vm505, %v2358, 0
        %v2866 = vsel %vm505, %v2359, 0
        %v2869 = vsel %vm505, %v2360, 0
        %v2872 = vsel %vm505, %v2361, 0
        %v2875 = vsel %vm505, %v2362, 0
        %v2878 = vsel %vm505, %v2363, 0
        %v2881 = vsel %vm505, %v2364, 0
        %v2884 = vsel %vm505, %v2365, 0
        %v2887 = vsel %vm505, %v2366, 0
        %v2890 = vsel %vm505, %v2367, 0
        %v2893 = vsel %vm505, %v2368, 0
        %v2896 = vsel %vm505, %v2369, 0
        %v2899 = vsel %vm505, %v2370, 0
        %v2902 = vsel %vm505, %v2371, 0
        %v2905 = vsel %vm505, %v2372, 0
        %v2908 = vsel %vm505, %v2373, 0
        %v2911 = vsel %vm505, %v2374, 0
        %v2914 = vsel %vm505, %v2375, 0
        %2916 = vmatprep.subr.mxu0 0.0
        %2917 = vmatpush1.msra.mxu0 %v311
        %2918 = vmatprep.subr.mxu0 0.0
        %2919 = vmatpush1.msra.mxu0 %v312
        %2920 = vmatprep.subr.mxu0 0.0
        %2921 = vmatpush1.msra.mxu0 %v313
        %2922 = vmatprep.subr.mxu0 0.0
        %2923 = vmatpush1.msra.mxu0 %v314
        %2924 = vmatprep.subr.mxu0 0.0
        %2925 = vmatpush1.msra.mxu0 %v315
        %2926 = vmatprep.subr.mxu0 0.0
        %2927 = vmatpush1.msra.mxu0 %v316
        %2928 = vmatprep.subr.mxu0 0.0
        %2929 = vmatpush1.msra.mxu0 %v1048
        %2930 = vmatprep.subr.mxu0 0.0
        %2931 = vmatpush1.msra.mxu0 0.0
        %2932 = vmatprep.subr.mxu0 0.0
        %2933 = vmatpush1.msra.mxu0 0.0
        %2934 = vmatprep.subr.mxu0 0.0
        %2935 = vmatpush1.msra.mxu0 0.0
        %2936 = vmatprep.subr.mxu0 0.0
        %2937 = vmatpush1.msra.mxu0 0.0
        %2938 = vmatprep.subr.mxu0 0.0
        %2939 = vmatpush1.msra.mxu0 0.0
        %2940 = vmatprep.subr.mxu0 0.0
        %2941 = vmatpush1.msra.mxu0 0.0
        %2942 = vmatprep.subr.mxu0 0.0
        %2943 = vmatpush1.msra.mxu0 0.0
        %2944 = vmatprep.subr.mxu0 0.0
        %2945 = vmatpush1.msra.mxu0 0.0
        %2946 = vmatprep.subr.mxu0 0.0
        %2947 = vmatpush1.msra.mxu0 0.0
        %2948 = vmatprep.subr.mxu0 0.0
        %2949 = vmatpush1.msra.mxu0 0.0
        %2950 = vmatprep.subr.mxu0 0.0
        %2951 = vmatpush1.msra.mxu0 0.0
        %2952 = vmatprep.subr.mxu0 0.0
        %2953 = vmatpush1.msra.mxu0 0.0
        %2954 = vmatprep.subr.mxu0 0.0
        %2955 = vmatpush1.msra.mxu0 0.0
        %2956 = vmatprep.subr.mxu0 0.0
        %2957 = vmatpush1.msra.mxu0 0.0
        %2958 = vmatprep.subr.mxu0 0.0
        %2959 = vmatpush1.msra.mxu0 0.0
        %2960 = vmatprep.subr.mxu0 0.0
        %2961 = vmatpush1.msra.mxu0 0.0
        %2962 = vmatprep.subr.mxu0 0.0
        %2963 = vmatpush1.msra.mxu0 0.0
        %2964 = vmatprep.subr.mxu0 0.0
        %2965 = vmatpush1.msra.mxu0 0.0
        %2966 = vmatprep.subr.mxu0 0.0
        %2967 = vmatpush1.msra.mxu0 0.0
        %2968 = vmatprep.subr.mxu0 0.0
        %2969 = vmatpush1.msra.mxu0 0.0
        %2970 = vmatprep.subr.mxu0 0.0
        %2971 = vmatpush1.msra.mxu0 0.0
        %2972 = vmatprep.subr.mxu0 0.0
        %2973 = vmatpush1.msra.mxu0 0.0
        %2974 = vmatprep.subr.mxu0 0.0
        %2975 = vmatpush1.msra.mxu0 0.0
        %2976 = vmatprep.subr.mxu0 0.0
        %2977 = vmatpush1.msra.mxu0 0.0
        %2978 = vmatprep.subr.mxu0 0.0
        %2979 = vmatpush1.msra.mxu0 0.0
        %2980 = vmatprep.mubr.f32.mxu0 0.0
        %2981 = vmatmul.mubr.f32.gmra.mrb[0].mxu0 %v2377
        %v2982 = vpop.f32.mrb[0].mxu0
        %v2983 = vadd.f32 %v503, %v2982
        %v2984 = vpop.f32.mrb[0].mxu0
        %2985 = vmatprep.mubr.f32.mxu0 0.0
        %2986 = vmatmul.mubr.f32.gmra.mrb[0].mxu0 %v2380
        %v2987 = vpop.f32.mrb[0].mxu0
        %v2988 = vadd.f32 %v503, %v2987
        %v2989 = vpop.f32.mrb[0].mxu0
        %2990 = vmatprep.mubr.f32.mxu0 0.0
        %2991 = vmatmul.mubr.f32.gmra.mrb[0].mxu0 %v2383
        %v2992 = vpop.f32.mrb[0].mxu0
        %v2993 = vadd.f32 %v503, %v2992
        %v2994 = vpop.f32.mrb[0].mxu0
        %2995 = vmatprep.mubr.f32.mxu0 0.0
        %2996 = vmatmul.mubr.f32.gmra.mrb[0].mxu0 %v2386
        %v2997 = vpop.f32.mrb[0].mxu0
        %v2998 = vadd.f32 %v503, %v2997
        %v2999 = vpop.f32.mrb[0].mxu0
        %3000 = vmatprep.mubr.f32.mxu0 0.0
        %3001 = vmatmul.mubr.f32.gmra.mrb[0].mxu0 %v2389
        %v3002 = vpop.f32.mrb[0].mxu0
        %v3003 = vadd.f32 %v503, %v3002
        %v3004 = vpop.f32.mrb[0].mxu0
        %3005 = vmatprep.mubr.f32.mxu0 0.0
        %3006 = vmatmul.mubr.f32.gmra.mrb[0].mxu0 %v2392
        %v3007 = vpop.f32.mrb[0].mxu0
        %v3008 = vadd.f32 %v503, %v3007
        %v3009 = vpop.f32.mrb[0].mxu0
        %3010 = vmatprep.mubr.f32.mxu0 0.0
        %3011 = vmatmul.mubr.f32.gmra.mrb[0].mxu0 %v2395
        %v3012 = vpop.f32.mrb[0].mxu0
        %v3013 = vadd.f32 %v503, %v3012
        %v3014 = vpop.f32.mrb[0].mxu0
        %3015 = vmatprep.mubr.f32.mxu0 0.0
        %3016 = vmatmul.mubr.f32.gmra.mrb[0].mxu0 %v2398
        %v3017 = vpop.f32.mrb[0].mxu0
        %v3018 = vadd.f32 %v503, %v3017
        %v3019 = vpop.f32.mrb[0].mxu0
        %3020 = vmatprep.mubr.f32.mxu0 0.0
        %3021 = vmatmul.mubr.f32.gmra.mrb[0].mxu0 %v2401
        %v3022 = vpop.f32.mrb[0].mxu0
        %v3023 = vadd.f32 %v503, %v3022
        %v3024 = vpop.f32.mrb[0].mxu0
        %3025 = vmatprep.mubr.f32.mxu0 0.0
        %3026 = vmatmul.mubr.f32.gmra.mrb[0].mxu0 %v2404
        %v3027 = vpop.f32.mrb[0].mxu0
        %v3028 = vadd.f32 %v503, %v3027
        %v3029 = vpop.f32.mrb[0].mxu0
        %3030 = vmatprep.mubr.f32.mxu0 0.0
        %3031 = vmatmul.mubr.f32.gmra.mrb[0].mxu0 %v2407
        %v3032 = vpop.f32.mrb[0].mxu0
        %v3033 = vadd.f32 %v503, %v3032
        %v3034 = vpop.f32.mrb[0].mxu0
        %3035 = vmatprep.mubr.f32.mxu0 0.0
        %3036 = vmatmul.mubr.f32.gmra.mrb[0].mxu0 %v2410
        %v3037 = vpop.f32.mrb[0].mxu0
        %v3038 = vadd.f32 %v503, %v3037
        %v3039 = vpop.f32.mrb[0].mxu0
        %3040 = vmatprep.mubr.f32.mxu0 0.0
        %3041 = vmatmul.mubr.f32.gmra.mrb[0].mxu0 %v2413
        %v3042 = vpop.f32.mrb[0].mxu0
        %v3043 = vadd.f32 %v503, %v3042
        %v3044 = vpop.f32.mrb[0].mxu0
        %3045 = vmatprep.mubr.f32.mxu0 0.0
        %3046 = vmatmul.mubr.f32.gmra.mrb[0].mxu0 %v2416
        %v3047 = vpop.f32.mrb[0].mxu0
        %v3048 = vadd.f32 %v503, %v3047
        %v3049 = vpop.f32.mrb[0].mxu0
        %3050 = vmatprep.mubr.f32.mxu0 0.0
        %3051 = vmatmul.mubr.f32.gmra.mrb[0].mxu0 %v2419
        %v3052 = vpop.f32.mrb[0].mxu0
        %v3053 = vadd.f32 %v503, %v3052
        %v3054 = vpop.f32.mrb[0].mxu0
        %3055 = vmatprep.mubr.f32.mxu0 0.0
        %3056 = vmatmul.mubr.f32.gmra.mrb[0].mxu0 %v2422
        %v3057 = vpop.f32.mrb[0].mxu0
        %v3058 = vadd.f32 %v503, %v3057
        %v3059 = vpop.f32.mrb[0].mxu0
        %3060 = vmatprep.mubr.f32.mxu0 0.0
        %3061 = vmatmul.mubr.f32.gmra.mrb[0].mxu0 %v2425
        %v3062 = vpop.f32.mrb[0].mxu0
        %v3063 = vadd.f32 %v503, %v3062
        %v3064 = vpop.f32.mrb[0].mxu0
        %3065 = vmatprep.mubr.f32.mxu0 0.0
        %3066 = vmatmul.mubr.f32.gmra.mrb[0].mxu0 %v2428
        %v3067 = vpop.f32.mrb[0].mxu0
        %v3068 = vadd.f32 %v503, %v3067
        %v3069 = vpop.f32.mrb[0].mxu0
        %3070 = vmatprep.mubr.f32.mxu0 0.0
        %3071 = vmatmul.mubr.f32.gmra.mrb[0].mxu0 %v2431
        %v3072 = vpop.f32.mrb[0].mxu0
        %v3073 = vadd.f32 %v503, %v3072
        %v3074 = vpop.f32.mrb[0].mxu0
        %3075 = vmatprep.mubr.f32.mxu0 0.0
        %3076 = vmatmul.mubr.f32.gmra.mrb[0].mxu0 %v2434
        %v3077 = vpop.f32.mrb[0].mxu0
        %v3078 = vadd.f32 %v503, %v3077
        %v3079 = vpop.f32.mrb[0].mxu0
        %3080 = vmatprep.mubr.f32.mxu0 0.0
        %3081 = vmatmul.mubr.f32.gmra.mrb[0].mxu0 %v2437
        %v3082 = vpop.f32.mrb[0].mxu0
        %v3083 = vadd.f32 %v503, %v3082
        %v3084 = vpop.f32.mrb[0].mxu0
        %3085 = vmatprep.mubr.f32.mxu0 0.0
        %3086 = vmatmul.mubr.f32.gmra.mrb[0].mxu0 %v2440
        %v3087 = vpop.f32.mrb[0].mxu0
        %v3088 = vadd.f32 %v503, %v3087
        %v3089 = vpop.f32.mrb[0].mxu0
        %3090 = vmatprep.mubr.f32.mxu0 0.0
        %3091 = vmatmul.mubr.f32.gmra.mrb[0].mxu0 %v2443
        %v3092 = vpop.f32.mrb[0].mxu0
        %v3093 = vadd.f32 %v503, %v3092
        %v3094 = vpop.f32.mrb[0].mxu0
        %3095 = vmatprep.mubr.f32.mxu0 0.0
        %3096 = vmatmul.mubr.f32.gmra.mrb[0].mxu0 %v2446
        %v3097 = vpop.f32.mrb[0].mxu0
        %v3098 = vadd.f32 %v503, %v3097
        %v3099 = vpop.f32.mrb[0].mxu0
        %3100 = vmatprep.mubr.f32.mxu0 0.0
        %3101 = vmatmul.mubr.f32.gmra.mrb[0].mxu0 %v2449
        %v3102 = vpop.f32.mrb[0].mxu0
        %v3103 = vadd.f32 %v503, %v3102
        %v3104 = vpop.f32.mrb[0].mxu0
        %3105 = vmatprep.mubr.f32.mxu0 0.0
        %3106 = vmatmul.mubr.f32.gmra.mrb[0].mxu0 %v2452
        %v3107 = vpop.f32.mrb[0].mxu0
        %v3108 = vadd.f32 %v503, %v3107
        %v3109 = vpop.f32.mrb[0].mxu0
        %3110 = vmatprep.mubr.f32.mxu0 0.0
        %3111 = vmatmul.mubr.f32.gmra.mrb[0].mxu0 %v2455
        %v3112 = vpop.f32.mrb[0].mxu0
        %v3113 = vadd.f32 %v503, %v3112
        %v3114 = vpop.f32.mrb[0].mxu0
        %3115 = vmatprep.mubr.f32.mxu0 0.0
        %3116 = vmatmul.mubr.f32.gmra.mrb[0].mxu0 %v2458
        %v3117 = vpop.f32.mrb[0].mxu0
        %v3118 = vadd.f32 %v503, %v3117
        %v3119 = vpop.f32.mrb[0].mxu0
        %3120 = vmatprep.mubr.f32.mxu0 0.0
        %3121 = vmatmul.mubr.f32.gmra.mrb[0].mxu0 %v2461
        %v3122 = vpop.f32.mrb[0].mxu0
        %v3123 = vadd.f32 %v503, %v3122
        %v3124 = vpop.f32.mrb[0].mxu0
        %3125 = vmatprep.mubr.f32.mxu0 0.0
        %3126 = vmatmul.mubr.f32.gmra.mrb[0].mxu0 %v2464
        %v3127 = vpop.f32.mrb[0].mxu0
        %v3128 = vadd.f32 %v503, %v3127
        %v3129 = vpop.f32.mrb[0].mxu0
        %3130 = vmatprep.mubr.f32.mxu0 0.0
        %3131 = vmatmul.mubr.f32.gmra.mrb[0].mxu0 %v2467
        %v3132 = vpop.f32.mrb[0].mxu0
        %v3133 = vadd.f32 %v503, %v3132
        %v3134 = vpop.f32.mrb[0].mxu0
        %3135 = vmatprep.mubr.f32.mxu0 0.0
        %3136 = vmatmul.mubr.f32.gmra.mrb[0].mxu0 %v2470
        %v3137 = vpop.f32.mrb[0].mxu0
        %v3138 = vadd.f32 %v503, %v3137
        %v3139 = vpop.f32.mrb[0].mxu0
        %3140 = vmatprep.mubr.f32.mxu0 0.0
        %3141 = vmatmul.mubr.f32.gmra.mrb[0].mxu0 %v2473
        %v3142 = vpop.f32.mrb[0].mxu0
        %v3143 = vadd.f32 %v503, %v3142
        %v3144 = vpop.f32.mrb[0].mxu0
        %3145 = vmatprep.mubr.f32.mxu0 0.0
        %3146 = vmatmul.mubr.f32.gmra.mrb[0].mxu0 %v2476
        %v3147 = vpop.f32.mrb[0].mxu0
        %v3148 = vadd.f32 %v503, %v3147
        %v3149 = vpop.f32.mrb[0].mxu0
        %3150 = vmatprep.mubr.f32.mxu0 0.0
        %3151 = vmatmul.mubr.f32.gmra.mrb[0].mxu0 %v2479
        %v3152 = vpop.f32.mrb[0].mxu0
        %v3153 = vadd.f32 %v503, %v3152
        %v3154 = vpop.f32.mrb[0].mxu0
        %3155 = vmatprep.mubr.f32.mxu0 0.0
        %3156 = vmatmul.mubr.f32.gmra.mrb[0].mxu0 %v2482
        %v3157 = vpop.f32.mrb[0].mxu0
        %v3158 = vadd.f32 %v503, %v3157
        %v3159 = vpop.f32.mrb[0].mxu0
        %3160 = vmatprep.mubr.f32.mxu0 0.0
        %3161 = vmatmul.mubr.f32.gmra.mrb[0].mxu0 %v2485
        %v3162 = vpop.f32.mrb[0].mxu0
        %v3163 = vadd.f32 %v503, %v3162
        %v3164 = vpop.f32.mrb[0].mxu0
        %3165 = vmatprep.mubr.f32.mxu0 0.0
        %3166 = vmatmul.mubr.f32.gmra.mrb[0].mxu0 %v2488
        %v3167 = vpop.f32.mrb[0].mxu0
        %v3168 = vadd.f32 %v503, %v3167
        %v3169 = vpop.f32.mrb[0].mxu0
        %3170 = vmatprep.mubr.f32.mxu0 0.0
        %3171 = vmatmul.mubr.f32.gmra.mrb[0].mxu0 %v2491
        %v3172 = vpop.f32.mrb[0].mxu0
        %v3173 = vadd.f32 %v503, %v3172
        %v3174 = vpop.f32.mrb[0].mxu0
        %3175 = vmatprep.mubr.f32.mxu0 0.0
        %3176 = vmatmul.mubr.f32.gmra.mrb[0].mxu0 %v2494
        %v3177 = vpop.f32.mrb[0].mxu0
        %v3178 = vadd.f32 %v503, %v3177
        %v3179 = vpop.f32.mrb[0].mxu0
        %3180 = vmatprep.mubr.f32.mxu0 0.0
        %3181 = vmatmul.mubr.f32.gmra.mrb[0].mxu0 %v2497
        %v3182 = vpop.f32.mrb[0].mxu0
        %v3183 = vadd.f32 %v503, %v3182
        %v3184 = vpop.f32.mrb[0].mxu0
        %3185 = vmatprep.mubr.f32.mxu0 0.0
        %3186 = vmatmul.mubr.f32.gmra.mrb[0].mxu0 %v2500
        %v3187 = vpop.f32.mrb[0].mxu0
        %v3188 = vadd.f32 %v503, %v3187
        %v3189 = vpop.f32.mrb[0].mxu0
        %3190 = vmatprep.mubr.f32.mxu0 0.0
        %3191 = vmatmul.mubr.f32.gmra.mrb[0].mxu0 %v2503
        %v3192 = vpop.f32.mrb[0].mxu0
        %v3193 = vadd.f32 %v503, %v3192
        %v3194 = vpop.f32.mrb[0].mxu0
        %3195 = vmatprep.mubr.f32.mxu0 0.0
        %3196 = vmatmul.mubr.f32.gmra.mrb[0].mxu0 %v2506
        %v3197 = vpop.f32.mrb[0].mxu0
        %v3198 = vadd.f32 %v503, %v3197
        %v3199 = vpop.f32.mrb[0].mxu0
        %3200 = vmatprep.mubr.f32.mxu0 0.0
        %3201 = vmatmul.mubr.f32.gmra.mrb[0].mxu0 %v2509
        %v3202 = vpop.f32.mrb[0].mxu0
        %v3203 = vadd.f32 %v503, %v3202
        %v3204 = vpop.f32.mrb[0].mxu0
        %3205 = vmatprep.mubr.f32.mxu0 0.0
        %3206 = vmatmul.mubr.f32.gmra.mrb[0].mxu0 %v2512
        %v3207 = vpop.f32.mrb[0].mxu0
        %v3208 = vadd.f32 %v503, %v3207
        %v3209 = vpop.f32.mrb[0].mxu0
        %3210 = vmatprep.mubr.f32.mxu0 0.0
        %3211 = vmatmul.mubr.f32.gmra.mrb[0].mxu0 %v2515
        %v3212 = vpop.f32.mrb[0].mxu0
        %v3213 = vadd.f32 %v503, %v3212
        %v3214 = vpop.f32.mrb[0].mxu0
        %3215 = vmatprep.mubr.f32.mxu0 0.0
        %3216 = vmatmul.mubr.f32.gmra.mrb[0].mxu0 %v2518
        %v3217 = vpop.f32.mrb[0].mxu0
        %v3218 = vadd.f32 %v503, %v3217
        %v3219 = vpop.f32.mrb[0].mxu0
        %3220 = vmatprep.mubr.f32.mxu0 0.0
        %3221 = vmatmul.mubr.f32.gmra.mrb[0].mxu0 %v2521
        %v3222 = vpop.f32.mrb[0].mxu0
        %v3223 = vadd.f32 %v503, %v3222
        %v3224 = vpop.f32.mrb[0].mxu0
        %3225 = vmatprep.mubr.f32.mxu0 0.0
        %3226 = vmatmul.mubr.f32.gmra.mrb[0].mxu0 %v2524
        %v3227 = vpop.f32.mrb[0].mxu0
        %v3228 = vadd.f32 %v503, %v3227
        %v3229 = vpop.f32.mrb[0].mxu0
        %3230 = vmatprep.mubr.f32.mxu0 0.0
        %3231 = vmatmul.mubr.f32.gmra.mrb[0].mxu0 %v2527
        %v3232 = vpop.f32.mrb[0].mxu0
        %v3233 = vadd.f32 %v503, %v3232
        %v3234 = vpop.f32.mrb[0].mxu0
        %3235 = vmatprep.mubr.f32.mxu0 0.0
        %3236 = vmatmul.mubr.f32.gmra.mrb[0].mxu0 %v2530
        %v3237 = vpop.f32.mrb[0].mxu0
        %v3238 = vadd.f32 %v503, %v3237
        %v3239 = vpop.f32.mrb[0].mxu0
        %3240 = vmatprep.mubr.f32.mxu0 0.0
        %3241 = vmatmul.mubr.f32.gmra.mrb[0].mxu0 %v2533
        %v3242 = vpop.f32.mrb[0].mxu0
        %v3243 = vadd.f32 %v503, %v3242
        %v3244 = vpop.f32.mrb[0].mxu0
        %3245 = vmatprep.mubr.f32.mxu0 0.0
        %3246 = vmatmul.mubr.f32.gmra.mrb[0].mxu0 %v2536
        %v3247 = vpop.f32.mrb[0].mxu0
        %v3248 = vadd.f32 %v503, %v3247
        %v3249 = vpop.f32.mrb[0].mxu0
        %3250 = vmatprep.mubr.f32.mxu0 0.0
        %3251 = vmatmul.mubr.f32.gmra.mrb[0].mxu0 %v2539
        %v3252 = vpop.f32.mrb[0].mxu0
        %v3253 = vadd.f32 %v503, %v3252
        %v3254 = vpop.f32.mrb[0].mxu0
        %3255 = vmatprep.mubr.f32.mxu0 0.0
        %3256 = vmatmul.mubr.f32.gmra.mrb[0].mxu0 %v2542
        %v3257 = vpop.f32.mrb[0].mxu0
        %v3258 = vadd.f32 %v503, %v3257
        %v3259 = vpop.f32.mrb[0].mxu0
        %3260 = vmatprep.mubr.f32.mxu0 0.0
        %3261 = vmatmul.mubr.f32.gmra.mrb[0].mxu0 %v2545
        %v3262 = vpop.f32.mrb[0].mxu0
        %v3263 = vadd.f32 %v503, %v3262
        %v3264 = vpop.f32.mrb[0].mxu0
        %3265 = vmatprep.mubr.f32.mxu0 0.0
        %3266 = vmatmul.mubr.f32.gmra.mrb[0].mxu0 %v2548
        %v3267 = vpop.f32.mrb[0].mxu0
        %v3268 = vadd.f32 %v503, %v3267
        %v3269 = vpop.f32.mrb[0].mxu0
        %3270 = vmatprep.mubr.f32.mxu0 0.0
        %3271 = vmatmul.mubr.f32.gmra.mrb[0].mxu0 %v2551
        %v3272 = vpop.f32.mrb[0].mxu0
        %v3273 = vadd.f32 %v503, %v3272
        %v3274 = vpop.f32.mrb[0].mxu0
        %3275 = vmatprep.mubr.f32.mxu0 0.0
        %3276 = vmatmul.mubr.f32.gmra.mrb[0].mxu0 %v2554
        %v3277 = vpop.f32.mrb[0].mxu0
        %v3278 = vadd.f32 %v503, %v3277
        %v3279 = vpop.f32.mrb[0].mxu0
        %3280 = vmatprep.mubr.f32.mxu0 0.0
        %3281 = vmatmul.mubr.f32.gmra.mrb[0].mxu0 %v2557
        %v3282 = vpop.f32.mrb[0].mxu0
        %v3283 = vadd.f32 %v503, %v3282
        %v3284 = vpop.f32.mrb[0].mxu0
        %3285 = vmatprep.mubr.f32.mxu0 0.0
        %3286 = vmatmul.mubr.f32.gmra.mrb[0].mxu0 %v2560
        %v3287 = vpop.f32.mrb[0].mxu0
        %v3288 = vadd.f32 %v503, %v3287
        %v3289 = vpop.f32.mrb[0].mxu0
        %3290 = vmatprep.mubr.f32.mxu0 0.0
        %3291 = vmatmul.mubr.f32.gmra.mrb[0].mxu0 %v2563
        %v3292 = vpop.f32.mrb[0].mxu0
        %v3293 = vadd.f32 %v503, %v3292
        %v3294 = vpop.f32.mrb[0].mxu0
        %3295 = vmatprep.mubr.f32.mxu0 0.0
        %3296 = vmatmul.mubr.f32.gmra.mrb[0].mxu0 %v2566
        %v3297 = vpop.f32.mrb[0].mxu0
        %v3298 = vadd.f32 %v503, %v3297
        %v3299 = vpop.f32.mrb[0].mxu0
        %3300 = vmatprep.mubr.f32.mxu0 0.0
        %3301 = vmatmul.mubr.f32.gmra.mrb[0].mxu0 %v2569
        %v3302 = vpop.f32.mrb[0].mxu0
        %v3303 = vadd.f32 %v503, %v3302
        %v3304 = vpop.f32.mrb[0].mxu0
        %3305 = vmatprep.mubr.f32.mxu0 0.0
        %3306 = vmatmul.mubr.f32.gmra.mrb[0].mxu0 %v2572
        %v3307 = vpop.f32.mrb[0].mxu0
        %v3308 = vadd.f32 %v503, %v3307
        %v3309 = vpop.f32.mrb[0].mxu0
        %3310 = vmatprep.mubr.f32.mxu0 0.0
        %3311 = vmatmul.mubr.f32.gmra.mrb[0].mxu0 %v2575
        %v3312 = vpop.f32.mrb[0].mxu0
        %v3313 = vadd.f32 %v503, %v3312
        %v3314 = vpop.f32.mrb[0].mxu0
        %3315 = vmatprep.mubr.f32.mxu0 0.0
        %3316 = vmatmul.mubr.f32.gmra.mrb[0].mxu0 %v2578
        %v3317 = vpop.f32.mrb[0].mxu0
        %v3318 = vadd.f32 %v503, %v3317
        %v3319 = vpop.f32.mrb[0].mxu0
        %3320 = vmatprep.mubr.f32.mxu0 0.0
        %3321 = vmatmul.mubr.f32.gmra.mrb[0].mxu0 %v2581
        %v3322 = vpop.f32.mrb[0].mxu0
        %v3323 = vadd.f32 %v503, %v3322
        %v3324 = vpop.f32.mrb[0].mxu0
        %3325 = vmatprep.mubr.f32.mxu0 0.0
        %3326 = vmatmul.mubr.f32.gmra.mrb[0].mxu0 %v2584
        %v3327 = vpop.f32.mrb[0].mxu0
        %v3328 = vadd.f32 %v503, %v3327
        %v3329 = vpop.f32.mrb[0].mxu0
        %3330 = vmatprep.mubr.f32.mxu0 0.0
        %3331 = vmatmul.mubr.f32.gmra.mrb[0].mxu0 %v2587
        %v3332 = vpop.f32.mrb[0].mxu0
        %v3333 = vadd.f32 %v503, %v3332
        %v3334 = vpop.f32.mrb[0].mxu0
        %3335 = vmatprep.mubr.f32.mxu0 0.0
        %3336 = vmatmul.mubr.f32.gmra.mrb[0].mxu0 %v2590
        %v3337 = vpop.f32.mrb[0].mxu0
        %v3338 = vadd.f32 %v503, %v3337
        %v3339 = vpop.f32.mrb[0].mxu0
        %3340 = vmatprep.mubr.f32.mxu0 0.0
        %3341 = vmatmul.mubr.f32.gmra.mrb[0].mxu0 %v2593
        %v3342 = vpop.f32.mrb[0].mxu0
        %v3343 = vadd.f32 %v503, %v3342
        %v3344 = vpop.f32.mrb[0].mxu0
        %3345 = vmatprep.mubr.f32.mxu0 0.0
        %3346 = vmatmul.mubr.f32.gmra.mrb[0].mxu0 %v2596
        %v3347 = vpop.f32.mrb[0].mxu0
        %v3348 = vadd.f32 %v503, %v3347
        %v3349 = vpop.f32.mrb[0].mxu0
        %3350 = vmatprep.mubr.f32.mxu0 0.0
        %3351 = vmatmul.mubr.f32.gmra.mrb[0].mxu0 %v2599
        %v3352 = vpop.f32.mrb[0].mxu0
        %v3353 = vadd.f32 %v503, %v3352
        %v3354 = vpop.f32.mrb[0].mxu0
        %3355 = vmatprep.mubr.f32.mxu0 0.0
        %3356 = vmatmul.mubr.f32.gmra.mrb[0].mxu0 %v2602
        %v3357 = vpop.f32.mrb[0].mxu0
        %v3358 = vadd.f32 %v503, %v3357
        %v3359 = vpop.f32.mrb[0].mxu0
        %3360 = vmatprep.mubr.f32.mxu0 0.0
        %3361 = vmatmul.mubr.f32.gmra.mrb[0].mxu0 %v2605
        %v3362 = vpop.f32.mrb[0].mxu0
        %v3363 = vadd.f32 %v503, %v3362
        %v3364 = vpop.f32.mrb[0].mxu0
        %3365 = vmatprep.mubr.f32.mxu0 0.0
        %3366 = vmatmul.mubr.f32.gmra.mrb[0].mxu0 %v2608
        %v3367 = vpop.f32.mrb[0].mxu0
        %v3368 = vadd.f32 %v503, %v3367
        %v3369 = vpop.f32.mrb[0].mxu0
        %3370 = vmatprep.mubr.f32.mxu0 0.0
        %3371 = vmatmul.mubr.f32.gmra.mrb[0].mxu0 %v2611
        %v3372 = vpop.f32.mrb[0].mxu0
        %v3373 = vadd.f32 %v503, %v3372
        %v3374 = vpop.f32.mrb[0].mxu0
        %3375 = vmatprep.mubr.f32.mxu0 0.0
        %3376 = vmatmul.mubr.f32.gmra.mrb[0].mxu0 %v2614
        %v3377 = vpop.f32.mrb[0].mxu0
        %v3378 = vadd.f32 %v503, %v3377
        %v3379 = vpop.f32.mrb[0].mxu0
        %3380 = vmatprep.mubr.f32.mxu0 0.0
        %3381 = vmatmul.mubr.f32.gmra.mrb[0].mxu0 %v2617
        %v3382 = vpop.f32.mrb[0].mxu0
        %v3383 = vadd.f32 %v503, %v3382
        %v3384 = vpop.f32.mrb[0].mxu0
        %3385 = vmatprep.mubr.f32.mxu0 0.0
        %3386 = vmatmul.mubr.f32.gmra.mrb[0].mxu0 %v2620
        %v3387 = vpop.f32.mrb[0].mxu0
        %v3388 = vadd.f32 %v503, %v3387
        %v3389 = vpop.f32.mrb[0].mxu0
        %3390 = vmatprep.mubr.f32.mxu0 0.0
        %3391 = vmatmul.mubr.f32.gmra.mrb[0].mxu0 %v2623
        %v3392 = vpop.f32.mrb[0].mxu0
        %v3393 = vadd.f32 %v503, %v3392
        %v3394 = vpop.f32.mrb[0].mxu0
        %3395 = vmatprep.mubr.f32.mxu0 0.0
        %3396 = vmatmul.mubr.f32.gmra.mrb[0].mxu0 %v2626
        %v3397 = vpop.f32.mrb[0].mxu0
        %v3398 = vadd.f32 %v503, %v3397
        %v3399 = vpop.f32.mrb[0].mxu0
        %3400 = vmatprep.mubr.f32.mxu0 0.0
        %3401 = vmatmul.mubr.f32.gmra.mrb[0].mxu0 %v2629
        %v3402 = vpop.f32.mrb[0].mxu0
        %v3403 = vadd.f32 %v503, %v3402
        %v3404 = vpop.f32.mrb[0].mxu0
        %3405 = vmatprep.mubr.f32.mxu0 0.0
        %3406 = vmatmul.mubr.f32.gmra.mrb[0].mxu0 %v2632
        %v3407 = vpop.f32.mrb[0].mxu0
        %v3408 = vadd.f32 %v503, %v3407
        %v3409 = vpop.f32.mrb[0].mxu0
        %3410 = vmatprep.mubr.f32.mxu0 0.0
        %3411 = vmatmul.mubr.f32.gmra.mrb[0].mxu0 %v2635
        %v3412 = vpop.f32.mrb[0].mxu0
        %v3413 = vadd.f32 %v503, %v3412
        %v3414 = vpop.f32.mrb[0].mxu0
        %3415 = vmatprep.mubr.f32.mxu0 0.0
        %3416 = vmatmul.mubr.f32.gmra.mrb[0].mxu0 %v2638
        %v3417 = vpop.f32.mrb[0].mxu0
        %v3418 = vadd.f32 %v503, %v3417
        %v3419 = vpop.f32.mrb[0].mxu0
        %3420 = vmatprep.mubr.f32.mxu0 0.0
        %3421 = vmatmul.mubr.f32.gmra.mrb[0].mxu0 %v2641
        %v3422 = vpop.f32.mrb[0].mxu0
        %v3423 = vadd.f32 %v503, %v3422
        %v3424 = vpop.f32.mrb[0].mxu0
        %3425 = vmatprep.mubr.f32.mxu0 0.0
        %3426 = vmatmul.mubr.f32.gmra.mrb[0].mxu0 %v2644
        %v3427 = vpop.f32.mrb[0].mxu0
        %v3428 = vadd.f32 %v503, %v3427
        %v3429 = vpop.f32.mrb[0].mxu0
        %3430 = vmatprep.mubr.f32.mxu0 0.0
        %3431 = vmatmul.mubr.f32.gmra.mrb[0].mxu0 %v2647
        %v3432 = vpop.f32.mrb[0].mxu0
        %v3433 = vadd.f32 %v503, %v3432
        %v3434 = vpop.f32.mrb[0].mxu0
        %3435 = vmatprep.mubr.f32.mxu0 0.0
        %3436 = vmatmul.mubr.f32.gmra.mrb[0].mxu0 %v2650
        %v3437 = vpop.f32.mrb[0].mxu0
        %v3438 = vadd.f32 %v503, %v3437
        %v3439 = vpop.f32.mrb[0].mxu0
        %3440 = vmatprep.mubr.f32.mxu0 0.0
        %3441 = vmatmul.mubr.f32.gmra.mrb[0].mxu0 %v2653
        %v3442 = vpop.f32.mrb[0].mxu0
        %v3443 = vadd.f32 %v503, %v3442
        %v3444 = vpop.f32.mrb[0].mxu0
        %3445 = vmatprep.mubr.f32.mxu0 0.0
        %3446 = vmatmul.mubr.f32.gmra.mrb[0].mxu0 %v2656
        %v3447 = vpop.f32.mrb[0].mxu0
        %v3448 = vadd.f32 %v503, %v3447
        %v3449 = vpop.f32.mrb[0].mxu0
        %3450 = vmatprep.mubr.f32.mxu0 0.0
        %3451 = vmatmul.mubr.f32.gmra.mrb[0].mxu0 %v2659
        %v3452 = vpop.f32.mrb[0].mxu0
        %v3453 = vadd.f32 %v503, %v3452
        %v3454 = vpop.f32.mrb[0].mxu0
        %3455 = vmatprep.mubr.f32.mxu0 0.0
        %3456 = vmatmul.mubr.f32.gmra.mrb[0].mxu0 %v2662
        %v3457 = vpop.f32.mrb[0].mxu0
        %v3458 = vadd.f32 %v503, %v3457
        %v3459 = vpop.f32.mrb[0].mxu0
        %3460 = vmatprep.mubr.f32.mxu0 0.0
        %3461 = vmatmul.mubr.f32.gmra.mrb[0].mxu0 %v2665
        %v3462 = vpop.f32.mrb[0].mxu0
        %v3463 = vadd.f32 %v503, %v3462
        %v3464 = vpop.f32.mrb[0].mxu0
        %3465 = vmatprep.mubr.f32.mxu0 0.0
        %3466 = vmatmul.mubr.f32.gmra.mrb[0].mxu0 %v2668
        %v3467 = vpop.f32.mrb[0].mxu0
        %v3468 = vadd.f32 %v503, %v3467
        %v3469 = vpop.f32.mrb[0].mxu0
        %3470 = vmatprep.mubr.f32.mxu0 0.0
        %3471 = vmatmul.mubr.f32.gmra.mrb[0].mxu0 %v2671
        %v3472 = vpop.f32.mrb[0].mxu0
        %v3473 = vadd.f32 %v503, %v3472
        %v3474 = vpop.f32.mrb[0].mxu0
        %3475 = vmatprep.mubr.f32.mxu0 0.0
        %3476 = vmatmul.mubr.f32.gmra.mrb[0].mxu0 %v2674
        %v3477 = vpop.f32.mrb[0].mxu0
        %v3478 = vadd.f32 %v503, %v3477
        %v3479 = vpop.f32.mrb[0].mxu0
        %3480 = vmatprep.mubr.f32.mxu0 0.0
        %3481 = vmatmul.mubr.f32.gmra.mrb[0].mxu0 %v2677
        %v3482 = vpop.f32.mrb[0].mxu0
        %v3483 = vadd.f32 %v503, %v3482
        %v3484 = vpop.f32.mrb[0].mxu0
        %3485 = vmatprep.mubr.f32.mxu0 0.0
        %3486 = vmatmul.mubr.f32.gmra.mrb[0].mxu0 %v2680
        %v3487 = vpop.f32.mrb[0].mxu0
        %v3488 = vadd.f32 %v503, %v3487
        %v3489 = vpop.f32.mrb[0].mxu0
        %3490 = vmatprep.mubr.f32.mxu0 0.0
        %3491 = vmatmul.mubr.f32.gmra.mrb[0].mxu0 %v2683
        %v3492 = vpop.f32.mrb[0].mxu0
        %v3493 = vadd.f32 %v503, %v3492
        %v3494 = vpop.f32.mrb[0].mxu0
        %3495 = vmatprep.mubr.f32.mxu0 0.0
        %3496 = vmatmul.mubr.f32.gmra.mrb[0].mxu0 %v2686
        %v3497 = vpop.f32.mrb[0].mxu0
        %v3498 = vadd.f32 %v503, %v3497
        %v3499 = vpop.f32.mrb[0].mxu0
        %3500 = vmatprep.mubr.f32.mxu0 0.0
        %3501 = vmatmul.mubr.f32.gmra.mrb[0].mxu0 %v2689
        %v3502 = vpop.f32.mrb[0].mxu0
        %v3503 = vadd.f32 %v503, %v3502
        %v3504 = vpop.f32.mrb[0].mxu0
        %3505 = vmatprep.mubr.f32.mxu0 0.0
        %3506 = vmatmul.mubr.f32.gmra.mrb[0].mxu0 %v2692
        %v3507 = vpop.f32.mrb[0].mxu0
        %v3508 = vadd.f32 %v503, %v3507
        %v3509 = vpop.f32.mrb[0].mxu0
        %3510 = vmatprep.mubr.f32.mxu0 0.0
        %3511 = vmatmul.mubr.f32.gmra.mrb[0].mxu0 %v2695
        %v3512 = vpop.f32.mrb[0].mxu0
        %v3513 = vadd.f32 %v503, %v3512
        %v3514 = vpop.f32.mrb[0].mxu0
        %3515 = vmatprep.mubr.f32.mxu0 0.0
        %3516 = vmatmul.mubr.f32.gmra.mrb[0].mxu0 %v2698
        %v3517 = vpop.f32.mrb[0].mxu0
        %v3518 = vadd.f32 %v503, %v3517
        %v3519 = vpop.f32.mrb[0].mxu0
        %3520 = vmatprep.mubr.f32.mxu0 0.0
        %3521 = vmatmul.mubr.f32.gmra.mrb[0].mxu0 %v2701
        %v3522 = vpop.f32.mrb[0].mxu0
        %v3523 = vadd.f32 %v503, %v3522
        %v3524 = vpop.f32.mrb[0].mxu0
        %3525 = vmatprep.mubr.f32.mxu0 0.0
        %3526 = vmatmul.mubr.f32.gmra.mrb[0].mxu0 %v2704
        %v3527 = vpop.f32.mrb[0].mxu0
        %v3528 = vadd.f32 %v503, %v3527
        %v3529 = vpop.f32.mrb[0].mxu0
        %3530 = vmatprep.mubr.f32.mxu0 0.0
        %3531 = vmatmul.mubr.f32.gmra.mrb[0].mxu0 %v2707
        %v3532 = vpop.f32.mrb[0].mxu0
        %v3533 = vadd.f32 %v503, %v3532
        %v3534 = vpop.f32.mrb[0].mxu0
        %3535 = vmatprep.mubr.f32.mxu0 0.0
        %3536 = vmatmul.mubr.f32.gmra.mrb[0].mxu0 %v2710
        %v3537 = vpop.f32.mrb[0].mxu0
        %v3538 = vadd.f32 %v503, %v3537
        %v3539 = vpop.f32.mrb[0].mxu0
        %3540 = vmatprep.mubr.f32.mxu0 0.0
        %3541 = vmatmul.mubr.f32.gmra.mrb[0].mxu0 %v2713
        %v3542 = vpop.f32.mrb[0].mxu0
        %v3543 = vadd.f32 %v503, %v3542
        %v3544 = vpop.f32.mrb[0].mxu0
        %3545 = vmatprep.mubr.f32.mxu0 0.0
        %3546 = vmatmul.mubr.f32.gmra.mrb[0].mxu0 %v2716
        %v3547 = vpop.f32.mrb[0].mxu0
        %v3548 = vadd.f32 %v503, %v3547
        %v3549 = vpop.f32.mrb[0].mxu0
        %3550 = vmatprep.mubr.f32.mxu0 0.0
        %3551 = vmatmul.mubr.f32.gmra.mrb[0].mxu0 %v2719
        %v3552 = vpop.f32.mrb[0].mxu0
        %v3553 = vadd.f32 %v503, %v3552
        %v3554 = vpop.f32.mrb[0].mxu0
        %3555 = vmatprep.mubr.f32.mxu0 0.0
        %3556 = vmatmul.mubr.f32.gmra.mrb[0].mxu0 %v2722
        %v3557 = vpop.f32.mrb[0].mxu0
        %v3558 = vadd.f32 %v503, %v3557
        %v3559 = vpop.f32.mrb[0].mxu0
        %3560 = vmatprep.mubr.f32.mxu0 0.0
        %3561 = vmatmul.mubr.f32.gmra.mrb[0].mxu0 %v2725
        %v3562 = vpop.f32.mrb[0].mxu0
        %v3563 = vadd.f32 %v503, %v3562
        %v3564 = vpop.f32.mrb[0].mxu0
        %3565 = vmatprep.mubr.f32.mxu0 0.0
        %3566 = vmatmul.mubr.f32.gmra.mrb[0].mxu0 %v2728
        %v3567 = vpop.f32.mrb[0].mxu0
        %v3568 = vadd.f32 %v503, %v3567
        %v3569 = vpop.f32.mrb[0].mxu0
        %3570 = vmatprep.mubr.f32.mxu0 0.0
        %3571 = vmatmul.mubr.f32.gmra.mrb[0].mxu0 %v2731
        %v3572 = vpop.f32.mrb[0].mxu0
        %v3573 = vadd.f32 %v503, %v3572
        %v3574 = vpop.f32.mrb[0].mxu0
        %3575 = vmatprep.mubr.f32.mxu0 0.0
        %3576 = vmatmul.mubr.f32.gmra.mrb[0].mxu0 %v2734
        %v3577 = vpop.f32.mrb[0].mxu0
        %v3578 = vadd.f32 %v503, %v3577
        %v3579 = vpop.f32.mrb[0].mxu0
        %3580 = vmatprep.mubr.f32.mxu0 0.0
        %3581 = vmatmul.mubr.f32.gmra.mrb[0].mxu0 %v2737
        %v3582 = vpop.f32.mrb[0].mxu0
        %v3583 = vadd.f32 %v503, %v3582
        %v3584 = vpop.f32.mrb[0].mxu0
        %3585 = vmatprep.mubr.f32.mxu0 0.0
        %3586 = vmatmul.mubr.f32.gmra.mrb[0].mxu0 %v2740
        %v3587 = vpop.f32.mrb[0].mxu0
        %v3588 = vadd.f32 %v503, %v3587
        %v3589 = vpop.f32.mrb[0].mxu0
        %3590 = vmatprep.mubr.f32.mxu0 0.0
        %3591 = vmatmul.mubr.f32.gmra.mrb[0].mxu0 %v2743
        %v3592 = vpop.f32.mrb[0].mxu0
        %v3593 = vadd.f32 %v503, %v3592
        %v3594 = vpop.f32.mrb[0].mxu0
        %3595 = vmatprep.mubr.f32.mxu0 0.0
        %3596 = vmatmul.mubr.f32.gmra.mrb[0].mxu0 %v2746
        %v3597 = vpop.f32.mrb[0].mxu0
        %v3598 = vadd.f32 %v503, %v3597
        %v3599 = vpop.f32.mrb[0].mxu0
        %3600 = vmatprep.mubr.f32.mxu0 0.0
        %3601 = vmatmul.mubr.f32.gmra.mrb[0].mxu0 %v2749
        %v3602 = vpop.f32.mrb[0].mxu0
        %v3603 = vadd.f32 %v503, %v3602
        %v3604 = vpop.f32.mrb[0].mxu0
        %3605 = vmatprep.mubr.f32.mxu0 0.0
        %3606 = vmatmul.mubr.f32.gmra.mrb[0].mxu0 %v2752
        %v3607 = vpop.f32.mrb[0].mxu0
        %v3608 = vadd.f32 %v503, %v3607
        %v3609 = vpop.f32.mrb[0].mxu0
        %3610 = vmatprep.mubr.f32.mxu0 0.0
        %3611 = vmatmul.mubr.f32.gmra.mrb[0].mxu0 %v2755
        %v3612 = vpop.f32.mrb[0].mxu0
        %v3613 = vadd.f32 %v503, %v3612
        %v3614 = vpop.f32.mrb[0].mxu0
        %3615 = vmatprep.mubr.f32.mxu0 0.0
        %3616 = vmatmul.mubr.f32.gmra.mrb[0].mxu0 %v2758
        %v3617 = vpop.f32.mrb[0].mxu0
        %v3618 = vadd.f32 %v503, %v3617
        %v3619 = vpop.f32.mrb[0].mxu0
        %3620 = vmatprep.mubr.f32.mxu0 0.0
        %3621 = vmatmul.mubr.f32.gmra.mrb[0].mxu0 %v2761
        %v3622 = vpop.f32.mrb[0].mxu0
        %v3623 = vadd.f32 %v503, %v3622
        %v3624 = vpop.f32.mrb[0].mxu0
        %3625 = vmatprep.mubr.f32.mxu0 0.0
        %3626 = vmatmul.mubr.f32.gmra.mrb[0].mxu0 %v2764
        %v3627 = vpop.f32.mrb[0].mxu0
        %v3628 = vadd.f32 %v503, %v3627
        %v3629 = vpop.f32.mrb[0].mxu0
        %3630 = vmatprep.mubr.f32.mxu0 0.0
        %3631 = vmatmul.mubr.f32.gmra.mrb[0].mxu0 %v2767
        %v3632 = vpop.f32.mrb[0].mxu0
        %v3633 = vadd.f32 %v503, %v3632
        %v3634 = vpop.f32.mrb[0].mxu0
        %3635 = vmatprep.mubr.f32.mxu0 0.0
        %3636 = vmatmul.mubr.f32.gmra.mrb[0].mxu0 %v2770
        %v3637 = vpop.f32.mrb[0].mxu0
        %v3638 = vadd.f32 %v503, %v3637
        %v3639 = vpop.f32.mrb[0].mxu0
        %3640 = vmatprep.mubr.f32.mxu0 0.0
        %3641 = vmatmul.mubr.f32.gmra.mrb[0].mxu0 %v2773
        %v3642 = vpop.f32.mrb[0].mxu0
        %v3643 = vadd.f32 %v503, %v3642
        %v3644 = vpop.f32.mrb[0].mxu0
        %3645 = vmatprep.mubr.f32.mxu0 0.0
        %3646 = vmatmul.mubr.f32.gmra.mrb[0].mxu0 %v2776
        %v3647 = vpop.f32.mrb[0].mxu0
        %v3648 = vadd.f32 %v503, %v3647
        %v3649 = vpop.f32.mrb[0].mxu0
        %3650 = vmatprep.mubr.f32.mxu0 0.0
        %3651 = vmatmul.mubr.f32.gmra.mrb[0].mxu0 %v2779
        %v3652 = vpop.f32.mrb[0].mxu0
        %v3653 = vadd.f32 %v503, %v3652
        %v3654 = vpop.f32.mrb[0].mxu0
        %3655 = vmatprep.mubr.f32.mxu0 0.0
        %3656 = vmatmul.mubr.f32.gmra.mrb[0].mxu0 %v2782
        %v3657 = vpop.f32.mrb[0].mxu0
        %v3658 = vadd.f32 %v503, %v3657
        %v3659 = vpop.f32.mrb[0].mxu0
        %3660 = vmatprep.mubr.f32.mxu0 0.0
        %3661 = vmatmul.mubr.f32.gmra.mrb[0].mxu0 %v2785
        %v3662 = vpop.f32.mrb[0].mxu0
        %v3663 = vadd.f32 %v503, %v3662
        %v3664 = vpop.f32.mrb[0].mxu0
        %3665 = vmatprep.mubr.f32.mxu0 0.0
        %3666 = vmatmul.mubr.f32.gmra.mrb[0].mxu0 %v2788
        %v3667 = vpop.f32.mrb[0].mxu0
        %v3668 = vadd.f32 %v503, %v3667
        %v3669 = vpop.f32.mrb[0].mxu0
        %3670 = vmatprep.mubr.f32.mxu0 0.0
        %3671 = vmatmul.mubr.f32.gmra.mrb[0].mxu0 %v2791
        %v3672 = vpop.f32.mrb[0].mxu0
        %v3673 = vadd.f32 %v503, %v3672
        %v3674 = vpop.f32.mrb[0].mxu0
        %3675 = vmatprep.mubr.f32.mxu0 0.0
        %3676 = vmatmul.mubr.f32.gmra.mrb[0].mxu0 %v2794
        %v3677 = vpop.f32.mrb[0].mxu0
        %v3678 = vadd.f32 %v503, %v3677
        %v3679 = vpop.f32.mrb[0].mxu0
        %3680 = vmatprep.mubr.f32.mxu0 0.0
        %3681 = vmatmul.mubr.f32.gmra.mrb[0].mxu0 %v2797
        %v3682 = vpop.f32.mrb[0].mxu0
        %v3683 = vadd.f32 %v503, %v3682
        %v3684 = vpop.f32.mrb[0].mxu0
        %3685 = vmatprep.mubr.f32.mxu0 0.0
        %3686 = vmatmul.mubr.f32.gmra.mrb[0].mxu0 %v2800
        %v3687 = vpop.f32.mrb[0].mxu0
        %v3688 = vadd.f32 %v503, %v3687
        %v3689 = vpop.f32.mrb[0].mxu0
        %3690 = vmatprep.mubr.f32.mxu0 0.0
        %3691 = vmatmul.mubr.f32.gmra.mrb[0].mxu0 %v2803
        %v3692 = vpop.f32.mrb[0].mxu0
        %v3693 = vadd.f32 %v503, %v3692
        %v3694 = vpop.f32.mrb[0].mxu0
        %3695 = vmatprep.mubr.f32.mxu0 0.0
        %3696 = vmatmul.mubr.f32.gmra.mrb[0].mxu0 %v2806
        %v3697 = vpop.f32.mrb[0].mxu0
        %v3698 = vadd.f32 %v503, %v3697
        %v3699 = vpop.f32.mrb[0].mxu0
        %3700 = vmatprep.mubr.f32.mxu0 0.0
        %3701 = vmatmul.mubr.f32.gmra.mrb[0].mxu0 %v2809
        %v3702 = vpop.f32.mrb[0].mxu0
        %v3703 = vadd.f32 %v503, %v3702
        %v3704 = vpop.f32.mrb[0].mxu0
        %3705 = vmatprep.mubr.f32.mxu0 0.0
        %3706 = vmatmul.mubr.f32.gmra.mrb[0].mxu0 %v2812
        %v3707 = vpop.f32.mrb[0].mxu0
        %v3708 = vadd.f32 %v503, %v3707
        %v3709 = vpop.f32.mrb[0].mxu0
        %3710 = vmatprep.mubr.f32.mxu0 0.0
        %3711 = vmatmul.mubr.f32.gmra.mrb[0].mxu0 %v2815
        %v3712 = vpop.f32.mrb[0].mxu0
        %v3713 = vadd.f32 %v503, %v3712
        %v3714 = vpop.f32.mrb[0].mxu0
        %3715 = vmatprep.mubr.f32.mxu0 0.0
        %3716 = vmatmul.mubr.f32.gmra.mrb[0].mxu0 %v2818
        %v3717 = vpop.f32.mrb[0].mxu0
        %v3718 = vadd.f32 %v503, %v3717
        %v3719 = vpop.f32.mrb[0].mxu0
        %3720 = vmatprep.mubr.f32.mxu0 0.0
        %3721 = vmatmul.mubr.f32.gmra.mrb[0].mxu0 %v2821
        %v3722 = vpop.f32.mrb[0].mxu0
        %v3723 = vadd.f32 %v503, %v3722
        %v3724 = vpop.f32.mrb[0].mxu0
        %3725 = vmatprep.mubr.f32.mxu0 0.0
        %3726 = vmatmul.mubr.f32.gmra.mrb[0].mxu0 %v2824
        %v3727 = vpop.f32.mrb[0].mxu0
        %v3728 = vadd.f32 %v503, %v3727
        %v3729 = vpop.f32.mrb[0].mxu0
        %3730 = vmatprep.mubr.f32.mxu0 0.0
        %3731 = vmatmul.mubr.f32.gmra.mrb[0].mxu0 %v2827
        %v3732 = vpop.f32.mrb[0].mxu0
        %v3733 = vadd.f32 %v503, %v3732
        %v3734 = vpop.f32.mrb[0].mxu0
        %3735 = vmatprep.mubr.f32.mxu0 0.0
        %3736 = vmatmul.mubr.f32.gmra.mrb[0].mxu0 %v2830
        %v3737 = vpop.f32.mrb[0].mxu0
        %v3738 = vadd.f32 %v503, %v3737
        %v3739 = vpop.f32.mrb[0].mxu0
        %3740 = vmatprep.mubr.f32.mxu0 0.0
        %3741 = vmatmul.mubr.f32.gmra.mrb[0].mxu0 %v2833
        %v3742 = vpop.f32.mrb[0].mxu0
        %v3743 = vadd.f32 %v503, %v3742
        %v3744 = vpop.f32.mrb[0].mxu0
        %3745 = vmatprep.mubr.f32.mxu0 0.0
        %3746 = vmatmul.mubr.f32.gmra.mrb[0].mxu0 %v2836
        %v3747 = vpop.f32.mrb[0].mxu0
        %v3748 = vadd.f32 %v503, %v3747
        %v3749 = vpop.f32.mrb[0].mxu0
        %3750 = vmatprep.mubr.f32.mxu0 0.0
        %3751 = vmatmul.mubr.f32.gmra.mrb[0].mxu0 %v2839
        %v3752 = vpop.f32.mrb[0].mxu0
        %v3753 = vadd.f32 %v503, %v3752
        %v3754 = vpop.f32.mrb[0].mxu0
        %3755 = vmatprep.mubr.f32.mxu0 0.0
        %3756 = vmatmul.mubr.f32.gmra.mrb[0].mxu0 %v2842
        %v3757 = vpop.f32.mrb[0].mxu0
        %v3758 = vadd.f32 %v503, %v3757
        %v3759 = vpop.f32.mrb[0].mxu0
        %3760 = vmatprep.mubr.f32.mxu0 0.0
        %3761 = vmatmul.mubr.f32.gmra.mrb[0].mxu0 %v2845
        %v3762 = vpop.f32.mrb[0].mxu0
        %v3763 = vadd.f32 %v503, %v3762
        %v3764 = vpop.f32.mrb[0].mxu0
        %3765 = vmatprep.mubr.f32.mxu0 0.0
        %3766 = vmatmul.mubr.f32.gmra.mrb[0].mxu0 %v2848
        %v3767 = vpop.f32.mrb[0].mxu0
        %v3768 = vadd.f32 %v503, %v3767
        %v3769 = vpop.f32.mrb[0].mxu0
        %3770 = vmatprep.mubr.f32.mxu0 0.0
        %3771 = vmatmul.mubr.f32.gmra.mrb[0].mxu0 %v2851
        %v3772 = vpop.f32.mrb[0].mxu0
        %v3773 = vadd.f32 %v503, %v3772
        %v3774 = vpop.f32.mrb[0].mxu0
        %3775 = vmatprep.mubr.f32.mxu0 0.0
        %3776 = vmatmul.mubr.f32.gmra.mrb[0].mxu0 %v2854
        %v3777 = vpop.f32.mrb[0].mxu0
        %v3778 = vadd.f32 %v503, %v3777
        %v3779 = vpop.f32.mrb[0].mxu0
        %3780 = vmatprep.mubr.f32.mxu0 0.0
        %3781 = vmatmul.mubr.f32.gmra.mrb[0].mxu0 %v2857
        %v3782 = vpop.f32.mrb[0].mxu0
        %v3783 = vadd.f32 %v503, %v3782
        %v3784 = vpop.f32.mrb[0].mxu0
        %3785 = vmatprep.mubr.f32.mxu0 0.0
        %3786 = vmatmul.mubr.f32.gmra.mrb[0].mxu0 %v2860
        %v3787 = vpop.f32.mrb[0].mxu0
        %v3788 = vadd.f32 %v503, %v3787
        %v3789 = vpop.f32.mrb[0].mxu0
        %3790 = vmatprep.mubr.f32.mxu0 0.0
        %3791 = vmatmul.mubr.f32.gmra.mrb[0].mxu0 %v2863
        %v3792 = vpop.f32.mrb[0].mxu0
        %v3793 = vadd.f32 %v503, %v3792
        %v3794 = vpop.f32.mrb[0].mxu0
        %3795 = vmatprep.mubr.f32.mxu0 0.0
        %3796 = vmatmul.mubr.f32.gmra.mrb[0].mxu0 %v2866
        %v3797 = vpop.f32.mrb[0].mxu0
        %v3798 = vadd.f32 %v503, %v3797
        %v3799 = vpop.f32.mrb[0].mxu0
        %3800 = vmatprep.mubr.f32.mxu0 0.0
        %3801 = vmatmul.mubr.f32.gmra.mrb[0].mxu0 %v2869
        %v3802 = vpop.f32.mrb[0].mxu0
        %v3803 = vadd.f32 %v503, %v3802
        %v3804 = vpop.f32.mrb[0].mxu0
        %3805 = vmatprep.mubr.f32.mxu0 0.0
        %3806 = vmatmul.mubr.f32.gmra.mrb[0].mxu0 %v2872
        %v3807 = vpop.f32.mrb[0].mxu0
        %v3808 = vadd.f32 %v503, %v3807
        %v3809 = vpop.f32.mrb[0].mxu0
        %3810 = vmatprep.mubr.f32.mxu0 0.0
        %3811 = vmatmul.mubr.f32.gmra.mrb[0].mxu0 %v2875
        %v3812 = vpop.f32.mrb[0].mxu0
        %v3813 = vadd.f32 %v503, %v3812
        %v3814 = vpop.f32.mrb[0].mxu0
        %3815 = vmatprep.mubr.f32.mxu0 0.0
        %3816 = vmatmul.mubr.f32.gmra.mrb[0].mxu0 %v2878
        %v3817 = vpop.f32.mrb[0].mxu0
        %v3818 = vadd.f32 %v503, %v3817
        %v3819 = vpop.f32.mrb[0].mxu0
        %3820 = vmatprep.mubr.f32.mxu0 0.0
        %3821 = vmatmul.mubr.f32.gmra.mrb[0].mxu0 %v2881
        %v3822 = vpop.f32.mrb[0].mxu0
        %v3823 = vadd.f32 %v503, %v3822
        %v3824 = vpop.f32.mrb[0].mxu0
        %3825 = vmatprep.mubr.f32.mxu0 0.0
        %3826 = vmatmul.mubr.f32.gmra.mrb[0].mxu0 %v2884
        %v3827 = vpop.f32.mrb[0].mxu0
        %v3828 = vadd.f32 %v503, %v3827
        %v3829 = vpop.f32.mrb[0].mxu0
        %3830 = vmatprep.mubr.f32.mxu0 0.0
        %3831 = vmatmul.mubr.f32.gmra.mrb[0].mxu0 %v2887
        %v3832 = vpop.f32.mrb[0].mxu0
        %v3833 = vadd.f32 %v503, %v3832
        %v3834 = vpop.f32.mrb[0].mxu0
        %3835 = vmatprep.mubr.f32.mxu0 0.0
        %3836 = vmatmul.mubr.f32.gmra.mrb[0].mxu0 %v2890
        %v3837 = vpop.f32.mrb[0].mxu0
        %v3838 = vadd.f32 %v503, %v3837
        %v3839 = vpop.f32.mrb[0].mxu0
        %3840 = vmatprep.mubr.f32.mxu0 0.0
        %3841 = vmatmul.mubr.f32.gmra.mrb[0].mxu0 %v2893
        %v3842 = vpop.f32.mrb[0].mxu0
        %v3843 = vadd.f32 %v503, %v3842
        %v3844 = vpop.f32.mrb[0].mxu0
        %3845 = vmatprep.mubr.f32.mxu0 0.0
        %3846 = vmatmul.mubr.f32.gmra.mrb[0].mxu0 %v2896
        %v3847 = vpop.f32.mrb[0].mxu0
        %v3848 = vadd.f32 %v503, %v3847
        %v3849 = vpop.f32.mrb[0].mxu0
        %3850 = vmatprep.mubr.f32.mxu0 0.0
        %3851 = vmatmul.mubr.f32.gmra.mrb[0].mxu0 %v2899
        %v3852 = vpop.f32.mrb[0].mxu0
        %v3853 = vadd.f32 %v503, %v3852
        %v3854 = vpop.f32.mrb[0].mxu0
        %3855 = vmatprep.mubr.f32.mxu0 0.0
        %3856 = vmatmul.mubr.f32.gmra.mrb[0].mxu0 %v2902
        %v3857 = vpop.f32.mrb[0].mxu0
        %v3858 = vadd.f32 %v503, %v3857
        %v3859 = vpop.f32.mrb[0].mxu0
        %3860 = vmatprep.mubr.f32.mxu0 0.0
        %3861 = vmatmul.mubr.f32.gmra.mrb[0].mxu0 %v2905
        %v3862 = vpop.f32.mrb[0].mxu0
        %v3863 = vadd.f32 %v503, %v3862
        %v3864 = vpop.f32.mrb[0].mxu0
        %3865 = vmatprep.mubr.f32.mxu0 0.0
        %3866 = vmatmul.mubr.f32.gmra.mrb[0].mxu0 %v2908
        %v3867 = vpop.f32.mrb[0].mxu0
        %v3868 = vadd.f32 %v503, %v3867
        %v3869 = vpop.f32.mrb[0].mxu0
        %3870 = vmatprep.mubr.f32.mxu0 0.0
        %3871 = vmatmul.mubr.f32.gmra.mrb[0].mxu0 %v2911
        %v3872 = vpop.f32.mrb[0].mxu0
        %v3873 = vadd.f32 %v503, %v3872
        %v3874 = vpop.f32.mrb[0].mxu0
        %3875 = vmatprep.mubr.f32.mxu0 0.0
        %3876 = vmatmul.mubr.f32.gmra.mrb[0].mxu0 %v2914
        %v3877 = vpop.f32.mrb[0].mxu0
        %v3878 = vadd.f32 %v503, %v3877
        %v3879 = vpop.f32.mrb[0].mxu0
        %3880 = vdwg.mxu0
        %v3881 = vmax.f32 %v2983, 0.0
        %v3882 = vmax.f32 %v2988, 0.0
        %v3883 = vmax.f32 %v2993, 0.0
        %v3884 = vmax.f32 %v2998, 0.0
        %v3885 = vmax.f32 %v3003, 0.0
        %v3886 = vmax.f32 %v3008, 0.0
        %v3887 = vmax.f32 %v3013, 0.0
        %v3888 = vmax.f32 %v3018, 0.0
        %v3889 = vmax.f32 %v3023, 0.0
        %v3890 = vmax.f32 %v3028, 0.0
        %v3891 = vmax.f32 %v3033, 0.0
        %v3892 = vmax.f32 %v3038, 0.0
        %v3893 = vmax.f32 %v3043, 0.0
        %v3894 = vmax.f32 %v3048, 0.0
        %v3895 = vmax.f32 %v3053, 0.0
        %v3896 = vmax.f32 %v3058, 0.0
        %v3897 = vmax.f32 %v3063, 0.0
        %v3898 = vmax.f32 %v3068, 0.0
        %v3899 = vmax.f32 %v3073, 0.0
        %v3900 = vmax.f32 %v3078, 0.0
        %v3901 = vmax.f32 %v3083, 0.0
        %v3902 = vmax.f32 %v3088, 0.0
        %v3903 = vmax.f32 %v3093, 0.0
        %v3904 = vmax.f32 %v3098, 0.0
        %v3905 = vmax.f32 %v3103, 0.0
        %v3906 = vmax.f32 %v3108, 0.0
        %v3907 = vmax.f32 %v3113, 0.0
        %v3908 = vmax.f32 %v3118, 0.0
        %v3909 = vmax.f32 %v3123, 0.0
        %v3910 = vmax.f32 %v3128, 0.0
        %v3911 = vmax.f32 %v3133, 0.0
        %v3912 = vmax.f32 %v3138, 0.0
        %v3913 = vmax.f32 %v3143, 0.0
        %v3914 = vmax.f32 %v3148, 0.0
        %v3915 = vmax.f32 %v3153, 0.0
        %v3916 = vmax.f32 %v3158, 0.0
        %v3917 = vmax.f32 %v3163, 0.0
        %v3918 = vmax.f32 %v3168, 0.0
        %v3919 = vmax.f32 %v3173, 0.0
        %v3920 = vmax.f32 %v3178, 0.0
        %v3921 = vmax.f32 %v3183, 0.0
        %v3922 = vmax.f32 %v3188, 0.0
        %v3923 = vmax.f32 %v3193, 0.0
        %v3924 = vmax.f32 %v3198, 0.0
        %v3925 = vmax.f32 %v3203, 0.0
        %v3926 = vmax.f32 %v3208, 0.0
        %v3927 = vmax.f32 %v3213, 0.0
        %v3928 = vmax.f32 %v3218, 0.0
        %v3929 = vmax.f32 %v3223, 0.0
        %v3930 = vmax.f32 %v3228, 0.0
        %v3931 = vmax.f32 %v3233, 0.0
        %v3932 = vmax.f32 %v3238, 0.0
        %v3933 = vmax.f32 %v3243, 0.0
        %v3934 = vmax.f32 %v3248, 0.0
        %v3935 = vmax.f32 %v3253, 0.0
        %v3936 = vmax.f32 %v3258, 0.0
        %v3937 = vmax.f32 %v3263, 0.0
        %v3938 = vmax.f32 %v3268, 0.0
        %v3939 = vmax.f32 %v3273, 0.0
        %v3940 = vmax.f32 %v3278, 0.0
        %v3941 = vmax.f32 %v3283, 0.0
        %v3942 = vmax.f32 %v3288, 0.0
        %v3943 = vmax.f32 %v3293, 0.0
        %v3944 = vmax.f32 %v3298, 0.0
        %v3945 = vmax.f32 %v3303, 0.0
        %v3946 = vmax.f32 %v3308, 0.0
        %v3947 = vmax.f32 %v3313, 0.0
        %v3948 = vmax.f32 %v3318, 0.0
        %v3949 = vmax.f32 %v3323, 0.0
        %v3950 = vmax.f32 %v3328, 0.0
        %v3951 = vmax.f32 %v3333, 0.0
        %v3952 = vmax.f32 %v3338, 0.0
        %v3953 = vmax.f32 %v3343, 0.0
        %v3954 = vmax.f32 %v3348, 0.0
        %v3955 = vmax.f32 %v3353, 0.0
        %v3956 = vmax.f32 %v3358, 0.0
        %v3957 = vmax.f32 %v3363, 0.0
        %v3958 = vmax.f32 %v3368, 0.0
        %v3959 = vmax.f32 %v3373, 0.0
        %v3960 = vmax.f32 %v3378, 0.0
        %v3961 = vmax.f32 %v3383, 0.0
        %v3962 = vmax.f32 %v3388, 0.0
        %v3963 = vmax.f32 %v3393, 0.0
        %v3964 = vmax.f32 %v3398, 0.0
        %v3965 = vmax.f32 %v3403, 0.0
        %v3966 = vmax.f32 %v3408, 0.0
        %v3967 = vmax.f32 %v3413, 0.0
        %v3968 = vmax.f32 %v3418, 0.0
        %v3969 = vmax.f32 %v3423, 0.0
        %v3970 = vmax.f32 %v3428, 0.0
        %v3971 = vmax.f32 %v3433, 0.0
        %v3972 = vmax.f32 %v3438, 0.0
        %v3973 = vmax.f32 %v3443, 0.0
        %v3974 = vmax.f32 %v3448, 0.0
        %v3975 = vmax.f32 %v3453, 0.0
        %v3976 = vmax.f32 %v3458, 0.0
        %v3977 = vmax.f32 %v3463, 0.0
        %v3978 = vmax.f32 %v3468, 0.0
        %v3979 = vmax.f32 %v3473, 0.0
        %v3980 = vmax.f32 %v3478, 0.0
        %v3981 = vmax.f32 %v3483, 0.0
        %v3982 = vmax.f32 %v3488, 0.0
        %v3983 = vmax.f32 %v3493, 0.0
        %v3984 = vmax.f32 %v3498, 0.0
        %v3985 = vmax.f32 %v3503, 0.0
        %v3986 = vmax.f32 %v3508, 0.0
        %v3987 = vmax.f32 %v3513, 0.0
        %v3988 = vmax.f32 %v3518, 0.0
        %v3989 = vmax.f32 %v3523, 0.0
        %v3990 = vmax.f32 %v3528, 0.0
        %v3991 = vmax.f32 %v3533, 0.0
        %v3992 = vmax.f32 %v3538, 0.0
        %v3993 = vmax.f32 %v3543, 0.0
        %v3994 = vmax.f32 %v3548, 0.0
        %v3995 = vmax.f32 %v3553, 0.0
        %v3996 = vmax.f32 %v3558, 0.0
        %v3997 = vmax.f32 %v3563, 0.0
        %v3998 = vmax.f32 %v3568, 0.0
        %v3999 = vmax.f32 %v3573, 0.0
        %v4000 = vmax.f32 %v3578, 0.0
        %v4001 = vmax.f32 %v3583, 0.0
        %v4002 = vmax.f32 %v3588, 0.0
        %v4003 = vmax.f32 %v3593, 0.0
        %v4004 = vmax.f32 %v3598, 0.0
        %v4005 = vmax.f32 %v3603, 0.0
        %v4006 = vmax.f32 %v3608, 0.0
        %v4007 = vmax.f32 %v3613, 0.0
        %v4008 = vmax.f32 %v3618, 0.0
        %v4009 = vmax.f32 %v3623, 0.0
        %v4010 = vmax.f32 %v3628, 0.0
        %v4011 = vmax.f32 %v3633, 0.0
        %v4012 = vmax.f32 %v3638, 0.0
        %v4013 = vmax.f32 %v3643, 0.0
        %v4014 = vmax.f32 %v3648, 0.0
        %v4015 = vmax.f32 %v3653, 0.0
        %v4016 = vmax.f32 %v3658, 0.0
        %v4017 = vmax.f32 %v3663, 0.0
        %v4018 = vmax.f32 %v3668, 0.0
        %v4019 = vmax.f32 %v3673, 0.0
        %v4020 = vmax.f32 %v3678, 0.0
        %v4021 = vmax.f32 %v3683, 0.0
        %v4022 = vmax.f32 %v3688, 0.0
        %v4023 = vmax.f32 %v3693, 0.0
        %v4024 = vmax.f32 %v3698, 0.0
        %v4025 = vmax.f32 %v3703, 0.0
        %v4026 = vmax.f32 %v3708, 0.0
        %v4027 = vmax.f32 %v3713, 0.0
        %v4028 = vmax.f32 %v3718, 0.0
        %v4029 = vmax.f32 %v3723, 0.0
        %v4030 = vmax.f32 %v3728, 0.0
        %v4031 = vmax.f32 %v3733, 0.0
        %v4032 = vmax.f32 %v3738, 0.0
        %v4033 = vmax.f32 %v3743, 0.0
        %v4034 = vmax.f32 %v3748, 0.0
        %v4035 = vmax.f32 %v3753, 0.0
        %v4036 = vmax.f32 %v3758, 0.0
        %v4037 = vmax.f32 %v3763, 0.0
        %v4038 = vmax.f32 %v3768, 0.0
        %v4039 = vmax.f32 %v3773, 0.0
        %v4040 = vmax.f32 %v3778, 0.0
        %v4041 = vmax.f32 %v3783, 0.0
        %v4042 = vmax.f32 %v3788, 0.0
        %v4043 = vmax.f32 %v3793, 0.0
        %v4044 = vmax.f32 %v3798, 0.0
        %v4045 = vmax.f32 %v3803, 0.0
        %v4046 = vmax.f32 %v3808, 0.0
        %v4047 = vmax.f32 %v3813, 0.0
        %v4048 = vmax.f32 %v3818, 0.0
        %v4049 = vmax.f32 %v3823, 0.0
        %v4050 = vmax.f32 %v3828, 0.0
        %v4051 = vmax.f32 %v3833, 0.0
        %v4052 = vmax.f32 %v3838, 0.0
        %v4053 = vmax.f32 %v3843, 0.0
        %v4054 = vmax.f32 %v3848, 0.0
        %v4055 = vmax.f32 %v3853, 0.0
        %v4056 = vmax.f32 %v3858, 0.0
        %v4057 = vmax.f32 %v3863, 0.0
        %v4058 = vmax.f32 %v3868, 0.0
        %v4059 = vmax.f32 %v3873, 0.0
        %v4060 = vmax.f32 %v3878, 0.0
        %s4061 = scalar_lea.vmem %s261, 2880 [#allocation2]
        %v4062 = vld [vmem:[%s4061] sm:$0xff]
        %v4063 = vld [vmem:[%s4061 + $0x8] sm:$0xff]
        %v4064 = vld [vmem:[%s4061 + $0x10] sm:$0xff]
        %v4065 = vld [vmem:[%s4061 + $0x18] sm:$0xff]
        %v4066 = vld [vmem:[%s4061 + $0x20] sm:$0xff]
        %v4067 = vld [vmem:[%s4061 + $0x28] sm:$0xff]
        %v4068 = vld [vmem:[%s4061 + $0x30] sm:$0xff]
        %v4069 = vld [vmem:[%s4061 + $0x38] sm:$0xff]
        %v4070 = vld [vmem:[%s4061 + $0x40] sm:$0xff]
        %v4071 = vld [vmem:[%s4061 + $0x48] sm:$0xff]
        %v4072 = vld [vmem:[%s4061 + $0x50] sm:$0xff]
        %v4073 = vld [vmem:[%s4061 + $0x58] sm:$0xff]
        %v4074 = vld [vmem:[%s4061 + $0x60] sm:$0xff]
        %v4075 = vld [vmem:[%s4061 + $0x68] sm:$0xff]
        %v4076 = vld [vmem:[%s4061 + $0x70] sm:$0xff]
        %v4077 = vld [vmem:[%s4061 + $0x78] sm:$0xff]
        %v4078 = vld [vmem:[%s4061 + $0x80] sm:$0xff]
        %v4079 = vld [vmem:[%s4061 + $0x88] sm:$0xff]
        %v4080 = vld [vmem:[%s4061 + $0x90] sm:$0xff]
        %v4081 = vld [vmem:[%s4061 + $0x98] sm:$0xff]
        %v4082 = vld [vmem:[%s4061 + $0xa0] sm:$0xff]
        %v4083 = vld [vmem:[%s4061 + $0xa8] sm:$0xff]
        %v4084 = vld [vmem:[%s4061 + $0xb0] sm:$0xff]
        %v4085 = vld [vmem:[%s4061 + $0xb8] sm:$0xff]
        %v4086 = vld [vmem:[%s4061 + $0xc0] sm:$0xff]
        %v4087 = vld [vmem:[%s4061 + $0xc8] sm:$0xff]
        %v4088 = vld [vmem:[%s4061 + $0xd0] sm:$0xff]
        %v4089 = vld [vmem:[%s4061 + $0xd8] sm:$0xff]
        %v4090 = vld [vmem:[%s4061 + $0xe0] sm:$0xff]
        %v4091 = vld [vmem:[%s4061 + $0xe8] sm:$0xff]
        %v4092 = vld [vmem:[%s4061 + $0xf0] sm:$0xff]
        %v4093 = vld [vmem:[%s4061 + $0xf8] sm:$0xff]
        %v4094 = vld [vmem:[%s4061 + $0x100] sm:$0xff]
        %v4095 = vld [vmem:[%s4061 + $0x108] sm:$0xff]
        %v4096 = vld [vmem:[%s4061 + $0x110] sm:$0xff]
        %v4097 = vld [vmem:[%s4061 + $0x118] sm:$0xff]
        %v4098 = vld [vmem:[%s4061 + $0x120] sm:$0xff]
        %v4099 = vld [vmem:[%s4061 + $0x128] sm:$0xff]
        %v4100 = vld [vmem:[%s4061 + $0x130] sm:$0xff]
        %v4101 = vld [vmem:[%s4061 + $0x138] sm:$0xff]
        %v4102 = vld [vmem:[%s4061 + $0x140] sm:$0xff]
        %v4103 = vld [vmem:[%s4061 + $0x148] sm:$0xff]
        %v4104 = vld [vmem:[%s4061 + $0x150] sm:$0xff]
        %v4105 = vld [vmem:[%s4061 + $0x158] sm:$0xff]
        %v4106 = vld [vmem:[%s4061 + $0x160] sm:$0xff]
        %v4107 = vld [vmem:[%s4061 + $0x168] sm:$0xff]
        %v4108 = vld [vmem:[%s4061 + $0x170] sm:$0xff]
        %v4109 = vld [vmem:[%s4061 + $0x178] sm:$0xff]
        %v4110 = vld [vmem:[%s4061 + $0x180] sm:$0xff]
        %v4111 = vld [vmem:[%s4061 + $0x188] sm:$0xff]
        %v4112 = vld [vmem:[%s4061 + $0x190] sm:$0xff]
        %v4113 = vld [vmem:[%s4061 + $0x198] sm:$0xff]
        %v4114 = vld [vmem:[%s4061 + $0x1a0] sm:$0xff]
        %v4115 = vld [vmem:[%s4061 + $0x1a8] sm:$0xff]
        %v4116 = vld [vmem:[%s4061 + $0x1b0] sm:$0xff]
        %v4117 = vld [vmem:[%s4061 + $0x1b8] sm:$0xff]
        %v4118 = vld [vmem:[%s4061 + $0x1c0] sm:$0xff]
        %v4119 = vld [vmem:[%s4061 + $0x1c8] sm:$0xff]
        %v4120 = vld [vmem:[%s4061 + $0x1d0] sm:$0xff]
        %v4121 = vld [vmem:[%s4061 + $0x1d8] sm:$0xff]
        %v4122 = vld [vmem:[%s4061 + $0x1e0] sm:$0xff]
        %v4123 = vld [vmem:[%s4061 + $0x1e8] sm:$0xff]
        %v4124 = vld [vmem:[%s4061 + $0x1f0] sm:$0xff]
        %v4125 = vld [vmem:[%s4061 + $0x1f8] sm:$0xff]
        %v4126 = vld [vmem:[%s4061 + $0x200] sm:$0xff]
        %v4127 = vld [vmem:[%s4061 + $0x208] sm:$0xff]
        %v4128 = vld [vmem:[%s4061 + $0x210] sm:$0xff]
        %v4129 = vld [vmem:[%s4061 + $0x218] sm:$0xff]
        %v4130 = vld [vmem:[%s4061 + $0x220] sm:$0xff]
        %v4131 = vld [vmem:[%s4061 + $0x228] sm:$0xff]
        %v4132 = vld [vmem:[%s4061 + $0x230] sm:$0xff]
        %v4133 = vld [vmem:[%s4061 + $0x238] sm:$0xff]
        %v4134 = vld [vmem:[%s4061 + $0x240] sm:$0xff]
        %v4135 = vld [vmem:[%s4061 + $0x248] sm:$0xff]
        %v4136 = vld [vmem:[%s4061 + $0x250] sm:$0xff]
        %v4137 = vld [vmem:[%s4061 + $0x258] sm:$0xff]
        %v4138 = vld [vmem:[%s4061 + $0x260] sm:$0xff]
        %v4139 = vld [vmem:[%s4061 + $0x268] sm:$0xff]
        %v4140 = vld [vmem:[%s4061 + $0x270] sm:$0xff]
        %v4141 = vld [vmem:[%s4061 + $0x278] sm:$0xff]
        %v4142 = vld [vmem:[%s4061 + $0x280] sm:$0xff]
        %v4143 = vld [vmem:[%s4061 + $0x288] sm:$0xff]
        %v4144 = vld [vmem:[%s4061 + $0x290] sm:$0xff]
        %v4145 = vld [vmem:[%s4061 + $0x298] sm:$0xff]
        %v4146 = vld [vmem:[%s4061 + $0x2a0] sm:$0xff]
        %v4147 = vld [vmem:[%s4061 + $0x2a8] sm:$0xff]
        %v4148 = vld [vmem:[%s4061 + $0x2b0] sm:$0xff]
        %v4149 = vld [vmem:[%s4061 + $0x2b8] sm:$0xff]
        %v4150 = vld [vmem:[%s4061 + $0x2c0] sm:$0xff]
        %v4151 = vld [vmem:[%s4061 + $0x2c8] sm:$0xff]
        %v4152 = vld [vmem:[%s4061 + $0x2d0] sm:$0xff]
        %v4153 = vld [vmem:[%s4061 + $0x2d8] sm:$0xff]
        %v4154 = vld [vmem:[%s4061 + $0x2e0] sm:$0xff]
        %v4155 = vld [vmem:[%s4061 + $0x2e8] sm:$0xff]
        %v4156 = vld [vmem:[%s4061 + $0x2f0] sm:$0xff]
        %v4157 = vld [vmem:[%s4061 + $0x2f8] sm:$0xff]
        %v4158 = vld [vmem:[%s4061 + $0x300] sm:$0xff]
        %v4159 = vld [vmem:[%s4061 + $0x308] sm:$0xff]
        %v4160 = vld [vmem:[%s4061 + $0x310] sm:$0xff]
        %v4161 = vld [vmem:[%s4061 + $0x318] sm:$0xff]
        %v4162 = vld [vmem:[%s4061 + $0x320] sm:$0xff]
        %v4163 = vld [vmem:[%s4061 + $0x328] sm:$0xff]
        %v4164 = vld [vmem:[%s4061 + $0x330] sm:$0xff]
        %v4165 = vld [vmem:[%s4061 + $0x338] sm:$0xff]
        %v4166 = vld [vmem:[%s4061 + $0x340] sm:$0xff]
        %v4167 = vld [vmem:[%s4061 + $0x348] sm:$0xff]
        %v4168 = vld [vmem:[%s4061 + $0x350] sm:$0xff]
        %v4169 = vld [vmem:[%s4061 + $0x358] sm:$0xff]
        %v4170 = vld [vmem:[%s4061 + $0x360] sm:$0xff]
        %v4171 = vld [vmem:[%s4061 + $0x368] sm:$0xff]
        %v4172 = vld [vmem:[%s4061 + $0x370] sm:$0xff]
        %v4173 = vld [vmem:[%s4061 + $0x378] sm:$0xff]
        %v4174 = vld [vmem:[%s4061 + $0x380] sm:$0xff]
        %v4175 = vld [vmem:[%s4061 + $0x388] sm:$0xff]
        %v4176 = vld [vmem:[%s4061 + $0x390] sm:$0xff]
        %v4177 = vld [vmem:[%s4061 + $0x398] sm:$0xff]
        %v4178 = vld [vmem:[%s4061 + $0x3a0] sm:$0xff]
        %v4179 = vld [vmem:[%s4061 + $0x3a8] sm:$0xff]
        %v4180 = vld [vmem:[%s4061 + $0x3b0] sm:$0xff]
        %v4181 = vld [vmem:[%s4061 + $0x3b8] sm:$0xff]
        %v4182 = vld [vmem:[%s4061 + $0x3c0] sm:$0xff]
        %v4183 = vld [vmem:[%s4061 + $0x3c8] sm:$0xff]
        %v4184 = vld [vmem:[%s4061 + $0x3d0] sm:$0xff]
        %v4185 = vld [vmem:[%s4061 + $0x3d8] sm:$0xff]
        %v4186 = vld [vmem:[%s4061 + $0x3e0] sm:$0xff]
        %v4187 = vld [vmem:[%s4061 + $0x3e8] sm:$0xff]
        %v4188 = vld [vmem:[%s4061 + $0x3f0] sm:$0xff]
        %v4189 = vld [vmem:[%s4061 + $0x3f8] sm:$0xff]
        %v4190 = vld [vmem:[%s4061 + $0x400] sm:$0xff]
        %v4191 = vld [vmem:[%s4061 + $0x408] sm:$0xff]
        %v4192 = vld [vmem:[%s4061 + $0x410] sm:$0xff]
        %v4193 = vld [vmem:[%s4061 + $0x418] sm:$0xff]
        %v4194 = vld [vmem:[%s4061 + $0x420] sm:$0xff]
        %v4195 = vld [vmem:[%s4061 + $0x428] sm:$0xff]
        %v4196 = vld [vmem:[%s4061 + $0x430] sm:$0xff]
        %v4197 = vld [vmem:[%s4061 + $0x438] sm:$0xff]
        %v4198 = vld [vmem:[%s4061 + $0x440] sm:$0xff]
        %v4199 = vld [vmem:[%s4061 + $0x448] sm:$0xff]
        %v4200 = vld [vmem:[%s4061 + $0x450] sm:$0xff]
        %v4201 = vld [vmem:[%s4061 + $0x458] sm:$0xff]
        %v4202 = vld [vmem:[%s4061 + $0x460] sm:$0xff]
        %v4203 = vld [vmem:[%s4061 + $0x468] sm:$0xff]
        %v4204 = vld [vmem:[%s4061 + $0x470] sm:$0xff]
        %v4205 = vld [vmem:[%s4061 + $0x478] sm:$0xff]
        %v4206 = vld [vmem:[%s4061 + $0x480] sm:$0xff]
        %v4207 = vld [vmem:[%s4061 + $0x488] sm:$0xff]
        %v4208 = vld [vmem:[%s4061 + $0x490] sm:$0xff]
        %v4209 = vld [vmem:[%s4061 + $0x498] sm:$0xff]
        %v4210 = vld [vmem:[%s4061 + $0x4a0] sm:$0xff]
        %v4211 = vld [vmem:[%s4061 + $0x4a8] sm:$0xff]
        %v4212 = vld [vmem:[%s4061 + $0x4b0] sm:$0xff]
        %v4213 = vld [vmem:[%s4061 + $0x4b8] sm:$0xff]
        %v4214 = vld [vmem:[%s4061 + $0x4c0] sm:$0xff]
        %v4215 = vld [vmem:[%s4061 + $0x4c8] sm:$0xff]
        %v4216 = vld [vmem:[%s4061 + $0x4d0] sm:$0xff]
        %v4217 = vld [vmem:[%s4061 + $0x4d8] sm:$0xff]
        %v4218 = vld [vmem:[%s4061 + $0x4e0] sm:$0xff]
        %v4219 = vld [vmem:[%s4061 + $0x4e8] sm:$0xff]
        %v4220 = vld [vmem:[%s4061 + $0x4f0] sm:$0xff]
        %v4221 = vld [vmem:[%s4061 + $0x4f8] sm:$0xff]
        %v4222 = vld [vmem:[%s4061 + $0x500] sm:$0xff]
        %v4223 = vld [vmem:[%s4061 + $0x508] sm:$0xff]
        %v4224 = vld [vmem:[%s4061 + $0x510] sm:$0xff]
        %v4225 = vld [vmem:[%s4061 + $0x518] sm:$0xff]
        %v4226 = vld [vmem:[%s4061 + $0x520] sm:$0xff]
        %v4227 = vld [vmem:[%s4061 + $0x528] sm:$0xff]
        %v4228 = vld [vmem:[%s4061 + $0x530] sm:$0xff]
        %v4229 = vld [vmem:[%s4061 + $0x538] sm:$0xff]
        %v4230 = vld [vmem:[%s4061 + $0x540] sm:$0xff]
        %v4231 = vld [vmem:[%s4061 + $0x548] sm:$0xff]
        %v4232 = vld [vmem:[%s4061 + $0x550] sm:$0xff]
        %v4233 = vld [vmem:[%s4061 + $0x558] sm:$0xff]
        %v4234 = vld [vmem:[%s4061 + $0x560] sm:$0xff]
        %v4235 = vld [vmem:[%s4061 + $0x568] sm:$0xff]
        %v4236 = vld [vmem:[%s4061 + $0x570] sm:$0xff]
        %v4237 = vld [vmem:[%s4061 + $0x578] sm:$0xff]
        %v4238 = vld [vmem:[%s4061 + $0x580] sm:$0xff]
        %v4239 = vld [vmem:[%s4061 + $0x588] sm:$0xff]
        %v4240 = vld [vmem:[%s4061 + $0x590] sm:$0xff]
        %v4241 = vld [vmem:[%s4061 + $0x598] sm:$0xff]
        %v4243 = vsel %vm505, %v4062, 0
        %v4246 = vsel %vm505, %v4063, 0
        %v4249 = vsel %vm505, %v4064, 0
        %v4252 = vsel %vm505, %v4065, 0
        %v4255 = vsel %vm505, %v4066, 0
        %v4258 = vsel %vm505, %v4067, 0
        %v4261 = vsel %vm505, %v4068, 0
        %v4264 = vsel %vm505, %v4069, 0
        %v4267 = vsel %vm505, %v4070, 0
        %v4270 = vsel %vm505, %v4071, 0
        %v4273 = vsel %vm505, %v4072, 0
        %v4276 = vsel %vm505, %v4073, 0
        %v4279 = vsel %vm505, %v4074, 0
        %v4282 = vsel %vm505, %v4075, 0
        %v4285 = vsel %vm505, %v4076, 0
        %v4288 = vsel %vm505, %v4077, 0
        %v4291 = vsel %vm505, %v4078, 0
        %v4294 = vsel %vm505, %v4079, 0
        %v4297 = vsel %vm505, %v4080, 0
        %v4300 = vsel %vm505, %v4081, 0
        %v4303 = vsel %vm505, %v4082, 0
        %v4306 = vsel %vm505, %v4083, 0
        %v4309 = vsel %vm505, %v4084, 0
        %v4312 = vsel %vm505, %v4085, 0
        %v4315 = vsel %vm505, %v4086, 0
        %v4318 = vsel %vm505, %v4087, 0
        %v4321 = vsel %vm505, %v4088, 0
        %v4324 = vsel %vm505, %v4089, 0
        %v4327 = vsel %vm505, %v4090, 0
        %v4330 = vsel %vm505, %v4091, 0
        %v4333 = vsel %vm505, %v4092, 0
        %v4336 = vsel %vm505, %v4093, 0
        %v4339 = vsel %vm505, %v4094, 0
        %v4342 = vsel %vm505, %v4095, 0
        %v4345 = vsel %vm505, %v4096, 0
        %v4348 = vsel %vm505, %v4097, 0
        %v4351 = vsel %vm505, %v4098, 0
        %v4354 = vsel %vm505, %v4099, 0
        %v4357 = vsel %vm505, %v4100, 0
        %v4360 = vsel %vm505, %v4101, 0
        %v4363 = vsel %vm505, %v4102, 0
        %v4366 = vsel %vm505, %v4103, 0
        %v4369 = vsel %vm505, %v4104, 0
        %v4372 = vsel %vm505, %v4105, 0
        %v4375 = vsel %vm505, %v4106, 0
        %v4378 = vsel %vm505, %v4107, 0
        %v4381 = vsel %vm505, %v4108, 0
        %v4384 = vsel %vm505, %v4109, 0
        %v4387 = vsel %vm505, %v4110, 0
        %v4390 = vsel %vm505, %v4111, 0
        %v4393 = vsel %vm505, %v4112, 0
        %v4396 = vsel %vm505, %v4113, 0
        %v4399 = vsel %vm505, %v4114, 0
        %v4402 = vsel %vm505, %v4115, 0
        %v4405 = vsel %vm505, %v4116, 0
        %v4408 = vsel %vm505, %v4117, 0
        %v4411 = vsel %vm505, %v4118, 0
        %v4414 = vsel %vm505, %v4119, 0
        %v4417 = vsel %vm505, %v4120, 0
        %v4420 = vsel %vm505, %v4121, 0
        %v4423 = vsel %vm505, %v4122, 0
        %v4426 = vsel %vm505, %v4123, 0
        %v4429 = vsel %vm505, %v4124, 0
        %v4432 = vsel %vm505, %v4125, 0
        %v4435 = vsel %vm505, %v4126, 0
        %v4438 = vsel %vm505, %v4127, 0
        %v4441 = vsel %vm505, %v4128, 0
        %v4444 = vsel %vm505, %v4129, 0
        %v4447 = vsel %vm505, %v4130, 0
        %v4450 = vsel %vm505, %v4131, 0
        %v4453 = vsel %vm505, %v4132, 0
        %v4456 = vsel %vm505, %v4133, 0
        %v4459 = vsel %vm505, %v4134, 0
        %v4462 = vsel %vm505, %v4135, 0
        %v4465 = vsel %vm505, %v4136, 0
        %v4468 = vsel %vm505, %v4137, 0
        %v4471 = vsel %vm505, %v4138, 0
        %v4474 = vsel %vm505, %v4139, 0
        %v4477 = vsel %vm505, %v4140, 0
        %v4480 = vsel %vm505, %v4141, 0
        %v4483 = vsel %vm505, %v4142, 0
        %v4486 = vsel %vm505, %v4143, 0
        %v4489 = vsel %vm505, %v4144, 0
        %v4492 = vsel %vm505, %v4145, 0
        %v4495 = vsel %vm505, %v4146, 0
        %v4498 = vsel %vm505, %v4147, 0
        %v4501 = vsel %vm505, %v4148, 0
        %v4504 = vsel %vm505, %v4149, 0
        %v4507 = vsel %vm505, %v4150, 0
        %v4510 = vsel %vm505, %v4151, 0
        %v4513 = vsel %vm505, %v4152, 0
        %v4516 = vsel %vm505, %v4153, 0
        %v4519 = vsel %vm505, %v4154, 0
        %v4522 = vsel %vm505, %v4155, 0
        %v4525 = vsel %vm505, %v4156, 0
        %v4528 = vsel %vm505, %v4157, 0
        %v4531 = vsel %vm505, %v4158, 0
        %v4534 = vsel %vm505, %v4159, 0
        %v4537 = vsel %vm505, %v4160, 0
        %v4540 = vsel %vm505, %v4161, 0
        %v4543 = vsel %vm505, %v4162, 0
        %v4546 = vsel %vm505, %v4163, 0
        %v4549 = vsel %vm505, %v4164, 0
        %v4552 = vsel %vm505, %v4165, 0
        %v4555 = vsel %vm505, %v4166, 0
        %v4558 = vsel %vm505, %v4167, 0
        %v4561 = vsel %vm505, %v4168, 0
        %v4564 = vsel %vm505, %v4169, 0
        %v4567 = vsel %vm505, %v4170, 0
        %v4570 = vsel %vm505, %v4171, 0
        %v4573 = vsel %vm505, %v4172, 0
        %v4576 = vsel %vm505, %v4173, 0
        %v4579 = vsel %vm505, %v4174, 0
        %v4582 = vsel %vm505, %v4175, 0
        %v4585 = vsel %vm505, %v4176, 0
        %v4588 = vsel %vm505, %v4177, 0
        %v4591 = vsel %vm505, %v4178, 0
        %v4594 = vsel %vm505, %v4179, 0
        %v4597 = vsel %vm505, %v4180, 0
        %v4600 = vsel %vm505, %v4181, 0
        %v4603 = vsel %vm505, %v4182, 0
        %v4606 = vsel %vm505, %v4183, 0
        %v4609 = vsel %vm505, %v4184, 0
        %v4612 = vsel %vm505, %v4185, 0
        %v4615 = vsel %vm505, %v4186, 0
        %v4618 = vsel %vm505, %v4187, 0
        %v4621 = vsel %vm505, %v4188, 0
        %v4624 = vsel %vm505, %v4189, 0
        %v4627 = vsel %vm505, %v4190, 0
        %v4630 = vsel %vm505, %v4191, 0
        %v4633 = vsel %vm505, %v4192, 0
        %v4636 = vsel %vm505, %v4193, 0
        %v4639 = vsel %vm505, %v4194, 0
        %v4642 = vsel %vm505, %v4195, 0
        %v4645 = vsel %vm505, %v4196, 0
        %v4648 = vsel %vm505, %v4197, 0
        %v4651 = vsel %vm505, %v4198, 0
        %v4654 = vsel %vm505, %v4199, 0
        %v4657 = vsel %vm505, %v4200, 0
        %v4660 = vsel %vm505, %v4201, 0
        %v4663 = vsel %vm505, %v4202, 0
        %v4666 = vsel %vm505, %v4203, 0
        %v4669 = vsel %vm505, %v4204, 0
        %v4672 = vsel %vm505, %v4205, 0
        %v4675 = vsel %vm505, %v4206, 0
        %v4678 = vsel %vm505, %v4207, 0
        %v4681 = vsel %vm505, %v4208, 0
        %v4684 = vsel %vm505, %v4209, 0
        %v4687 = vsel %vm505, %v4210, 0
        %v4690 = vsel %vm505, %v4211, 0
        %v4693 = vsel %vm505, %v4212, 0
        %v4696 = vsel %vm505, %v4213, 0
        %v4699 = vsel %vm505, %v4214, 0
        %v4702 = vsel %vm505, %v4215, 0
        %v4705 = vsel %vm505, %v4216, 0
        %v4708 = vsel %vm505, %v4217, 0
        %v4711 = vsel %vm505, %v4218, 0
        %v4714 = vsel %vm505, %v4219, 0
        %v4717 = vsel %vm505, %v4220, 0
        %v4720 = vsel %vm505, %v4221, 0
        %v4723 = vsel %vm505, %v4222, 0
        %v4726 = vsel %vm505, %v4223, 0
        %v4729 = vsel %vm505, %v4224, 0
        %v4732 = vsel %vm505, %v4225, 0
        %v4735 = vsel %vm505, %v4226, 0
        %v4738 = vsel %vm505, %v4227, 0
        %v4741 = vsel %vm505, %v4228, 0
        %v4744 = vsel %vm505, %v4229, 0
        %v4747 = vsel %vm505, %v4230, 0
        %v4750 = vsel %vm505, %v4231, 0
        %v4753 = vsel %vm505, %v4232, 0
        %v4756 = vsel %vm505, %v4233, 0
        %v4759 = vsel %vm505, %v4234, 0
        %v4762 = vsel %vm505, %v4235, 0
        %v4765 = vsel %vm505, %v4236, 0
        %v4768 = vsel %vm505, %v4237, 0
        %v4771 = vsel %vm505, %v4238, 0
        %v4774 = vsel %vm505, %v4239, 0
        %v4777 = vsel %vm505, %v4240, 0
        %v4780 = vsel %vm505, %v4241, 0
        %4782 = vmatprep.subr.mxu0 0.0
        %4783 = vmatpush1.msra.mxu0 %v311
        %4784 = vmatprep.subr.mxu0 0.0
        %4785 = vmatpush1.msra.mxu0 %v312
        %4786 = vmatprep.subr.mxu0 0.0
        %4787 = vmatpush1.msra.mxu0 %v313
        %4788 = vmatprep.subr.mxu0 0.0
        %4789 = vmatpush1.msra.mxu0 %v314
        %4790 = vmatprep.subr.mxu0 0.0
        %4791 = vmatpush1.msra.mxu0 %v315
        %4792 = vmatprep.subr.mxu0 0.0
        %4793 = vmatpush1.msra.mxu0 %v316
        %4794 = vmatprep.subr.mxu0 0.0
        %4795 = vmatpush1.msra.mxu0 %v1048
        %4796 = vmatprep.subr.mxu0 0.0
        %4797 = vmatpush1.msra.mxu0 0.0
        %4798 = vmatprep.subr.mxu0 0.0
        %4799 = vmatpush1.msra.mxu0 0.0
        %4800 = vmatprep.subr.mxu0 0.0
        %4801 = vmatpush1.msra.mxu0 0.0
        %4802 = vmatprep.subr.mxu0 0.0
        %4803 = vmatpush1.msra.mxu0 0.0
        %4804 = vmatprep.subr.mxu0 0.0
        %4805 = vmatpush1.msra.mxu0 0.0
        %4806 = vmatprep.subr.mxu0 0.0
        %4807 = vmatpush1.msra.mxu0 0.0
        %4808 = vmatprep.subr.mxu0 0.0
        %4809 = vmatpush1.msra.mxu0 0.0
        %4810 = vmatprep.subr.mxu0 0.0
        %4811 = vmatpush1.msra.mxu0 0.0
        %4812 = vmatprep.subr.mxu0 0.0
        %4813 = vmatpush1.msra.mxu0 0.0
        %4814 = vmatprep.subr.mxu0 0.0
        %4815 = vmatpush1.msra.mxu0 0.0
        %4816 = vmatprep.subr.mxu0 0.0
        %4817 = vmatpush1.msra.mxu0 0.0
        %4818 = vmatprep.subr.mxu0 0.0
        %4819 = vmatpush1.msra.mxu0 0.0
        %4820 = vmatprep.subr.mxu0 0.0
        %4821 = vmatpush1.msra.mxu0 0.0
        %4822 = vmatprep.subr.mxu0 0.0
        %4823 = vmatpush1.msra.mxu0 0.0
        %4824 = vmatprep.subr.mxu0 0.0
        %4825 = vmatpush1.msra.mxu0 0.0
        %4826 = vmatprep.subr.mxu0 0.0
        %4827 = vmatpush1.msra.mxu0 0.0
        %4828 = vmatprep.subr.mxu0 0.0
        %4829 = vmatpush1.msra.mxu0 0.0
        %4830 = vmatprep.subr.mxu0 0.0
        %4831 = vmatpush1.msra.mxu0 0.0
        %4832 = vmatprep.subr.mxu0 0.0
        %4833 = vmatpush1.msra.mxu0 0.0
        %4834 = vmatprep.subr.mxu0 0.0
        %4835 = vmatpush1.msra.mxu0 0.0
        %4836 = vmatprep.subr.mxu0 0.0
        %4837 = vmatpush1.msra.mxu0 0.0
        %4838 = vmatprep.subr.mxu0 0.0
        %4839 = vmatpush1.msra.mxu0 0.0
        %4840 = vmatprep.subr.mxu0 0.0
        %4841 = vmatpush1.msra.mxu0 0.0
        %4842 = vmatprep.subr.mxu0 0.0
        %4843 = vmatpush1.msra.mxu0 0.0
        %4844 = vmatprep.subr.mxu0 0.0
        %4845 = vmatpush1.msra.mxu0 0.0
        %4846 = vmatprep.mubr.f32.mxu0 0.0
        %4847 = vmatmul.mubr.f32.gmra.mrb[0].mxu0 %v4243
        %v4848 = vpop.f32.mrb[0].mxu0
        %v4849 = vadd.f32 %v503, %v4848
        %v4850 = vpop.f32.mrb[0].mxu0
        %4851 = vmatprep.mubr.f32.mxu0 0.0
        %4852 = vmatmul.mubr.f32.gmra.mrb[0].mxu0 %v4246
        %v4853 = vpop.f32.mrb[0].mxu0
        %v4854 = vadd.f32 %v503, %v4853
        %v4855 = vpop.f32.mrb[0].mxu0
        %4856 = vmatprep.mubr.f32.mxu0 0.0
        %4857 = vmatmul.mubr.f32.gmra.mrb[0].mxu0 %v4249
        %v4858 = vpop.f32.mrb[0].mxu0
        %v4859 = vadd.f32 %v503, %v4858
        %v4860 = vpop.f32.mrb[0].mxu0
        %4861 = vmatprep.mubr.f32.mxu0 0.0
        %4862 = vmatmul.mubr.f32.gmra.mrb[0].mxu0 %v4252
        %v4863 = vpop.f32.mrb[0].mxu0
        %v4864 = vadd.f32 %v503, %v4863
        %v4865 = vpop.f32.mrb[0].mxu0
        %4866 = vmatprep.mubr.f32.mxu0 0.0
        %4867 = vmatmul.mubr.f32.gmra.mrb[0].mxu0 %v4255
        %v4868 = vpop.f32.mrb[0].mxu0
        %v4869 = vadd.f32 %v503, %v4868
        %v4870 = vpop.f32.mrb[0].mxu0
        %4871 = vmatprep.mubr.f32.mxu0 0.0
        %4872 = vmatmul.mubr.f32.gmra.mrb[0].mxu0 %v4258
        %v4873 = vpop.f32.mrb[0].mxu0
        %v4874 = vadd.f32 %v503, %v4873
        %v4875 = vpop.f32.mrb[0].mxu0
        %4876 = vmatprep.mubr.f32.mxu0 0.0
        %4877 = vmatmul.mubr.f32.gmra.mrb[0].mxu0 %v4261
        %v4878 = vpop.f32.mrb[0].mxu0
        %v4879 = vadd.f32 %v503, %v4878
        %v4880 = vpop.f32.mrb[0].mxu0
        %4881 = vmatprep.mubr.f32.mxu0 0.0
        %4882 = vmatmul.mubr.f32.gmra.mrb[0].mxu0 %v4264
        %v4883 = vpop.f32.mrb[0].mxu0
        %v4884 = vadd.f32 %v503, %v4883
        %v4885 = vpop.f32.mrb[0].mxu0
        %4886 = vmatprep.mubr.f32.mxu0 0.0
        %4887 = vmatmul.mubr.f32.gmra.mrb[0].mxu0 %v4267
        %v4888 = vpop.f32.mrb[0].mxu0
        %v4889 = vadd.f32 %v503, %v4888
        %v4890 = vpop.f32.mrb[0].mxu0
        %4891 = vmatprep.mubr.f32.mxu0 0.0
        %4892 = vmatmul.mubr.f32.gmra.mrb[0].mxu0 %v4270
        %v4893 = vpop.f32.mrb[0].mxu0
        %v4894 = vadd.f32 %v503, %v4893
        %v4895 = vpop.f32.mrb[0].mxu0
        %4896 = vmatprep.mubr.f32.mxu0 0.0
        %4897 = vmatmul.mubr.f32.gmra.mrb[0].mxu0 %v4273
        %v4898 = vpop.f32.mrb[0].mxu0
        %v4899 = vadd.f32 %v503, %v4898
        %v4900 = vpop.f32.mrb[0].mxu0
        %4901 = vmatprep.mubr.f32.mxu0 0.0
        %4902 = vmatmul.mubr.f32.gmra.mrb[0].mxu0 %v4276
        %v4903 = vpop.f32.mrb[0].mxu0
        %v4904 = vadd.f32 %v503, %v4903
        %v4905 = vpop.f32.mrb[0].mxu0
        %4906 = vmatprep.mubr.f32.mxu0 0.0
        %4907 = vmatmul.mubr.f32.gmra.mrb[0].mxu0 %v4279
        %v4908 = vpop.f32.mrb[0].mxu0
        %v4909 = vadd.f32 %v503, %v4908
        %v4910 = vpop.f32.mrb[0].mxu0
        %4911 = vmatprep.mubr.f32.mxu0 0.0
        %4912 = vmatmul.mubr.f32.gmra.mrb[0].mxu0 %v4282
        %v4913 = vpop.f32.mrb[0].mxu0
        %v4914 = vadd.f32 %v503, %v4913
        %v4915 = vpop.f32.mrb[0].mxu0
        %4916 = vmatprep.mubr.f32.mxu0 0.0
        %4917 = vmatmul.mubr.f32.gmra.mrb[0].mxu0 %v4285
        %v4918 = vpop.f32.mrb[0].mxu0
        %v4919 = vadd.f32 %v503, %v4918
        %v4920 = vpop.f32.mrb[0].mxu0
        %4921 = vmatprep.mubr.f32.mxu0 0.0
        %4922 = vmatmul.mubr.f32.gmra.mrb[0].mxu0 %v4288
        %v4923 = vpop.f32.mrb[0].mxu0
        %v4924 = vadd.f32 %v503, %v4923
        %v4925 = vpop.f32.mrb[0].mxu0
        %4926 = vmatprep.mubr.f32.mxu0 0.0
        %4927 = vmatmul.mubr.f32.gmra.mrb[0].mxu0 %v4291
        %v4928 = vpop.f32.mrb[0].mxu0
        %v4929 = vadd.f32 %v503, %v4928
        %v4930 = vpop.f32.mrb[0].mxu0
        %4931 = vmatprep.mubr.f32.mxu0 0.0
        %4932 = vmatmul.mubr.f32.gmra.mrb[0].mxu0 %v4294
        %v4933 = vpop.f32.mrb[0].mxu0
        %v4934 = vadd.f32 %v503, %v4933
        %v4935 = vpop.f32.mrb[0].mxu0
        %4936 = vmatprep.mubr.f32.mxu0 0.0
        %4937 = vmatmul.mubr.f32.gmra.mrb[0].mxu0 %v4297
        %v4938 = vpop.f32.mrb[0].mxu0
        %v4939 = vadd.f32 %v503, %v4938
        %v4940 = vpop.f32.mrb[0].mxu0
        %4941 = vmatprep.mubr.f32.mxu0 0.0
        %4942 = vmatmul.mubr.f32.gmra.mrb[0].mxu0 %v4300
        %v4943 = vpop.f32.mrb[0].mxu0
        %v4944 = vadd.f32 %v503, %v4943
        %v4945 = vpop.f32.mrb[0].mxu0
        %4946 = vmatprep.mubr.f32.mxu0 0.0
        %4947 = vmatmul.mubr.f32.gmra.mrb[0].mxu0 %v4303
        %v4948 = vpop.f32.mrb[0].mxu0
        %v4949 = vadd.f32 %v503, %v4948
        %v4950 = vpop.f32.mrb[0].mxu0
        %4951 = vmatprep.mubr.f32.mxu0 0.0
        %4952 = vmatmul.mubr.f32.gmra.mrb[0].mxu0 %v4306
        %v4953 = vpop.f32.mrb[0].mxu0
        %v4954 = vadd.f32 %v503, %v4953
        %v4955 = vpop.f32.mrb[0].mxu0
        %4956 = vmatprep.mubr.f32.mxu0 0.0
        %4957 = vmatmul.mubr.f32.gmra.mrb[0].mxu0 %v4309
        %v4958 = vpop.f32.mrb[0].mxu0
        %v4959 = vadd.f32 %v503, %v4958
        %v4960 = vpop.f32.mrb[0].mxu0
        %4961 = vmatprep.mubr.f32.mxu0 0.0
        %4962 = vmatmul.mubr.f32.gmra.mrb[0].mxu0 %v4312
        %v4963 = vpop.f32.mrb[0].mxu0
        %v4964 = vadd.f32 %v503, %v4963
        %v4965 = vpop.f32.mrb[0].mxu0
        %4966 = vmatprep.mubr.f32.mxu0 0.0
        %4967 = vmatmul.mubr.f32.gmra.mrb[0].mxu0 %v4315
        %v4968 = vpop.f32.mrb[0].mxu0
        %v4969 = vadd.f32 %v503, %v4968
        %v4970 = vpop.f32.mrb[0].mxu0
        %4971 = vmatprep.mubr.f32.mxu0 0.0
        %4972 = vmatmul.mubr.f32.gmra.mrb[0].mxu0 %v4318
        %v4973 = vpop.f32.mrb[0].mxu0
        %v4974 = vadd.f32 %v503, %v4973
        %v4975 = vpop.f32.mrb[0].mxu0
        %4976 = vmatprep.mubr.f32.mxu0 0.0
        %4977 = vmatmul.mubr.f32.gmra.mrb[0].mxu0 %v4321
        %v4978 = vpop.f32.mrb[0].mxu0
        %v4979 = vadd.f32 %v503, %v4978
        %v4980 = vpop.f32.mrb[0].mxu0
        %4981 = vmatprep.mubr.f32.mxu0 0.0
        %4982 = vmatmul.mubr.f32.gmra.mrb[0].mxu0 %v4324
        %v4983 = vpop.f32.mrb[0].mxu0
        %v4984 = vadd.f32 %v503, %v4983
        %v4985 = vpop.f32.mrb[0].mxu0
        %4986 = vmatprep.mubr.f32.mxu0 0.0
        %4987 = vmatmul.mubr.f32.gmra.mrb[0].mxu0 %v4327
        %v4988 = vpop.f32.mrb[0].mxu0
        %v4989 = vadd.f32 %v503, %v4988
        %v4990 = vpop.f32.mrb[0].mxu0
        %4991 = vmatprep.mubr.f32.mxu0 0.0
        %4992 = vmatmul.mubr.f32.gmra.mrb[0].mxu0 %v4330
        %v4993 = vpop.f32.mrb[0].mxu0
        %v4994 = vadd.f32 %v503, %v4993
        %v4995 = vpop.f32.mrb[0].mxu0
        %4996 = vmatprep.mubr.f32.mxu0 0.0
        %4997 = vmatmul.mubr.f32.gmra.mrb[0].mxu0 %v4333
        %v4998 = vpop.f32.mrb[0].mxu0
        %v4999 = vadd.f32 %v503, %v4998
        %v5000 = vpop.f32.mrb[0].mxu0
        %5001 = vmatprep.mubr.f32.mxu0 0.0
        %5002 = vmatmul.mubr.f32.gmra.mrb[0].mxu0 %v4336
        %v5003 = vpop.f32.mrb[0].mxu0
        %v5004 = vadd.f32 %v503, %v5003
        %v5005 = vpop.f32.mrb[0].mxu0
        %5006 = vmatprep.mubr.f32.mxu0 0.0
        %5007 = vmatmul.mubr.f32.gmra.mrb[0].mxu0 %v4339
        %v5008 = vpop.f32.mrb[0].mxu0
        %v5009 = vadd.f32 %v503, %v5008
        %v5010 = vpop.f32.mrb[0].mxu0
        %5011 = vmatprep.mubr.f32.mxu0 0.0
        %5012 = vmatmul.mubr.f32.gmra.mrb[0].mxu0 %v4342
        %v5013 = vpop.f32.mrb[0].mxu0
        %v5014 = vadd.f32 %v503, %v5013
        %v5015 = vpop.f32.mrb[0].mxu0
        %5016 = vmatprep.mubr.f32.mxu0 0.0
        %5017 = vmatmul.mubr.f32.gmra.mrb[0].mxu0 %v4345
        %v5018 = vpop.f32.mrb[0].mxu0
        %v5019 = vadd.f32 %v503, %v5018
        %v5020 = vpop.f32.mrb[0].mxu0
        %5021 = vmatprep.mubr.f32.mxu0 0.0
        %5022 = vmatmul.mubr.f32.gmra.mrb[0].mxu0 %v4348
        %v5023 = vpop.f32.mrb[0].mxu0
        %v5024 = vadd.f32 %v503, %v5023
        %v5025 = vpop.f32.mrb[0].mxu0
        %5026 = vmatprep.mubr.f32.mxu0 0.0
        %5027 = vmatmul.mubr.f32.gmra.mrb[0].mxu0 %v4351
        %v5028 = vpop.f32.mrb[0].mxu0
        %v5029 = vadd.f32 %v503, %v5028
        %v5030 = vpop.f32.mrb[0].mxu0
        %5031 = vmatprep.mubr.f32.mxu0 0.0
        %5032 = vmatmul.mubr.f32.gmra.mrb[0].mxu0 %v4354
        %v5033 = vpop.f32.mrb[0].mxu0
        %v5034 = vadd.f32 %v503, %v5033
        %v5035 = vpop.f32.mrb[0].mxu0
        %5036 = vmatprep.mubr.f32.mxu0 0.0
        %5037 = vmatmul.mubr.f32.gmra.mrb[0].mxu0 %v4357
        %v5038 = vpop.f32.mrb[0].mxu0
        %v5039 = vadd.f32 %v503, %v5038
        %v5040 = vpop.f32.mrb[0].mxu0
        %5041 = vmatprep.mubr.f32.mxu0 0.0
        %5042 = vmatmul.mubr.f32.gmra.mrb[0].mxu0 %v4360
        %v5043 = vpop.f32.mrb[0].mxu0
        %v5044 = vadd.f32 %v503, %v5043
        %v5045 = vpop.f32.mrb[0].mxu0
        %5046 = vmatprep.mubr.f32.mxu0 0.0
        %5047 = vmatmul.mubr.f32.gmra.mrb[0].mxu0 %v4363
        %v5048 = vpop.f32.mrb[0].mxu0
        %v5049 = vadd.f32 %v503, %v5048
        %v5050 = vpop.f32.mrb[0].mxu0
        %5051 = vmatprep.mubr.f32.mxu0 0.0
        %5052 = vmatmul.mubr.f32.gmra.mrb[0].mxu0 %v4366
        %v5053 = vpop.f32.mrb[0].mxu0
        %v5054 = vadd.f32 %v503, %v5053
        %v5055 = vpop.f32.mrb[0].mxu0
        %5056 = vmatprep.mubr.f32.mxu0 0.0
        %5057 = vmatmul.mubr.f32.gmra.mrb[0].mxu0 %v4369
        %v5058 = vpop.f32.mrb[0].mxu0
        %v5059 = vadd.f32 %v503, %v5058
        %v5060 = vpop.f32.mrb[0].mxu0
        %5061 = vmatprep.mubr.f32.mxu0 0.0
        %5062 = vmatmul.mubr.f32.gmra.mrb[0].mxu0 %v4372
        %v5063 = vpop.f32.mrb[0].mxu0
        %v5064 = vadd.f32 %v503, %v5063
        %v5065 = vpop.f32.mrb[0].mxu0
        %5066 = vmatprep.mubr.f32.mxu0 0.0
        %5067 = vmatmul.mubr.f32.gmra.mrb[0].mxu0 %v4375
        %v5068 = vpop.f32.mrb[0].mxu0
        %v5069 = vadd.f32 %v503, %v5068
        %v5070 = vpop.f32.mrb[0].mxu0
        %5071 = vmatprep.mubr.f32.mxu0 0.0
        %5072 = vmatmul.mubr.f32.gmra.mrb[0].mxu0 %v4378
        %v5073 = vpop.f32.mrb[0].mxu0
        %v5074 = vadd.f32 %v503, %v5073
        %v5075 = vpop.f32.mrb[0].mxu0
        %5076 = vmatprep.mubr.f32.mxu0 0.0
        %5077 = vmatmul.mubr.f32.gmra.mrb[0].mxu0 %v4381
        %v5078 = vpop.f32.mrb[0].mxu0
        %v5079 = vadd.f32 %v503, %v5078
        %v5080 = vpop.f32.mrb[0].mxu0
        %5081 = vmatprep.mubr.f32.mxu0 0.0
        %5082 = vmatmul.mubr.f32.gmra.mrb[0].mxu0 %v4384
        %v5083 = vpop.f32.mrb[0].mxu0
        %v5084 = vadd.f32 %v503, %v5083
        %v5085 = vpop.f32.mrb[0].mxu0
        %5086 = vmatprep.mubr.f32.mxu0 0.0
        %5087 = vmatmul.mubr.f32.gmra.mrb[0].mxu0 %v4387
        %v5088 = vpop.f32.mrb[0].mxu0
        %v5089 = vadd.f32 %v503, %v5088
        %v5090 = vpop.f32.mrb[0].mxu0
        %5091 = vmatprep.mubr.f32.mxu0 0.0
        %5092 = vmatmul.mubr.f32.gmra.mrb[0].mxu0 %v4390
        %v5093 = vpop.f32.mrb[0].mxu0
        %v5094 = vadd.f32 %v503, %v5093
        %v5095 = vpop.f32.mrb[0].mxu0
        %5096 = vmatprep.mubr.f32.mxu0 0.0
        %5097 = vmatmul.mubr.f32.gmra.mrb[0].mxu0 %v4393
        %v5098 = vpop.f32.mrb[0].mxu0
        %v5099 = vadd.f32 %v503, %v5098
        %v5100 = vpop.f32.mrb[0].mxu0
        %5101 = vmatprep.mubr.f32.mxu0 0.0
        %5102 = vmatmul.mubr.f32.gmra.mrb[0].mxu0 %v4396
        %v5103 = vpop.f32.mrb[0].mxu0
        %v5104 = vadd.f32 %v503, %v5103
        %v5105 = vpop.f32.mrb[0].mxu0
        %5106 = vmatprep.mubr.f32.mxu0 0.0
        %5107 = vmatmul.mubr.f32.gmra.mrb[0].mxu0 %v4399
        %v5108 = vpop.f32.mrb[0].mxu0
        %v5109 = vadd.f32 %v503, %v5108
        %v5110 = vpop.f32.mrb[0].mxu0
        %5111 = vmatprep.mubr.f32.mxu0 0.0
        %5112 = vmatmul.mubr.f32.gmra.mrb[0].mxu0 %v4402
        %v5113 = vpop.f32.mrb[0].mxu0
        %v5114 = vadd.f32 %v503, %v5113
        %v5115 = vpop.f32.mrb[0].mxu0
        %5116 = vmatprep.mubr.f32.mxu0 0.0
        %5117 = vmatmul.mubr.f32.gmra.mrb[0].mxu0 %v4405
        %v5118 = vpop.f32.mrb[0].mxu0
        %v5119 = vadd.f32 %v503, %v5118
        %v5120 = vpop.f32.mrb[0].mxu0
        %5121 = vmatprep.mubr.f32.mxu0 0.0
        %5122 = vmatmul.mubr.f32.gmra.mrb[0].mxu0 %v4408
        %v5123 = vpop.f32.mrb[0].mxu0
        %v5124 = vadd.f32 %v503, %v5123
        %v5125 = vpop.f32.mrb[0].mxu0
        %5126 = vmatprep.mubr.f32.mxu0 0.0
        %5127 = vmatmul.mubr.f32.gmra.mrb[0].mxu0 %v4411
        %v5128 = vpop.f32.mrb[0].mxu0
        %v5129 = vadd.f32 %v503, %v5128
        %v5130 = vpop.f32.mrb[0].mxu0
        %5131 = vmatprep.mubr.f32.mxu0 0.0
        %5132 = vmatmul.mubr.f32.gmra.mrb[0].mxu0 %v4414
        %v5133 = vpop.f32.mrb[0].mxu0
        %v5134 = vadd.f32 %v503, %v5133
        %v5135 = vpop.f32.mrb[0].mxu0
        %5136 = vmatprep.mubr.f32.mxu0 0.0
        %5137 = vmatmul.mubr.f32.gmra.mrb[0].mxu0 %v4417
        %v5138 = vpop.f32.mrb[0].mxu0
        %v5139 = vadd.f32 %v503, %v5138
        %v5140 = vpop.f32.mrb[0].mxu0
        %5141 = vmatprep.mubr.f32.mxu0 0.0
        %5142 = vmatmul.mubr.f32.gmra.mrb[0].mxu0 %v4420
        %v5143 = vpop.f32.mrb[0].mxu0
        %v5144 = vadd.f32 %v503, %v5143
        %v5145 = vpop.f32.mrb[0].mxu0
        %5146 = vmatprep.mubr.f32.mxu0 0.0
        %5147 = vmatmul.mubr.f32.gmra.mrb[0].mxu0 %v4423
        %v5148 = vpop.f32.mrb[0].mxu0
        %v5149 = vadd.f32 %v503, %v5148
        %v5150 = vpop.f32.mrb[0].mxu0
        %5151 = vmatprep.mubr.f32.mxu0 0.0
        %5152 = vmatmul.mubr.f32.gmra.mrb[0].mxu0 %v4426
        %v5153 = vpop.f32.mrb[0].mxu0
        %v5154 = vadd.f32 %v503, %v5153
        %v5155 = vpop.f32.mrb[0].mxu0
        %5156 = vmatprep.mubr.f32.mxu0 0.0
        %5157 = vmatmul.mubr.f32.gmra.mrb[0].mxu0 %v4429
        %v5158 = vpop.f32.mrb[0].mxu0
        %v5159 = vadd.f32 %v503, %v5158
        %v5160 = vpop.f32.mrb[0].mxu0
        %5161 = vmatprep.mubr.f32.mxu0 0.0
        %5162 = vmatmul.mubr.f32.gmra.mrb[0].mxu0 %v4432
        %v5163 = vpop.f32.mrb[0].mxu0
        %v5164 = vadd.f32 %v503, %v5163
        %v5165 = vpop.f32.mrb[0].mxu0
        %5166 = vmatprep.mubr.f32.mxu0 0.0
        %5167 = vmatmul.mubr.f32.gmra.mrb[0].mxu0 %v4435
        %v5168 = vpop.f32.mrb[0].mxu0
        %v5169 = vadd.f32 %v503, %v5168
        %v5170 = vpop.f32.mrb[0].mxu0
        %5171 = vmatprep.mubr.f32.mxu0 0.0
        %5172 = vmatmul.mubr.f32.gmra.mrb[0].mxu0 %v4438
        %v5173 = vpop.f32.mrb[0].mxu0
        %v5174 = vadd.f32 %v503, %v5173
        %v5175 = vpop.f32.mrb[0].mxu0
        %5176 = vmatprep.mubr.f32.mxu0 0.0
        %5177 = vmatmul.mubr.f32.gmra.mrb[0].mxu0 %v4441
        %v5178 = vpop.f32.mrb[0].mxu0
        %v5179 = vadd.f32 %v503, %v5178
        %v5180 = vpop.f32.mrb[0].mxu0
        %5181 = vmatprep.mubr.f32.mxu0 0.0
        %5182 = vmatmul.mubr.f32.gmra.mrb[0].mxu0 %v4444
        %v5183 = vpop.f32.mrb[0].mxu0
        %v5184 = vadd.f32 %v503, %v5183
        %v5185 = vpop.f32.mrb[0].mxu0
        %5186 = vmatprep.mubr.f32.mxu0 0.0
        %5187 = vmatmul.mubr.f32.gmra.mrb[0].mxu0 %v4447
        %v5188 = vpop.f32.mrb[0].mxu0
        %v5189 = vadd.f32 %v503, %v5188
        %v5190 = vpop.f32.mrb[0].mxu0
        %5191 = vmatprep.mubr.f32.mxu0 0.0
        %5192 = vmatmul.mubr.f32.gmra.mrb[0].mxu0 %v4450
        %v5193 = vpop.f32.mrb[0].mxu0
        %v5194 = vadd.f32 %v503, %v5193
        %v5195 = vpop.f32.mrb[0].mxu0
        %5196 = vmatprep.mubr.f32.mxu0 0.0
        %5197 = vmatmul.mubr.f32.gmra.mrb[0].mxu0 %v4453
        %v5198 = vpop.f32.mrb[0].mxu0
        %v5199 = vadd.f32 %v503, %v5198
        %v5200 = vpop.f32.mrb[0].mxu0
        %5201 = vmatprep.mubr.f32.mxu0 0.0
        %5202 = vmatmul.mubr.f32.gmra.mrb[0].mxu0 %v4456
        %v5203 = vpop.f32.mrb[0].mxu0
        %v5204 = vadd.f32 %v503, %v5203
        %v5205 = vpop.f32.mrb[0].mxu0
        %5206 = vmatprep.mubr.f32.mxu0 0.0
        %5207 = vmatmul.mubr.f32.gmra.mrb[0].mxu0 %v4459
        %v5208 = vpop.f32.mrb[0].mxu0
        %v5209 = vadd.f32 %v503, %v5208
        %v5210 = vpop.f32.mrb[0].mxu0
        %5211 = vmatprep.mubr.f32.mxu0 0.0
        %5212 = vmatmul.mubr.f32.gmra.mrb[0].mxu0 %v4462
        %v5213 = vpop.f32.mrb[0].mxu0
        %v5214 = vadd.f32 %v503, %v5213
        %v5215 = vpop.f32.mrb[0].mxu0
        %5216 = vmatprep.mubr.f32.mxu0 0.0
        %5217 = vmatmul.mubr.f32.gmra.mrb[0].mxu0 %v4465
        %v5218 = vpop.f32.mrb[0].mxu0
        %v5219 = vadd.f32 %v503, %v5218
        %v5220 = vpop.f32.mrb[0].mxu0
        %5221 = vmatprep.mubr.f32.mxu0 0.0
        %5222 = vmatmul.mubr.f32.gmra.mrb[0].mxu0 %v4468
        %v5223 = vpop.f32.mrb[0].mxu0
        %v5224 = vadd.f32 %v503, %v5223
        %v5225 = vpop.f32.mrb[0].mxu0
        %5226 = vmatprep.mubr.f32.mxu0 0.0
        %5227 = vmatmul.mubr.f32.gmra.mrb[0].mxu0 %v4471
        %v5228 = vpop.f32.mrb[0].mxu0
        %v5229 = vadd.f32 %v503, %v5228
        %v5230 = vpop.f32.mrb[0].mxu0
        %5231 = vmatprep.mubr.f32.mxu0 0.0
        %5232 = vmatmul.mubr.f32.gmra.mrb[0].mxu0 %v4474
        %v5233 = vpop.f32.mrb[0].mxu0
        %v5234 = vadd.f32 %v503, %v5233
        %v5235 = vpop.f32.mrb[0].mxu0
        %5236 = vmatprep.mubr.f32.mxu0 0.0
        %5237 = vmatmul.mubr.f32.gmra.mrb[0].mxu0 %v4477
        %v5238 = vpop.f32.mrb[0].mxu0
        %v5239 = vadd.f32 %v503, %v5238
        %v5240 = vpop.f32.mrb[0].mxu0
        %5241 = vmatprep.mubr.f32.mxu0 0.0
        %5242 = vmatmul.mubr.f32.gmra.mrb[0].mxu0 %v4480
        %v5243 = vpop.f32.mrb[0].mxu0
        %v5244 = vadd.f32 %v503, %v5243
        %v5245 = vpop.f32.mrb[0].mxu0
        %5246 = vmatprep.mubr.f32.mxu0 0.0
        %5247 = vmatmul.mubr.f32.gmra.mrb[0].mxu0 %v4483
        %v5248 = vpop.f32.mrb[0].mxu0
        %v5249 = vadd.f32 %v503, %v5248
        %v5250 = vpop.f32.mrb[0].mxu0
        %5251 = vmatprep.mubr.f32.mxu0 0.0
        %5252 = vmatmul.mubr.f32.gmra.mrb[0].mxu0 %v4486
        %v5253 = vpop.f32.mrb[0].mxu0
        %v5254 = vadd.f32 %v503, %v5253
        %v5255 = vpop.f32.mrb[0].mxu0
        %5256 = vmatprep.mubr.f32.mxu0 0.0
        %5257 = vmatmul.mubr.f32.gmra.mrb[0].mxu0 %v4489
        %v5258 = vpop.f32.mrb[0].mxu0
        %v5259 = vadd.f32 %v503, %v5258
        %v5260 = vpop.f32.mrb[0].mxu0
        %5261 = vmatprep.mubr.f32.mxu0 0.0
        %5262 = vmatmul.mubr.f32.gmra.mrb[0].mxu0 %v4492
        %v5263 = vpop.f32.mrb[0].mxu0
        %v5264 = vadd.f32 %v503, %v5263
        %v5265 = vpop.f32.mrb[0].mxu0
        %5266 = vmatprep.mubr.f32.mxu0 0.0
        %5267 = vmatmul.mubr.f32.gmra.mrb[0].mxu0 %v4495
        %v5268 = vpop.f32.mrb[0].mxu0
        %v5269 = vadd.f32 %v503, %v5268
        %v5270 = vpop.f32.mrb[0].mxu0
        %5271 = vmatprep.mubr.f32.mxu0 0.0
        %5272 = vmatmul.mubr.f32.gmra.mrb[0].mxu0 %v4498
        %v5273 = vpop.f32.mrb[0].mxu0
        %v5274 = vadd.f32 %v503, %v5273
        %v5275 = vpop.f32.mrb[0].mxu0
        %5276 = vmatprep.mubr.f32.mxu0 0.0
        %5277 = vmatmul.mubr.f32.gmra.mrb[0].mxu0 %v4501
        %v5278 = vpop.f32.mrb[0].mxu0
        %v5279 = vadd.f32 %v503, %v5278
        %v5280 = vpop.f32.mrb[0].mxu0
        %5281 = vmatprep.mubr.f32.mxu0 0.0
        %5282 = vmatmul.mubr.f32.gmra.mrb[0].mxu0 %v4504
        %v5283 = vpop.f32.mrb[0].mxu0
        %v5284 = vadd.f32 %v503, %v5283
        %v5285 = vpop.f32.mrb[0].mxu0
        %5286 = vmatprep.mubr.f32.mxu0 0.0
        %5287 = vmatmul.mubr.f32.gmra.mrb[0].mxu0 %v4507
        %v5288 = vpop.f32.mrb[0].mxu0
        %v5289 = vadd.f32 %v503, %v5288
        %v5290 = vpop.f32.mrb[0].mxu0
        %5291 = vmatprep.mubr.f32.mxu0 0.0
        %5292 = vmatmul.mubr.f32.gmra.mrb[0].mxu0 %v4510
        %v5293 = vpop.f32.mrb[0].mxu0
        %v5294 = vadd.f32 %v503, %v5293
        %v5295 = vpop.f32.mrb[0].mxu0
        %5296 = vmatprep.mubr.f32.mxu0 0.0
        %5297 = vmatmul.mubr.f32.gmra.mrb[0].mxu0 %v4513
        %v5298 = vpop.f32.mrb[0].mxu0
        %v5299 = vadd.f32 %v503, %v5298
        %v5300 = vpop.f32.mrb[0].mxu0
        %5301 = vmatprep.mubr.f32.mxu0 0.0
        %5302 = vmatmul.mubr.f32.gmra.mrb[0].mxu0 %v4516
        %v5303 = vpop.f32.mrb[0].mxu0
        %v5304 = vadd.f32 %v503, %v5303
        %v5305 = vpop.f32.mrb[0].mxu0
        %5306 = vmatprep.mubr.f32.mxu0 0.0
        %5307 = vmatmul.mubr.f32.gmra.mrb[0].mxu0 %v4519
        %v5308 = vpop.f32.mrb[0].mxu0
        %v5309 = vadd.f32 %v503, %v5308
        %v5310 = vpop.f32.mrb[0].mxu0
        %5311 = vmatprep.mubr.f32.mxu0 0.0
        %5312 = vmatmul.mubr.f32.gmra.mrb[0].mxu0 %v4522
        %v5313 = vpop.f32.mrb[0].mxu0
        %v5314 = vadd.f32 %v503, %v5313
        %v5315 = vpop.f32.mrb[0].mxu0
        %5316 = vmatprep.mubr.f32.mxu0 0.0
        %5317 = vmatmul.mubr.f32.gmra.mrb[0].mxu0 %v4525
        %v5318 = vpop.f32.mrb[0].mxu0
        %v5319 = vadd.f32 %v503, %v5318
        %v5320 = vpop.f32.mrb[0].mxu0
        %5321 = vmatprep.mubr.f32.mxu0 0.0
        %5322 = vmatmul.mubr.f32.gmra.mrb[0].mxu0 %v4528
        %v5323 = vpop.f32.mrb[0].mxu0
        %v5324 = vadd.f32 %v503, %v5323
        %v5325 = vpop.f32.mrb[0].mxu0
        %5326 = vmatprep.mubr.f32.mxu0 0.0
        %5327 = vmatmul.mubr.f32.gmra.mrb[0].mxu0 %v4531
        %v5328 = vpop.f32.mrb[0].mxu0
        %v5329 = vadd.f32 %v503, %v5328
        %v5330 = vpop.f32.mrb[0].mxu0
        %5331 = vmatprep.mubr.f32.mxu0 0.0
        %5332 = vmatmul.mubr.f32.gmra.mrb[0].mxu0 %v4534
        %v5333 = vpop.f32.mrb[0].mxu0
        %v5334 = vadd.f32 %v503, %v5333
        %v5335 = vpop.f32.mrb[0].mxu0
        %5336 = vmatprep.mubr.f32.mxu0 0.0
        %5337 = vmatmul.mubr.f32.gmra.mrb[0].mxu0 %v4537
        %v5338 = vpop.f32.mrb[0].mxu0
        %v5339 = vadd.f32 %v503, %v5338
        %v5340 = vpop.f32.mrb[0].mxu0
        %5341 = vmatprep.mubr.f32.mxu0 0.0
        %5342 = vmatmul.mubr.f32.gmra.mrb[0].mxu0 %v4540
        %v5343 = vpop.f32.mrb[0].mxu0
        %v5344 = vadd.f32 %v503, %v5343
        %v5345 = vpop.f32.mrb[0].mxu0
        %5346 = vmatprep.mubr.f32.mxu0 0.0
        %5347 = vmatmul.mubr.f32.gmra.mrb[0].mxu0 %v4543
        %v5348 = vpop.f32.mrb[0].mxu0
        %v5349 = vadd.f32 %v503, %v5348
        %v5350 = vpop.f32.mrb[0].mxu0
        %5351 = vmatprep.mubr.f32.mxu0 0.0
        %5352 = vmatmul.mubr.f32.gmra.mrb[0].mxu0 %v4546
        %v5353 = vpop.f32.mrb[0].mxu0
        %v5354 = vadd.f32 %v503, %v5353
        %v5355 = vpop.f32.mrb[0].mxu0
        %5356 = vmatprep.mubr.f32.mxu0 0.0
        %5357 = vmatmul.mubr.f32.gmra.mrb[0].mxu0 %v4549
        %v5358 = vpop.f32.mrb[0].mxu0
        %v5359 = vadd.f32 %v503, %v5358
        %v5360 = vpop.f32.mrb[0].mxu0
        %5361 = vmatprep.mubr.f32.mxu0 0.0
        %5362 = vmatmul.mubr.f32.gmra.mrb[0].mxu0 %v4552
        %v5363 = vpop.f32.mrb[0].mxu0
        %v5364 = vadd.f32 %v503, %v5363
        %v5365 = vpop.f32.mrb[0].mxu0
        %5366 = vmatprep.mubr.f32.mxu0 0.0
        %5367 = vmatmul.mubr.f32.gmra.mrb[0].mxu0 %v4555
        %v5368 = vpop.f32.mrb[0].mxu0
        %v5369 = vadd.f32 %v503, %v5368
        %v5370 = vpop.f32.mrb[0].mxu0
        %5371 = vmatprep.mubr.f32.mxu0 0.0
        %5372 = vmatmul.mubr.f32.gmra.mrb[0].mxu0 %v4558
        %v5373 = vpop.f32.mrb[0].mxu0
        %v5374 = vadd.f32 %v503, %v5373
        %v5375 = vpop.f32.mrb[0].mxu0
        %5376 = vmatprep.mubr.f32.mxu0 0.0
        %5377 = vmatmul.mubr.f32.gmra.mrb[0].mxu0 %v4561
        %v5378 = vpop.f32.mrb[0].mxu0
        %v5379 = vadd.f32 %v503, %v5378
        %v5380 = vpop.f32.mrb[0].mxu0
        %5381 = vmatprep.mubr.f32.mxu0 0.0
        %5382 = vmatmul.mubr.f32.gmra.mrb[0].mxu0 %v4564
        %v5383 = vpop.f32.mrb[0].mxu0
        %v5384 = vadd.f32 %v503, %v5383
        %v5385 = vpop.f32.mrb[0].mxu0
        %5386 = vmatprep.mubr.f32.mxu0 0.0
        %5387 = vmatmul.mubr.f32.gmra.mrb[0].mxu0 %v4567
        %v5388 = vpop.f32.mrb[0].mxu0
        %v5389 = vadd.f32 %v503, %v5388
        %v5390 = vpop.f32.mrb[0].mxu0
        %5391 = vmatprep.mubr.f32.mxu0 0.0
        %5392 = vmatmul.mubr.f32.gmra.mrb[0].mxu0 %v4570
        %v5393 = vpop.f32.mrb[0].mxu0
        %v5394 = vadd.f32 %v503, %v5393
        %v5395 = vpop.f32.mrb[0].mxu0
        %5396 = vmatprep.mubr.f32.mxu0 0.0
        %5397 = vmatmul.mubr.f32.gmra.mrb[0].mxu0 %v4573
        %v5398 = vpop.f32.mrb[0].mxu0
        %v5399 = vadd.f32 %v503, %v5398
        %v5400 = vpop.f32.mrb[0].mxu0
        %5401 = vmatprep.mubr.f32.mxu0 0.0
        %5402 = vmatmul.mubr.f32.gmra.mrb[0].mxu0 %v4576
        %v5403 = vpop.f32.mrb[0].mxu0
        %v5404 = vadd.f32 %v503, %v5403
        %v5405 = vpop.f32.mrb[0].mxu0
        %5406 = vmatprep.mubr.f32.mxu0 0.0
        %5407 = vmatmul.mubr.f32.gmra.mrb[0].mxu0 %v4579
        %v5408 = vpop.f32.mrb[0].mxu0
        %v5409 = vadd.f32 %v503, %v5408
        %v5410 = vpop.f32.mrb[0].mxu0
        %5411 = vmatprep.mubr.f32.mxu0 0.0
        %5412 = vmatmul.mubr.f32.gmra.mrb[0].mxu0 %v4582
        %v5413 = vpop.f32.mrb[0].mxu0
        %v5414 = vadd.f32 %v503, %v5413
        %v5415 = vpop.f32.mrb[0].mxu0
        %5416 = vmatprep.mubr.f32.mxu0 0.0
        %5417 = vmatmul.mubr.f32.gmra.mrb[0].mxu0 %v4585
        %v5418 = vpop.f32.mrb[0].mxu0
        %v5419 = vadd.f32 %v503, %v5418
        %v5420 = vpop.f32.mrb[0].mxu0
        %5421 = vmatprep.mubr.f32.mxu0 0.0
        %5422 = vmatmul.mubr.f32.gmra.mrb[0].mxu0 %v4588
        %v5423 = vpop.f32.mrb[0].mxu0
        %v5424 = vadd.f32 %v503, %v5423
        %v5425 = vpop.f32.mrb[0].mxu0
        %5426 = vmatprep.mubr.f32.mxu0 0.0
        %5427 = vmatmul.mubr.f32.gmra.mrb[0].mxu0 %v4591
        %v5428 = vpop.f32.mrb[0].mxu0
        %v5429 = vadd.f32 %v503, %v5428
        %v5430 = vpop.f32.mrb[0].mxu0
        %5431 = vmatprep.mubr.f32.mxu0 0.0
        %5432 = vmatmul.mubr.f32.gmra.mrb[0].mxu0 %v4594
        %v5433 = vpop.f32.mrb[0].mxu0
        %v5434 = vadd.f32 %v503, %v5433
        %v5435 = vpop.f32.mrb[0].mxu0
        %5436 = vmatprep.mubr.f32.mxu0 0.0
        %5437 = vmatmul.mubr.f32.gmra.mrb[0].mxu0 %v4597
        %v5438 = vpop.f32.mrb[0].mxu0
        %v5439 = vadd.f32 %v503, %v5438
        %v5440 = vpop.f32.mrb[0].mxu0
        %5441 = vmatprep.mubr.f32.mxu0 0.0
        %5442 = vmatmul.mubr.f32.gmra.mrb[0].mxu0 %v4600
        %v5443 = vpop.f32.mrb[0].mxu0
        %v5444 = vadd.f32 %v503, %v5443
        %v5445 = vpop.f32.mrb[0].mxu0
        %5446 = vmatprep.mubr.f32.mxu0 0.0
        %5447 = vmatmul.mubr.f32.gmra.mrb[0].mxu0 %v4603
        %v5448 = vpop.f32.mrb[0].mxu0
        %v5449 = vadd.f32 %v503, %v5448
        %v5450 = vpop.f32.mrb[0].mxu0
        %5451 = vmatprep.mubr.f32.mxu0 0.0
        %5452 = vmatmul.mubr.f32.gmra.mrb[0].mxu0 %v4606
        %v5453 = vpop.f32.mrb[0].mxu0
        %v5454 = vadd.f32 %v503, %v5453
        %v5455 = vpop.f32.mrb[0].mxu0
        %5456 = vmatprep.mubr.f32.mxu0 0.0
        %5457 = vmatmul.mubr.f32.gmra.mrb[0].mxu0 %v4609
        %v5458 = vpop.f32.mrb[0].mxu0
        %v5459 = vadd.f32 %v503, %v5458
        %v5460 = vpop.f32.mrb[0].mxu0
        %5461 = vmatprep.mubr.f32.mxu0 0.0
        %5462 = vmatmul.mubr.f32.gmra.mrb[0].mxu0 %v4612
        %v5463 = vpop.f32.mrb[0].mxu0
        %v5464 = vadd.f32 %v503, %v5463
        %v5465 = vpop.f32.mrb[0].mxu0
        %5466 = vmatprep.mubr.f32.mxu0 0.0
        %5467 = vmatmul.mubr.f32.gmra.mrb[0].mxu0 %v4615
        %v5468 = vpop.f32.mrb[0].mxu0
        %v5469 = vadd.f32 %v503, %v5468
        %v5470 = vpop.f32.mrb[0].mxu0
        %5471 = vmatprep.mubr.f32.mxu0 0.0
        %5472 = vmatmul.mubr.f32.gmra.mrb[0].mxu0 %v4618
        %v5473 = vpop.f32.mrb[0].mxu0
        %v5474 = vadd.f32 %v503, %v5473
        %v5475 = vpop.f32.mrb[0].mxu0
        %5476 = vmatprep.mubr.f32.mxu0 0.0
        %5477 = vmatmul.mubr.f32.gmra.mrb[0].mxu0 %v4621
        %v5478 = vpop.f32.mrb[0].mxu0
        %v5479 = vadd.f32 %v503, %v5478
        %v5480 = vpop.f32.mrb[0].mxu0
        %5481 = vmatprep.mubr.f32.mxu0 0.0
        %5482 = vmatmul.mubr.f32.gmra.mrb[0].mxu0 %v4624
        %v5483 = vpop.f32.mrb[0].mxu0
        %v5484 = vadd.f32 %v503, %v5483
        %v5485 = vpop.f32.mrb[0].mxu0
        %5486 = vmatprep.mubr.f32.mxu0 0.0
        %5487 = vmatmul.mubr.f32.gmra.mrb[0].mxu0 %v4627
        %v5488 = vpop.f32.mrb[0].mxu0
        %v5489 = vadd.f32 %v503, %v5488
        %v5490 = vpop.f32.mrb[0].mxu0
        %5491 = vmatprep.mubr.f32.mxu0 0.0
        %5492 = vmatmul.mubr.f32.gmra.mrb[0].mxu0 %v4630
        %v5493 = vpop.f32.mrb[0].mxu0
        %v5494 = vadd.f32 %v503, %v5493
        %v5495 = vpop.f32.mrb[0].mxu0
        %5496 = vmatprep.mubr.f32.mxu0 0.0
        %5497 = vmatmul.mubr.f32.gmra.mrb[0].mxu0 %v4633
        %v5498 = vpop.f32.mrb[0].mxu0
        %v5499 = vadd.f32 %v503, %v5498
        %v5500 = vpop.f32.mrb[0].mxu0
        %5501 = vmatprep.mubr.f32.mxu0 0.0
        %5502 = vmatmul.mubr.f32.gmra.mrb[0].mxu0 %v4636
        %v5503 = vpop.f32.mrb[0].mxu0
        %v5504 = vadd.f32 %v503, %v5503
        %v5505 = vpop.f32.mrb[0].mxu0
        %5506 = vmatprep.mubr.f32.mxu0 0.0
        %5507 = vmatmul.mubr.f32.gmra.mrb[0].mxu0 %v4639
        %v5508 = vpop.f32.mrb[0].mxu0
        %v5509 = vadd.f32 %v503, %v5508
        %v5510 = vpop.f32.mrb[0].mxu0
        %5511 = vmatprep.mubr.f32.mxu0 0.0
        %5512 = vmatmul.mubr.f32.gmra.mrb[0].mxu0 %v4642
        %v5513 = vpop.f32.mrb[0].mxu0
        %v5514 = vadd.f32 %v503, %v5513
        %v5515 = vpop.f32.mrb[0].mxu0
        %5516 = vmatprep.mubr.f32.mxu0 0.0
        %5517 = vmatmul.mubr.f32.gmra.mrb[0].mxu0 %v4645
        %v5518 = vpop.f32.mrb[0].mxu0
        %v5519 = vadd.f32 %v503, %v5518
        %v5520 = vpop.f32.mrb[0].mxu0
        %5521 = vmatprep.mubr.f32.mxu0 0.0
        %5522 = vmatmul.mubr.f32.gmra.mrb[0].mxu0 %v4648
        %v5523 = vpop.f32.mrb[0].mxu0
        %v5524 = vadd.f32 %v503, %v5523
        %v5525 = vpop.f32.mrb[0].mxu0
        %5526 = vmatprep.mubr.f32.mxu0 0.0
        %5527 = vmatmul.mubr.f32.gmra.mrb[0].mxu0 %v4651
        %v5528 = vpop.f32.mrb[0].mxu0
        %v5529 = vadd.f32 %v503, %v5528
        %v5530 = vpop.f32.mrb[0].mxu0
        %5531 = vmatprep.mubr.f32.mxu0 0.0
        %5532 = vmatmul.mubr.f32.gmra.mrb[0].mxu0 %v4654
        %v5533 = vpop.f32.mrb[0].mxu0
        %v5534 = vadd.f32 %v503, %v5533
        %v5535 = vpop.f32.mrb[0].mxu0
        %5536 = vmatprep.mubr.f32.mxu0 0.0
        %5537 = vmatmul.mubr.f32.gmra.mrb[0].mxu0 %v4657
        %v5538 = vpop.f32.mrb[0].mxu0
        %v5539 = vadd.f32 %v503, %v5538
        %v5540 = vpop.f32.mrb[0].mxu0
        %5541 = vmatprep.mubr.f32.mxu0 0.0
        %5542 = vmatmul.mubr.f32.gmra.mrb[0].mxu0 %v4660
        %v5543 = vpop.f32.mrb[0].mxu0
        %v5544 = vadd.f32 %v503, %v5543
        %v5545 = vpop.f32.mrb[0].mxu0
        %5546 = vmatprep.mubr.f32.mxu0 0.0
        %5547 = vmatmul.mubr.f32.gmra.mrb[0].mxu0 %v4663
        %v5548 = vpop.f32.mrb[0].mxu0
        %v5549 = vadd.f32 %v503, %v5548
        %v5550 = vpop.f32.mrb[0].mxu0
        %5551 = vmatprep.mubr.f32.mxu0 0.0
        %5552 = vmatmul.mubr.f32.gmra.mrb[0].mxu0 %v4666
        %v5553 = vpop.f32.mrb[0].mxu0
        %v5554 = vadd.f32 %v503, %v5553
        %v5555 = vpop.f32.mrb[0].mxu0
        %5556 = vmatprep.mubr.f32.mxu0 0.0
        %5557 = vmatmul.mubr.f32.gmra.mrb[0].mxu0 %v4669
        %v5558 = vpop.f32.mrb[0].mxu0
        %v5559 = vadd.f32 %v503, %v5558
        %v5560 = vpop.f32.mrb[0].mxu0
        %5561 = vmatprep.mubr.f32.mxu0 0.0
        %5562 = vmatmul.mubr.f32.gmra.mrb[0].mxu0 %v4672
        %v5563 = vpop.f32.mrb[0].mxu0
        %v5564 = vadd.f32 %v503, %v5563
        %v5565 = vpop.f32.mrb[0].mxu0
        %5566 = vmatprep.mubr.f32.mxu0 0.0
        %5567 = vmatmul.mubr.f32.gmra.mrb[0].mxu0 %v4675
        %v5568 = vpop.f32.mrb[0].mxu0
        %v5569 = vadd.f32 %v503, %v5568
        %v5570 = vpop.f32.mrb[0].mxu0
        %5571 = vmatprep.mubr.f32.mxu0 0.0
        %5572 = vmatmul.mubr.f32.gmra.mrb[0].mxu0 %v4678
        %v5573 = vpop.f32.mrb[0].mxu0
        %v5574 = vadd.f32 %v503, %v5573
        %v5575 = vpop.f32.mrb[0].mxu0
        %5576 = vmatprep.mubr.f32.mxu0 0.0
        %5577 = vmatmul.mubr.f32.gmra.mrb[0].mxu0 %v4681
        %v5578 = vpop.f32.mrb[0].mxu0
        %v5579 = vadd.f32 %v503, %v5578
        %v5580 = vpop.f32.mrb[0].mxu0
        %5581 = vmatprep.mubr.f32.mxu0 0.0
        %5582 = vmatmul.mubr.f32.gmra.mrb[0].mxu0 %v4684
        %v5583 = vpop.f32.mrb[0].mxu0
        %v5584 = vadd.f32 %v503, %v5583
        %v5585 = vpop.f32.mrb[0].mxu0
        %5586 = vmatprep.mubr.f32.mxu0 0.0
        %5587 = vmatmul.mubr.f32.gmra.mrb[0].mxu0 %v4687
        %v5588 = vpop.f32.mrb[0].mxu0
        %v5589 = vadd.f32 %v503, %v5588
        %v5590 = vpop.f32.mrb[0].mxu0
        %5591 = vmatprep.mubr.f32.mxu0 0.0
        %5592 = vmatmul.mubr.f32.gmra.mrb[0].mxu0 %v4690
        %v5593 = vpop.f32.mrb[0].mxu0
        %v5594 = vadd.f32 %v503, %v5593
        %v5595 = vpop.f32.mrb[0].mxu0
        %5596 = vmatprep.mubr.f32.mxu0 0.0
        %5597 = vmatmul.mubr.f32.gmra.mrb[0].mxu0 %v4693
        %v5598 = vpop.f32.mrb[0].mxu0
        %v5599 = vadd.f32 %v503, %v5598
        %v5600 = vpop.f32.mrb[0].mxu0
        %5601 = vmatprep.mubr.f32.mxu0 0.0
        %5602 = vmatmul.mubr.f32.gmra.mrb[0].mxu0 %v4696
        %v5603 = vpop.f32.mrb[0].mxu0
        %v5604 = vadd.f32 %v503, %v5603
        %v5605 = vpop.f32.mrb[0].mxu0
        %5606 = vmatprep.mubr.f32.mxu0 0.0
        %5607 = vmatmul.mubr.f32.gmra.mrb[0].mxu0 %v4699
        %v5608 = vpop.f32.mrb[0].mxu0
        %v5609 = vadd.f32 %v503, %v5608
        %v5610 = vpop.f32.mrb[0].mxu0
        %5611 = vmatprep.mubr.f32.mxu0 0.0
        %5612 = vmatmul.mubr.f32.gmra.mrb[0].mxu0 %v4702
        %v5613 = vpop.f32.mrb[0].mxu0
        %v5614 = vadd.f32 %v503, %v5613
        %v5615 = vpop.f32.mrb[0].mxu0
        %5616 = vmatprep.mubr.f32.mxu0 0.0
        %5617 = vmatmul.mubr.f32.gmra.mrb[0].mxu0 %v4705
        %v5618 = vpop.f32.mrb[0].mxu0
        %v5619 = vadd.f32 %v503, %v5618
        %v5620 = vpop.f32.mrb[0].mxu0
        %5621 = vmatprep.mubr.f32.mxu0 0.0
        %5622 = vmatmul.mubr.f32.gmra.mrb[0].mxu0 %v4708
        %v5623 = vpop.f32.mrb[0].mxu0
        %v5624 = vadd.f32 %v503, %v5623
        %v5625 = vpop.f32.mrb[0].mxu0
        %5626 = vmatprep.mubr.f32.mxu0 0.0
        %5627 = vmatmul.mubr.f32.gmra.mrb[0].mxu0 %v4711
        %v5628 = vpop.f32.mrb[0].mxu0
        %v5629 = vadd.f32 %v503, %v5628
        %v5630 = vpop.f32.mrb[0].mxu0
        %5631 = vmatprep.mubr.f32.mxu0 0.0
        %5632 = vmatmul.mubr.f32.gmra.mrb[0].mxu0 %v4714
        %v5633 = vpop.f32.mrb[0].mxu0
        %v5634 = vadd.f32 %v503, %v5633
        %v5635 = vpop.f32.mrb[0].mxu0
        %5636 = vmatprep.mubr.f32.mxu0 0.0
        %5637 = vmatmul.mubr.f32.gmra.mrb[0].mxu0 %v4717
        %v5638 = vpop.f32.mrb[0].mxu0
        %v5639 = vadd.f32 %v503, %v5638
        %v5640 = vpop.f32.mrb[0].mxu0
        %5641 = vmatprep.mubr.f32.mxu0 0.0
        %5642 = vmatmul.mubr.f32.gmra.mrb[0].mxu0 %v4720
        %v5643 = vpop.f32.mrb[0].mxu0
        %v5644 = vadd.f32 %v503, %v5643
        %v5645 = vpop.f32.mrb[0].mxu0
        %5646 = vmatprep.mubr.f32.mxu0 0.0
        %5647 = vmatmul.mubr.f32.gmra.mrb[0].mxu0 %v4723
        %v5648 = vpop.f32.mrb[0].mxu0
        %v5649 = vadd.f32 %v503, %v5648
        %v5650 = vpop.f32.mrb[0].mxu0
        %5651 = vmatprep.mubr.f32.mxu0 0.0
        %5652 = vmatmul.mubr.f32.gmra.mrb[0].mxu0 %v4726
        %v5653 = vpop.f32.mrb[0].mxu0
        %v5654 = vadd.f32 %v503, %v5653
        %v5655 = vpop.f32.mrb[0].mxu0
        %5656 = vmatprep.mubr.f32.mxu0 0.0
        %5657 = vmatmul.mubr.f32.gmra.mrb[0].mxu0 %v4729
        %v5658 = vpop.f32.mrb[0].mxu0
        %v5659 = vadd.f32 %v503, %v5658
        %v5660 = vpop.f32.mrb[0].mxu0
        %5661 = vmatprep.mubr.f32.mxu0 0.0
        %5662 = vmatmul.mubr.f32.gmra.mrb[0].mxu0 %v4732
        %v5663 = vpop.f32.mrb[0].mxu0
        %v5664 = vadd.f32 %v503, %v5663
        %v5665 = vpop.f32.mrb[0].mxu0
        %5666 = vmatprep.mubr.f32.mxu0 0.0
        %5667 = vmatmul.mubr.f32.gmra.mrb[0].mxu0 %v4735
        %v5668 = vpop.f32.mrb[0].mxu0
        %v5669 = vadd.f32 %v503, %v5668
        %v5670 = vpop.f32.mrb[0].mxu0
        %5671 = vmatprep.mubr.f32.mxu0 0.0
        %5672 = vmatmul.mubr.f32.gmra.mrb[0].mxu0 %v4738
        %v5673 = vpop.f32.mrb[0].mxu0
        %v5674 = vadd.f32 %v503, %v5673
        %v5675 = vpop.f32.mrb[0].mxu0
        %5676 = vmatprep.mubr.f32.mxu0 0.0
        %5677 = vmatmul.mubr.f32.gmra.mrb[0].mxu0 %v4741
        %v5678 = vpop.f32.mrb[0].mxu0
        %v5679 = vadd.f32 %v503, %v5678
        %v5680 = vpop.f32.mrb[0].mxu0
        %5681 = vmatprep.mubr.f32.mxu0 0.0
        %5682 = vmatmul.mubr.f32.gmra.mrb[0].mxu0 %v4744
        %v5683 = vpop.f32.mrb[0].mxu0
        %v5684 = vadd.f32 %v503, %v5683
        %v5685 = vpop.f32.mrb[0].mxu0
        %5686 = vmatprep.mubr.f32.mxu0 0.0
        %5687 = vmatmul.mubr.f32.gmra.mrb[0].mxu0 %v4747
        %v5688 = vpop.f32.mrb[0].mxu0
        %v5689 = vadd.f32 %v503, %v5688
        %v5690 = vpop.f32.mrb[0].mxu0
        %5691 = vmatprep.mubr.f32.mxu0 0.0
        %5692 = vmatmul.mubr.f32.gmra.mrb[0].mxu0 %v4750
        %v5693 = vpop.f32.mrb[0].mxu0
        %v5694 = vadd.f32 %v503, %v5693
        %v5695 = vpop.f32.mrb[0].mxu0
        %5696 = vmatprep.mubr.f32.mxu0 0.0
        %5697 = vmatmul.mubr.f32.gmra.mrb[0].mxu0 %v4753
        %v5698 = vpop.f32.mrb[0].mxu0
        %v5699 = vadd.f32 %v503, %v5698
        %v5700 = vpop.f32.mrb[0].mxu0
        %5701 = vmatprep.mubr.f32.mxu0 0.0
        %5702 = vmatmul.mubr.f32.gmra.mrb[0].mxu0 %v4756
        %v5703 = vpop.f32.mrb[0].mxu0
        %v5704 = vadd.f32 %v503, %v5703
        %v5705 = vpop.f32.mrb[0].mxu0
        %5706 = vmatprep.mubr.f32.mxu0 0.0
        %5707 = vmatmul.mubr.f32.gmra.mrb[0].mxu0 %v4759
        %v5708 = vpop.f32.mrb[0].mxu0
        %v5709 = vadd.f32 %v503, %v5708
        %v5710 = vpop.f32.mrb[0].mxu0
        %5711 = vmatprep.mubr.f32.mxu0 0.0
        %5712 = vmatmul.mubr.f32.gmra.mrb[0].mxu0 %v4762
        %v5713 = vpop.f32.mrb[0].mxu0
        %v5714 = vadd.f32 %v503, %v5713
        %v5715 = vpop.f32.mrb[0].mxu0
        %5716 = vmatprep.mubr.f32.mxu0 0.0
        %5717 = vmatmul.mubr.f32.gmra.mrb[0].mxu0 %v4765
        %v5718 = vpop.f32.mrb[0].mxu0
        %v5719 = vadd.f32 %v503, %v5718
        %v5720 = vpop.f32.mrb[0].mxu0
        %5721 = vmatprep.mubr.f32.mxu0 0.0
        %5722 = vmatmul.mubr.f32.gmra.mrb[0].mxu0 %v4768
        %v5723 = vpop.f32.mrb[0].mxu0
        %v5724 = vadd.f32 %v503, %v5723
        %v5725 = vpop.f32.mrb[0].mxu0
        %5726 = vmatprep.mubr.f32.mxu0 0.0
        %5727 = vmatmul.mubr.f32.gmra.mrb[0].mxu0 %v4771
        %v5728 = vpop.f32.mrb[0].mxu0
        %v5729 = vadd.f32 %v503, %v5728
        %v5730 = vpop.f32.mrb[0].mxu0
        %5731 = vmatprep.mubr.f32.mxu0 0.0
        %5732 = vmatmul.mubr.f32.gmra.mrb[0].mxu0 %v4774
        %v5733 = vpop.f32.mrb[0].mxu0
        %v5734 = vadd.f32 %v503, %v5733
        %v5735 = vpop.f32.mrb[0].mxu0
        %5736 = vmatprep.mubr.f32.mxu0 0.0
        %5737 = vmatmul.mubr.f32.gmra.mrb[0].mxu0 %v4777
        %v5738 = vpop.f32.mrb[0].mxu0
        %v5739 = vadd.f32 %v503, %v5738
        %v5740 = vpop.f32.mrb[0].mxu0
        %5741 = vmatprep.mubr.f32.mxu0 0.0
        %5742 = vmatmul.mubr.f32.gmra.mrb[0].mxu0 %v4780
        %v5743 = vpop.f32.mrb[0].mxu0
        %v5744 = vadd.f32 %v503, %v5743
        %v5745 = vpop.f32.mrb[0].mxu0
        %5746 = vdwg.mxu0
        %v5747 = vmax.f32 %v4849, 0.0
        %v5748 = vmax.f32 %v4854, 0.0
        %v5749 = vmax.f32 %v4859, 0.0
        %v5750 = vmax.f32 %v4864, 0.0
        %v5751 = vmax.f32 %v4869, 0.0
        %v5752 = vmax.f32 %v4874, 0.0
        %v5753 = vmax.f32 %v4879, 0.0
        %v5754 = vmax.f32 %v4884, 0.0
        %v5755 = vmax.f32 %v4889, 0.0
        %v5756 = vmax.f32 %v4894, 0.0
        %v5757 = vmax.f32 %v4899, 0.0
        %v5758 = vmax.f32 %v4904, 0.0
        %v5759 = vmax.f32 %v4909, 0.0
        %v5760 = vmax.f32 %v4914, 0.0
        %v5761 = vmax.f32 %v4919, 0.0
        %v5762 = vmax.f32 %v4924, 0.0
        %v5763 = vmax.f32 %v4929, 0.0
        %v5764 = vmax.f32 %v4934, 0.0
        %v5765 = vmax.f32 %v4939, 0.0
        %v5766 = vmax.f32 %v4944, 0.0
        %v5767 = vmax.f32 %v4949, 0.0
        %v5768 = vmax.f32 %v4954, 0.0
        %v5769 = vmax.f32 %v4959, 0.0
        %v5770 = vmax.f32 %v4964, 0.0
        %v5771 = vmax.f32 %v4969, 0.0
        %v5772 = vmax.f32 %v4974, 0.0
        %v5773 = vmax.f32 %v4979, 0.0
        %v5774 = vmax.f32 %v4984, 0.0
        %v5775 = vmax.f32 %v4989, 0.0
        %v5776 = vmax.f32 %v4994, 0.0
        %v5777 = vmax.f32 %v4999, 0.0
        %v5778 = vmax.f32 %v5004, 0.0
        %v5779 = vmax.f32 %v5009, 0.0
        %v5780 = vmax.f32 %v5014, 0.0
        %v5781 = vmax.f32 %v5019, 0.0
        %v5782 = vmax.f32 %v5024, 0.0
        %v5783 = vmax.f32 %v5029, 0.0
        %v5784 = vmax.f32 %v5034, 0.0
        %v5785 = vmax.f32 %v5039, 0.0
        %v5786 = vmax.f32 %v5044, 0.0
        %v5787 = vmax.f32 %v5049, 0.0
        %v5788 = vmax.f32 %v5054, 0.0
        %v5789 = vmax.f32 %v5059, 0.0
        %v5790 = vmax.f32 %v5064, 0.0
        %v5791 = vmax.f32 %v5069, 0.0
        %v5792 = vmax.f32 %v5074, 0.0
        %v5793 = vmax.f32 %v5079, 0.0
        %v5794 = vmax.f32 %v5084, 0.0
        %v5795 = vmax.f32 %v5089, 0.0
        %v5796 = vmax.f32 %v5094, 0.0
        %v5797 = vmax.f32 %v5099, 0.0
        %v5798 = vmax.f32 %v5104, 0.0
        %v5799 = vmax.f32 %v5109, 0.0
        %v5800 = vmax.f32 %v5114, 0.0
        %v5801 = vmax.f32 %v5119, 0.0
        %v5802 = vmax.f32 %v5124, 0.0
        %v5803 = vmax.f32 %v5129, 0.0
        %v5804 = vmax.f32 %v5134, 0.0
        %v5805 = vmax.f32 %v5139, 0.0
        %v5806 = vmax.f32 %v5144, 0.0
        %v5807 = vmax.f32 %v5149, 0.0
        %v5808 = vmax.f32 %v5154, 0.0
        %v5809 = vmax.f32 %v5159, 0.0
        %v5810 = vmax.f32 %v5164, 0.0
        %v5811 = vmax.f32 %v5169, 0.0
        %v5812 = vmax.f32 %v5174, 0.0
        %v5813 = vmax.f32 %v5179, 0.0
        %v5814 = vmax.f32 %v5184, 0.0
        %v5815 = vmax.f32 %v5189, 0.0
        %v5816 = vmax.f32 %v5194, 0.0
        %v5817 = vmax.f32 %v5199, 0.0
        %v5818 = vmax.f32 %v5204, 0.0
        %v5819 = vmax.f32 %v5209, 0.0
        %v5820 = vmax.f32 %v5214, 0.0
        %v5821 = vmax.f32 %v5219, 0.0
        %v5822 = vmax.f32 %v5224, 0.0
        %v5823 = vmax.f32 %v5229, 0.0
        %v5824 = vmax.f32 %v5234, 0.0
        %v5825 = vmax.f32 %v5239, 0.0
        %v5826 = vmax.f32 %v5244, 0.0
        %v5827 = vmax.f32 %v5249, 0.0
        %v5828 = vmax.f32 %v5254, 0.0
        %v5829 = vmax.f32 %v5259, 0.0
        %v5830 = vmax.f32 %v5264, 0.0
        %v5831 = vmax.f32 %v5269, 0.0
        %v5832 = vmax.f32 %v5274, 0.0
        %v5833 = vmax.f32 %v5279, 0.0
        %v5834 = vmax.f32 %v5284, 0.0
        %v5835 = vmax.f32 %v5289, 0.0
        %v5836 = vmax.f32 %v5294, 0.0
        %v5837 = vmax.f32 %v5299, 0.0
        %v5838 = vmax.f32 %v5304, 0.0
        %v5839 = vmax.f32 %v5309, 0.0
        %v5840 = vmax.f32 %v5314, 0.0
        %v5841 = vmax.f32 %v5319, 0.0
        %v5842 = vmax.f32 %v5324, 0.0
        %v5843 = vmax.f32 %v5329, 0.0
        %v5844 = vmax.f32 %v5334, 0.0
        %v5845 = vmax.f32 %v5339, 0.0
        %v5846 = vmax.f32 %v5344, 0.0
        %v5847 = vmax.f32 %v5349, 0.0
        %v5848 = vmax.f32 %v5354, 0.0
        %v5849 = vmax.f32 %v5359, 0.0
        %v5850 = vmax.f32 %v5364, 0.0
        %v5851 = vmax.f32 %v5369, 0.0
        %v5852 = vmax.f32 %v5374, 0.0
        %v5853 = vmax.f32 %v5379, 0.0
        %v5854 = vmax.f32 %v5384, 0.0
        %v5855 = vmax.f32 %v5389, 0.0
        %v5856 = vmax.f32 %v5394, 0.0
        %v5857 = vmax.f32 %v5399, 0.0
        %v5858 = vmax.f32 %v5404, 0.0
        %v5859 = vmax.f32 %v5409, 0.0
        %v5860 = vmax.f32 %v5414, 0.0
        %v5861 = vmax.f32 %v5419, 0.0
        %v5862 = vmax.f32 %v5424, 0.0
        %v5863 = vmax.f32 %v5429, 0.0
        %v5864 = vmax.f32 %v5434, 0.0
        %v5865 = vmax.f32 %v5439, 0.0
        %v5866 = vmax.f32 %v5444, 0.0
        %v5867 = vmax.f32 %v5449, 0.0
        %v5868 = vmax.f32 %v5454, 0.0
        %v5869 = vmax.f32 %v5459, 0.0
        %v5870 = vmax.f32 %v5464, 0.0
        %v5871 = vmax.f32 %v5469, 0.0
        %v5872 = vmax.f32 %v5474, 0.0
        %v5873 = vmax.f32 %v5479, 0.0
        %v5874 = vmax.f32 %v5484, 0.0
        %v5875 = vmax.f32 %v5489, 0.0
        %v5876 = vmax.f32 %v5494, 0.0
        %v5877 = vmax.f32 %v5499, 0.0
        %v5878 = vmax.f32 %v5504, 0.0
        %v5879 = vmax.f32 %v5509, 0.0
        %v5880 = vmax.f32 %v5514, 0.0
        %v5881 = vmax.f32 %v5519, 0.0
        %v5882 = vmax.f32 %v5524, 0.0
        %v5883 = vmax.f32 %v5529, 0.0
        %v5884 = vmax.f32 %v5534, 0.0
        %v5885 = vmax.f32 %v5539, 0.0
        %v5886 = vmax.f32 %v5544, 0.0
        %v5887 = vmax.f32 %v5549, 0.0
        %v5888 = vmax.f32 %v5554, 0.0
        %v5889 = vmax.f32 %v5559, 0.0
        %v5890 = vmax.f32 %v5564, 0.0
        %v5891 = vmax.f32 %v5569, 0.0
        %v5892 = vmax.f32 %v5574, 0.0
        %v5893 = vmax.f32 %v5579, 0.0
        %v5894 = vmax.f32 %v5584, 0.0
        %v5895 = vmax.f32 %v5589, 0.0
        %v5896 = vmax.f32 %v5594, 0.0
        %v5897 = vmax.f32 %v5599, 0.0
        %v5898 = vmax.f32 %v5604, 0.0
        %v5899 = vmax.f32 %v5609, 0.0
        %v5900 = vmax.f32 %v5614, 0.0
        %v5901 = vmax.f32 %v5619, 0.0
        %v5902 = vmax.f32 %v5624, 0.0
        %v5903 = vmax.f32 %v5629, 0.0
        %v5904 = vmax.f32 %v5634, 0.0
        %v5905 = vmax.f32 %v5639, 0.0
        %v5906 = vmax.f32 %v5644, 0.0
        %v5907 = vmax.f32 %v5649, 0.0
        %v5908 = vmax.f32 %v5654, 0.0
        %v5909 = vmax.f32 %v5659, 0.0
        %v5910 = vmax.f32 %v5664, 0.0
        %v5911 = vmax.f32 %v5669, 0.0
        %v5912 = vmax.f32 %v5674, 0.0
        %v5913 = vmax.f32 %v5679, 0.0
        %v5914 = vmax.f32 %v5684, 0.0
        %v5915 = vmax.f32 %v5689, 0.0
        %v5916 = vmax.f32 %v5694, 0.0
        %v5917 = vmax.f32 %v5699, 0.0
        %v5918 = vmax.f32 %v5704, 0.0
        %v5919 = vmax.f32 %v5709, 0.0
        %v5920 = vmax.f32 %v5714, 0.0
        %v5921 = vmax.f32 %v5719, 0.0
        %v5922 = vmax.f32 %v5724, 0.0
        %v5923 = vmax.f32 %v5729, 0.0
        %v5924 = vmax.f32 %v5734, 0.0
        %v5925 = vmax.f32 %v5739, 0.0
        %v5926 = vmax.f32 %v5744, 0.0
        %s5927 = scalar_lea.vmem %s261, 4320 [#allocation2]
        %v5928 = vld [vmem:[%s5927] sm:$0xff]
        %v5929 = vld [vmem:[%s5927 + $0x8] sm:$0xff]
        %v5930 = vld [vmem:[%s5927 + $0x10] sm:$0xff]
        %v5931 = vld [vmem:[%s5927 + $0x18] sm:$0xff]
        %v5932 = vld [vmem:[%s5927 + $0x20] sm:$0xff]
        %v5933 = vld [vmem:[%s5927 + $0x28] sm:$0xff]
        %v5934 = vld [vmem:[%s5927 + $0x30] sm:$0xff]
        %v5935 = vld [vmem:[%s5927 + $0x38] sm:$0xff]
        %v5936 = vld [vmem:[%s5927 + $0x40] sm:$0xff]
        %v5937 = vld [vmem:[%s5927 + $0x48] sm:$0xff]
        %v5938 = vld [vmem:[%s5927 + $0x50] sm:$0xff]
        %v5939 = vld [vmem:[%s5927 + $0x58] sm:$0xff]
        %v5940 = vld [vmem:[%s5927 + $0x60] sm:$0xff]
        %v5941 = vld [vmem:[%s5927 + $0x68] sm:$0xff]
        %v5942 = vld [vmem:[%s5927 + $0x70] sm:$0xff]
        %v5943 = vld [vmem:[%s5927 + $0x78] sm:$0xff]
        %v5944 = vld [vmem:[%s5927 + $0x80] sm:$0xff]
        %v5945 = vld [vmem:[%s5927 + $0x88] sm:$0xff]
        %v5946 = vld [vmem:[%s5927 + $0x90] sm:$0xff]
        %v5947 = vld [vmem:[%s5927 + $0x98] sm:$0xff]
        %v5948 = vld [vmem:[%s5927 + $0xa0] sm:$0xff]
        %v5949 = vld [vmem:[%s5927 + $0xa8] sm:$0xff]
        %v5950 = vld [vmem:[%s5927 + $0xb0] sm:$0xff]
        %v5951 = vld [vmem:[%s5927 + $0xb8] sm:$0xff]
        %v5952 = vld [vmem:[%s5927 + $0xc0] sm:$0xff]
        %v5953 = vld [vmem:[%s5927 + $0xc8] sm:$0xff]
        %v5954 = vld [vmem:[%s5927 + $0xd0] sm:$0xff]
        %v5955 = vld [vmem:[%s5927 + $0xd8] sm:$0xff]
        %v5956 = vld [vmem:[%s5927 + $0xe0] sm:$0xff]
        %v5957 = vld [vmem:[%s5927 + $0xe8] sm:$0xff]
        %v5958 = vld [vmem:[%s5927 + $0xf0] sm:$0xff]
        %v5959 = vld [vmem:[%s5927 + $0xf8] sm:$0xff]
        %v5960 = vld [vmem:[%s5927 + $0x100] sm:$0xff]
        %v5961 = vld [vmem:[%s5927 + $0x108] sm:$0xff]
        %v5962 = vld [vmem:[%s5927 + $0x110] sm:$0xff]
        %v5963 = vld [vmem:[%s5927 + $0x118] sm:$0xff]
        %v5964 = vld [vmem:[%s5927 + $0x120] sm:$0xff]
        %v5965 = vld [vmem:[%s5927 + $0x128] sm:$0xff]
        %v5966 = vld [vmem:[%s5927 + $0x130] sm:$0xff]
        %v5967 = vld [vmem:[%s5927 + $0x138] sm:$0xff]
        %v5968 = vld [vmem:[%s5927 + $0x140] sm:$0xff]
        %v5969 = vld [vmem:[%s5927 + $0x148] sm:$0xff]
        %v5970 = vld [vmem:[%s5927 + $0x150] sm:$0xff]
        %v5971 = vld [vmem:[%s5927 + $0x158] sm:$0xff]
        %v5972 = vld [vmem:[%s5927 + $0x160] sm:$0xff]
        %v5973 = vld [vmem:[%s5927 + $0x168] sm:$0xff]
        %v5974 = vld [vmem:[%s5927 + $0x170] sm:$0xff]
        %v5975 = vld [vmem:[%s5927 + $0x178] sm:$0xff]
        %v5976 = vld [vmem:[%s5927 + $0x180] sm:$0xff]
        %v5977 = vld [vmem:[%s5927 + $0x188] sm:$0xff]
        %v5978 = vld [vmem:[%s5927 + $0x190] sm:$0xff]
        %v5979 = vld [vmem:[%s5927 + $0x198] sm:$0xff]
        %v5980 = vld [vmem:[%s5927 + $0x1a0] sm:$0xff]
        %v5981 = vld [vmem:[%s5927 + $0x1a8] sm:$0xff]
        %v5982 = vld [vmem:[%s5927 + $0x1b0] sm:$0xff]
        %v5983 = vld [vmem:[%s5927 + $0x1b8] sm:$0xff]
        %v5984 = vld [vmem:[%s5927 + $0x1c0] sm:$0xff]
        %v5985 = vld [vmem:[%s5927 + $0x1c8] sm:$0xff]
        %v5986 = vld [vmem:[%s5927 + $0x1d0] sm:$0xff]
        %v5987 = vld [vmem:[%s5927 + $0x1d8] sm:$0xff]
        %v5988 = vld [vmem:[%s5927 + $0x1e0] sm:$0xff]
        %v5989 = vld [vmem:[%s5927 + $0x1e8] sm:$0xff]
        %v5990 = vld [vmem:[%s5927 + $0x1f0] sm:$0xff]
        %v5991 = vld [vmem:[%s5927 + $0x1f8] sm:$0xff]
        %v5992 = vld [vmem:[%s5927 + $0x200] sm:$0xff]
        %v5993 = vld [vmem:[%s5927 + $0x208] sm:$0xff]
        %v5994 = vld [vmem:[%s5927 + $0x210] sm:$0xff]
        %v5995 = vld [vmem:[%s5927 + $0x218] sm:$0xff]
        %v5996 = vld [vmem:[%s5927 + $0x220] sm:$0xff]
        %v5997 = vld [vmem:[%s5927 + $0x228] sm:$0xff]
        %v5998 = vld [vmem:[%s5927 + $0x230] sm:$0xff]
        %v5999 = vld [vmem:[%s5927 + $0x238] sm:$0xff]
        %v6000 = vld [vmem:[%s5927 + $0x240] sm:$0xff]
        %v6001 = vld [vmem:[%s5927 + $0x248] sm:$0xff]
        %v6002 = vld [vmem:[%s5927 + $0x250] sm:$0xff]
        %v6003 = vld [vmem:[%s5927 + $0x258] sm:$0xff]
        %v6004 = vld [vmem:[%s5927 + $0x260] sm:$0xff]
        %v6005 = vld [vmem:[%s5927 + $0x268] sm:$0xff]
        %v6006 = vld [vmem:[%s5927 + $0x270] sm:$0xff]
        %v6007 = vld [vmem:[%s5927 + $0x278] sm:$0xff]
        %v6008 = vld [vmem:[%s5927 + $0x280] sm:$0xff]
        %v6009 = vld [vmem:[%s5927 + $0x288] sm:$0xff]
        %v6010 = vld [vmem:[%s5927 + $0x290] sm:$0xff]
        %v6011 = vld [vmem:[%s5927 + $0x298] sm:$0xff]
        %v6012 = vld [vmem:[%s5927 + $0x2a0] sm:$0xff]
        %v6013 = vld [vmem:[%s5927 + $0x2a8] sm:$0xff]
        %v6014 = vld [vmem:[%s5927 + $0x2b0] sm:$0xff]
        %v6015 = vld [vmem:[%s5927 + $0x2b8] sm:$0xff]
        %v6016 = vld [vmem:[%s5927 + $0x2c0] sm:$0xff]
        %v6017 = vld [vmem:[%s5927 + $0x2c8] sm:$0xff]
        %v6018 = vld [vmem:[%s5927 + $0x2d0] sm:$0xff]
        %v6019 = vld [vmem:[%s5927 + $0x2d8] sm:$0xff]
        %v6020 = vld [vmem:[%s5927 + $0x2e0] sm:$0xff]
        %v6021 = vld [vmem:[%s5927 + $0x2e8] sm:$0xff]
        %v6022 = vld [vmem:[%s5927 + $0x2f0] sm:$0xff]
        %v6023 = vld [vmem:[%s5927 + $0x2f8] sm:$0xff]
        %v6024 = vld [vmem:[%s5927 + $0x300] sm:$0xff]
        %v6025 = vld [vmem:[%s5927 + $0x308] sm:$0xff]
        %v6026 = vld [vmem:[%s5927 + $0x310] sm:$0xff]
        %v6027 = vld [vmem:[%s5927 + $0x318] sm:$0xff]
        %v6028 = vld [vmem:[%s5927 + $0x320] sm:$0xff]
        %v6029 = vld [vmem:[%s5927 + $0x328] sm:$0xff]
        %v6030 = vld [vmem:[%s5927 + $0x330] sm:$0xff]
        %v6031 = vld [vmem:[%s5927 + $0x338] sm:$0xff]
        %v6032 = vld [vmem:[%s5927 + $0x340] sm:$0xff]
        %v6033 = vld [vmem:[%s5927 + $0x348] sm:$0xff]
        %v6034 = vld [vmem:[%s5927 + $0x350] sm:$0xff]
        %v6035 = vld [vmem:[%s5927 + $0x358] sm:$0xff]
        %v6036 = vld [vmem:[%s5927 + $0x360] sm:$0xff]
        %v6037 = vld [vmem:[%s5927 + $0x368] sm:$0xff]
        %v6038 = vld [vmem:[%s5927 + $0x370] sm:$0xff]
        %v6039 = vld [vmem:[%s5927 + $0x378] sm:$0xff]
        %v6040 = vld [vmem:[%s5927 + $0x380] sm:$0xff]
        %v6041 = vld [vmem:[%s5927 + $0x388] sm:$0xff]
        %v6042 = vld [vmem:[%s5927 + $0x390] sm:$0xff]
        %v6043 = vld [vmem:[%s5927 + $0x398] sm:$0xff]
        %v6044 = vld [vmem:[%s5927 + $0x3a0] sm:$0xff]
        %v6045 = vld [vmem:[%s5927 + $0x3a8] sm:$0xff]
        %v6046 = vld [vmem:[%s5927 + $0x3b0] sm:$0xff]
        %v6047 = vld [vmem:[%s5927 + $0x3b8] sm:$0xff]
        %v6048 = vld [vmem:[%s5927 + $0x3c0] sm:$0xff]
        %v6049 = vld [vmem:[%s5927 + $0x3c8] sm:$0xff]
        %v6050 = vld [vmem:[%s5927 + $0x3d0] sm:$0xff]
        %v6051 = vld [vmem:[%s5927 + $0x3d8] sm:$0xff]
        %v6052 = vld [vmem:[%s5927 + $0x3e0] sm:$0xff]
        %v6053 = vld [vmem:[%s5927 + $0x3e8] sm:$0xff]
        %v6054 = vld [vmem:[%s5927 + $0x3f0] sm:$0xff]
        %v6055 = vld [vmem:[%s5927 + $0x3f8] sm:$0xff]
        %v6056 = vld [vmem:[%s5927 + $0x400] sm:$0xff]
        %v6057 = vld [vmem:[%s5927 + $0x408] sm:$0xff]
        %v6058 = vld [vmem:[%s5927 + $0x410] sm:$0xff]
        %v6059 = vld [vmem:[%s5927 + $0x418] sm:$0xff]
        %v6060 = vld [vmem:[%s5927 + $0x420] sm:$0xff]
        %v6061 = vld [vmem:[%s5927 + $0x428] sm:$0xff]
        %v6062 = vld [vmem:[%s5927 + $0x430] sm:$0xff]
        %v6063 = vld [vmem:[%s5927 + $0x438] sm:$0xff]
        %v6064 = vld [vmem:[%s5927 + $0x440] sm:$0xff]
        %v6065 = vld [vmem:[%s5927 + $0x448] sm:$0xff]
        %v6066 = vld [vmem:[%s5927 + $0x450] sm:$0xff]
        %v6067 = vld [vmem:[%s5927 + $0x458] sm:$0xff]
        %v6068 = vld [vmem:[%s5927 + $0x460] sm:$0xff]
        %v6069 = vld [vmem:[%s5927 + $0x468] sm:$0xff]
        %v6070 = vld [vmem:[%s5927 + $0x470] sm:$0xff]
        %v6071 = vld [vmem:[%s5927 + $0x478] sm:$0xff]
        %v6072 = vld [vmem:[%s5927 + $0x480] sm:$0xff]
        %v6073 = vld [vmem:[%s5927 + $0x488] sm:$0xff]
        %v6074 = vld [vmem:[%s5927 + $0x490] sm:$0xff]
        %v6075 = vld [vmem:[%s5927 + $0x498] sm:$0xff]
        %v6076 = vld [vmem:[%s5927 + $0x4a0] sm:$0xff]
        %v6077 = vld [vmem:[%s5927 + $0x4a8] sm:$0xff]
        %v6078 = vld [vmem:[%s5927 + $0x4b0] sm:$0xff]
        %v6079 = vld [vmem:[%s5927 + $0x4b8] sm:$0xff]
        %v6080 = vld [vmem:[%s5927 + $0x4c0] sm:$0xff]
        %v6081 = vld [vmem:[%s5927 + $0x4c8] sm:$0xff]
        %v6082 = vld [vmem:[%s5927 + $0x4d0] sm:$0xff]
        %v6083 = vld [vmem:[%s5927 + $0x4d8] sm:$0xff]
        %v6084 = vld [vmem:[%s5927 + $0x4e0] sm:$0xff]
        %v6085 = vld [vmem:[%s5927 + $0x4e8] sm:$0xff]
        %v6086 = vld [vmem:[%s5927 + $0x4f0] sm:$0xff]
        %v6087 = vld [vmem:[%s5927 + $0x4f8] sm:$0xff]
        %v6088 = vld [vmem:[%s5927 + $0x500] sm:$0xff]
        %v6089 = vld [vmem:[%s5927 + $0x508] sm:$0xff]
        %v6090 = vld [vmem:[%s5927 + $0x510] sm:$0xff]
        %v6091 = vld [vmem:[%s5927 + $0x518] sm:$0xff]
        %v6092 = vld [vmem:[%s5927 + $0x520] sm:$0xff]
        %v6093 = vld [vmem:[%s5927 + $0x528] sm:$0xff]
        %v6094 = vld [vmem:[%s5927 + $0x530] sm:$0xff]
        %v6095 = vld [vmem:[%s5927 + $0x538] sm:$0xff]
        %v6096 = vld [vmem:[%s5927 + $0x540] sm:$0xff]
        %v6097 = vld [vmem:[%s5927 + $0x548] sm:$0xff]
        %v6098 = vld [vmem:[%s5927 + $0x550] sm:$0xff]
        %v6099 = vld [vmem:[%s5927 + $0x558] sm:$0xff]
        %v6100 = vld [vmem:[%s5927 + $0x560] sm:$0xff]
        %v6101 = vld [vmem:[%s5927 + $0x568] sm:$0xff]
        %v6102 = vld [vmem:[%s5927 + $0x570] sm:$0xff]
        %v6103 = vld [vmem:[%s5927 + $0x578] sm:$0xff]
        %v6104 = vld [vmem:[%s5927 + $0x580] sm:$0xff]
        %v6105 = vld [vmem:[%s5927 + $0x588] sm:$0xff]
        %v6106 = vld [vmem:[%s5927 + $0x590] sm:$0xff]
        %v6107 = vld [vmem:[%s5927 + $0x598] sm:$0xff]
        %v6109 = vsel %vm505, %v5928, 0
        %v6112 = vsel %vm505, %v5929, 0
        %v6115 = vsel %vm505, %v5930, 0
        %v6118 = vsel %vm505, %v5931, 0
        %v6121 = vsel %vm505, %v5932, 0
        %v6124 = vsel %vm505, %v5933, 0
        %v6127 = vsel %vm505, %v5934, 0
        %v6130 = vsel %vm505, %v5935, 0
        %v6133 = vsel %vm505, %v5936, 0
        %v6136 = vsel %vm505, %v5937, 0
        %v6139 = vsel %vm505, %v5938, 0
        %v6142 = vsel %vm505, %v5939, 0
        %v6145 = vsel %vm505, %v5940, 0
        %v6148 = vsel %vm505, %v5941, 0
        %v6151 = vsel %vm505, %v5942, 0
        %v6154 = vsel %vm505, %v5943, 0
        %v6157 = vsel %vm505, %v5944, 0
        %v6160 = vsel %vm505, %v5945, 0
        %v6163 = vsel %vm505, %v5946, 0
        %v6166 = vsel %vm505, %v5947, 0
        %v6169 = vsel %vm505, %v5948, 0
        %v6172 = vsel %vm505, %v5949, 0
        %v6175 = vsel %vm505, %v5950, 0
        %v6178 = vsel %vm505, %v5951, 0
        %v6181 = vsel %vm505, %v5952, 0
        %v6184 = vsel %vm505, %v5953, 0
        %v6187 = vsel %vm505, %v5954, 0
        %v6190 = vsel %vm505, %v5955, 0
        %v6193 = vsel %vm505, %v5956, 0
        %v6196 = vsel %vm505, %v5957, 0
        %v6199 = vsel %vm505, %v5958, 0
        %v6202 = vsel %vm505, %v5959, 0
        %v6205 = vsel %vm505, %v5960, 0
        %v6208 = vsel %vm505, %v5961, 0
        %v6211 = vsel %vm505, %v5962, 0
        %v6214 = vsel %vm505, %v5963, 0
        %v6217 = vsel %vm505, %v5964, 0
        %v6220 = vsel %vm505, %v5965, 0
        %v6223 = vsel %vm505, %v5966, 0
        %v6226 = vsel %vm505, %v5967, 0
        %v6229 = vsel %vm505, %v5968, 0
        %v6232 = vsel %vm505, %v5969, 0
        %v6235 = vsel %vm505, %v5970, 0
        %v6238 = vsel %vm505, %v5971, 0
        %v6241 = vsel %vm505, %v5972, 0
        %v6244 = vsel %vm505, %v5973, 0
        %v6247 = vsel %vm505, %v5974, 0
        %v6250 = vsel %vm505, %v5975, 0
        %v6253 = vsel %vm505, %v5976, 0
        %v6256 = vsel %vm505, %v5977, 0
        %v6259 = vsel %vm505, %v5978, 0
        %v6262 = vsel %vm505, %v5979, 0
        %v6265 = vsel %vm505, %v5980, 0
        %v6268 = vsel %vm505, %v5981, 0
        %v6271 = vsel %vm505, %v5982, 0
        %v6274 = vsel %vm505, %v5983, 0
        %v6277 = vsel %vm505, %v5984, 0
        %v6280 = vsel %vm505, %v5985, 0
        %v6283 = vsel %vm505, %v5986, 0
        %v6286 = vsel %vm505, %v5987, 0
        %v6289 = vsel %vm505, %v5988, 0
        %v6292 = vsel %vm505, %v5989, 0
        %v6295 = vsel %vm505, %v5990, 0
        %v6298 = vsel %vm505, %v5991, 0
        %v6301 = vsel %vm505, %v5992, 0
        %v6304 = vsel %vm505, %v5993, 0
        %v6307 = vsel %vm505, %v5994, 0
        %v6310 = vsel %vm505, %v5995, 0
        %v6313 = vsel %vm505, %v5996, 0
        %v6316 = vsel %vm505, %v5997, 0
        %v6319 = vsel %vm505, %v5998, 0
        %v6322 = vsel %vm505, %v5999, 0
        %v6325 = vsel %vm505, %v6000, 0
        %v6328 = vsel %vm505, %v6001, 0
        %v6331 = vsel %vm505, %v6002, 0
        %v6334 = vsel %vm505, %v6003, 0
        %v6337 = vsel %vm505, %v6004, 0
        %v6340 = vsel %vm505, %v6005, 0
        %v6343 = vsel %vm505, %v6006, 0
        %v6346 = vsel %vm505, %v6007, 0
        %v6349 = vsel %vm505, %v6008, 0
        %v6352 = vsel %vm505, %v6009, 0
        %v6355 = vsel %vm505, %v6010, 0
        %v6358 = vsel %vm505, %v6011, 0
        %v6361 = vsel %vm505, %v6012, 0
        %v6364 = vsel %vm505, %v6013, 0
        %v6367 = vsel %vm505, %v6014, 0
        %v6370 = vsel %vm505, %v6015, 0
        %v6373 = vsel %vm505, %v6016, 0
        %v6376 = vsel %vm505, %v6017, 0
        %v6379 = vsel %vm505, %v6018, 0
        %v6382 = vsel %vm505, %v6019, 0
        %v6385 = vsel %vm505, %v6020, 0
        %v6388 = vsel %vm505, %v6021, 0
        %v6391 = vsel %vm505, %v6022, 0
        %v6394 = vsel %vm505, %v6023, 0
        %v6397 = vsel %vm505, %v6024, 0
        %v6400 = vsel %vm505, %v6025, 0
        %v6403 = vsel %vm505, %v6026, 0
        %v6406 = vsel %vm505, %v6027, 0
        %v6409 = vsel %vm505, %v6028, 0
        %v6412 = vsel %vm505, %v6029, 0
        %v6415 = vsel %vm505, %v6030, 0
        %v6418 = vsel %vm505, %v6031, 0
        %v6421 = vsel %vm505, %v6032, 0
        %v6424 = vsel %vm505, %v6033, 0
        %v6427 = vsel %vm505, %v6034, 0
        %v6430 = vsel %vm505, %v6035, 0
        %v6433 = vsel %vm505, %v6036, 0
        %v6436 = vsel %vm505, %v6037, 0
        %v6439 = vsel %vm505, %v6038, 0
        %v6442 = vsel %vm505, %v6039, 0
        %v6445 = vsel %vm505, %v6040, 0
        %v6448 = vsel %vm505, %v6041, 0
        %v6451 = vsel %vm505, %v6042, 0
        %v6454 = vsel %vm505, %v6043, 0
        %v6457 = vsel %vm505, %v6044, 0
        %v6460 = vsel %vm505, %v6045, 0
        %v6463 = vsel %vm505, %v6046, 0
        %v6466 = vsel %vm505, %v6047, 0
        %v6469 = vsel %vm505, %v6048, 0
        %v6472 = vsel %vm505, %v6049, 0
        %v6475 = vsel %vm505, %v6050, 0
        %v6478 = vsel %vm505, %v6051, 0
        %v6481 = vsel %vm505, %v6052, 0
        %v6484 = vsel %vm505, %v6053, 0
        %v6487 = vsel %vm505, %v6054, 0
        %v6490 = vsel %vm505, %v6055, 0
        %v6493 = vsel %vm505, %v6056, 0
        %v6496 = vsel %vm505, %v6057, 0
        %v6499 = vsel %vm505, %v6058, 0
        %v6502 = vsel %vm505, %v6059, 0
        %v6505 = vsel %vm505, %v6060, 0
        %v6508 = vsel %vm505, %v6061, 0
        %v6511 = vsel %vm505, %v6062, 0
        %v6514 = vsel %vm505, %v6063, 0
        %v6517 = vsel %vm505, %v6064, 0
        %v6520 = vsel %vm505, %v6065, 0
        %v6523 = vsel %vm505, %v6066, 0
        %v6526 = vsel %vm505, %v6067, 0
        %v6529 = vsel %vm505, %v6068, 0
        %v6532 = vsel %vm505, %v6069, 0
        %v6535 = vsel %vm505, %v6070, 0
        %v6538 = vsel %vm505, %v6071, 0
        %v6541 = vsel %vm505, %v6072, 0
        %v6544 = vsel %vm505, %v6073, 0
        %v6547 = vsel %vm505, %v6074, 0
        %v6550 = vsel %vm505, %v6075, 0
        %v6553 = vsel %vm505, %v6076, 0
        %v6556 = vsel %vm505, %v6077, 0
        %v6559 = vsel %vm505, %v6078, 0
        %v6562 = vsel %vm505, %v6079, 0
        %v6565 = vsel %vm505, %v6080, 0
        %v6568 = vsel %vm505, %v6081, 0
        %v6571 = vsel %vm505, %v6082, 0
        %v6574 = vsel %vm505, %v6083, 0
        %v6577 = vsel %vm505, %v6084, 0
        %v6580 = vsel %vm505, %v6085, 0
        %v6583 = vsel %vm505, %v6086, 0
        %v6586 = vsel %vm505, %v6087, 0
        %v6589 = vsel %vm505, %v6088, 0
        %v6592 = vsel %vm505, %v6089, 0
        %v6595 = vsel %vm505, %v6090, 0
        %v6598 = vsel %vm505, %v6091, 0
        %v6601 = vsel %vm505, %v6092, 0
        %v6604 = vsel %vm505, %v6093, 0
        %v6607 = vsel %vm505, %v6094, 0
        %v6610 = vsel %vm505, %v6095, 0
        %v6613 = vsel %vm505, %v6096, 0
        %v6616 = vsel %vm505, %v6097, 0
        %v6619 = vsel %vm505, %v6098, 0
        %v6622 = vsel %vm505, %v6099, 0
        %v6625 = vsel %vm505, %v6100, 0
        %v6628 = vsel %vm505, %v6101, 0
        %v6631 = vsel %vm505, %v6102, 0
        %v6634 = vsel %vm505, %v6103, 0
        %v6637 = vsel %vm505, %v6104, 0
        %v6640 = vsel %vm505, %v6105, 0
        %v6643 = vsel %vm505, %v6106, 0
        %v6646 = vsel %vm505, %v6107, 0
        %6648 = vmatprep.subr.mxu0 0.0
        %6649 = vmatpush1.msra.mxu0 %v311
        %6650 = vmatprep.subr.mxu0 0.0
        %6651 = vmatpush1.msra.mxu0 %v312
        %6652 = vmatprep.subr.mxu0 0.0
        %6653 = vmatpush1.msra.mxu0 %v313
        %6654 = vmatprep.subr.mxu0 0.0
        %6655 = vmatpush1.msra.mxu0 %v314
        %6656 = vmatprep.subr.mxu0 0.0
        %6657 = vmatpush1.msra.mxu0 %v315
        %6658 = vmatprep.subr.mxu0 0.0
        %6659 = vmatpush1.msra.mxu0 %v316
        %6660 = vmatprep.subr.mxu0 0.0
        %6661 = vmatpush1.msra.mxu0 %v1048
        %6662 = vmatprep.subr.mxu0 0.0
        %6663 = vmatpush1.msra.mxu0 0.0
        %6664 = vmatprep.subr.mxu0 0.0
        %6665 = vmatpush1.msra.mxu0 0.0
        %6666 = vmatprep.subr.mxu0 0.0
        %6667 = vmatpush1.msra.mxu0 0.0
        %6668 = vmatprep.subr.mxu0 0.0
        %6669 = vmatpush1.msra.mxu0 0.0
        %6670 = vmatprep.subr.mxu0 0.0
        %6671 = vmatpush1.msra.mxu0 0.0
        %6672 = vmatprep.subr.mxu0 0.0
        %6673 = vmatpush1.msra.mxu0 0.0
        %6674 = vmatprep.subr.mxu0 0.0
        %6675 = vmatpush1.msra.mxu0 0.0
        %6676 = vmatprep.subr.mxu0 0.0
        %6677 = vmatpush1.msra.mxu0 0.0
        %6678 = vmatprep.subr.mxu0 0.0
        %6679 = vmatpush1.msra.mxu0 0.0
        %6680 = vmatprep.subr.mxu0 0.0
        %6681 = vmatpush1.msra.mxu0 0.0
        %6682 = vmatprep.subr.mxu0 0.0
        %6683 = vmatpush1.msra.mxu0 0.0
        %6684 = vmatprep.subr.mxu0 0.0
        %6685 = vmatpush1.msra.mxu0 0.0
        %6686 = vmatprep.subr.mxu0 0.0
        %6687 = vmatpush1.msra.mxu0 0.0
        %6688 = vmatprep.subr.mxu0 0.0
        %6689 = vmatpush1.msra.mxu0 0.0
        %6690 = vmatprep.subr.mxu0 0.0
        %6691 = vmatpush1.msra.mxu0 0.0
        %6692 = vmatprep.subr.mxu0 0.0
        %6693 = vmatpush1.msra.mxu0 0.0
        %6694 = vmatprep.subr.mxu0 0.0
        %6695 = vmatpush1.msra.mxu0 0.0
        %6696 = vmatprep.subr.mxu0 0.0
        %6697 = vmatpush1.msra.mxu0 0.0
        %6698 = vmatprep.subr.mxu0 0.0
        %6699 = vmatpush1.msra.mxu0 0.0
        %6700 = vmatprep.subr.mxu0 0.0
        %6701 = vmatpush1.msra.mxu0 0.0
        %6702 = vmatprep.subr.mxu0 0.0
        %6703 = vmatpush1.msra.mxu0 0.0
        %6704 = vmatprep.subr.mxu0 0.0
        %6705 = vmatpush1.msra.mxu0 0.0
        %6706 = vmatprep.subr.mxu0 0.0
        %6707 = vmatpush1.msra.mxu0 0.0
        %6708 = vmatprep.subr.mxu0 0.0
        %6709 = vmatpush1.msra.mxu0 0.0
        %6710 = vmatprep.subr.mxu0 0.0
        %6711 = vmatpush1.msra.mxu0 0.0
        %6712 = vmatprep.mubr.f32.mxu0 0.0
        %6713 = vmatmul.mubr.f32.gmra.mrb[0].mxu0 %v6109
        %v6714 = vpop.f32.mrb[0].mxu0
        %v6715 = vadd.f32 %v503, %v6714
        %v6716 = vpop.f32.mrb[0].mxu0
        %6717 = vmatprep.mubr.f32.mxu0 0.0
        %6718 = vmatmul.mubr.f32.gmra.mrb[0].mxu0 %v6112
        %v6719 = vpop.f32.mrb[0].mxu0
        %v6720 = vadd.f32 %v503, %v6719
        %v6721 = vpop.f32.mrb[0].mxu0
        %6722 = vmatprep.mubr.f32.mxu0 0.0
        %6723 = vmatmul.mubr.f32.gmra.mrb[0].mxu0 %v6115
        %v6724 = vpop.f32.mrb[0].mxu0
        %v6725 = vadd.f32 %v503, %v6724
        %v6726 = vpop.f32.mrb[0].mxu0
        %6727 = vmatprep.mubr.f32.mxu0 0.0
        %6728 = vmatmul.mubr.f32.gmra.mrb[0].mxu0 %v6118
        %v6729 = vpop.f32.mrb[0].mxu0
        %v6730 = vadd.f32 %v503, %v6729
        %v6731 = vpop.f32.mrb[0].mxu0
        %6732 = vmatprep.mubr.f32.mxu0 0.0
        %6733 = vmatmul.mubr.f32.gmra.mrb[0].mxu0 %v6121
        %v6734 = vpop.f32.mrb[0].mxu0
        %v6735 = vadd.f32 %v503, %v6734
        %v6736 = vpop.f32.mrb[0].mxu0
        %6737 = vmatprep.mubr.f32.mxu0 0.0
        %6738 = vmatmul.mubr.f32.gmra.mrb[0].mxu0 %v6124
        %v6739 = vpop.f32.mrb[0].mxu0
        %v6740 = vadd.f32 %v503, %v6739
        %v6741 = vpop.f32.mrb[0].mxu0
        %6742 = vmatprep.mubr.f32.mxu0 0.0
        %6743 = vmatmul.mubr.f32.gmra.mrb[0].mxu0 %v6127
        %v6744 = vpop.f32.mrb[0].mxu0
        %v6745 = vadd.f32 %v503, %v6744
        %v6746 = vpop.f32.mrb[0].mxu0
        %6747 = vmatprep.mubr.f32.mxu0 0.0
        %6748 = vmatmul.mubr.f32.gmra.mrb[0].mxu0 %v6130
        %v6749 = vpop.f32.mrb[0].mxu0
        %v6750 = vadd.f32 %v503, %v6749
        %v6751 = vpop.f32.mrb[0].mxu0
        %6752 = vmatprep.mubr.f32.mxu0 0.0
        %6753 = vmatmul.mubr.f32.gmra.mrb[0].mxu0 %v6133
        %v6754 = vpop.f32.mrb[0].mxu0
        %v6755 = vadd.f32 %v503, %v6754
        %v6756 = vpop.f32.mrb[0].mxu0
        %6757 = vmatprep.mubr.f32.mxu0 0.0
        %6758 = vmatmul.mubr.f32.gmra.mrb[0].mxu0 %v6136
        %v6759 = vpop.f32.mrb[0].mxu0
        %v6760 = vadd.f32 %v503, %v6759
        %v6761 = vpop.f32.mrb[0].mxu0
        %6762 = vmatprep.mubr.f32.mxu0 0.0
        %6763 = vmatmul.mubr.f32.gmra.mrb[0].mxu0 %v6139
        %v6764 = vpop.f32.mrb[0].mxu0
        %v6765 = vadd.f32 %v503, %v6764
        %v6766 = vpop.f32.mrb[0].mxu0
        %6767 = vmatprep.mubr.f32.mxu0 0.0
        %6768 = vmatmul.mubr.f32.gmra.mrb[0].mxu0 %v6142
        %v6769 = vpop.f32.mrb[0].mxu0
        %v6770 = vadd.f32 %v503, %v6769
        %v6771 = vpop.f32.mrb[0].mxu0
        %6772 = vmatprep.mubr.f32.mxu0 0.0
        %6773 = vmatmul.mubr.f32.gmra.mrb[0].mxu0 %v6145
        %v6774 = vpop.f32.mrb[0].mxu0
        %v6775 = vadd.f32 %v503, %v6774
        %v6776 = vpop.f32.mrb[0].mxu0
        %6777 = vmatprep.mubr.f32.mxu0 0.0
        %6778 = vmatmul.mubr.f32.gmra.mrb[0].mxu0 %v6148
        %v6779 = vpop.f32.mrb[0].mxu0
        %v6780 = vadd.f32 %v503, %v6779
        %v6781 = vpop.f32.mrb[0].mxu0
        %6782 = vmatprep.mubr.f32.mxu0 0.0
        %6783 = vmatmul.mubr.f32.gmra.mrb[0].mxu0 %v6151
        %v6784 = vpop.f32.mrb[0].mxu0
        %v6785 = vadd.f32 %v503, %v6784
        %v6786 = vpop.f32.mrb[0].mxu0
        %6787 = vmatprep.mubr.f32.mxu0 0.0
        %6788 = vmatmul.mubr.f32.gmra.mrb[0].mxu0 %v6154
        %v6789 = vpop.f32.mrb[0].mxu0
        %v6790 = vadd.f32 %v503, %v6789
        %v6791 = vpop.f32.mrb[0].mxu0
        %6792 = vmatprep.mubr.f32.mxu0 0.0
        %6793 = vmatmul.mubr.f32.gmra.mrb[0].mxu0 %v6157
        %v6794 = vpop.f32.mrb[0].mxu0
        %v6795 = vadd.f32 %v503, %v6794
        %v6796 = vpop.f32.mrb[0].mxu0
        %6797 = vmatprep.mubr.f32.mxu0 0.0
        %6798 = vmatmul.mubr.f32.gmra.mrb[0].mxu0 %v6160
        %v6799 = vpop.f32.mrb[0].mxu0
        %v6800 = vadd.f32 %v503, %v6799
        %v6801 = vpop.f32.mrb[0].mxu0
        %6802 = vmatprep.mubr.f32.mxu0 0.0
        %6803 = vmatmul.mubr.f32.gmra.mrb[0].mxu0 %v6163
        %v6804 = vpop.f32.mrb[0].mxu0
        %v6805 = vadd.f32 %v503, %v6804
        %v6806 = vpop.f32.mrb[0].mxu0
        %6807 = vmatprep.mubr.f32.mxu0 0.0
        %6808 = vmatmul.mubr.f32.gmra.mrb[0].mxu0 %v6166
        %v6809 = vpop.f32.mrb[0].mxu0
        %v6810 = vadd.f32 %v503, %v6809
        %v6811 = vpop.f32.mrb[0].mxu0
        %6812 = vmatprep.mubr.f32.mxu0 0.0
        %6813 = vmatmul.mubr.f32.gmra.mrb[0].mxu0 %v6169
        %v6814 = vpop.f32.mrb[0].mxu0
        %v6815 = vadd.f32 %v503, %v6814
        %v6816 = vpop.f32.mrb[0].mxu0
        %6817 = vmatprep.mubr.f32.mxu0 0.0
        %6818 = vmatmul.mubr.f32.gmra.mrb[0].mxu0 %v6172
        %v6819 = vpop.f32.mrb[0].mxu0
        %v6820 = vadd.f32 %v503, %v6819
        %v6821 = vpop.f32.mrb[0].mxu0
        %6822 = vmatprep.mubr.f32.mxu0 0.0
        %6823 = vmatmul.mubr.f32.gmra.mrb[0].mxu0 %v6175
        %v6824 = vpop.f32.mrb[0].mxu0
        %v6825 = vadd.f32 %v503, %v6824
        %v6826 = vpop.f32.mrb[0].mxu0
        %6827 = vmatprep.mubr.f32.mxu0 0.0
        %6828 = vmatmul.mubr.f32.gmra.mrb[0].mxu0 %v6178
        %v6829 = vpop.f32.mrb[0].mxu0
        %v6830 = vadd.f32 %v503, %v6829
        %v6831 = vpop.f32.mrb[0].mxu0
        %6832 = vmatprep.mubr.f32.mxu0 0.0
        %6833 = vmatmul.mubr.f32.gmra.mrb[0].mxu0 %v6181
        %v6834 = vpop.f32.mrb[0].mxu0
        %v6835 = vadd.f32 %v503, %v6834
        %v6836 = vpop.f32.mrb[0].mxu0
        %6837 = vmatprep.mubr.f32.mxu0 0.0
        %6838 = vmatmul.mubr.f32.gmra.mrb[0].mxu0 %v6184
        %v6839 = vpop.f32.mrb[0].mxu0
        %v6840 = vadd.f32 %v503, %v6839
        %v6841 = vpop.f32.mrb[0].mxu0
        %6842 = vmatprep.mubr.f32.mxu0 0.0
        %6843 = vmatmul.mubr.f32.gmra.mrb[0].mxu0 %v6187
        %v6844 = vpop.f32.mrb[0].mxu0
        %v6845 = vadd.f32 %v503, %v6844
        %v6846 = vpop.f32.mrb[0].mxu0
        %6847 = vmatprep.mubr.f32.mxu0 0.0
        %6848 = vmatmul.mubr.f32.gmra.mrb[0].mxu0 %v6190
        %v6849 = vpop.f32.mrb[0].mxu0
        %v6850 = vadd.f32 %v503, %v6849
        %v6851 = vpop.f32.mrb[0].mxu0
        %6852 = vmatprep.mubr.f32.mxu0 0.0
        %6853 = vmatmul.mubr.f32.gmra.mrb[0].mxu0 %v6193
        %v6854 = vpop.f32.mrb[0].mxu0
        %v6855 = vadd.f32 %v503, %v6854
        %v6856 = vpop.f32.mrb[0].mxu0
        %6857 = vmatprep.mubr.f32.mxu0 0.0
        %6858 = vmatmul.mubr.f32.gmra.mrb[0].mxu0 %v6196
        %v6859 = vpop.f32.mrb[0].mxu0
        %v6860 = vadd.f32 %v503, %v6859
        %v6861 = vpop.f32.mrb[0].mxu0
        %6862 = vmatprep.mubr.f32.mxu0 0.0
        %6863 = vmatmul.mubr.f32.gmra.mrb[0].mxu0 %v6199
        %v6864 = vpop.f32.mrb[0].mxu0
        %v6865 = vadd.f32 %v503, %v6864
        %v6866 = vpop.f32.mrb[0].mxu0
        %6867 = vmatprep.mubr.f32.mxu0 0.0
        %6868 = vmatmul.mubr.f32.gmra.mrb[0].mxu0 %v6202
        %v6869 = vpop.f32.mrb[0].mxu0
        %v6870 = vadd.f32 %v503, %v6869
        %v6871 = vpop.f32.mrb[0].mxu0
        %6872 = vmatprep.mubr.f32.mxu0 0.0
        %6873 = vmatmul.mubr.f32.gmra.mrb[0].mxu0 %v6205
        %v6874 = vpop.f32.mrb[0].mxu0
        %v6875 = vadd.f32 %v503, %v6874
        %v6876 = vpop.f32.mrb[0].mxu0
        %6877 = vmatprep.mubr.f32.mxu0 0.0
        %6878 = vmatmul.mubr.f32.gmra.mrb[0].mxu0 %v6208
        %v6879 = vpop.f32.mrb[0].mxu0
        %v6880 = vadd.f32 %v503, %v6879
        %v6881 = vpop.f32.mrb[0].mxu0
        %6882 = vmatprep.mubr.f32.mxu0 0.0
        %6883 = vmatmul.mubr.f32.gmra.mrb[0].mxu0 %v6211
        %v6884 = vpop.f32.mrb[0].mxu0
        %v6885 = vadd.f32 %v503, %v6884
        %v6886 = vpop.f32.mrb[0].mxu0
        %6887 = vmatprep.mubr.f32.mxu0 0.0
        %6888 = vmatmul.mubr.f32.gmra.mrb[0].mxu0 %v6214
        %v6889 = vpop.f32.mrb[0].mxu0
        %v6890 = vadd.f32 %v503, %v6889
        %v6891 = vpop.f32.mrb[0].mxu0
        %6892 = vmatprep.mubr.f32.mxu0 0.0
        %6893 = vmatmul.mubr.f32.gmra.mrb[0].mxu0 %v6217
        %v6894 = vpop.f32.mrb[0].mxu0
        %v6895 = vadd.f32 %v503, %v6894
        %v6896 = vpop.f32.mrb[0].mxu0
        %6897 = vmatprep.mubr.f32.mxu0 0.0
        %6898 = vmatmul.mubr.f32.gmra.mrb[0].mxu0 %v6220
        %v6899 = vpop.f32.mrb[0].mxu0
        %v6900 = vadd.f32 %v503, %v6899
        %v6901 = vpop.f32.mrb[0].mxu0
        %6902 = vmatprep.mubr.f32.mxu0 0.0
        %6903 = vmatmul.mubr.f32.gmra.mrb[0].mxu0 %v6223
        %v6904 = vpop.f32.mrb[0].mxu0
        %v6905 = vadd.f32 %v503, %v6904
        %v6906 = vpop.f32.mrb[0].mxu0
        %6907 = vmatprep.mubr.f32.mxu0 0.0
        %6908 = vmatmul.mubr.f32.gmra.mrb[0].mxu0 %v6226
        %v6909 = vpop.f32.mrb[0].mxu0
        %v6910 = vadd.f32 %v503, %v6909
        %v6911 = vpop.f32.mrb[0].mxu0
        %6912 = vmatprep.mubr.f32.mxu0 0.0
        %6913 = vmatmul.mubr.f32.gmra.mrb[0].mxu0 %v6229
        %v6914 = vpop.f32.mrb[0].mxu0
        %v6915 = vadd.f32 %v503, %v6914
        %v6916 = vpop.f32.mrb[0].mxu0
        %6917 = vmatprep.mubr.f32.mxu0 0.0
        %6918 = vmatmul.mubr.f32.gmra.mrb[0].mxu0 %v6232
        %v6919 = vpop.f32.mrb[0].mxu0
        %v6920 = vadd.f32 %v503, %v6919
        %v6921 = vpop.f32.mrb[0].mxu0
        %6922 = vmatprep.mubr.f32.mxu0 0.0
        %6923 = vmatmul.mubr.f32.gmra.mrb[0].mxu0 %v6235
        %v6924 = vpop.f32.mrb[0].mxu0
        %v6925 = vadd.f32 %v503, %v6924
        %v6926 = vpop.f32.mrb[0].mxu0
        %6927 = vmatprep.mubr.f32.mxu0 0.0
        %6928 = vmatmul.mubr.f32.gmra.mrb[0].mxu0 %v6238
        %v6929 = vpop.f32.mrb[0].mxu0
        %v6930 = vadd.f32 %v503, %v6929
        %v6931 = vpop.f32.mrb[0].mxu0
        %6932 = vmatprep.mubr.f32.mxu0 0.0
        %6933 = vmatmul.mubr.f32.gmra.mrb[0].mxu0 %v6241
        %v6934 = vpop.f32.mrb[0].mxu0
        %v6935 = vadd.f32 %v503, %v6934
        %v6936 = vpop.f32.mrb[0].mxu0
        %6937 = vmatprep.mubr.f32.mxu0 0.0
        %6938 = vmatmul.mubr.f32.gmra.mrb[0].mxu0 %v6244
        %v6939 = vpop.f32.mrb[0].mxu0
        %v6940 = vadd.f32 %v503, %v6939
        %v6941 = vpop.f32.mrb[0].mxu0
        %6942 = vmatprep.mubr.f32.mxu0 0.0
        %6943 = vmatmul.mubr.f32.gmra.mrb[0].mxu0 %v6247
        %v6944 = vpop.f32.mrb[0].mxu0
        %v6945 = vadd.f32 %v503, %v6944
        %v6946 = vpop.f32.mrb[0].mxu0
        %6947 = vmatprep.mubr.f32.mxu0 0.0
        %6948 = vmatmul.mubr.f32.gmra.mrb[0].mxu0 %v6250
        %v6949 = vpop.f32.mrb[0].mxu0
        %v6950 = vadd.f32 %v503, %v6949
        %v6951 = vpop.f32.mrb[0].mxu0
        %6952 = vmatprep.mubr.f32.mxu0 0.0
        %6953 = vmatmul.mubr.f32.gmra.mrb[0].mxu0 %v6253
        %v6954 = vpop.f32.mrb[0].mxu0
        %v6955 = vadd.f32 %v503, %v6954
        %v6956 = vpop.f32.mrb[0].mxu0
        %6957 = vmatprep.mubr.f32.mxu0 0.0
        %6958 = vmatmul.mubr.f32.gmra.mrb[0].mxu0 %v6256
        %v6959 = vpop.f32.mrb[0].mxu0
        %v6960 = vadd.f32 %v503, %v6959
        %v6961 = vpop.f32.mrb[0].mxu0
        %6962 = vmatprep.mubr.f32.mxu0 0.0
        %6963 = vmatmul.mubr.f32.gmra.mrb[0].mxu0 %v6259
        %v6964 = vpop.f32.mrb[0].mxu0
        %v6965 = vadd.f32 %v503, %v6964
        %v6966 = vpop.f32.mrb[0].mxu0
        %6967 = vmatprep.mubr.f32.mxu0 0.0
        %6968 = vmatmul.mubr.f32.gmra.mrb[0].mxu0 %v6262
        %v6969 = vpop.f32.mrb[0].mxu0
        %v6970 = vadd.f32 %v503, %v6969
        %v6971 = vpop.f32.mrb[0].mxu0
        %6972 = vmatprep.mubr.f32.mxu0 0.0
        %6973 = vmatmul.mubr.f32.gmra.mrb[0].mxu0 %v6265
        %v6974 = vpop.f32.mrb[0].mxu0
        %v6975 = vadd.f32 %v503, %v6974
        %v6976 = vpop.f32.mrb[0].mxu0
        %6977 = vmatprep.mubr.f32.mxu0 0.0
        %6978 = vmatmul.mubr.f32.gmra.mrb[0].mxu0 %v6268
        %v6979 = vpop.f32.mrb[0].mxu0
        %v6980 = vadd.f32 %v503, %v6979
        %v6981 = vpop.f32.mrb[0].mxu0
        %6982 = vmatprep.mubr.f32.mxu0 0.0
        %6983 = vmatmul.mubr.f32.gmra.mrb[0].mxu0 %v6271
        %v6984 = vpop.f32.mrb[0].mxu0
        %v6985 = vadd.f32 %v503, %v6984
        %v6986 = vpop.f32.mrb[0].mxu0
        %6987 = vmatprep.mubr.f32.mxu0 0.0
        %6988 = vmatmul.mubr.f32.gmra.mrb[0].mxu0 %v6274
        %v6989 = vpop.f32.mrb[0].mxu0
        %v6990 = vadd.f32 %v503, %v6989
        %v6991 = vpop.f32.mrb[0].mxu0
        %6992 = vmatprep.mubr.f32.mxu0 0.0
        %6993 = vmatmul.mubr.f32.gmra.mrb[0].mxu0 %v6277
        %v6994 = vpop.f32.mrb[0].mxu0
        %v6995 = vadd.f32 %v503, %v6994
        %v6996 = vpop.f32.mrb[0].mxu0
        %6997 = vmatprep.mubr.f32.mxu0 0.0
        %6998 = vmatmul.mubr.f32.gmra.mrb[0].mxu0 %v6280
        %v6999 = vpop.f32.mrb[0].mxu0
        %v7000 = vadd.f32 %v503, %v6999
        %v7001 = vpop.f32.mrb[0].mxu0
        %7002 = vmatprep.mubr.f32.mxu0 0.0
        %7003 = vmatmul.mubr.f32.gmra.mrb[0].mxu0 %v6283
        %v7004 = vpop.f32.mrb[0].mxu0
        %v7005 = vadd.f32 %v503, %v7004
        %v7006 = vpop.f32.mrb[0].mxu0
        %7007 = vmatprep.mubr.f32.mxu0 0.0
        %7008 = vmatmul.mubr.f32.gmra.mrb[0].mxu0 %v6286
        %v7009 = vpop.f32.mrb[0].mxu0
        %v7010 = vadd.f32 %v503, %v7009
        %v7011 = vpop.f32.mrb[0].mxu0
        %7012 = vmatprep.mubr.f32.mxu0 0.0
        %7013 = vmatmul.mubr.f32.gmra.mrb[0].mxu0 %v6289
        %v7014 = vpop.f32.mrb[0].mxu0
        %v7015 = vadd.f32 %v503, %v7014
        %v7016 = vpop.f32.mrb[0].mxu0
        %7017 = vmatprep.mubr.f32.mxu0 0.0
        %7018 = vmatmul.mubr.f32.gmra.mrb[0].mxu0 %v6292
        %v7019 = vpop.f32.mrb[0].mxu0
        %v7020 = vadd.f32 %v503, %v7019
        %v7021 = vpop.f32.mrb[0].mxu0
        %7022 = vmatprep.mubr.f32.mxu0 0.0
        %7023 = vmatmul.mubr.f32.gmra.mrb[0].mxu0 %v6295
        %v7024 = vpop.f32.mrb[0].mxu0
        %v7025 = vadd.f32 %v503, %v7024
        %v7026 = vpop.f32.mrb[0].mxu0
        %7027 = vmatprep.mubr.f32.mxu0 0.0
        %7028 = vmatmul.mubr.f32.gmra.mrb[0].mxu0 %v6298
        %v7029 = vpop.f32.mrb[0].mxu0
        %v7030 = vadd.f32 %v503, %v7029
        %v7031 = vpop.f32.mrb[0].mxu0
        %7032 = vmatprep.mubr.f32.mxu0 0.0
        %7033 = vmatmul.mubr.f32.gmra.mrb[0].mxu0 %v6301
        %v7034 = vpop.f32.mrb[0].mxu0
        %v7035 = vadd.f32 %v503, %v7034
        %v7036 = vpop.f32.mrb[0].mxu0
        %7037 = vmatprep.mubr.f32.mxu0 0.0
        %7038 = vmatmul.mubr.f32.gmra.mrb[0].mxu0 %v6304
        %v7039 = vpop.f32.mrb[0].mxu0
        %v7040 = vadd.f32 %v503, %v7039
        %v7041 = vpop.f32.mrb[0].mxu0
        %7042 = vmatprep.mubr.f32.mxu0 0.0
        %7043 = vmatmul.mubr.f32.gmra.mrb[0].mxu0 %v6307
        %v7044 = vpop.f32.mrb[0].mxu0
        %v7045 = vadd.f32 %v503, %v7044
        %v7046 = vpop.f32.mrb[0].mxu0
        %7047 = vmatprep.mubr.f32.mxu0 0.0
        %7048 = vmatmul.mubr.f32.gmra.mrb[0].mxu0 %v6310
        %v7049 = vpop.f32.mrb[0].mxu0
        %v7050 = vadd.f32 %v503, %v7049
        %v7051 = vpop.f32.mrb[0].mxu0
        %7052 = vmatprep.mubr.f32.mxu0 0.0
        %7053 = vmatmul.mubr.f32.gmra.mrb[0].mxu0 %v6313
        %v7054 = vpop.f32.mrb[0].mxu0
        %v7055 = vadd.f32 %v503, %v7054
        %v7056 = vpop.f32.mrb[0].mxu0
        %7057 = vmatprep.mubr.f32.mxu0 0.0
        %7058 = vmatmul.mubr.f32.gmra.mrb[0].mxu0 %v6316
        %v7059 = vpop.f32.mrb[0].mxu0
        %v7060 = vadd.f32 %v503, %v7059
        %v7061 = vpop.f32.mrb[0].mxu0
        %7062 = vmatprep.mubr.f32.mxu0 0.0
        %7063 = vmatmul.mubr.f32.gmra.mrb[0].mxu0 %v6319
        %v7064 = vpop.f32.mrb[0].mxu0
        %v7065 = vadd.f32 %v503, %v7064
        %v7066 = vpop.f32.mrb[0].mxu0
        %7067 = vmatprep.mubr.f32.mxu0 0.0
        %7068 = vmatmul.mubr.f32.gmra.mrb[0].mxu0 %v6322
        %v7069 = vpop.f32.mrb[0].mxu0
        %v7070 = vadd.f32 %v503, %v7069
        %v7071 = vpop.f32.mrb[0].mxu0
        %7072 = vmatprep.mubr.f32.mxu0 0.0
        %7073 = vmatmul.mubr.f32.gmra.mrb[0].mxu0 %v6325
        %v7074 = vpop.f32.mrb[0].mxu0
        %v7075 = vadd.f32 %v503, %v7074
        %v7076 = vpop.f32.mrb[0].mxu0
        %7077 = vmatprep.mubr.f32.mxu0 0.0
        %7078 = vmatmul.mubr.f32.gmra.mrb[0].mxu0 %v6328
        %v7079 = vpop.f32.mrb[0].mxu0
        %v7080 = vadd.f32 %v503, %v7079
        %v7081 = vpop.f32.mrb[0].mxu0
        %7082 = vmatprep.mubr.f32.mxu0 0.0
        %7083 = vmatmul.mubr.f32.gmra.mrb[0].mxu0 %v6331
        %v7084 = vpop.f32.mrb[0].mxu0
        %v7085 = vadd.f32 %v503, %v7084
        %v7086 = vpop.f32.mrb[0].mxu0
        %7087 = vmatprep.mubr.f32.mxu0 0.0
        %7088 = vmatmul.mubr.f32.gmra.mrb[0].mxu0 %v6334
        %v7089 = vpop.f32.mrb[0].mxu0
        %v7090 = vadd.f32 %v503, %v7089
        %v7091 = vpop.f32.mrb[0].mxu0
        %7092 = vmatprep.mubr.f32.mxu0 0.0
        %7093 = vmatmul.mubr.f32.gmra.mrb[0].mxu0 %v6337
        %v7094 = vpop.f32.mrb[0].mxu0
        %v7095 = vadd.f32 %v503, %v7094
        %v7096 = vpop.f32.mrb[0].mxu0
        %7097 = vmatprep.mubr.f32.mxu0 0.0
        %7098 = vmatmul.mubr.f32.gmra.mrb[0].mxu0 %v6340
        %v7099 = vpop.f32.mrb[0].mxu0
        %v7100 = vadd.f32 %v503, %v7099
        %v7101 = vpop.f32.mrb[0].mxu0
        %7102 = vmatprep.mubr.f32.mxu0 0.0
        %7103 = vmatmul.mubr.f32.gmra.mrb[0].mxu0 %v6343
        %v7104 = vpop.f32.mrb[0].mxu0
        %v7105 = vadd.f32 %v503, %v7104
        %v7106 = vpop.f32.mrb[0].mxu0
        %7107 = vmatprep.mubr.f32.mxu0 0.0
        %7108 = vmatmul.mubr.f32.gmra.mrb[0].mxu0 %v6346
        %v7109 = vpop.f32.mrb[0].mxu0
        %v7110 = vadd.f32 %v503, %v7109
        %v7111 = vpop.f32.mrb[0].mxu0
        %7112 = vmatprep.mubr.f32.mxu0 0.0
        %7113 = vmatmul.mubr.f32.gmra.mrb[0].mxu0 %v6349
        %v7114 = vpop.f32.mrb[0].mxu0
        %v7115 = vadd.f32 %v503, %v7114
        %v7116 = vpop.f32.mrb[0].mxu0
        %7117 = vmatprep.mubr.f32.mxu0 0.0
        %7118 = vmatmul.mubr.f32.gmra.mrb[0].mxu0 %v6352
        %v7119 = vpop.f32.mrb[0].mxu0
        %v7120 = vadd.f32 %v503, %v7119
        %v7121 = vpop.f32.mrb[0].mxu0
        %7122 = vmatprep.mubr.f32.mxu0 0.0
        %7123 = vmatmul.mubr.f32.gmra.mrb[0].mxu0 %v6355
        %v7124 = vpop.f32.mrb[0].mxu0
        %v7125 = vadd.f32 %v503, %v7124
        %v7126 = vpop.f32.mrb[0].mxu0
        %7127 = vmatprep.mubr.f32.mxu0 0.0
        %7128 = vmatmul.mubr.f32.gmra.mrb[0].mxu0 %v6358
        %v7129 = vpop.f32.mrb[0].mxu0
        %v7130 = vadd.f32 %v503, %v7129
        %v7131 = vpop.f32.mrb[0].mxu0
        %7132 = vmatprep.mubr.f32.mxu0 0.0
        %7133 = vmatmul.mubr.f32.gmra.mrb[0].mxu0 %v6361
        %v7134 = vpop.f32.mrb[0].mxu0
        %v7135 = vadd.f32 %v503, %v7134
        %v7136 = vpop.f32.mrb[0].mxu0
        %7137 = vmatprep.mubr.f32.mxu0 0.0
        %7138 = vmatmul.mubr.f32.gmra.mrb[0].mxu0 %v6364
        %v7139 = vpop.f32.mrb[0].mxu0
        %v7140 = vadd.f32 %v503, %v7139
        %v7141 = vpop.f32.mrb[0].mxu0
        %7142 = vmatprep.mubr.f32.mxu0 0.0
        %7143 = vmatmul.mubr.f32.gmra.mrb[0].mxu0 %v6367
        %v7144 = vpop.f32.mrb[0].mxu0
        %v7145 = vadd.f32 %v503, %v7144
        %v7146 = vpop.f32.mrb[0].mxu0
        %7147 = vmatprep.mubr.f32.mxu0 0.0
        %7148 = vmatmul.mubr.f32.gmra.mrb[0].mxu0 %v6370
        %v7149 = vpop.f32.mrb[0].mxu0
        %v7150 = vadd.f32 %v503, %v7149
        %v7151 = vpop.f32.mrb[0].mxu0
        %7152 = vmatprep.mubr.f32.mxu0 0.0
        %7153 = vmatmul.mubr.f32.gmra.mrb[0].mxu0 %v6373
        %v7154 = vpop.f32.mrb[0].mxu0
        %v7155 = vadd.f32 %v503, %v7154
        %v7156 = vpop.f32.mrb[0].mxu0
        %7157 = vmatprep.mubr.f32.mxu0 0.0
        %7158 = vmatmul.mubr.f32.gmra.mrb[0].mxu0 %v6376
        %v7159 = vpop.f32.mrb[0].mxu0
        %v7160 = vadd.f32 %v503, %v7159
        %v7161 = vpop.f32.mrb[0].mxu0
        %7162 = vmatprep.mubr.f32.mxu0 0.0
        %7163 = vmatmul.mubr.f32.gmra.mrb[0].mxu0 %v6379
        %v7164 = vpop.f32.mrb[0].mxu0
        %v7165 = vadd.f32 %v503, %v7164
        %v7166 = vpop.f32.mrb[0].mxu0
        %7167 = vmatprep.mubr.f32.mxu0 0.0
        %7168 = vmatmul.mubr.f32.gmra.mrb[0].mxu0 %v6382
        %v7169 = vpop.f32.mrb[0].mxu0
        %v7170 = vadd.f32 %v503, %v7169
        %v7171 = vpop.f32.mrb[0].mxu0
        %7172 = vmatprep.mubr.f32.mxu0 0.0
        %7173 = vmatmul.mubr.f32.gmra.mrb[0].mxu0 %v6385
        %v7174 = vpop.f32.mrb[0].mxu0
        %v7175 = vadd.f32 %v503, %v7174
        %v7176 = vpop.f32.mrb[0].mxu0
        %7177 = vmatprep.mubr.f32.mxu0 0.0
        %7178 = vmatmul.mubr.f32.gmra.mrb[0].mxu0 %v6388
        %v7179 = vpop.f32.mrb[0].mxu0
        %v7180 = vadd.f32 %v503, %v7179
        %v7181 = vpop.f32.mrb[0].mxu0
        %7182 = vmatprep.mubr.f32.mxu0 0.0
        %7183 = vmatmul.mubr.f32.gmra.mrb[0].mxu0 %v6391
        %v7184 = vpop.f32.mrb[0].mxu0
        %v7185 = vadd.f32 %v503, %v7184
        %v7186 = vpop.f32.mrb[0].mxu0
        %7187 = vmatprep.mubr.f32.mxu0 0.0
        %7188 = vmatmul.mubr.f32.gmra.mrb[0].mxu0 %v6394
        %v7189 = vpop.f32.mrb[0].mxu0
        %v7190 = vadd.f32 %v503, %v7189
        %v7191 = vpop.f32.mrb[0].mxu0
        %7192 = vmatprep.mubr.f32.mxu0 0.0
        %7193 = vmatmul.mubr.f32.gmra.mrb[0].mxu0 %v6397
        %v7194 = vpop.f32.mrb[0].mxu0
        %v7195 = vadd.f32 %v503, %v7194
        %v7196 = vpop.f32.mrb[0].mxu0
        %7197 = vmatprep.mubr.f32.mxu0 0.0
        %7198 = vmatmul.mubr.f32.gmra.mrb[0].mxu0 %v6400
        %v7199 = vpop.f32.mrb[0].mxu0
        %v7200 = vadd.f32 %v503, %v7199
        %v7201 = vpop.f32.mrb[0].mxu0
        %7202 = vmatprep.mubr.f32.mxu0 0.0
        %7203 = vmatmul.mubr.f32.gmra.mrb[0].mxu0 %v6403
        %v7204 = vpop.f32.mrb[0].mxu0
        %v7205 = vadd.f32 %v503, %v7204
        %v7206 = vpop.f32.mrb[0].mxu0
        %7207 = vmatprep.mubr.f32.mxu0 0.0
        %7208 = vmatmul.mubr.f32.gmra.mrb[0].mxu0 %v6406
        %v7209 = vpop.f32.mrb[0].mxu0
        %v7210 = vadd.f32 %v503, %v7209
        %v7211 = vpop.f32.mrb[0].mxu0
        %7212 = vmatprep.mubr.f32.mxu0 0.0
        %7213 = vmatmul.mubr.f32.gmra.mrb[0].mxu0 %v6409
        %v7214 = vpop.f32.mrb[0].mxu0
        %v7215 = vadd.f32 %v503, %v7214
        %v7216 = vpop.f32.mrb[0].mxu0
        %7217 = vmatprep.mubr.f32.mxu0 0.0
        %7218 = vmatmul.mubr.f32.gmra.mrb[0].mxu0 %v6412
        %v7219 = vpop.f32.mrb[0].mxu0
        %v7220 = vadd.f32 %v503, %v7219
        %v7221 = vpop.f32.mrb[0].mxu0
        %7222 = vmatprep.mubr.f32.mxu0 0.0
        %7223 = vmatmul.mubr.f32.gmra.mrb[0].mxu0 %v6415
        %v7224 = vpop.f32.mrb[0].mxu0
        %v7225 = vadd.f32 %v503, %v7224
        %v7226 = vpop.f32.mrb[0].mxu0
        %7227 = vmatprep.mubr.f32.mxu0 0.0
        %7228 = vmatmul.mubr.f32.gmra.mrb[0].mxu0 %v6418
        %v7229 = vpop.f32.mrb[0].mxu0
        %v7230 = vadd.f32 %v503, %v7229
        %v7231 = vpop.f32.mrb[0].mxu0
        %7232 = vmatprep.mubr.f32.mxu0 0.0
        %7233 = vmatmul.mubr.f32.gmra.mrb[0].mxu0 %v6421
        %v7234 = vpop.f32.mrb[0].mxu0
        %v7235 = vadd.f32 %v503, %v7234
        %v7236 = vpop.f32.mrb[0].mxu0
        %7237 = vmatprep.mubr.f32.mxu0 0.0
        %7238 = vmatmul.mubr.f32.gmra.mrb[0].mxu0 %v6424
        %v7239 = vpop.f32.mrb[0].mxu0
        %v7240 = vadd.f32 %v503, %v7239
        %v7241 = vpop.f32.mrb[0].mxu0
        %7242 = vmatprep.mubr.f32.mxu0 0.0
        %7243 = vmatmul.mubr.f32.gmra.mrb[0].mxu0 %v6427
        %v7244 = vpop.f32.mrb[0].mxu0
        %v7245 = vadd.f32 %v503, %v7244
        %v7246 = vpop.f32.mrb[0].mxu0
        %7247 = vmatprep.mubr.f32.mxu0 0.0
        %7248 = vmatmul.mubr.f32.gmra.mrb[0].mxu0 %v6430
        %v7249 = vpop.f32.mrb[0].mxu0
        %v7250 = vadd.f32 %v503, %v7249
        %v7251 = vpop.f32.mrb[0].mxu0
        %7252 = vmatprep.mubr.f32.mxu0 0.0
        %7253 = vmatmul.mubr.f32.gmra.mrb[0].mxu0 %v6433
        %v7254 = vpop.f32.mrb[0].mxu0
        %v7255 = vadd.f32 %v503, %v7254
        %v7256 = vpop.f32.mrb[0].mxu0
        %7257 = vmatprep.mubr.f32.mxu0 0.0
        %7258 = vmatmul.mubr.f32.gmra.mrb[0].mxu0 %v6436
        %v7259 = vpop.f32.mrb[0].mxu0
        %v7260 = vadd.f32 %v503, %v7259
        %v7261 = vpop.f32.mrb[0].mxu0
        %7262 = vmatprep.mubr.f32.mxu0 0.0
        %7263 = vmatmul.mubr.f32.gmra.mrb[0].mxu0 %v6439
        %v7264 = vpop.f32.mrb[0].mxu0
        %v7265 = vadd.f32 %v503, %v7264
        %v7266 = vpop.f32.mrb[0].mxu0
        %7267 = vmatprep.mubr.f32.mxu0 0.0
        %7268 = vmatmul.mubr.f32.gmra.mrb[0].mxu0 %v6442
        %v7269 = vpop.f32.mrb[0].mxu0
        %v7270 = vadd.f32 %v503, %v7269
        %v7271 = vpop.f32.mrb[0].mxu0
        %7272 = vmatprep.mubr.f32.mxu0 0.0
        %7273 = vmatmul.mubr.f32.gmra.mrb[0].mxu0 %v6445
        %v7274 = vpop.f32.mrb[0].mxu0
        %v7275 = vadd.f32 %v503, %v7274
        %v7276 = vpop.f32.mrb[0].mxu0
        %7277 = vmatprep.mubr.f32.mxu0 0.0
        %7278 = vmatmul.mubr.f32.gmra.mrb[0].mxu0 %v6448
        %v7279 = vpop.f32.mrb[0].mxu0
        %v7280 = vadd.f32 %v503, %v7279
        %v7281 = vpop.f32.mrb[0].mxu0
        %7282 = vmatprep.mubr.f32.mxu0 0.0
        %7283 = vmatmul.mubr.f32.gmra.mrb[0].mxu0 %v6451
        %v7284 = vpop.f32.mrb[0].mxu0
        %v7285 = vadd.f32 %v503, %v7284
        %v7286 = vpop.f32.mrb[0].mxu0
        %7287 = vmatprep.mubr.f32.mxu0 0.0
        %7288 = vmatmul.mubr.f32.gmra.mrb[0].mxu0 %v6454
        %v7289 = vpop.f32.mrb[0].mxu0
        %v7290 = vadd.f32 %v503, %v7289
        %v7291 = vpop.f32.mrb[0].mxu0
        %7292 = vmatprep.mubr.f32.mxu0 0.0
        %7293 = vmatmul.mubr.f32.gmra.mrb[0].mxu0 %v6457
        %v7294 = vpop.f32.mrb[0].mxu0
        %v7295 = vadd.f32 %v503, %v7294
        %v7296 = vpop.f32.mrb[0].mxu0
        %7297 = vmatprep.mubr.f32.mxu0 0.0
        %7298 = vmatmul.mubr.f32.gmra.mrb[0].mxu0 %v6460
        %v7299 = vpop.f32.mrb[0].mxu0
        %v7300 = vadd.f32 %v503, %v7299
        %v7301 = vpop.f32.mrb[0].mxu0
        %7302 = vmatprep.mubr.f32.mxu0 0.0
        %7303 = vmatmul.mubr.f32.gmra.mrb[0].mxu0 %v6463
        %v7304 = vpop.f32.mrb[0].mxu0
        %v7305 = vadd.f32 %v503, %v7304
        %v7306 = vpop.f32.mrb[0].mxu0
        %7307 = vmatprep.mubr.f32.mxu0 0.0
        %7308 = vmatmul.mubr.f32.gmra.mrb[0].mxu0 %v6466
        %v7309 = vpop.f32.mrb[0].mxu0
        %v7310 = vadd.f32 %v503, %v7309
        %v7311 = vpop.f32.mrb[0].mxu0
        %7312 = vmatprep.mubr.f32.mxu0 0.0
        %7313 = vmatmul.mubr.f32.gmra.mrb[0].mxu0 %v6469
        %v7314 = vpop.f32.mrb[0].mxu0
        %v7315 = vadd.f32 %v503, %v7314
        %v7316 = vpop.f32.mrb[0].mxu0
        %7317 = vmatprep.mubr.f32.mxu0 0.0
        %7318 = vmatmul.mubr.f32.gmra.mrb[0].mxu0 %v6472
        %v7319 = vpop.f32.mrb[0].mxu0
        %v7320 = vadd.f32 %v503, %v7319
        %v7321 = vpop.f32.mrb[0].mxu0
        %7322 = vmatprep.mubr.f32.mxu0 0.0
        %7323 = vmatmul.mubr.f32.gmra.mrb[0].mxu0 %v6475
        %v7324 = vpop.f32.mrb[0].mxu0
        %v7325 = vadd.f32 %v503, %v7324
        %v7326 = vpop.f32.mrb[0].mxu0
        %7327 = vmatprep.mubr.f32.mxu0 0.0
        %7328 = vmatmul.mubr.f32.gmra.mrb[0].mxu0 %v6478
        %v7329 = vpop.f32.mrb[0].mxu0
        %v7330 = vadd.f32 %v503, %v7329
        %v7331 = vpop.f32.mrb[0].mxu0
        %7332 = vmatprep.mubr.f32.mxu0 0.0
        %7333 = vmatmul.mubr.f32.gmra.mrb[0].mxu0 %v6481
        %v7334 = vpop.f32.mrb[0].mxu0
        %v7335 = vadd.f32 %v503, %v7334
        %v7336 = vpop.f32.mrb[0].mxu0
        %7337 = vmatprep.mubr.f32.mxu0 0.0
        %7338 = vmatmul.mubr.f32.gmra.mrb[0].mxu0 %v6484
        %v7339 = vpop.f32.mrb[0].mxu0
        %v7340 = vadd.f32 %v503, %v7339
        %v7341 = vpop.f32.mrb[0].mxu0
        %7342 = vmatprep.mubr.f32.mxu0 0.0
        %7343 = vmatmul.mubr.f32.gmra.mrb[0].mxu0 %v6487
        %v7344 = vpop.f32.mrb[0].mxu0
        %v7345 = vadd.f32 %v503, %v7344
        %v7346 = vpop.f32.mrb[0].mxu0
        %7347 = vmatprep.mubr.f32.mxu0 0.0
        %7348 = vmatmul.mubr.f32.gmra.mrb[0].mxu0 %v6490
        %v7349 = vpop.f32.mrb[0].mxu0
        %v7350 = vadd.f32 %v503, %v7349
        %v7351 = vpop.f32.mrb[0].mxu0
        %7352 = vmatprep.mubr.f32.mxu0 0.0
        %7353 = vmatmul.mubr.f32.gmra.mrb[0].mxu0 %v6493
        %v7354 = vpop.f32.mrb[0].mxu0
        %v7355 = vadd.f32 %v503, %v7354
        %v7356 = vpop.f32.mrb[0].mxu0
        %7357 = vmatprep.mubr.f32.mxu0 0.0
        %7358 = vmatmul.mubr.f32.gmra.mrb[0].mxu0 %v6496
        %v7359 = vpop.f32.mrb[0].mxu0
        %v7360 = vadd.f32 %v503, %v7359
        %v7361 = vpop.f32.mrb[0].mxu0
        %7362 = vmatprep.mubr.f32.mxu0 0.0
        %7363 = vmatmul.mubr.f32.gmra.mrb[0].mxu0 %v6499
        %v7364 = vpop.f32.mrb[0].mxu0
        %v7365 = vadd.f32 %v503, %v7364
        %v7366 = vpop.f32.mrb[0].mxu0
        %7367 = vmatprep.mubr.f32.mxu0 0.0
        %7368 = vmatmul.mubr.f32.gmra.mrb[0].mxu0 %v6502
        %v7369 = vpop.f32.mrb[0].mxu0
        %v7370 = vadd.f32 %v503, %v7369
        %v7371 = vpop.f32.mrb[0].mxu0
        %7372 = vmatprep.mubr.f32.mxu0 0.0
        %7373 = vmatmul.mubr.f32.gmra.mrb[0].mxu0 %v6505
        %v7374 = vpop.f32.mrb[0].mxu0
        %v7375 = vadd.f32 %v503, %v7374
        %v7376 = vpop.f32.mrb[0].mxu0
        %7377 = vmatprep.mubr.f32.mxu0 0.0
        %7378 = vmatmul.mubr.f32.gmra.mrb[0].mxu0 %v6508
        %v7379 = vpop.f32.mrb[0].mxu0
        %v7380 = vadd.f32 %v503, %v7379
        %v7381 = vpop.f32.mrb[0].mxu0
        %7382 = vmatprep.mubr.f32.mxu0 0.0
        %7383 = vmatmul.mubr.f32.gmra.mrb[0].mxu0 %v6511
        %v7384 = vpop.f32.mrb[0].mxu0
        %v7385 = vadd.f32 %v503, %v7384
        %v7386 = vpop.f32.mrb[0].mxu0
        %7387 = vmatprep.mubr.f32.mxu0 0.0
        %7388 = vmatmul.mubr.f32.gmra.mrb[0].mxu0 %v6514
        %v7389 = vpop.f32.mrb[0].mxu0
        %v7390 = vadd.f32 %v503, %v7389
        %v7391 = vpop.f32.mrb[0].mxu0
        %7392 = vmatprep.mubr.f32.mxu0 0.0
        %7393 = vmatmul.mubr.f32.gmra.mrb[0].mxu0 %v6517
        %v7394 = vpop.f32.mrb[0].mxu0
        %v7395 = vadd.f32 %v503, %v7394
        %v7396 = vpop.f32.mrb[0].mxu0
        %7397 = vmatprep.mubr.f32.mxu0 0.0
        %7398 = vmatmul.mubr.f32.gmra.mrb[0].mxu0 %v6520
        %v7399 = vpop.f32.mrb[0].mxu0
        %v7400 = vadd.f32 %v503, %v7399
        %v7401 = vpop.f32.mrb[0].mxu0
        %7402 = vmatprep.mubr.f32.mxu0 0.0
        %7403 = vmatmul.mubr.f32.gmra.mrb[0].mxu0 %v6523
        %v7404 = vpop.f32.mrb[0].mxu0
        %v7405 = vadd.f32 %v503, %v7404
        %v7406 = vpop.f32.mrb[0].mxu0
        %7407 = vmatprep.mubr.f32.mxu0 0.0
        %7408 = vmatmul.mubr.f32.gmra.mrb[0].mxu0 %v6526
        %v7409 = vpop.f32.mrb[0].mxu0
        %v7410 = vadd.f32 %v503, %v7409
        %v7411 = vpop.f32.mrb[0].mxu0
        %7412 = vmatprep.mubr.f32.mxu0 0.0
        %7413 = vmatmul.mubr.f32.gmra.mrb[0].mxu0 %v6529
        %v7414 = vpop.f32.mrb[0].mxu0
        %v7415 = vadd.f32 %v503, %v7414
        %v7416 = vpop.f32.mrb[0].mxu0
        %7417 = vmatprep.mubr.f32.mxu0 0.0
        %7418 = vmatmul.mubr.f32.gmra.mrb[0].mxu0 %v6532
        %v7419 = vpop.f32.mrb[0].mxu0
        %v7420 = vadd.f32 %v503, %v7419
        %v7421 = vpop.f32.mrb[0].mxu0
        %7422 = vmatprep.mubr.f32.mxu0 0.0
        %7423 = vmatmul.mubr.f32.gmra.mrb[0].mxu0 %v6535
        %v7424 = vpop.f32.mrb[0].mxu0
        %v7425 = vadd.f32 %v503, %v7424
        %v7426 = vpop.f32.mrb[0].mxu0
        %7427 = vmatprep.mubr.f32.mxu0 0.0
        %7428 = vmatmul.mubr.f32.gmra.mrb[0].mxu0 %v6538
        %v7429 = vpop.f32.mrb[0].mxu0
        %v7430 = vadd.f32 %v503, %v7429
        %v7431 = vpop.f32.mrb[0].mxu0
        %7432 = vmatprep.mubr.f32.mxu0 0.0
        %7433 = vmatmul.mubr.f32.gmra.mrb[0].mxu0 %v6541
        %v7434 = vpop.f32.mrb[0].mxu0
        %v7435 = vadd.f32 %v503, %v7434
        %v7436 = vpop.f32.mrb[0].mxu0
        %7437 = vmatprep.mubr.f32.mxu0 0.0
        %7438 = vmatmul.mubr.f32.gmra.mrb[0].mxu0 %v6544
        %v7439 = vpop.f32.mrb[0].mxu0
        %v7440 = vadd.f32 %v503, %v7439
        %v7441 = vpop.f32.mrb[0].mxu0
        %7442 = vmatprep.mubr.f32.mxu0 0.0
        %7443 = vmatmul.mubr.f32.gmra.mrb[0].mxu0 %v6547
        %v7444 = vpop.f32.mrb[0].mxu0
        %v7445 = vadd.f32 %v503, %v7444
        %v7446 = vpop.f32.mrb[0].mxu0
        %7447 = vmatprep.mubr.f32.mxu0 0.0
        %7448 = vmatmul.mubr.f32.gmra.mrb[0].mxu0 %v6550
        %v7449 = vpop.f32.mrb[0].mxu0
        %v7450 = vadd.f32 %v503, %v7449
        %v7451 = vpop.f32.mrb[0].mxu0
        %7452 = vmatprep.mubr.f32.mxu0 0.0
        %7453 = vmatmul.mubr.f32.gmra.mrb[0].mxu0 %v6553
        %v7454 = vpop.f32.mrb[0].mxu0
        %v7455 = vadd.f32 %v503, %v7454
        %v7456 = vpop.f32.mrb[0].mxu0
        %7457 = vmatprep.mubr.f32.mxu0 0.0
        %7458 = vmatmul.mubr.f32.gmra.mrb[0].mxu0 %v6556
        %v7459 = vpop.f32.mrb[0].mxu0
        %v7460 = vadd.f32 %v503, %v7459
        %v7461 = vpop.f32.mrb[0].mxu0
        %7462 = vmatprep.mubr.f32.mxu0 0.0
        %7463 = vmatmul.mubr.f32.gmra.mrb[0].mxu0 %v6559
        %v7464 = vpop.f32.mrb[0].mxu0
        %v7465 = vadd.f32 %v503, %v7464
        %v7466 = vpop.f32.mrb[0].mxu0
        %7467 = vmatprep.mubr.f32.mxu0 0.0
        %7468 = vmatmul.mubr.f32.gmra.mrb[0].mxu0 %v6562
        %v7469 = vpop.f32.mrb[0].mxu0
        %v7470 = vadd.f32 %v503, %v7469
        %v7471 = vpop.f32.mrb[0].mxu0
        %7472 = vmatprep.mubr.f32.mxu0 0.0
        %7473 = vmatmul.mubr.f32.gmra.mrb[0].mxu0 %v6565
        %v7474 = vpop.f32.mrb[0].mxu0
        %v7475 = vadd.f32 %v503, %v7474
        %v7476 = vpop.f32.mrb[0].mxu0
        %7477 = vmatprep.mubr.f32.mxu0 0.0
        %7478 = vmatmul.mubr.f32.gmra.mrb[0].mxu0 %v6568
        %v7479 = vpop.f32.mrb[0].mxu0
        %v7480 = vadd.f32 %v503, %v7479
        %v7481 = vpop.f32.mrb[0].mxu0
        %7482 = vmatprep.mubr.f32.mxu0 0.0
        %7483 = vmatmul.mubr.f32.gmra.mrb[0].mxu0 %v6571
        %v7484 = vpop.f32.mrb[0].mxu0
        %v7485 = vadd.f32 %v503, %v7484
        %v7486 = vpop.f32.mrb[0].mxu0
        %7487 = vmatprep.mubr.f32.mxu0 0.0
        %7488 = vmatmul.mubr.f32.gmra.mrb[0].mxu0 %v6574
        %v7489 = vpop.f32.mrb[0].mxu0
        %v7490 = vadd.f32 %v503, %v7489
        %v7491 = vpop.f32.mrb[0].mxu0
        %7492 = vmatprep.mubr.f32.mxu0 0.0
        %7493 = vmatmul.mubr.f32.gmra.mrb[0].mxu0 %v6577
        %v7494 = vpop.f32.mrb[0].mxu0
        %v7495 = vadd.f32 %v503, %v7494
        %v7496 = vpop.f32.mrb[0].mxu0
        %7497 = vmatprep.mubr.f32.mxu0 0.0
        %7498 = vmatmul.mubr.f32.gmra.mrb[0].mxu0 %v6580
        %v7499 = vpop.f32.mrb[0].mxu0
        %v7500 = vadd.f32 %v503, %v7499
        %v7501 = vpop.f32.mrb[0].mxu0
        %7502 = vmatprep.mubr.f32.mxu0 0.0
        %7503 = vmatmul.mubr.f32.gmra.mrb[0].mxu0 %v6583
        %v7504 = vpop.f32.mrb[0].mxu0
        %v7505 = vadd.f32 %v503, %v7504
        %v7506 = vpop.f32.mrb[0].mxu0
        %7507 = vmatprep.mubr.f32.mxu0 0.0
        %7508 = vmatmul.mubr.f32.gmra.mrb[0].mxu0 %v6586
        %v7509 = vpop.f32.mrb[0].mxu0
        %v7510 = vadd.f32 %v503, %v7509
        %v7511 = vpop.f32.mrb[0].mxu0
        %7512 = vmatprep.mubr.f32.mxu0 0.0
        %7513 = vmatmul.mubr.f32.gmra.mrb[0].mxu0 %v6589
        %v7514 = vpop.f32.mrb[0].mxu0
        %v7515 = vadd.f32 %v503, %v7514
        %v7516 = vpop.f32.mrb[0].mxu0
        %7517 = vmatprep.mubr.f32.mxu0 0.0
        %7518 = vmatmul.mubr.f32.gmra.mrb[0].mxu0 %v6592
        %v7519 = vpop.f32.mrb[0].mxu0
        %v7520 = vadd.f32 %v503, %v7519
        %v7521 = vpop.f32.mrb[0].mxu0
        %7522 = vmatprep.mubr.f32.mxu0 0.0
        %7523 = vmatmul.mubr.f32.gmra.mrb[0].mxu0 %v6595
        %v7524 = vpop.f32.mrb[0].mxu0
        %v7525 = vadd.f32 %v503, %v7524
        %v7526 = vpop.f32.mrb[0].mxu0
        %7527 = vmatprep.mubr.f32.mxu0 0.0
        %7528 = vmatmul.mubr.f32.gmra.mrb[0].mxu0 %v6598
        %v7529 = vpop.f32.mrb[0].mxu0
        %v7530 = vadd.f32 %v503, %v7529
        %v7531 = vpop.f32.mrb[0].mxu0
        %7532 = vmatprep.mubr.f32.mxu0 0.0
        %7533 = vmatmul.mubr.f32.gmra.mrb[0].mxu0 %v6601
        %v7534 = vpop.f32.mrb[0].mxu0
        %v7535 = vadd.f32 %v503, %v7534
        %v7536 = vpop.f32.mrb[0].mxu0
        %7537 = vmatprep.mubr.f32.mxu0 0.0
        %7538 = vmatmul.mubr.f32.gmra.mrb[0].mxu0 %v6604
        %v7539 = vpop.f32.mrb[0].mxu0
        %v7540 = vadd.f32 %v503, %v7539
        %v7541 = vpop.f32.mrb[0].mxu0
        %7542 = vmatprep.mubr.f32.mxu0 0.0
        %7543 = vmatmul.mubr.f32.gmra.mrb[0].mxu0 %v6607
        %v7544 = vpop.f32.mrb[0].mxu0
        %v7545 = vadd.f32 %v503, %v7544
        %v7546 = vpop.f32.mrb[0].mxu0
        %7547 = vmatprep.mubr.f32.mxu0 0.0
        %7548 = vmatmul.mubr.f32.gmra.mrb[0].mxu0 %v6610
        %v7549 = vpop.f32.mrb[0].mxu0
        %v7550 = vadd.f32 %v503, %v7549
        %v7551 = vpop.f32.mrb[0].mxu0
        %7552 = vmatprep.mubr.f32.mxu0 0.0
        %7553 = vmatmul.mubr.f32.gmra.mrb[0].mxu0 %v6613
        %v7554 = vpop.f32.mrb[0].mxu0
        %v7555 = vadd.f32 %v503, %v7554
        %v7556 = vpop.f32.mrb[0].mxu0
        %7557 = vmatprep.mubr.f32.mxu0 0.0
        %7558 = vmatmul.mubr.f32.gmra.mrb[0].mxu0 %v6616
        %v7559 = vpop.f32.mrb[0].mxu0
        %v7560 = vadd.f32 %v503, %v7559
        %v7561 = vpop.f32.mrb[0].mxu0
        %7562 = vmatprep.mubr.f32.mxu0 0.0
        %7563 = vmatmul.mubr.f32.gmra.mrb[0].mxu0 %v6619
        %v7564 = vpop.f32.mrb[0].mxu0
        %v7565 = vadd.f32 %v503, %v7564
        %v7566 = vpop.f32.mrb[0].mxu0
        %7567 = vmatprep.mubr.f32.mxu0 0.0
        %7568 = vmatmul.mubr.f32.gmra.mrb[0].mxu0 %v6622
        %v7569 = vpop.f32.mrb[0].mxu0
        %v7570 = vadd.f32 %v503, %v7569
        %v7571 = vpop.f32.mrb[0].mxu0
        %7572 = vmatprep.mubr.f32.mxu0 0.0
        %7573 = vmatmul.mubr.f32.gmra.mrb[0].mxu0 %v6625
        %v7574 = vpop.f32.mrb[0].mxu0
        %v7575 = vadd.f32 %v503, %v7574
        %v7576 = vpop.f32.mrb[0].mxu0
        %7577 = vmatprep.mubr.f32.mxu0 0.0
        %7578 = vmatmul.mubr.f32.gmra.mrb[0].mxu0 %v6628
        %v7579 = vpop.f32.mrb[0].mxu0
        %v7580 = vadd.f32 %v503, %v7579
        %v7581 = vpop.f32.mrb[0].mxu0
        %7582 = vmatprep.mubr.f32.mxu0 0.0
        %7583 = vmatmul.mubr.f32.gmra.mrb[0].mxu0 %v6631
        %v7584 = vpop.f32.mrb[0].mxu0
        %v7585 = vadd.f32 %v503, %v7584
        %v7586 = vpop.f32.mrb[0].mxu0
        %7587 = vmatprep.mubr.f32.mxu0 0.0
        %7588 = vmatmul.mubr.f32.gmra.mrb[0].mxu0 %v6634
        %v7589 = vpop.f32.mrb[0].mxu0
        %v7590 = vadd.f32 %v503, %v7589
        %v7591 = vpop.f32.mrb[0].mxu0
        %7592 = vmatprep.mubr.f32.mxu0 0.0
        %7593 = vmatmul.mubr.f32.gmra.mrb[0].mxu0 %v6637
        %v7594 = vpop.f32.mrb[0].mxu0
        %v7595 = vadd.f32 %v503, %v7594
        %v7596 = vpop.f32.mrb[0].mxu0
        %7597 = vmatprep.mubr.f32.mxu0 0.0
        %7598 = vmatmul.mubr.f32.gmra.mrb[0].mxu0 %v6640
        %v7599 = vpop.f32.mrb[0].mxu0
        %v7600 = vadd.f32 %v503, %v7599
        %v7601 = vpop.f32.mrb[0].mxu0
        %7602 = vmatprep.mubr.f32.mxu0 0.0
        %7603 = vmatmul.mubr.f32.gmra.mrb[0].mxu0 %v6643
        %v7604 = vpop.f32.mrb[0].mxu0
        %v7605 = vadd.f32 %v503, %v7604
        %v7606 = vpop.f32.mrb[0].mxu0
        %7607 = vmatprep.mubr.f32.mxu0 0.0
        %7608 = vmatmul.mubr.f32.gmra.mrb[0].mxu0 %v6646
        %v7609 = vpop.f32.mrb[0].mxu0
        %v7610 = vadd.f32 %v503, %v7609
        %v7611 = vpop.f32.mrb[0].mxu0
        %7612 = vdwg.mxu0
        %v7613 = vmax.f32 %v6715, 0.0
        %v7614 = vmax.f32 %v6720, 0.0
        %v7615 = vmax.f32 %v6725, 0.0
        %v7616 = vmax.f32 %v6730, 0.0
        %v7617 = vmax.f32 %v6735, 0.0
        %v7618 = vmax.f32 %v6740, 0.0
        %v7619 = vmax.f32 %v6745, 0.0
        %v7620 = vmax.f32 %v6750, 0.0
        %v7621 = vmax.f32 %v6755, 0.0
        %v7622 = vmax.f32 %v6760, 0.0
        %v7623 = vmax.f32 %v6765, 0.0
        %v7624 = vmax.f32 %v6770, 0.0
        %v7625 = vmax.f32 %v6775, 0.0
        %v7626 = vmax.f32 %v6780, 0.0
        %v7627 = vmax.f32 %v6785, 0.0
        %v7628 = vmax.f32 %v6790, 0.0
        %v7629 = vmax.f32 %v6795, 0.0
        %v7630 = vmax.f32 %v6800, 0.0
        %v7631 = vmax.f32 %v6805, 0.0
        %v7632 = vmax.f32 %v6810, 0.0
        %v7633 = vmax.f32 %v6815, 0.0
        %v7634 = vmax.f32 %v6820, 0.0
        %v7635 = vmax.f32 %v6825, 0.0
        %v7636 = vmax.f32 %v6830, 0.0
        %v7637 = vmax.f32 %v6835, 0.0
        %v7638 = vmax.f32 %v6840, 0.0
        %v7639 = vmax.f32 %v6845, 0.0
        %v7640 = vmax.f32 %v6850, 0.0
        %v7641 = vmax.f32 %v6855, 0.0
        %v7642 = vmax.f32 %v6860, 0.0
        %v7643 = vmax.f32 %v6865, 0.0
        %v7644 = vmax.f32 %v6870, 0.0
        %v7645 = vmax.f32 %v6875, 0.0
        %v7646 = vmax.f32 %v6880, 0.0
        %v7647 = vmax.f32 %v6885, 0.0
        %v7648 = vmax.f32 %v6890, 0.0
        %v7649 = vmax.f32 %v6895, 0.0
        %v7650 = vmax.f32 %v6900, 0.0
        %v7651 = vmax.f32 %v6905, 0.0
        %v7652 = vmax.f32 %v6910, 0.0
        %v7653 = vmax.f32 %v6915, 0.0
        %v7654 = vmax.f32 %v6920, 0.0
        %v7655 = vmax.f32 %v6925, 0.0
        %v7656 = vmax.f32 %v6930, 0.0
        %v7657 = vmax.f32 %v6935, 0.0
        %v7658 = vmax.f32 %v6940, 0.0
        %v7659 = vmax.f32 %v6945, 0.0
        %v7660 = vmax.f32 %v6950, 0.0
        %v7661 = vmax.f32 %v6955, 0.0
        %v7662 = vmax.f32 %v6960, 0.0
        %v7663 = vmax.f32 %v6965, 0.0
        %v7664 = vmax.f32 %v6970, 0.0
        %v7665 = vmax.f32 %v6975, 0.0
        %v7666 = vmax.f32 %v6980, 0.0
        %v7667 = vmax.f32 %v6985, 0.0
        %v7668 = vmax.f32 %v6990, 0.0
        %v7669 = vmax.f32 %v6995, 0.0
        %v7670 = vmax.f32 %v7000, 0.0
        %v7671 = vmax.f32 %v7005, 0.0
        %v7672 = vmax.f32 %v7010, 0.0
        %v7673 = vmax.f32 %v7015, 0.0
        %v7674 = vmax.f32 %v7020, 0.0
        %v7675 = vmax.f32 %v7025, 0.0
        %v7676 = vmax.f32 %v7030, 0.0
        %v7677 = vmax.f32 %v7035, 0.0
        %v7678 = vmax.f32 %v7040, 0.0
        %v7679 = vmax.f32 %v7045, 0.0
        %v7680 = vmax.f32 %v7050, 0.0
        %v7681 = vmax.f32 %v7055, 0.0
        %v7682 = vmax.f32 %v7060, 0.0
        %v7683 = vmax.f32 %v7065, 0.0
        %v7684 = vmax.f32 %v7070, 0.0
        %v7685 = vmax.f32 %v7075, 0.0
        %v7686 = vmax.f32 %v7080, 0.0
        %v7687 = vmax.f32 %v7085, 0.0
        %v7688 = vmax.f32 %v7090, 0.0
        %v7689 = vmax.f32 %v7095, 0.0
        %v7690 = vmax.f32 %v7100, 0.0
        %v7691 = vmax.f32 %v7105, 0.0
        %v7692 = vmax.f32 %v7110, 0.0
        %v7693 = vmax.f32 %v7115, 0.0
        %v7694 = vmax.f32 %v7120, 0.0
        %v7695 = vmax.f32 %v7125, 0.0
        %v7696 = vmax.f32 %v7130, 0.0
        %v7697 = vmax.f32 %v7135, 0.0
        %v7698 = vmax.f32 %v7140, 0.0
        %v7699 = vmax.f32 %v7145, 0.0
        %v7700 = vmax.f32 %v7150, 0.0
        %v7701 = vmax.f32 %v7155, 0.0
        %v7702 = vmax.f32 %v7160, 0.0
        %v7703 = vmax.f32 %v7165, 0.0
        %v7704 = vmax.f32 %v7170, 0.0
        %v7705 = vmax.f32 %v7175, 0.0
        %v7706 = vmax.f32 %v7180, 0.0
        %v7707 = vmax.f32 %v7185, 0.0
        %v7708 = vmax.f32 %v7190, 0.0
        %v7709 = vmax.f32 %v7195, 0.0
        %v7710 = vmax.f32 %v7200, 0.0
        %v7711 = vmax.f32 %v7205, 0.0
        %v7712 = vmax.f32 %v7210, 0.0
        %v7713 = vmax.f32 %v7215, 0.0
        %v7714 = vmax.f32 %v7220, 0.0
        %v7715 = vmax.f32 %v7225, 0.0
        %v7716 = vmax.f32 %v7230, 0.0
        %v7717 = vmax.f32 %v7235, 0.0
        %v7718 = vmax.f32 %v7240, 0.0
        %v7719 = vmax.f32 %v7245, 0.0
        %v7720 = vmax.f32 %v7250, 0.0
        %v7721 = vmax.f32 %v7255, 0.0
        %v7722 = vmax.f32 %v7260, 0.0
        %v7723 = vmax.f32 %v7265, 0.0
        %v7724 = vmax.f32 %v7270, 0.0
        %v7725 = vmax.f32 %v7275, 0.0
        %v7726 = vmax.f32 %v7280, 0.0
        %v7727 = vmax.f32 %v7285, 0.0
        %v7728 = vmax.f32 %v7290, 0.0
        %v7729 = vmax.f32 %v7295, 0.0
        %v7730 = vmax.f32 %v7300, 0.0
        %v7731 = vmax.f32 %v7305, 0.0
        %v7732 = vmax.f32 %v7310, 0.0
        %v7733 = vmax.f32 %v7315, 0.0
        %v7734 = vmax.f32 %v7320, 0.0
        %v7735 = vmax.f32 %v7325, 0.0
        %v7736 = vmax.f32 %v7330, 0.0
        %v7737 = vmax.f32 %v7335, 0.0
        %v7738 = vmax.f32 %v7340, 0.0
        %v7739 = vmax.f32 %v7345, 0.0
        %v7740 = vmax.f32 %v7350, 0.0
        %v7741 = vmax.f32 %v7355, 0.0
        %v7742 = vmax.f32 %v7360, 0.0
        %v7743 = vmax.f32 %v7365, 0.0
        %v7744 = vmax.f32 %v7370, 0.0
        %v7745 = vmax.f32 %v7375, 0.0
        %v7746 = vmax.f32 %v7380, 0.0
        %v7747 = vmax.f32 %v7385, 0.0
        %v7748 = vmax.f32 %v7390, 0.0
        %v7749 = vmax.f32 %v7395, 0.0
        %v7750 = vmax.f32 %v7400, 0.0
        %v7751 = vmax.f32 %v7405, 0.0
        %v7752 = vmax.f32 %v7410, 0.0
        %v7753 = vmax.f32 %v7415, 0.0
        %v7754 = vmax.f32 %v7420, 0.0
        %v7755 = vmax.f32 %v7425, 0.0
        %v7756 = vmax.f32 %v7430, 0.0
        %v7757 = vmax.f32 %v7435, 0.0
        %v7758 = vmax.f32 %v7440, 0.0
        %v7759 = vmax.f32 %v7445, 0.0
        %v7760 = vmax.f32 %v7450, 0.0
        %v7761 = vmax.f32 %v7455, 0.0
        %v7762 = vmax.f32 %v7460, 0.0
        %v7763 = vmax.f32 %v7465, 0.0
        %v7764 = vmax.f32 %v7470, 0.0
        %v7765 = vmax.f32 %v7475, 0.0
        %v7766 = vmax.f32 %v7480, 0.0
        %v7767 = vmax.f32 %v7485, 0.0
        %v7768 = vmax.f32 %v7490, 0.0
        %v7769 = vmax.f32 %v7495, 0.0
        %v7770 = vmax.f32 %v7500, 0.0
        %v7771 = vmax.f32 %v7505, 0.0
        %v7772 = vmax.f32 %v7510, 0.0
        %v7773 = vmax.f32 %v7515, 0.0
        %v7774 = vmax.f32 %v7520, 0.0
        %v7775 = vmax.f32 %v7525, 0.0
        %v7776 = vmax.f32 %v7530, 0.0
        %v7777 = vmax.f32 %v7535, 0.0
        %v7778 = vmax.f32 %v7540, 0.0
        %v7779 = vmax.f32 %v7545, 0.0
        %v7780 = vmax.f32 %v7550, 0.0
        %v7781 = vmax.f32 %v7555, 0.0
        %v7782 = vmax.f32 %v7560, 0.0
        %v7783 = vmax.f32 %v7565, 0.0
        %v7784 = vmax.f32 %v7570, 0.0
        %v7785 = vmax.f32 %v7575, 0.0
        %v7786 = vmax.f32 %v7580, 0.0
        %v7787 = vmax.f32 %v7585, 0.0
        %v7788 = vmax.f32 %v7590, 0.0
        %v7789 = vmax.f32 %v7595, 0.0
        %v7790 = vmax.f32 %v7600, 0.0
        %v7791 = vmax.f32 %v7605, 0.0
        %v7792 = vmax.f32 %v7610, 0.0
        %v7793 = vmax.f32 %v2015, %v3881
        %v7794 = vmax.f32 %v2016, %v3882
        %v7795 = vmax.f32 %v2017, %v3883
        %v7796 = vmax.f32 %v2018, %v3884
        %v7797 = vmax.f32 %v2019, %v3885
        %v7798 = vmax.f32 %v2020, %v3886
        %v7799 = vmax.f32 %v2021, %v3887
        %v7800 = vmax.f32 %v2022, %v3888
        %v7801 = vmax.f32 %v2023, %v3889
        %v7802 = vmax.f32 %v2024, %v3890
        %v7803 = vmax.f32 %v2025, %v3891
        %v7804 = vmax.f32 %v2026, %v3892
        %v7805 = vmax.f32 %v2027, %v3893
        %v7806 = vmax.f32 %v2028, %v3894
        %v7807 = vmax.f32 %v2029, %v3895
        %v7808 = vmax.f32 %v2030, %v3896
        %v7809 = vmax.f32 %v2031, %v3897
        %v7810 = vmax.f32 %v2032, %v3898
        %v7811 = vmax.f32 %v2033, %v3899
        %v7812 = vmax.f32 %v2034, %v3900
        %v7813 = vmax.f32 %v2035, %v3901
        %v7814 = vmax.f32 %v2036, %v3902
        %v7815 = vmax.f32 %v2037, %v3903
        %v7816 = vmax.f32 %v2038, %v3904
        %v7817 = vmax.f32 %v2039, %v3905
        %v7818 = vmax.f32 %v2040, %v3906
        %v7819 = vmax.f32 %v2041, %v3907
        %v7820 = vmax.f32 %v2042, %v3908
        %v7821 = vmax.f32 %v2043, %v3909
        %v7822 = vmax.f32 %v2044, %v3910
        %v7823 = vmax.f32 %v2045, %v3911
        %v7824 = vmax.f32 %v2046, %v3912
        %v7825 = vmax.f32 %v2047, %v3913
        %v7826 = vmax.f32 %v2048, %v3914
        %v7827 = vmax.f32 %v2049, %v3915
        %v7828 = vmax.f32 %v2050, %v3916
        %v7829 = vmax.f32 %v2051, %v3917
        %v7830 = vmax.f32 %v2052, %v3918
        %v7831 = vmax.f32 %v2053, %v3919
        %v7832 = vmax.f32 %v2054, %v3920
        %v7833 = vmax.f32 %v2055, %v3921
        %v7834 = vmax.f32 %v2056, %v3922
        %v7835 = vmax.f32 %v2057, %v3923
        %v7836 = vmax.f32 %v2058, %v3924
        %v7837 = vmax.f32 %v2059, %v3925
        %v7838 = vmax.f32 %v2060, %v3926
        %v7839 = vmax.f32 %v2061, %v3927
        %v7840 = vmax.f32 %v2062, %v3928
        %v7841 = vmax.f32 %v2063, %v3929
        %v7842 = vmax.f32 %v2064, %v3930
        %v7843 = vmax.f32 %v2065, %v3931
        %v7844 = vmax.f32 %v2066, %v3932
        %v7845 = vmax.f32 %v2067, %v3933
        %v7846 = vmax.f32 %v2068, %v3934
        %v7847 = vmax.f32 %v2069, %v3935
        %v7848 = vmax.f32 %v2070, %v3936
        %v7849 = vmax.f32 %v2071, %v3937
        %v7850 = vmax.f32 %v2072, %v3938
        %v7851 = vmax.f32 %v2073, %v3939
        %v7852 = vmax.f32 %v2074, %v3940
        %v7853 = vmax.f32 %v2075, %v3941
        %v7854 = vmax.f32 %v2076, %v3942
        %v7855 = vmax.f32 %v2077, %v3943
        %v7856 = vmax.f32 %v2078, %v3944
        %v7857 = vmax.f32 %v2079, %v3945
        %v7858 = vmax.f32 %v2080, %v3946
        %v7859 = vmax.f32 %v2081, %v3947
        %v7860 = vmax.f32 %v2082, %v3948
        %v7861 = vmax.f32 %v2083, %v3949
        %v7862 = vmax.f32 %v2084, %v3950
        %v7863 = vmax.f32 %v2085, %v3951
        %v7864 = vmax.f32 %v2086, %v3952
        %v7865 = vmax.f32 %v2087, %v3953
        %v7866 = vmax.f32 %v2088, %v3954
        %v7867 = vmax.f32 %v2089, %v3955
        %v7868 = vmax.f32 %v2090, %v3956
        %v7869 = vmax.f32 %v2091, %v3957
        %v7870 = vmax.f32 %v2092, %v3958
        %v7871 = vmax.f32 %v2093, %v3959
        %v7872 = vmax.f32 %v2094, %v3960
        %v7873 = vmax.f32 %v2095, %v3961
        %v7874 = vmax.f32 %v2096, %v3962
        %v7875 = vmax.f32 %v2097, %v3963
        %v7876 = vmax.f32 %v2098, %v3964
        %v7877 = vmax.f32 %v2099, %v3965
        %v7878 = vmax.f32 %v2100, %v3966
        %v7879 = vmax.f32 %v2101, %v3967
        %v7880 = vmax.f32 %v2102, %v3968
        %v7881 = vmax.f32 %v2103, %v3969
        %v7882 = vmax.f32 %v2104, %v3970
        %v7883 = vmax.f32 %v2105, %v3971
        %v7884 = vmax.f32 %v2106, %v3972
        %v7885 = vmax.f32 %v2107, %v3973
        %v7886 = vmax.f32 %v2108, %v3974
        %v7887 = vmax.f32 %v2109, %v3975
        %v7888 = vmax.f32 %v2110, %v3976
        %v7889 = vmax.f32 %v2111, %v3977
        %v7890 = vmax.f32 %v2112, %v3978
        %v7891 = vmax.f32 %v2113, %v3979
        %v7892 = vmax.f32 %v2114, %v3980
        %v7893 = vmax.f32 %v2115, %v3981
        %v7894 = vmax.f32 %v2116, %v3982
        %v7895 = vmax.f32 %v2117, %v3983
        %v7896 = vmax.f32 %v2118, %v3984
        %v7897 = vmax.f32 %v2119, %v3985
        %v7898 = vmax.f32 %v2120, %v3986
        %v7899 = vmax.f32 %v2121, %v3987
        %v7900 = vmax.f32 %v2122, %v3988
        %v7901 = vmax.f32 %v2123, %v3989
        %v7902 = vmax.f32 %v2124, %v3990
        %v7903 = vmax.f32 %v2125, %v3991
        %v7904 = vmax.f32 %v2126, %v3992
        %v7905 = vmax.f32 %v2127, %v3993
        %v7906 = vmax.f32 %v2128, %v3994
        %v7907 = vmax.f32 %v2129, %v3995
        %v7908 = vmax.f32 %v2130, %v3996
        %v7909 = vmax.f32 %v2131, %v3997
        %v7910 = vmax.f32 %v2132, %v3998
        %v7911 = vmax.f32 %v2133, %v3999
        %v7912 = vmax.f32 %v2134, %v4000
        %v7913 = vmax.f32 %v2135, %v4001
        %v7914 = vmax.f32 %v2136, %v4002
        %v7915 = vmax.f32 %v2137, %v4003
        %v7916 = vmax.f32 %v2138, %v4004
        %v7917 = vmax.f32 %v2139, %v4005
        %v7918 = vmax.f32 %v2140, %v4006
        %v7919 = vmax.f32 %v2141, %v4007
        %v7920 = vmax.f32 %v2142, %v4008
        %v7921 = vmax.f32 %v2143, %v4009
        %v7922 = vmax.f32 %v2144, %v4010
        %v7923 = vmax.f32 %v2145, %v4011
        %v7924 = vmax.f32 %v2146, %v4012
        %v7925 = vmax.f32 %v2147, %v4013
        %v7926 = vmax.f32 %v2148, %v4014
        %v7927 = vmax.f32 %v2149, %v4015
        %v7928 = vmax.f32 %v2150, %v4016
        %v7929 = vmax.f32 %v2151, %v4017
        %v7930 = vmax.f32 %v2152, %v4018
        %v7931 = vmax.f32 %v2153, %v4019
        %v7932 = vmax.f32 %v2154, %v4020
        %v7933 = vmax.f32 %v2155, %v4021
        %v7934 = vmax.f32 %v2156, %v4022
        %v7935 = vmax.f32 %v2157, %v4023
        %v7936 = vmax.f32 %v2158, %v4024
        %v7937 = vmax.f32 %v2159, %v4025
        %v7938 = vmax.f32 %v2160, %v4026
        %v7939 = vmax.f32 %v2161, %v4027
        %v7940 = vmax.f32 %v2162, %v4028
        %v7941 = vmax.f32 %v2163, %v4029
        %v7942 = vmax.f32 %v2164, %v4030
        %v7943 = vmax.f32 %v2165, %v4031
        %v7944 = vmax.f32 %v2166, %v4032
        %v7945 = vmax.f32 %v2167, %v4033
        %v7946 = vmax.f32 %v2168, %v4034
        %v7947 = vmax.f32 %v2169, %v4035
        %v7948 = vmax.f32 %v2170, %v4036
        %v7949 = vmax.f32 %v2171, %v4037
        %v7950 = vmax.f32 %v2172, %v4038
        %v7951 = vmax.f32 %v2173, %v4039
        %v7952 = vmax.f32 %v2174, %v4040
        %v7953 = vmax.f32 %v2175, %v4041
        %v7954 = vmax.f32 %v2176, %v4042
        %v7955 = vmax.f32 %v2177, %v4043
        %v7956 = vmax.f32 %v2178, %v4044
        %v7957 = vmax.f32 %v2179, %v4045
        %v7958 = vmax.f32 %v2180, %v4046
        %v7959 = vmax.f32 %v2181, %v4047
        %v7960 = vmax.f32 %v2182, %v4048
        %v7961 = vmax.f32 %v2183, %v4049
        %v7962 = vmax.f32 %v2184, %v4050
        %v7963 = vmax.f32 %v2185, %v4051
        %v7964 = vmax.f32 %v2186, %v4052
        %v7965 = vmax.f32 %v2187, %v4053
        %v7966 = vmax.f32 %v2188, %v4054
        %v7967 = vmax.f32 %v2189, %v4055
        %v7968 = vmax.f32 %v2190, %v4056
        %v7969 = vmax.f32 %v2191, %v4057
        %v7970 = vmax.f32 %v2192, %v4058
        %v7971 = vmax.f32 %v2193, %v4059
        %v7972 = vmax.f32 %v2194, %v4060
        %v7973 = vmax.f32 %v5747, %v7613
        %v7974 = vmax.f32 %v5748, %v7614
        %v7975 = vmax.f32 %v5749, %v7615
        %v7976 = vmax.f32 %v5750, %v7616
        %v7977 = vmax.f32 %v5751, %v7617
        %v7978 = vmax.f32 %v5752, %v7618
        %v7979 = vmax.f32 %v5753, %v7619
        %v7980 = vmax.f32 %v5754, %v7620
        %v7981 = vmax.f32 %v5755, %v7621
        %v7982 = vmax.f32 %v5756, %v7622
        %v7983 = vmax.f32 %v5757, %v7623
        %v7984 = vmax.f32 %v5758, %v7624
        %v7985 = vmax.f32 %v5759, %v7625
        %v7986 = vmax.f32 %v5760, %v7626
        %v7987 = vmax.f32 %v5761, %v7627
        %v7988 = vmax.f32 %v5762, %v7628
        %v7989 = vmax.f32 %v5763, %v7629
        %v7990 = vmax.f32 %v5764, %v7630
        %v7991 = vmax.f32 %v5765, %v7631
        %v7992 = vmax.f32 %v5766, %v7632
        %v7993 = vmax.f32 %v5767, %v7633
        %v7994 = vmax.f32 %v5768, %v7634
        %v7995 = vmax.f32 %v5769, %v7635
        %v7996 = vmax.f32 %v5770, %v7636
        %v7997 = vmax.f32 %v5771, %v7637
        %v7998 = vmax.f32 %v5772, %v7638
        %v7999 = vmax.f32 %v5773, %v7639
        %v8000 = vmax.f32 %v5774, %v7640
        %v8001 = vmax.f32 %v5775, %v7641
        %v8002 = vmax.f32 %v5776, %v7642
        %v8003 = vmax.f32 %v5777, %v7643
        %v8004 = vmax.f32 %v5778, %v7644
        %v8005 = vmax.f32 %v5779, %v7645
        %v8006 = vmax.f32 %v5780, %v7646
        %v8007 = vmax.f32 %v5781, %v7647
        %v8008 = vmax.f32 %v5782, %v7648
        %v8009 = vmax.f32 %v5783, %v7649
        %v8010 = vmax.f32 %v5784, %v7650
        %v8011 = vmax.f32 %v5785, %v7651
        %v8012 = vmax.f32 %v5786, %v7652
        %v8013 = vmax.f32 %v5787, %v7653
        %v8014 = vmax.f32 %v5788, %v7654
        %v8015 = vmax.f32 %v5789, %v7655
        %v8016 = vmax.f32 %v5790, %v7656
        %v8017 = vmax.f32 %v5791, %v7657
        %v8018 = vmax.f32 %v5792, %v7658
        %v8019 = vmax.f32 %v5793, %v7659
        %v8020 = vmax.f32 %v5794, %v7660
        %v8021 = vmax.f32 %v5795, %v7661
        %v8022 = vmax.f32 %v5796, %v7662
        %v8023 = vmax.f32 %v5797, %v7663
        %v8024 = vmax.f32 %v5798, %v7664
        %v8025 = vmax.f32 %v5799, %v7665
        %v8026 = vmax.f32 %v5800, %v7666
        %v8027 = vmax.f32 %v5801, %v7667
        %v8028 = vmax.f32 %v5802, %v7668
        %v8029 = vmax.f32 %v5803, %v7669
        %v8030 = vmax.f32 %v5804, %v7670
        %v8031 = vmax.f32 %v5805, %v7671
        %v8032 = vmax.f32 %v5806, %v7672
        %v8033 = vmax.f32 %v5807, %v7673
        %v8034 = vmax.f32 %v5808, %v7674
        %v8035 = vmax.f32 %v5809, %v7675
        %v8036 = vmax.f32 %v5810, %v7676
        %v8037 = vmax.f32 %v5811, %v7677
        %v8038 = vmax.f32 %v5812, %v7678
        %v8039 = vmax.f32 %v5813, %v7679
        %v8040 = vmax.f32 %v5814, %v7680
        %v8041 = vmax.f32 %v5815, %v7681
        %v8042 = vmax.f32 %v5816, %v7682
        %v8043 = vmax.f32 %v5817, %v7683
        %v8044 = vmax.f32 %v5818, %v7684
        %v8045 = vmax.f32 %v5819, %v7685
        %v8046 = vmax.f32 %v5820, %v7686
        %v8047 = vmax.f32 %v5821, %v7687
        %v8048 = vmax.f32 %v5822, %v7688
        %v8049 = vmax.f32 %v5823, %v7689
        %v8050 = vmax.f32 %v5824, %v7690
        %v8051 = vmax.f32 %v5825, %v7691
        %v8052 = vmax.f32 %v5826, %v7692
        %v8053 = vmax.f32 %v5827, %v7693
        %v8054 = vmax.f32 %v5828, %v7694
        %v8055 = vmax.f32 %v5829, %v7695
        %v8056 = vmax.f32 %v5830, %v7696
        %v8057 = vmax.f32 %v5831, %v7697
        %v8058 = vmax.f32 %v5832, %v7698
        %v8059 = vmax.f32 %v5833, %v7699
        %v8060 = vmax.f32 %v5834, %v7700
        %v8061 = vmax.f32 %v5835, %v7701
        %v8062 = vmax.f32 %v5836, %v7702
        %v8063 = vmax.f32 %v5837, %v7703
        %v8064 = vmax.f32 %v5838, %v7704
        %v8065 = vmax.f32 %v5839, %v7705
        %v8066 = vmax.f32 %v5840, %v7706
        %v8067 = vmax.f32 %v5841, %v7707
        %v8068 = vmax.f32 %v5842, %v7708
        %v8069 = vmax.f32 %v5843, %v7709
        %v8070 = vmax.f32 %v5844, %v7710
        %v8071 = vmax.f32 %v5845, %v7711
        %v8072 = vmax.f32 %v5846, %v7712
        %v8073 = vmax.f32 %v5847, %v7713
        %v8074 = vmax.f32 %v5848, %v7714
        %v8075 = vmax.f32 %v5849, %v7715
        %v8076 = vmax.f32 %v5850, %v7716
        %v8077 = vmax.f32 %v5851, %v7717
        %v8078 = vmax.f32 %v5852, %v7718
        %v8079 = vmax.f32 %v5853, %v7719
        %v8080 = vmax.f32 %v5854, %v7720
        %v8081 = vmax.f32 %v5855, %v7721
        %v8082 = vmax.f32 %v5856, %v7722
        %v8083 = vmax.f32 %v5857, %v7723
        %v8084 = vmax.f32 %v5858, %v7724
        %v8085 = vmax.f32 %v5859, %v7725
        %v8086 = vmax.f32 %v5860, %v7726
        %v8087 = vmax.f32 %v5861, %v7727
        %v8088 = vmax.f32 %v5862, %v7728
        %v8089 = vmax.f32 %v5863, %v7729
        %v8090 = vmax.f32 %v5864, %v7730
        %v8091 = vmax.f32 %v5865, %v7731
        %v8092 = vmax.f32 %v5866, %v7732
        %v8093 = vmax.f32 %v5867, %v7733
        %v8094 = vmax.f32 %v5868, %v7734
        %v8095 = vmax.f32 %v5869, %v7735
        %v8096 = vmax.f32 %v5870, %v7736
        %v8097 = vmax.f32 %v5871, %v7737
        %v8098 = vmax.f32 %v5872, %v7738
        %v8099 = vmax.f32 %v5873, %v7739
        %v8100 = vmax.f32 %v5874, %v7740
        %v8101 = vmax.f32 %v5875, %v7741
        %v8102 = vmax.f32 %v5876, %v7742
        %v8103 = vmax.f32 %v5877, %v7743
        %v8104 = vmax.f32 %v5878, %v7744
        %v8105 = vmax.f32 %v5879, %v7745
        %v8106 = vmax.f32 %v5880, %v7746
        %v8107 = vmax.f32 %v5881, %v7747
        %v8108 = vmax.f32 %v5882, %v7748
        %v8109 = vmax.f32 %v5883, %v7749
        %v8110 = vmax.f32 %v5884, %v7750
        %v8111 = vmax.f32 %v5885, %v7751
        %v8112 = vmax.f32 %v5886, %v7752
        %v8113 = vmax.f32 %v5887, %v7753
        %v8114 = vmax.f32 %v5888, %v7754
        %v8115 = vmax.f32 %v5889, %v7755
        %v8116 = vmax.f32 %v5890, %v7756
        %v8117 = vmax.f32 %v5891, %v7757
        %v8118 = vmax.f32 %v5892, %v7758
        %v8119 = vmax.f32 %v5893, %v7759
        %v8120 = vmax.f32 %v5894, %v7760
        %v8121 = vmax.f32 %v5895, %v7761
        %v8122 = vmax.f32 %v5896, %v7762
        %v8123 = vmax.f32 %v5897, %v7763
        %v8124 = vmax.f32 %v5898, %v7764
        %v8125 = vmax.f32 %v5899, %v7765
        %v8126 = vmax.f32 %v5900, %v7766
        %v8127 = vmax.f32 %v5901, %v7767
        %v8128 = vmax.f32 %v5902, %v7768
        %v8129 = vmax.f32 %v5903, %v7769
        %v8130 = vmax.f32 %v5904, %v7770
        %v8131 = vmax.f32 %v5905, %v7771
        %v8132 = vmax.f32 %v5906, %v7772
        %v8133 = vmax.f32 %v5907, %v7773
        %v8134 = vmax.f32 %v5908, %v7774
        %v8135 = vmax.f32 %v5909, %v7775
        %v8136 = vmax.f32 %v5910, %v7776
        %v8137 = vmax.f32 %v5911, %v7777
        %v8138 = vmax.f32 %v5912, %v7778
        %v8139 = vmax.f32 %v5913, %v7779
        %v8140 = vmax.f32 %v5914, %v7780
        %v8141 = vmax.f32 %v5915, %v7781
        %v8142 = vmax.f32 %v5916, %v7782
        %v8143 = vmax.f32 %v5917, %v7783
        %v8144 = vmax.f32 %v5918, %v7784
        %v8145 = vmax.f32 %v5919, %v7785
        %v8146 = vmax.f32 %v5920, %v7786
        %v8147 = vmax.f32 %v5921, %v7787
        %v8148 = vmax.f32 %v5922, %v7788
        %v8149 = vmax.f32 %v5923, %v7789
        %v8150 = vmax.f32 %v5924, %v7790
        %v8151 = vmax.f32 %v5925, %v7791
        %v8152 = vmax.f32 %v5926, %v7792
        %v8153 = vmax.f32 %v7793, %v7973
        %v8154 = vmax.f32 %v7794, %v7974
        %v8155 = vmax.f32 %v7795, %v7975
        %v8156 = vmax.f32 %v7796, %v7976
        %v8157 = vmax.f32 %v7797, %v7977
        %v8158 = vmax.f32 %v7798, %v7978
        %v8159 = vmax.f32 %v7799, %v7979
        %v8160 = vmax.f32 %v7800, %v7980
        %v8161 = vmax.f32 %v7801, %v7981
        %v8162 = vmax.f32 %v7802, %v7982
        %v8163 = vmax.f32 %v7803, %v7983
        %v8164 = vmax.f32 %v7804, %v7984
        %v8165 = vmax.f32 %v7805, %v7985
        %v8166 = vmax.f32 %v7806, %v7986
        %v8167 = vmax.f32 %v7807, %v7987
        %v8168 = vmax.f32 %v7808, %v7988
        %v8169 = vmax.f32 %v7809, %v7989
        %v8170 = vmax.f32 %v7810, %v7990
        %v8171 = vmax.f32 %v7811, %v7991
        %v8172 = vmax.f32 %v7812, %v7992
        %v8173 = vmax.f32 %v7813, %v7993
        %v8174 = vmax.f32 %v7814, %v7994
        %v8175 = vmax.f32 %v7815, %v7995
        %v8176 = vmax.f32 %v7816, %v7996
        %v8177 = vmax.f32 %v7817, %v7997
        %v8178 = vmax.f32 %v7818, %v7998
        %v8179 = vmax.f32 %v7819, %v7999
        %v8180 = vmax.f32 %v7820, %v8000
        %v8181 = vmax.f32 %v7821, %v8001
        %v8182 = vmax.f32 %v7822, %v8002
        %v8183 = vmax.f32 %v7823, %v8003
        %v8184 = vmax.f32 %v7824, %v8004
        %v8185 = vmax.f32 %v7825, %v8005
        %v8186 = vmax.f32 %v7826, %v8006
        %v8187 = vmax.f32 %v7827, %v8007
        %v8188 = vmax.f32 %v7828, %v8008
        %v8189 = vmax.f32 %v7829, %v8009
        %v8190 = vmax.f32 %v7830, %v8010
        %v8191 = vmax.f32 %v7831, %v8011
        %v8192 = vmax.f32 %v7832, %v8012
        %v8193 = vmax.f32 %v7833, %v8013
        %v8194 = vmax.f32 %v7834, %v8014
        %v8195 = vmax.f32 %v7835, %v8015
        %v8196 = vmax.f32 %v7836, %v8016
        %v8197 = vmax.f32 %v7837, %v8017
        %v8198 = vmax.f32 %v7838, %v8018
        %v8199 = vmax.f32 %v7839, %v8019
        %v8200 = vmax.f32 %v7840, %v8020
        %v8201 = vmax.f32 %v7841, %v8021
        %v8202 = vmax.f32 %v7842, %v8022
        %v8203 = vmax.f32 %v7843, %v8023
        %v8204 = vmax.f32 %v7844, %v8024
        %v8205 = vmax.f32 %v7845, %v8025
        %v8206 = vmax.f32 %v7846, %v8026
        %v8207 = vmax.f32 %v7847, %v8027
        %v8208 = vmax.f32 %v7848, %v8028
        %v8209 = vmax.f32 %v7849, %v8029
        %v8210 = vmax.f32 %v7850, %v8030
        %v8211 = vmax.f32 %v7851, %v8031
        %v8212 = vmax.f32 %v7852, %v8032
        %v8213 = vmax.f32 %v7853, %v8033
        %v8214 = vmax.f32 %v7854, %v8034
        %v8215 = vmax.f32 %v7855, %v8035
        %v8216 = vmax.f32 %v7856, %v8036
        %v8217 = vmax.f32 %v7857, %v8037
        %v8218 = vmax.f32 %v7858, %v8038
        %v8219 = vmax.f32 %v7859, %v8039
        %v8220 = vmax.f32 %v7860, %v8040
        %v8221 = vmax.f32 %v7861, %v8041
        %v8222 = vmax.f32 %v7862, %v8042
        %v8223 = vmax.f32 %v7863, %v8043
        %v8224 = vmax.f32 %v7864, %v8044
        %v8225 = vmax.f32 %v7865, %v8045
        %v8226 = vmax.f32 %v7866, %v8046
        %v8227 = vmax.f32 %v7867, %v8047
        %v8228 = vmax.f32 %v7868, %v8048
        %v8229 = vmax.f32 %v7869, %v8049
        %v8230 = vmax.f32 %v7870, %v8050
        %v8231 = vmax.f32 %v7871, %v8051
        %v8232 = vmax.f32 %v7872, %v8052
        %v8233 = vmax.f32 %v7873, %v8053
        %v8234 = vmax.f32 %v7874, %v8054
        %v8235 = vmax.f32 %v7875, %v8055
        %v8236 = vmax.f32 %v7876, %v8056
        %v8237 = vmax.f32 %v7877, %v8057
        %v8238 = vmax.f32 %v7878, %v8058
        %v8239 = vmax.f32 %v7879, %v8059
        %v8240 = vmax.f32 %v7880, %v8060
        %v8241 = vmax.f32 %v7881, %v8061
        %v8242 = vmax.f32 %v7882, %v8062
        %v8243 = vmax.f32 %v7883, %v8063
        %v8244 = vmax.f32 %v7884, %v8064
        %v8245 = vmax.f32 %v7885, %v8065
        %v8246 = vmax.f32 %v7886, %v8066
        %v8247 = vmax.f32 %v7887, %v8067
        %v8248 = vmax.f32 %v7888, %v8068
        %v8249 = vmax.f32 %v7889, %v8069
        %v8250 = vmax.f32 %v7890, %v8070
        %v8251 = vmax.f32 %v7891, %v8071
        %v8252 = vmax.f32 %v7892, %v8072
        %v8253 = vmax.f32 %v7893, %v8073
        %v8254 = vmax.f32 %v7894, %v8074
        %v8255 = vmax.f32 %v7895, %v8075
        %v8256 = vmax.f32 %v7896, %v8076
        %v8257 = vmax.f32 %v7897, %v8077
        %v8258 = vmax.f32 %v7898, %v8078
        %v8259 = vmax.f32 %v7899, %v8079
        %v8260 = vmax.f32 %v7900, %v8080
        %v8261 = vmax.f32 %v7901, %v8081
        %v8262 = vmax.f32 %v7902, %v8082
        %v8263 = vmax.f32 %v7903, %v8083
        %v8264 = vmax.f32 %v7904, %v8084
        %v8265 = vmax.f32 %v7905, %v8085
        %v8266 = vmax.f32 %v7906, %v8086
        %v8267 = vmax.f32 %v7907, %v8087
        %v8268 = vmax.f32 %v7908, %v8088
        %v8269 = vmax.f32 %v7909, %v8089
        %v8270 = vmax.f32 %v7910, %v8090
        %v8271 = vmax.f32 %v7911, %v8091
        %v8272 = vmax.f32 %v7912, %v8092
        %v8273 = vmax.f32 %v7913, %v8093
        %v8274 = vmax.f32 %v7914, %v8094
        %v8275 = vmax.f32 %v7915, %v8095
        %v8276 = vmax.f32 %v7916, %v8096
        %v8277 = vmax.f32 %v7917, %v8097
        %v8278 = vmax.f32 %v7918, %v8098
        %v8279 = vmax.f32 %v7919, %v8099
        %v8280 = vmax.f32 %v7920, %v8100
        %v8281 = vmax.f32 %v7921, %v8101
        %v8282 = vmax.f32 %v7922, %v8102
        %v8283 = vmax.f32 %v7923, %v8103
        %v8284 = vmax.f32 %v7924, %v8104
        %v8285 = vmax.f32 %v7925, %v8105
        %v8286 = vmax.f32 %v7926, %v8106
        %v8287 = vmax.f32 %v7927, %v8107
        %v8288 = vmax.f32 %v7928, %v8108
        %v8289 = vmax.f32 %v7929, %v8109
        %v8290 = vmax.f32 %v7930, %v8110
        %v8291 = vmax.f32 %v7931, %v8111
        %v8292 = vmax.f32 %v7932, %v8112
        %v8293 = vmax.f32 %v7933, %v8113
        %v8294 = vmax.f32 %v7934, %v8114
        %v8295 = vmax.f32 %v7935, %v8115
        %v8296 = vmax.f32 %v7936, %v8116
        %v8297 = vmax.f32 %v7937, %v8117
        %v8298 = vmax.f32 %v7938, %v8118
        %v8299 = vmax.f32 %v7939, %v8119
        %v8300 = vmax.f32 %v7940, %v8120
        %v8301 = vmax.f32 %v7941, %v8121
        %v8302 = vmax.f32 %v7942, %v8122
        %v8303 = vmax.f32 %v7943, %v8123
        %v8304 = vmax.f32 %v7944, %v8124
        %v8305 = vmax.f32 %v7945, %v8125
        %v8306 = vmax.f32 %v7946, %v8126
        %v8307 = vmax.f32 %v7947, %v8127
        %v8308 = vmax.f32 %v7948, %v8128
        %v8309 = vmax.f32 %v7949, %v8129
        %v8310 = vmax.f32 %v7950, %v8130
        %v8311 = vmax.f32 %v7951, %v8131
        %v8312 = vmax.f32 %v7952, %v8132
        %v8313 = vmax.f32 %v7953, %v8133
        %v8314 = vmax.f32 %v7954, %v8134
        %v8315 = vmax.f32 %v7955, %v8135
        %v8316 = vmax.f32 %v7956, %v8136
        %v8317 = vmax.f32 %v7957, %v8137
        %v8318 = vmax.f32 %v7958, %v8138
        %v8319 = vmax.f32 %v7959, %v8139
        %v8320 = vmax.f32 %v7960, %v8140
        %v8321 = vmax.f32 %v7961, %v8141
        %v8322 = vmax.f32 %v7962, %v8142
        %v8323 = vmax.f32 %v7963, %v8143
        %v8324 = vmax.f32 %v7964, %v8144
        %v8325 = vmax.f32 %v7965, %v8145
        %v8326 = vmax.f32 %v7966, %v8146
        %v8327 = vmax.f32 %v7967, %v8147
        %v8328 = vmax.f32 %v7968, %v8148
        %v8329 = vmax.f32 %v7969, %v8149
        %v8330 = vmax.f32 %v7970, %v8150
        %v8331 = vmax.f32 %v7971, %v8151
        %v8332 = vmax.f32 %v7972, %v8152
        %v8333 = vld [vmem:[%s278] sm:$0xff]
        %v8334 = vld [vmem:[%s278 + $0x8] sm:$0xff]
        %v8335 = vld [vmem:[%s278 + $0x10] sm:$0xff]
        %v8336 = vld [vmem:[%s278 + $0x18] sm:$0xff]
        %v8337 = vld [vmem:[%s278 + $0x20] sm:$0xff]
        %v8338 = vld [vmem:[%s278 + $0x28] sm:$0xff]
        %v8339 = vld [vmem:[%s278 + $0x30] sm:$0xff]
        %v8340 = vld [vmem:[%s278 + $0x38] sm:$0xff]
        %v8341 = vld [vmem:[%s278 + $0x40] sm:$0xff]
        %v8342 = vld [vmem:[%s278 + $0x48] sm:$0xff]
        %v8343 = vld [vmem:[%s278 + $0x50] sm:$0xff]
        %v8344 = vld [vmem:[%s278 + $0x58] sm:$0xff]
        %v8345 = vld [vmem:[%s278 + $0x60] sm:$0xff]
        %v8346 = vld [vmem:[%s278 + $0x68] sm:$0xff]
        %v8347 = vld [vmem:[%s278 + $0x70] sm:$0xff]
        %v8348 = vld [vmem:[%s278 + $0x78] sm:$0xff]
        %v8349 = vld [vmem:[%s278 + $0x80] sm:$0xff]
        %v8350 = vld [vmem:[%s278 + $0x88] sm:$0xff]
        %v8351 = vld [vmem:[%s278 + $0x90] sm:$0xff]
        %v8352 = vld [vmem:[%s278 + $0x98] sm:$0xff]
        %v8353 = vld [vmem:[%s278 + $0xa0] sm:$0xff]
        %v8354 = vld [vmem:[%s278 + $0xa8] sm:$0xff]
        %v8355 = vld [vmem:[%s278 + $0xb0] sm:$0xff]
        %v8356 = vld [vmem:[%s278 + $0xb8] sm:$0xff]
        %v8357 = vld [vmem:[%s278 + $0xc0] sm:$0xff]
        %v8358 = vld [vmem:[%s278 + $0xc8] sm:$0xff]
        %v8359 = vld [vmem:[%s278 + $0xd0] sm:$0xff]
        %v8360 = vld [vmem:[%s278 + $0xd8] sm:$0xff]
        %v8361 = vld [vmem:[%s278 + $0xe0] sm:$0xff]
        %v8362 = vld [vmem:[%s278 + $0xe8] sm:$0xff]
        %v8363 = vld [vmem:[%s278 + $0xf0] sm:$0xff]
        %v8364 = vld [vmem:[%s278 + $0xf8] sm:$0xff]
        %v8365 = vld [vmem:[%s278 + $0x100] sm:$0xff]
        %v8366 = vld [vmem:[%s278 + $0x108] sm:$0xff]
        %v8367 = vld [vmem:[%s278 + $0x110] sm:$0xff]
        %v8368 = vld [vmem:[%s278 + $0x118] sm:$0xff]
        %v8369 = vld [vmem:[%s278 + $0x120] sm:$0xff]
        %v8370 = vld [vmem:[%s278 + $0x128] sm:$0xff]
        %v8371 = vld [vmem:[%s278 + $0x130] sm:$0xff]
        %v8372 = vld [vmem:[%s278 + $0x138] sm:$0xff]
        %v8373 = vld [vmem:[%s278 + $0x140] sm:$0xff]
        %v8374 = vld [vmem:[%s278 + $0x148] sm:$0xff]
        %v8375 = vld [vmem:[%s278 + $0x150] sm:$0xff]
        %v8376 = vld [vmem:[%s278 + $0x158] sm:$0xff]
        %v8377 = vld [vmem:[%s278 + $0x160] sm:$0xff]
        %v8378 = vld [vmem:[%s278 + $0x168] sm:$0xff]
        %v8379 = vld [vmem:[%s278 + $0x170] sm:$0xff]
        %v8380 = vld [vmem:[%s278 + $0x178] sm:$0xff]
        %v8381 = vld [vmem:[%s278 + $0x180] sm:$0xff]
        %v8382 = vld [vmem:[%s278 + $0x188] sm:$0xff]
        %v8383 = vld [vmem:[%s278 + $0x190] sm:$0xff]
        %v8384 = vld [vmem:[%s278 + $0x198] sm:$0xff]
        %v8385 = vld [vmem:[%s278 + $0x1a0] sm:$0xff]
        %v8386 = vld [vmem:[%s278 + $0x1a8] sm:$0xff]
        %v8387 = vld [vmem:[%s278 + $0x1b0] sm:$0xff]
        %v8388 = vld [vmem:[%s278 + $0x1b8] sm:$0xff]
        %v8389 = vld [vmem:[%s278 + $0x1c0] sm:$0xff]
        %v8390 = vld [vmem:[%s278 + $0x1c8] sm:$0xff]
        %v8391 = vld [vmem:[%s278 + $0x1d0] sm:$0xff]
        %v8392 = vld [vmem:[%s278 + $0x1d8] sm:$0xff]
        %v8393 = vld [vmem:[%s278 + $0x1e0] sm:$0xff]
        %v8394 = vld [vmem:[%s278 + $0x1e8] sm:$0xff]
        %v8395 = vld [vmem:[%s278 + $0x1f0] sm:$0xff]
        %v8396 = vld [vmem:[%s278 + $0x1f8] sm:$0xff]
        %v8397 = vld [vmem:[%s278 + $0x200] sm:$0xff]
        %v8398 = vld [vmem:[%s278 + $0x208] sm:$0xff]
        %v8399 = vld [vmem:[%s278 + $0x210] sm:$0xff]
        %v8400 = vld [vmem:[%s278 + $0x218] sm:$0xff]
        %v8401 = vld [vmem:[%s278 + $0x220] sm:$0xff]
        %v8402 = vld [vmem:[%s278 + $0x228] sm:$0xff]
        %v8403 = vld [vmem:[%s278 + $0x230] sm:$0xff]
        %v8404 = vld [vmem:[%s278 + $0x238] sm:$0xff]
        %v8405 = vld [vmem:[%s278 + $0x240] sm:$0xff]
        %v8406 = vld [vmem:[%s278 + $0x248] sm:$0xff]
        %v8407 = vld [vmem:[%s278 + $0x250] sm:$0xff]
        %v8408 = vld [vmem:[%s278 + $0x258] sm:$0xff]
        %v8409 = vld [vmem:[%s278 + $0x260] sm:$0xff]
        %v8410 = vld [vmem:[%s278 + $0x268] sm:$0xff]
        %v8411 = vld [vmem:[%s278 + $0x270] sm:$0xff]
        %v8412 = vld [vmem:[%s278 + $0x278] sm:$0xff]
        %v8413 = vld [vmem:[%s278 + $0x280] sm:$0xff]
        %v8414 = vld [vmem:[%s278 + $0x288] sm:$0xff]
        %v8415 = vld [vmem:[%s278 + $0x290] sm:$0xff]
        %v8416 = vld [vmem:[%s278 + $0x298] sm:$0xff]
        %v8417 = vld [vmem:[%s278 + $0x2a0] sm:$0xff]
        %v8418 = vld [vmem:[%s278 + $0x2a8] sm:$0xff]
        %v8419 = vld [vmem:[%s278 + $0x2b0] sm:$0xff]
        %v8420 = vld [vmem:[%s278 + $0x2b8] sm:$0xff]
        %v8421 = vld [vmem:[%s278 + $0x2c0] sm:$0xff]
        %v8422 = vld [vmem:[%s278 + $0x2c8] sm:$0xff]
        %v8423 = vld [vmem:[%s278 + $0x2d0] sm:$0xff]
        %v8424 = vld [vmem:[%s278 + $0x2d8] sm:$0xff]
        %v8425 = vld [vmem:[%s278 + $0x2e0] sm:$0xff]
        %v8426 = vld [vmem:[%s278 + $0x2e8] sm:$0xff]
        %v8427 = vld [vmem:[%s278 + $0x2f0] sm:$0xff]
        %v8428 = vld [vmem:[%s278 + $0x2f8] sm:$0xff]
        %v8429 = vld [vmem:[%s278 + $0x300] sm:$0xff]
        %v8430 = vld [vmem:[%s278 + $0x308] sm:$0xff]
        %v8431 = vld [vmem:[%s278 + $0x310] sm:$0xff]
        %v8432 = vld [vmem:[%s278 + $0x318] sm:$0xff]
        %v8433 = vld [vmem:[%s278 + $0x320] sm:$0xff]
        %v8434 = vld [vmem:[%s278 + $0x328] sm:$0xff]
        %v8435 = vld [vmem:[%s278 + $0x330] sm:$0xff]
        %v8436 = vld [vmem:[%s278 + $0x338] sm:$0xff]
        %v8437 = vld [vmem:[%s278 + $0x340] sm:$0xff]
        %v8438 = vld [vmem:[%s278 + $0x348] sm:$0xff]
        %v8439 = vld [vmem:[%s278 + $0x350] sm:$0xff]
        %v8440 = vld [vmem:[%s278 + $0x358] sm:$0xff]
        %v8441 = vld [vmem:[%s278 + $0x360] sm:$0xff]
        %v8442 = vld [vmem:[%s278 + $0x368] sm:$0xff]
        %v8443 = vld [vmem:[%s278 + $0x370] sm:$0xff]
        %v8444 = vld [vmem:[%s278 + $0x378] sm:$0xff]
        %v8445 = vld [vmem:[%s278 + $0x380] sm:$0xff]
        %v8446 = vld [vmem:[%s278 + $0x388] sm:$0xff]
        %v8447 = vld [vmem:[%s278 + $0x390] sm:$0xff]
        %v8448 = vld [vmem:[%s278 + $0x398] sm:$0xff]
        %v8449 = vld [vmem:[%s278 + $0x3a0] sm:$0xff]
        %v8450 = vld [vmem:[%s278 + $0x3a8] sm:$0xff]
        %v8451 = vld [vmem:[%s278 + $0x3b0] sm:$0xff]
        %v8452 = vld [vmem:[%s278 + $0x3b8] sm:$0xff]
        %v8453 = vld [vmem:[%s278 + $0x3c0] sm:$0xff]
        %v8454 = vld [vmem:[%s278 + $0x3c8] sm:$0xff]
        %v8455 = vld [vmem:[%s278 + $0x3d0] sm:$0xff]
        %v8456 = vld [vmem:[%s278 + $0x3d8] sm:$0xff]
        %v8457 = vld [vmem:[%s278 + $0x3e0] sm:$0xff]
        %v8458 = vld [vmem:[%s278 + $0x3e8] sm:$0xff]
        %v8459 = vld [vmem:[%s278 + $0x3f0] sm:$0xff]
        %v8460 = vld [vmem:[%s278 + $0x3f8] sm:$0xff]
        %v8461 = vld [vmem:[%s278 + $0x400] sm:$0xff]
        %v8462 = vld [vmem:[%s278 + $0x408] sm:$0xff]
        %v8463 = vld [vmem:[%s278 + $0x410] sm:$0xff]
        %v8464 = vld [vmem:[%s278 + $0x418] sm:$0xff]
        %v8465 = vld [vmem:[%s278 + $0x420] sm:$0xff]
        %v8466 = vld [vmem:[%s278 + $0x428] sm:$0xff]
        %v8467 = vld [vmem:[%s278 + $0x430] sm:$0xff]
        %v8468 = vld [vmem:[%s278 + $0x438] sm:$0xff]
        %v8469 = vld [vmem:[%s278 + $0x440] sm:$0xff]
        %v8470 = vld [vmem:[%s278 + $0x448] sm:$0xff]
        %v8471 = vld [vmem:[%s278 + $0x450] sm:$0xff]
        %v8472 = vld [vmem:[%s278 + $0x458] sm:$0xff]
        %v8473 = vld [vmem:[%s278 + $0x460] sm:$0xff]
        %v8474 = vld [vmem:[%s278 + $0x468] sm:$0xff]
        %v8475 = vld [vmem:[%s278 + $0x470] sm:$0xff]
        %v8476 = vld [vmem:[%s278 + $0x478] sm:$0xff]
        %v8477 = vld [vmem:[%s278 + $0x480] sm:$0xff]
        %v8478 = vld [vmem:[%s278 + $0x488] sm:$0xff]
        %v8479 = vld [vmem:[%s278 + $0x490] sm:$0xff]
        %v8480 = vld [vmem:[%s278 + $0x498] sm:$0xff]
        %v8481 = vld [vmem:[%s278 + $0x4a0] sm:$0xff]
        %v8482 = vld [vmem:[%s278 + $0x4a8] sm:$0xff]
        %v8483 = vld [vmem:[%s278 + $0x4b0] sm:$0xff]
        %v8484 = vld [vmem:[%s278 + $0x4b8] sm:$0xff]
        %v8485 = vld [vmem:[%s278 + $0x4c0] sm:$0xff]
        %v8486 = vld [vmem:[%s278 + $0x4c8] sm:$0xff]
        %v8487 = vld [vmem:[%s278 + $0x4d0] sm:$0xff]
        %v8488 = vld [vmem:[%s278 + $0x4d8] sm:$0xff]
        %v8489 = vld [vmem:[%s278 + $0x4e0] sm:$0xff]
        %v8490 = vld [vmem:[%s278 + $0x4e8] sm:$0xff]
        %v8491 = vld [vmem:[%s278 + $0x4f0] sm:$0xff]
        %v8492 = vld [vmem:[%s278 + $0x4f8] sm:$0xff]
        %v8493 = vld [vmem:[%s278 + $0x500] sm:$0xff]
        %v8494 = vld [vmem:[%s278 + $0x508] sm:$0xff]
        %v8495 = vld [vmem:[%s278 + $0x510] sm:$0xff]
        %v8496 = vld [vmem:[%s278 + $0x518] sm:$0xff]
        %v8497 = vld [vmem:[%s278 + $0x520] sm:$0xff]
        %v8498 = vld [vmem:[%s278 + $0x528] sm:$0xff]
        %v8499 = vld [vmem:[%s278 + $0x530] sm:$0xff]
        %v8500 = vld [vmem:[%s278 + $0x538] sm:$0xff]
        %v8501 = vld [vmem:[%s278 + $0x540] sm:$0xff]
        %v8502 = vld [vmem:[%s278 + $0x548] sm:$0xff]
        %v8503 = vld [vmem:[%s278 + $0x550] sm:$0xff]
        %v8504 = vld [vmem:[%s278 + $0x558] sm:$0xff]
        %v8505 = vld [vmem:[%s278 + $0x560] sm:$0xff]
        %v8506 = vld [vmem:[%s278 + $0x568] sm:$0xff]
        %v8507 = vld [vmem:[%s278 + $0x570] sm:$0xff]
        %v8508 = vld [vmem:[%s278 + $0x578] sm:$0xff]
        %v8509 = vld [vmem:[%s278 + $0x580] sm:$0xff]
        %v8510 = vld [vmem:[%s278 + $0x588] sm:$0xff]
        %v8511 = vld [vmem:[%s278 + $0x590] sm:$0xff]
        %v8512 = vld [vmem:[%s278 + $0x598] sm:$0xff]
        %v8513 = vmul.f32 %v8153, %v8333
        %v8514 = vmul.f32 %v8154, %v8334
        %v8515 = vmul.f32 %v8155, %v8335
        %v8516 = vmul.f32 %v8156, %v8336
        %v8517 = vmul.f32 %v8157, %v8337
        %v8518 = vmul.f32 %v8158, %v8338
        %v8519 = vmul.f32 %v8159, %v8339
        %v8520 = vmul.f32 %v8160, %v8340
        %v8521 = vmul.f32 %v8161, %v8341
        %v8522 = vmul.f32 %v8162, %v8342
        %v8523 = vmul.f32 %v8163, %v8343
        %v8524 = vmul.f32 %v8164, %v8344
        %v8525 = vmul.f32 %v8165, %v8345
        %v8526 = vmul.f32 %v8166, %v8346
        %v8527 = vmul.f32 %v8167, %v8347
        %v8528 = vmul.f32 %v8168, %v8348
        %v8529 = vmul.f32 %v8169, %v8349
        %v8530 = vmul.f32 %v8170, %v8350
        %v8531 = vmul.f32 %v8171, %v8351
        %v8532 = vmul.f32 %v8172, %v8352
        %v8533 = vmul.f32 %v8173, %v8353
        %v8534 = vmul.f32 %v8174, %v8354
        %v8535 = vmul.f32 %v8175, %v8355
        %v8536 = vmul.f32 %v8176, %v8356
        %v8537 = vmul.f32 %v8177, %v8357
        %v8538 = vmul.f32 %v8178, %v8358
        %v8539 = vmul.f32 %v8179, %v8359
        %v8540 = vmul.f32 %v8180, %v8360
        %v8541 = vmul.f32 %v8181, %v8361
        %v8542 = vmul.f32 %v8182, %v8362
        %v8543 = vmul.f32 %v8183, %v8363
        %v8544 = vmul.f32 %v8184, %v8364
        %v8545 = vmul.f32 %v8185, %v8365
        %v8546 = vmul.f32 %v8186, %v8366
        %v8547 = vmul.f32 %v8187, %v8367
        %v8548 = vmul.f32 %v8188, %v8368
        %v8549 = vmul.f32 %v8189, %v8369
        %v8550 = vmul.f32 %v8190, %v8370
        %v8551 = vmul.f32 %v8191, %v8371
        %v8552 = vmul.f32 %v8192, %v8372
        %v8553 = vmul.f32 %v8193, %v8373
        %v8554 = vmul.f32 %v8194, %v8374
        %v8555 = vmul.f32 %v8195, %v8375
        %v8556 = vmul.f32 %v8196, %v8376
        %v8557 = vmul.f32 %v8197, %v8377
        %v8558 = vmul.f32 %v8198, %v8378
        %v8559 = vmul.f32 %v8199, %v8379
        %v8560 = vmul.f32 %v8200, %v8380
        %v8561 = vmul.f32 %v8201, %v8381
        %v8562 = vmul.f32 %v8202, %v8382
        %v8563 = vmul.f32 %v8203, %v8383
        %v8564 = vmul.f32 %v8204, %v8384
        %v8565 = vmul.f32 %v8205, %v8385
        %v8566 = vmul.f32 %v8206, %v8386
        %v8567 = vmul.f32 %v8207, %v8387
        %v8568 = vmul.f32 %v8208, %v8388
        %v8569 = vmul.f32 %v8209, %v8389
        %v8570 = vmul.f32 %v8210, %v8390
        %v8571 = vmul.f32 %v8211, %v8391
        %v8572 = vmul.f32 %v8212, %v8392
        %v8573 = vmul.f32 %v8213, %v8393
        %v8574 = vmul.f32 %v8214, %v8394
        %v8575 = vmul.f32 %v8215, %v8395
        %v8576 = vmul.f32 %v8216, %v8396
        %v8577 = vmul.f32 %v8217, %v8397
        %v8578 = vmul.f32 %v8218, %v8398
        %v8579 = vmul.f32 %v8219, %v8399
        %v8580 = vmul.f32 %v8220, %v8400
        %v8581 = vmul.f32 %v8221, %v8401
        %v8582 = vmul.f32 %v8222, %v8402
        %v8583 = vmul.f32 %v8223, %v8403
        %v8584 = vmul.f32 %v8224, %v8404
        %v8585 = vmul.f32 %v8225, %v8405
        %v8586 = vmul.f32 %v8226, %v8406
        %v8587 = vmul.f32 %v8227, %v8407
        %v8588 = vmul.f32 %v8228, %v8408
        %v8589 = vmul.f32 %v8229, %v8409
        %v8590 = vmul.f32 %v8230, %v8410
        %v8591 = vmul.f32 %v8231, %v8411
        %v8592 = vmul.f32 %v8232, %v8412
        %v8593 = vmul.f32 %v8233, %v8413
        %v8594 = vmul.f32 %v8234, %v8414
        %v8595 = vmul.f32 %v8235, %v8415
        %v8596 = vmul.f32 %v8236, %v8416
        %v8597 = vmul.f32 %v8237, %v8417
        %v8598 = vmul.f32 %v8238, %v8418
        %v8599 = vmul.f32 %v8239, %v8419
        %v8600 = vmul.f32 %v8240, %v8420
        %v8601 = vmul.f32 %v8241, %v8421
        %v8602 = vmul.f32 %v8242, %v8422
        %v8603 = vmul.f32 %v8243, %v8423
        %v8604 = vmul.f32 %v8244, %v8424
        %v8605 = vmul.f32 %v8245, %v8425
        %v8606 = vmul.f32 %v8246, %v8426
        %v8607 = vmul.f32 %v8247, %v8427
        %v8608 = vmul.f32 %v8248, %v8428
        %v8609 = vmul.f32 %v8249, %v8429
        %v8610 = vmul.f32 %v8250, %v8430
        %v8611 = vmul.f32 %v8251, %v8431
        %v8612 = vmul.f32 %v8252, %v8432
        %v8613 = vmul.f32 %v8253, %v8433
        %v8614 = vmul.f32 %v8254, %v8434
        %v8615 = vmul.f32 %v8255, %v8435
        %v8616 = vmul.f32 %v8256, %v8436
        %v8617 = vmul.f32 %v8257, %v8437
        %v8618 = vmul.f32 %v8258, %v8438
        %v8619 = vmul.f32 %v8259, %v8439
        %v8620 = vmul.f32 %v8260, %v8440
        %v8621 = vmul.f32 %v8261, %v8441
        %v8622 = vmul.f32 %v8262, %v8442
        %v8623 = vmul.f32 %v8263, %v8443
        %v8624 = vmul.f32 %v8264, %v8444
        %v8625 = vmul.f32 %v8265, %v8445
        %v8626 = vmul.f32 %v8266, %v8446
        %v8627 = vmul.f32 %v8267, %v8447
        %v8628 = vmul.f32 %v8268, %v8448
        %v8629 = vmul.f32 %v8269, %v8449
        %v8630 = vmul.f32 %v8270, %v8450
        %v8631 = vmul.f32 %v8271, %v8451
        %v8632 = vmul.f32 %v8272, %v8452
        %v8633 = vmul.f32 %v8273, %v8453
        %v8634 = vmul.f32 %v8274, %v8454
        %v8635 = vmul.f32 %v8275, %v8455
        %v8636 = vmul.f32 %v8276, %v8456
        %v8637 = vmul.f32 %v8277, %v8457
        %v8638 = vmul.f32 %v8278, %v8458
        %v8639 = vmul.f32 %v8279, %v8459
        %v8640 = vmul.f32 %v8280, %v8460
        %v8641 = vmul.f32 %v8281, %v8461
        %v8642 = vmul.f32 %v8282, %v8462
        %v8643 = vmul.f32 %v8283, %v8463
        %v8644 = vmul.f32 %v8284, %v8464
        %v8645 = vmul.f32 %v8285, %v8465
        %v8646 = vmul.f32 %v8286, %v8466
        %v8647 = vmul.f32 %v8287, %v8467
        %v8648 = vmul.f32 %v8288, %v8468
        %v8649 = vmul.f32 %v8289, %v8469
        %v8650 = vmul.f32 %v8290, %v8470
        %v8651 = vmul.f32 %v8291, %v8471
        %v8652 = vmul.f32 %v8292, %v8472
        %v8653 = vmul.f32 %v8293, %v8473
        %v8654 = vmul.f32 %v8294, %v8474
        %v8655 = vmul.f32 %v8295, %v8475
        %v8656 = vmul.f32 %v8296, %v8476
        %v8657 = vmul.f32 %v8297, %v8477
        %v8658 = vmul.f32 %v8298, %v8478
        %v8659 = vmul.f32 %v8299, %v8479
        %v8660 = vmul.f32 %v8300, %v8480
        %v8661 = vmul.f32 %v8301, %v8481
        %v8662 = vmul.f32 %v8302, %v8482
        %v8663 = vmul.f32 %v8303, %v8483
        %v8664 = vmul.f32 %v8304, %v8484
        %v8665 = vmul.f32 %v8305, %v8485
        %v8666 = vmul.f32 %v8306, %v8486
        %v8667 = vmul.f32 %v8307, %v8487
        %v8668 = vmul.f32 %v8308, %v8488
        %v8669 = vmul.f32 %v8309, %v8489
        %v8670 = vmul.f32 %v8310, %v8490
        %v8671 = vmul.f32 %v8311, %v8491
        %v8672 = vmul.f32 %v8312, %v8492
        %v8673 = vmul.f32 %v8313, %v8493
        %v8674 = vmul.f32 %v8314, %v8494
        %v8675 = vmul.f32 %v8315, %v8495
        %v8676 = vmul.f32 %v8316, %v8496
        %v8677 = vmul.f32 %v8317, %v8497
        %v8678 = vmul.f32 %v8318, %v8498
        %v8679 = vmul.f32 %v8319, %v8499
        %v8680 = vmul.f32 %v8320, %v8500
        %v8681 = vmul.f32 %v8321, %v8501
        %v8682 = vmul.f32 %v8322, %v8502
        %v8683 = vmul.f32 %v8323, %v8503
        %v8684 = vmul.f32 %v8324, %v8504
        %v8685 = vmul.f32 %v8325, %v8505
        %v8686 = vmul.f32 %v8326, %v8506
        %v8687 = vmul.f32 %v8327, %v8507
        %v8688 = vmul.f32 %v8328, %v8508
        %v8689 = vmul.f32 %v8329, %v8509
        %v8690 = vmul.f32 %v8330, %v8510
        %v8691 = vmul.f32 %v8331, %v8511
        %v8692 = vmul.f32 %v8332, %v8512
        %vm8693 = vcmask 130048
        %8694 = vst.msk [vmem:[%s307] sm:$0xff] %vm8693, %v8513
        %8695 = vst.msk [vmem:[%s307 + $0x8] sm:$0xff] %vm8693, %v8514
        %8696 = vst.msk [vmem:[%s307 + $0x10] sm:$0xff] %vm8693, %v8515
        %8697 = vst.msk [vmem:[%s307 + $0x18] sm:$0xff] %vm8693, %v8516
        %8698 = vst.msk [vmem:[%s307 + $0x20] sm:$0xff] %vm8693, %v8517
        %8699 = vst.msk [vmem:[%s307 + $0x28] sm:$0xff] %vm8693, %v8518
        %8700 = vst.msk [vmem:[%s307 + $0x30] sm:$0xff] %vm8693, %v8519
        %8701 = vst.msk [vmem:[%s307 + $0x38] sm:$0xff] %vm8693, %v8520
        %8702 = vst.msk [vmem:[%s307 + $0x40] sm:$0xff] %vm8693, %v8521
        %8703 = vst.msk [vmem:[%s307 + $0x48] sm:$0xff] %vm8693, %v8522
        %8704 = vst.msk [vmem:[%s307 + $0x50] sm:$0xff] %vm8693, %v8523
        %8705 = vst.msk [vmem:[%s307 + $0x58] sm:$0xff] %vm8693, %v8524
        %8706 = vst.msk [vmem:[%s307 + $0x60] sm:$0xff] %vm8693, %v8525
        %8707 = vst.msk [vmem:[%s307 + $0x68] sm:$0xff] %vm8693, %v8526
        %8708 = vst.msk [vmem:[%s307 + $0x70] sm:$0xff] %vm8693, %v8527
        %8709 = vst.msk [vmem:[%s307 + $0x78] sm:$0xff] %vm8693, %v8528
        %8710 = vst.msk [vmem:[%s307 + $0x80] sm:$0xff] %vm8693, %v8529
        %8711 = vst.msk [vmem:[%s307 + $0x88] sm:$0xff] %vm8693, %v8530
        %8712 = vst.msk [vmem:[%s307 + $0x90] sm:$0xff] %vm8693, %v8531
        %8713 = vst.msk [vmem:[%s307 + $0x98] sm:$0xff] %vm8693, %v8532
        %8714 = vst.msk [vmem:[%s307 + $0xa0] sm:$0xff] %vm8693, %v8533
        %8715 = vst.msk [vmem:[%s307 + $0xa8] sm:$0xff] %vm8693, %v8534
        %8716 = vst.msk [vmem:[%s307 + $0xb0] sm:$0xff] %vm8693, %v8535
        %8717 = vst.msk [vmem:[%s307 + $0xb8] sm:$0xff] %vm8693, %v8536
        %8718 = vst.msk [vmem:[%s307 + $0xc0] sm:$0xff] %vm8693, %v8537
        %8719 = vst.msk [vmem:[%s307 + $0xc8] sm:$0xff] %vm8693, %v8538
        %8720 = vst.msk [vmem:[%s307 + $0xd0] sm:$0xff] %vm8693, %v8539
        %8721 = vst.msk [vmem:[%s307 + $0xd8] sm:$0xff] %vm8693, %v8540
        %8722 = vst.msk [vmem:[%s307 + $0xe0] sm:$0xff] %vm8693, %v8541
        %8723 = vst.msk [vmem:[%s307 + $0xe8] sm:$0xff] %vm8693, %v8542
        %8724 = vst.msk [vmem:[%s307 + $0xf0] sm:$0xff] %vm8693, %v8543
        %8725 = vst.msk [vmem:[%s307 + $0xf8] sm:$0xff] %vm8693, %v8544
        %8726 = vst.msk [vmem:[%s307 + $0x100] sm:$0xff] %vm8693, %v8545
        %8727 = vst.msk [vmem:[%s307 + $0x108] sm:$0xff] %vm8693, %v8546
        %8728 = vst.msk [vmem:[%s307 + $0x110] sm:$0xff] %vm8693, %v8547
        %8729 = vst.msk [vmem:[%s307 + $0x118] sm:$0xff] %vm8693, %v8548
        %8730 = vst.msk [vmem:[%s307 + $0x120] sm:$0xff] %vm8693, %v8549
        %8731 = vst.msk [vmem:[%s307 + $0x128] sm:$0xff] %vm8693, %v8550
        %8732 = vst.msk [vmem:[%s307 + $0x130] sm:$0xff] %vm8693, %v8551
        %8733 = vst.msk [vmem:[%s307 + $0x138] sm:$0xff] %vm8693, %v8552
        %8734 = vst.msk [vmem:[%s307 + $0x140] sm:$0xff] %vm8693, %v8553
        %8735 = vst.msk [vmem:[%s307 + $0x148] sm:$0xff] %vm8693, %v8554
        %8736 = vst.msk [vmem:[%s307 + $0x150] sm:$0xff] %vm8693, %v8555
        %8737 = vst.msk [vmem:[%s307 + $0x158] sm:$0xff] %vm8693, %v8556
        %8738 = vst.msk [vmem:[%s307 + $0x160] sm:$0xff] %vm8693, %v8557
        %8739 = vst.msk [vmem:[%s307 + $0x168] sm:$0xff] %vm8693, %v8558
        %8740 = vst.msk [vmem:[%s307 + $0x170] sm:$0xff] %vm8693, %v8559
        %8741 = vst.msk [vmem:[%s307 + $0x178] sm:$0xff] %vm8693, %v8560
        %8742 = vst.msk [vmem:[%s307 + $0x180] sm:$0xff] %vm8693, %v8561
        %8743 = vst.msk [vmem:[%s307 + $0x188] sm:$0xff] %vm8693, %v8562
        %8744 = vst.msk [vmem:[%s307 + $0x190] sm:$0xff] %vm8693, %v8563
        %8745 = vst.msk [vmem:[%s307 + $0x198] sm:$0xff] %vm8693, %v8564
        %8746 = vst.msk [vmem:[%s307 + $0x1a0] sm:$0xff] %vm8693, %v8565
        %8747 = vst.msk [vmem:[%s307 + $0x1a8] sm:$0xff] %vm8693, %v8566
        %8748 = vst.msk [vmem:[%s307 + $0x1b0] sm:$0xff] %vm8693, %v8567
        %8749 = vst.msk [vmem:[%s307 + $0x1b8] sm:$0xff] %vm8693, %v8568
        %8750 = vst.msk [vmem:[%s307 + $0x1c0] sm:$0xff] %vm8693, %v8569
        %8751 = vst.msk [vmem:[%s307 + $0x1c8] sm:$0xff] %vm8693, %v8570
        %8752 = vst.msk [vmem:[%s307 + $0x1d0] sm:$0xff] %vm8693, %v8571
        %8753 = vst.msk [vmem:[%s307 + $0x1d8] sm:$0xff] %vm8693, %v8572
        %8754 = vst.msk [vmem:[%s307 + $0x1e0] sm:$0xff] %vm8693, %v8573
        %8755 = vst.msk [vmem:[%s307 + $0x1e8] sm:$0xff] %vm8693, %v8574
        %8756 = vst.msk [vmem:[%s307 + $0x1f0] sm:$0xff] %vm8693, %v8575
        %8757 = vst.msk [vmem:[%s307 + $0x1f8] sm:$0xff] %vm8693, %v8576
        %8758 = vst.msk [vmem:[%s307 + $0x200] sm:$0xff] %vm8693, %v8577
        %8759 = vst.msk [vmem:[%s307 + $0x208] sm:$0xff] %vm8693, %v8578
        %8760 = vst.msk [vmem:[%s307 + $0x210] sm:$0xff] %vm8693, %v8579
        %8761 = vst.msk [vmem:[%s307 + $0x218] sm:$0xff] %vm8693, %v8580
        %8762 = vst.msk [vmem:[%s307 + $0x220] sm:$0xff] %vm8693, %v8581
        %8763 = vst.msk [vmem:[%s307 + $0x228] sm:$0xff] %vm8693, %v8582
        %8764 = vst.msk [vmem:[%s307 + $0x230] sm:$0xff] %vm8693, %v8583
        %8765 = vst.msk [vmem:[%s307 + $0x238] sm:$0xff] %vm8693, %v8584
        %8766 = vst.msk [vmem:[%s307 + $0x240] sm:$0xff] %vm8693, %v8585
        %8767 = vst.msk [vmem:[%s307 + $0x248] sm:$0xff] %vm8693, %v8586
        %8768 = vst.msk [vmem:[%s307 + $0x250] sm:$0xff] %vm8693, %v8587
        %8769 = vst.msk [vmem:[%s307 + $0x258] sm:$0xff] %vm8693, %v8588
        %8770 = vst.msk [vmem:[%s307 + $0x260] sm:$0xff] %vm8693, %v8589
        %8771 = vst.msk [vmem:[%s307 + $0x268] sm:$0xff] %vm8693, %v8590
        %8772 = vst.msk [vmem:[%s307 + $0x270] sm:$0xff] %vm8693, %v8591
        %8773 = vst.msk [vmem:[%s307 + $0x278] sm:$0xff] %vm8693, %v8592
        %8774 = vst.msk [vmem:[%s307 + $0x280] sm:$0xff] %vm8693, %v8593
        %8775 = vst.msk [vmem:[%s307 + $0x288] sm:$0xff] %vm8693, %v8594
        %8776 = vst.msk [vmem:[%s307 + $0x290] sm:$0xff] %vm8693, %v8595
        %8777 = vst.msk [vmem:[%s307 + $0x298] sm:$0xff] %vm8693, %v8596
        %8778 = vst.msk [vmem:[%s307 + $0x2a0] sm:$0xff] %vm8693, %v8597
        %8779 = vst.msk [vmem:[%s307 + $0x2a8] sm:$0xff] %vm8693, %v8598
        %8780 = vst.msk [vmem:[%s307 + $0x2b0] sm:$0xff] %vm8693, %v8599
        %8781 = vst.msk [vmem:[%s307 + $0x2b8] sm:$0xff] %vm8693, %v8600
        %8782 = vst.msk [vmem:[%s307 + $0x2c0] sm:$0xff] %vm8693, %v8601
        %8783 = vst.msk [vmem:[%s307 + $0x2c8] sm:$0xff] %vm8693, %v8602
        %8784 = vst.msk [vmem:[%s307 + $0x2d0] sm:$0xff] %vm8693, %v8603
        %8785 = vst.msk [vmem:[%s307 + $0x2d8] sm:$0xff] %vm8693, %v8604
        %8786 = vst.msk [vmem:[%s307 + $0x2e0] sm:$0xff] %vm8693, %v8605
        %8787 = vst.msk [vmem:[%s307 + $0x2e8] sm:$0xff] %vm8693, %v8606
        %8788 = vst.msk [vmem:[%s307 + $0x2f0] sm:$0xff] %vm8693, %v8607
        %8789 = vst.msk [vmem:[%s307 + $0x2f8] sm:$0xff] %vm8693, %v8608
        %8790 = vst.msk [vmem:[%s307 + $0x300] sm:$0xff] %vm8693, %v8609
        %8791 = vst.msk [vmem:[%s307 + $0x308] sm:$0xff] %vm8693, %v8610
        %8792 = vst.msk [vmem:[%s307 + $0x310] sm:$0xff] %vm8693, %v8611
        %8793 = vst.msk [vmem:[%s307 + $0x318] sm:$0xff] %vm8693, %v8612
        %8794 = vst.msk [vmem:[%s307 + $0x320] sm:$0xff] %vm8693, %v8613
        %8795 = vst.msk [vmem:[%s307 + $0x328] sm:$0xff] %vm8693, %v8614
        %8796 = vst.msk [vmem:[%s307 + $0x330] sm:$0xff] %vm8693, %v8615
        %8797 = vst.msk [vmem:[%s307 + $0x338] sm:$0xff] %vm8693, %v8616
        %8798 = vst.msk [vmem:[%s307 + $0x340] sm:$0xff] %vm8693, %v8617
        %8799 = vst.msk [vmem:[%s307 + $0x348] sm:$0xff] %vm8693, %v8618
        %8800 = vst.msk [vmem:[%s307 + $0x350] sm:$0xff] %vm8693, %v8619
        %8801 = vst.msk [vmem:[%s307 + $0x358] sm:$0xff] %vm8693, %v8620
        %8802 = vst.msk [vmem:[%s307 + $0x360] sm:$0xff] %vm8693, %v8621
        %8803 = vst.msk [vmem:[%s307 + $0x368] sm:$0xff] %vm8693, %v8622
        %8804 = vst.msk [vmem:[%s307 + $0x370] sm:$0xff] %vm8693, %v8623
        %8805 = vst.msk [vmem:[%s307 + $0x378] sm:$0xff] %vm8693, %v8624
        %8806 = vst.msk [vmem:[%s307 + $0x380] sm:$0xff] %vm8693, %v8625
        %8807 = vst.msk [vmem:[%s307 + $0x388] sm:$0xff] %vm8693, %v8626
        %8808 = vst.msk [vmem:[%s307 + $0x390] sm:$0xff] %vm8693, %v8627
        %8809 = vst.msk [vmem:[%s307 + $0x398] sm:$0xff] %vm8693, %v8628
        %8810 = vst.msk [vmem:[%s307 + $0x3a0] sm:$0xff] %vm8693, %v8629
        %8811 = vst.msk [vmem:[%s307 + $0x3a8] sm:$0xff] %vm8693, %v8630
        %8812 = vst.msk [vmem:[%s307 + $0x3b0] sm:$0xff] %vm8693, %v8631
        %8813 = vst.msk [vmem:[%s307 + $0x3b8] sm:$0xff] %vm8693, %v8632
        %8814 = vst.msk [vmem:[%s307 + $0x3c0] sm:$0xff] %vm8693, %v8633
        %8815 = vst.msk [vmem:[%s307 + $0x3c8] sm:$0xff] %vm8693, %v8634
        %8816 = vst.msk [vmem:[%s307 + $0x3d0] sm:$0xff] %vm8693, %v8635
        %8817 = vst.msk [vmem:[%s307 + $0x3d8] sm:$0xff] %vm8693, %v8636
        %8818 = vst.msk [vmem:[%s307 + $0x3e0] sm:$0xff] %vm8693, %v8637
        %8819 = vst.msk [vmem:[%s307 + $0x3e8] sm:$0xff] %vm8693, %v8638
        %8820 = vst.msk [vmem:[%s307 + $0x3f0] sm:$0xff] %vm8693, %v8639
        %8821 = vst.msk [vmem:[%s307 + $0x3f8] sm:$0xff] %vm8693, %v8640
        %8822 = vst.msk [vmem:[%s307 + $0x400] sm:$0xff] %vm8693, %v8641
        %8823 = vst.msk [vmem:[%s307 + $0x408] sm:$0xff] %vm8693, %v8642
        %8824 = vst.msk [vmem:[%s307 + $0x410] sm:$0xff] %vm8693, %v8643
        %8825 = vst.msk [vmem:[%s307 + $0x418] sm:$0xff] %vm8693, %v8644
        %8826 = vst.msk [vmem:[%s307 + $0x420] sm:$0xff] %vm8693, %v8645
        %8827 = vst.msk [vmem:[%s307 + $0x428] sm:$0xff] %vm8693, %v8646
        %8828 = vst.msk [vmem:[%s307 + $0x430] sm:$0xff] %vm8693, %v8647
        %8829 = vst.msk [vmem:[%s307 + $0x438] sm:$0xff] %vm8693, %v8648
        %8830 = vst.msk [vmem:[%s307 + $0x440] sm:$0xff] %vm8693, %v8649
        %8831 = vst.msk [vmem:[%s307 + $0x448] sm:$0xff] %vm8693, %v8650
        %8832 = vst.msk [vmem:[%s307 + $0x450] sm:$0xff] %vm8693, %v8651
        %8833 = vst.msk [vmem:[%s307 + $0x458] sm:$0xff] %vm8693, %v8652
        %8834 = vst.msk [vmem:[%s307 + $0x460] sm:$0xff] %vm8693, %v8653
        %8835 = vst.msk [vmem:[%s307 + $0x468] sm:$0xff] %vm8693, %v8654
        %8836 = vst.msk [vmem:[%s307 + $0x470] sm:$0xff] %vm8693, %v8655
        %8837 = vst.msk [vmem:[%s307 + $0x478] sm:$0xff] %vm8693, %v8656
        %8838 = vst.msk [vmem:[%s307 + $0x480] sm:$0xff] %vm8693, %v8657
        %8839 = vst.msk [vmem:[%s307 + $0x488] sm:$0xff] %vm8693, %v8658
        %8840 = vst.msk [vmem:[%s307 + $0x490] sm:$0xff] %vm8693, %v8659
        %8841 = vst.msk [vmem:[%s307 + $0x498] sm:$0xff] %vm8693, %v8660
        %8842 = vst.msk [vmem:[%s307 + $0x4a0] sm:$0xff] %vm8693, %v8661
        %8843 = vst.msk [vmem:[%s307 + $0x4a8] sm:$0xff] %vm8693, %v8662
        %8844 = vst.msk [vmem:[%s307 + $0x4b0] sm:$0xff] %vm8693, %v8663
        %8845 = vst.msk [vmem:[%s307 + $0x4b8] sm:$0xff] %vm8693, %v8664
        %8846 = vst.msk [vmem:[%s307 + $0x4c0] sm:$0xff] %vm8693, %v8665
        %8847 = vst.msk [vmem:[%s307 + $0x4c8] sm:$0xff] %vm8693, %v8666
        %8848 = vst.msk [vmem:[%s307 + $0x4d0] sm:$0xff] %vm8693, %v8667
        %8849 = vst.msk [vmem:[%s307 + $0x4d8] sm:$0xff] %vm8693, %v8668
        %8850 = vst.msk [vmem:[%s307 + $0x4e0] sm:$0xff] %vm8693, %v8669
        %8851 = vst.msk [vmem:[%s307 + $0x4e8] sm:$0xff] %vm8693, %v8670
        %8852 = vst.msk [vmem:[%s307 + $0x4f0] sm:$0xff] %vm8693, %v8671
        %8853 = vst.msk [vmem:[%s307 + $0x4f8] sm:$0xff] %vm8693, %v8672
        %8854 = vst.msk [vmem:[%s307 + $0x500] sm:$0xff] %vm8693, %v8673
        %8855 = vst.msk [vmem:[%s307 + $0x508] sm:$0xff] %vm8693, %v8674
        %8856 = vst.msk [vmem:[%s307 + $0x510] sm:$0xff] %vm8693, %v8675
        %8857 = vst.msk [vmem:[%s307 + $0x518] sm:$0xff] %vm8693, %v8676
        %8858 = vst.msk [vmem:[%s307 + $0x520] sm:$0xff] %vm8693, %v8677
        %8859 = vst.msk [vmem:[%s307 + $0x528] sm:$0xff] %vm8693, %v8678
        %8860 = vst.msk [vmem:[%s307 + $0x530] sm:$0xff] %vm8693, %v8679
        %8861 = vst.msk [vmem:[%s307 + $0x538] sm:$0xff] %vm8693, %v8680
        %8862 = vst.msk [vmem:[%s307 + $0x540] sm:$0xff] %vm8693, %v8681
        %8863 = vst.msk [vmem:[%s307 + $0x548] sm:$0xff] %vm8693, %v8682
        %8864 = vst.msk [vmem:[%s307 + $0x550] sm:$0xff] %vm8693, %v8683
        %8865 = vst.msk [vmem:[%s307 + $0x558] sm:$0xff] %vm8693, %v8684
        %8866 = vst.msk [vmem:[%s307 + $0x560] sm:$0xff] %vm8693, %v8685
        %8867 = vst.msk [vmem:[%s307 + $0x568] sm:$0xff] %vm8693, %v8686
        %8868 = vst.msk [vmem:[%s307 + $0x570] sm:$0xff] %vm8693, %v8687
        %8869 = vst.msk [vmem:[%s307 + $0x578] sm:$0xff] %vm8693, %v8688
        %8870 = vst.msk [vmem:[%s307 + $0x580] sm:$0xff] %vm8693, %v8689
        %8871 = vst.msk [vmem:[%s307 + $0x588] sm:$0xff] %vm8693, %v8690
        %8872 = vst.msk [vmem:[%s307 + $0x590] sm:$0xff] %vm8693, %v8691
        %8873 = vst.msk [vmem:[%s307 + $0x598] sm:$0xff] %vm8693, %v8692
        %s8874 = sand.u32 %s127, 1
        %s8875 = scalar_lea.sflag [#allocation4], %s8874
        %s8876 = sand.u32 %s127, 1
        %s8877 = smul.addr %s8876, 1440
        %s8878 = scalar_lea.vmem [#allocation10], %s8877
        // Predicated region
        $region53: #{tpu_custom_call.1} parent=35 // pred_check
          %p8879 = pneg %p137
        $region54: #{tpu_custom_call.1} parent=35 // pred_check_branch
          %8881 = sbr.rel (%p8879) target = $region56
        $region55: #{tpu_custom_call.1} parent=35 // pred_region
          %s8882 = smul.u32 180, %s25
          %s8884 = ssub.s32 23040, 23040
          %8885 = vsyncadd %s8875, %s8884
          %s8886 = smul.addr %s8882, 128
          %s8887 = scalar_lea.hbm %s4, %s8886
          %s8888 = sshll.u32 %s8878, 4
          %s8889 = int_to_ptr.vmem [resolvable:$true] %s8888
          %8894 = dma.vmem_to_hbm [thread:$0]  %s8889, 23040, %s8887, %s8875, 128, 128, 8
        $region56: #{tpu_custom_call.1} parent=35 // pred_fallthru
          _
      $region36: #{tpu_custom_call.1} parent=5 // pred_fallthru
        _
      %p8895 = scmp.le.s32.totalorder 2, %s20
      // Predicated region
      $region57: #{tpu_custom_call.1} parent=5 // pred_check
        %p8896 = pneg %p8895
      $region58: #{tpu_custom_call.1} parent=5 // pred_check_branch
        %8898 = sbr.rel (%p8896) target = $region60
      $region59: #{tpu_custom_call.1} parent=5 // pred_region
        %s8899 = ssub.s32 %s20, 2
        // Predicated region
        $region61: #{tpu_custom_call.1} parent=59 // pred_check
          %p8900 = pneg %p143
        $region62: #{tpu_custom_call.1} parent=59 // pred_check_branch
          %8902 = sbr.rel (%p8900) target = $region64
        $region63: #{tpu_custom_call.1} parent=59 // pred_region
          %s8903 = sand.u32 %s128, 1
          %s8904 = scalar_lea.sflag [#allocation4], %s8903
          %s8905 = sand.u32 %s128, 1
          %s8906 = smul.addr %s8905, 1440
          %s8907 = scalar_lea.vmem [#allocation10], %s8906
          %8908 = dma.done %s8904, 23040
        $region64: #{tpu_custom_call.1} parent=59 // pred_fallthru
          _
      $region60: #{tpu_custom_call.1} parent=5 // pred_fallthru
        _
    $region6: #{tpu_custom_call.1} parent=1 // loop_footer
      %s24 = sadd.s32 1, %s20
    $region7: #{tpu_custom_call.1} parent=1 // loop_footer_branch
      %19 = sbr.rel target = $region3
    $region8: #{tpu_custom_call.1} parent=1 // loop_exit
      _
    %8909 = vsyncpa [#allocation3], 1
    %s8910 = scalar_lea.sflag [#allocation3], 1
    %8911 = vsyncpa %s8910, 1
    %8912 = vsyncpa [#allocation6], 1
    %8913 = vsyncpa [#allocation9], 1
    %s8914 = scalar_lea.sflag [#allocation9], 1
    %8915 = vsyncpa %s8914, 1
    %8916 = vsyncpa [#allocation4], 1
    %s8917 = scalar_lea.sflag [#allocation4], 1
    %8918 = vsyncpa %s8917, 1

</llo_original>
